<compile_context>
chip_gen: v6e
topology: v6e:2x2x1
jax: 0.10.0
libtpu: 0.0.40
codegen_flags: <defaults>
</compile_context>

<pallas_src>
import jax
import jax.numpy as jnp
from jax.experimental import pallas as pl
from jax.experimental.pallas import tpu as pltpu

BN_EPS = 1e-5


# ---------------------------------------------------------------------------
# Fused DoubleConv (+ optional MaxPool) kernel
# ---------------------------------------------------------------------------
def _make_double_conv_kernel(has_pool):
    def kernel(x_ref, w1_ref, p1_ref, w2_ref, p2_ref, *refs):
        if has_pool:
            out_ref, pool_ref, xpad_sc, ypad_sc = refs
        else:
            out_ref, xpad_sc, ypad_sc = refs
            pool_ref = None

        n, h, w, cin = x_ref.shape
        cout = out_ref.shape[-1]
        m = n * h * w
        inv_m = 1.0 / m

        def conv_bn_relu(pad_sc, src_nhwc, w_ref, p_ref, c_in):
            """3x3 'same' conv (single im2col matmul) + BN(batch stats) + ReLU."""
            # Zero-pad inside VMEM scratch (no padded copy in HBM).
            pad_sc[...] = jnp.zeros_like(pad_sc)
            pad_sc[:, 1:h + 1, 1:w + 1, :] = src_nhwc.astype(pad_sc.dtype)
            # Cast once to bf16: halves vreg traffic through the 9-tap concat
            # and feeds the MXU directly (f32 accumulation below).
            xpad = pad_sc[...].astype(jnp.bfloat16)
            # im2col: 9 shifted taps concatenated along channels -> one MXU
            # matmul with K = 9*Cin instead of nine K = Cin matmuls.
            taps = [xpad[:, dy:dy + h, dx:dx + w, :]
                    for dy in range(3) for dx in range(3)]
            patch = jnp.concatenate(taps, axis=-1).reshape(m, 9 * c_in)
            acc = jnp.dot(patch, w_ref[...], preferred_element_type=jnp.float32)
            acc = acc + p_ref[0:1, :]                      # conv bias
            # BatchNorm2d, training-mode batch stats (biased variance):
            # fused single pass over acc via sum + sum-of-squares.
            s = jnp.sum(acc, axis=0, keepdims=True)
            ss = jnp.sum(acc * acc, axis=0, keepdims=True)
            mean = s * inv_m
            var = jnp.maximum(ss * inv_m - mean * mean, 0.0)
            scale = p_ref[1:2, :] * jax.lax.rsqrt(var + BN_EPS)   # gamma * invstd
            shift = p_ref[2:3, :] - mean * scale                  # beta - mean*scale
            return jnp.maximum(acc * scale + shift, 0.0)          # ReLU, (m, Cout) f32

        y1 = conv_bn_relu(xpad_sc, x_ref[...], w1_ref, p1_ref, cin)
        y2 = conv_bn_relu(ypad_sc, y1.reshape(n, h, w, cout), w2_ref, p2_ref, cout)

        out_ref[...] = y2.reshape(n, h, w, cout).astype(out_ref.dtype)

        if has_pool:
            # Fused MaxPool2d(kernel=2, stride=2) from the VMEM-resident output;
            # removes the separate pallas_call and its HBM round trip.
            hh, wh = h // 2, w // 2
            p00 = out_ref[:, pl.ds(0, hh, 2), pl.ds(0, wh, 2), :]
            p01 = out_ref[:, pl.ds(0, hh, 2), pl.ds(1, wh, 2), :]
            p10 = out_ref[:, pl.ds(1, hh, 2), pl.ds(0, wh, 2), :]
            p11 = out_ref[:, pl.ds(1, hh, 2), pl.ds(1, wh, 2), :]
            pooled = jnp.maximum(jnp.maximum(p00, p01), jnp.maximum(p10, p11))
            pool_ref[...] = pooled.astype(pool_ref.dtype)

    return kernel


# ---------------------------------------------------------------------------
# Wrapper: one pallas_call per DoubleConv block
# ---------------------------------------------------------------------------
def double_conv_block(x_nhwc, block_params, has_pool):
    n, h, w, cin = x_nhwc.shape
    (w1, p1), (w2, p2) = block_params
    cout = w1.shape[1]
    hp, wp = h + 2, w + 2
    vmem = pl.BlockSpec(memory_space=pltpu.MemorySpace.VMEM)

    if has_pool:
        out_shape = (jax.ShapeDtypeStruct((n, h, w, cout), jnp.float32),
                     jax.ShapeDtypeStruct((n, h // 2, w // 2, cout), jnp.bfloat16))
        out_specs = (vmem, vmem)
    else:
        out_shape = jax.ShapeDtypeStruct((n, h, w, cout), jnp.float32)
        out_specs = vmem

    result = pl.pallas_call(
        _make_double_conv_kernel(has_pool),
        out_shape=out_shape,
        in_specs=[vmem] * 5,
        out_specs=out_specs,
        scratch_shapes=[
            pltpu.VMEM((n, hp, wp, cin), jnp.float32),    # padded stage-1 input
            pltpu.VMEM((n, hp, wp, cout), jnp.float32),   # padded stage-2 input
        ],
    )(x_nhwc, w1, p1, w2, p2)

    if has_pool:
        out, pooled = result
        return out, pooled
    return result, None


# ---------------------------------------------------------------------------
# Parameters (weight relayout hoisted out of the forward pass)
# ---------------------------------------------------------------------------
def init_downward_params(key, channels):
    """Params matching nn.Conv2d / nn.BatchNorm2d, pre-laid-out for the kernel."""
    params = []
    for i in range(len(channels) - 1):
        cin, cout = channels[i], channels[i + 1]
        block = []
        for (ci, co) in ((cin, cout), (cout, cout)):
            key, kw, kb = jax.random.split(key, 3)
            bound = 1.0 / (ci * 9) ** 0.5
            w_oihw = jax.random.uniform(kw, (co, ci, 3, 3), jnp.float32, -bound, bound)
            b = jax.random.uniform(kb, (co,), jnp.float32, -bound, bound)
            gamma = jnp.ones((co,), jnp.float32)    # BN weight init
            beta = jnp.zeros((co,), jnp.float32)    # BN bias init
            # Hoisted relayout: OIHW -> (kh, kw, Cin, Cout) -> (9*Cin, Cout), bf16.
            wk = jnp.transpose(w_oihw, (2, 3, 1, 0)).reshape(9 * ci, co)
            wk = wk.astype(jnp.bfloat16)
            p = jnp.stack([b, gamma, beta], axis=0)  # (3, Cout) f32: bias/gamma/beta
            block.append((wk, p))
        params.append(block)
    return params


def downward_layers_forward(x_nchw, params):
    """Equivalent of DownwardLayers.forward: returns a list of NCHW tensors."""
    x = jnp.transpose(x_nchw, (0, 2, 3, 1)).astype(jnp.float32)  # NCHW -> NHWC
    outputs = []
    nblocks = len(params)
    for i, block in enumerate(params):
        has_pool = i < nblocks - 1          # MaxPool2d(2) between DoubleConv blocks
        out, pooled = double_conv_block(x, block, has_pool)
        outputs.append(jnp.transpose(out, (0, 3, 1, 2)))         # back to NCHW (f32)
        x = pooled                          # bf16 inter-block activation
    return outputs


# ---------------------------------------------------------------------------
if __name__ == "__main__":
    channels = [4, 8, 16]                   # DownwardLayers(channels=[4, 8, 16])
    key = jax.random.PRNGKey(0)
    kx, kp = jax.random.split(key)
    x = jax.random.normal(kx, (2, 4, 16, 16), jnp.float32)       # NCHW input
    params = init_downward_params(kp, channels)

    fwd = jax.jit(downward_layers_forward)
    outs = fwd(x, params)
    outs = [jax.block_until_ready(o) for o in outs]

    expected_shapes = [(2, 8, 16, 16), (2, 16, 8, 8)]
    assert [tuple(o.shape) for o in outs] == expected_shapes, \
        [tuple(o.shape) for o in outs]
    assert all(o.dtype == jnp.float32 for o in outs)
    assert all(bool(jnp.all(jnp.isfinite(o))) for o in outs)
    assert all(bool(jnp.all(o >= 0.0)) for o in outs)            # ReLU outputs
    print("KERNEL_OK")
</pallas_src>

<mosaic_0001>
module attributes {stable_mosaic.version = 11 : i64} {
  func.func @kernel(%arg0: memref<2x16x16x4xf32, #tpu.memory_space<vmem>>, %arg1: memref<36x8xbf16, #tpu.memory_space<vmem>>, %arg2: memref<3x8xf32, #tpu.memory_space<vmem>>, %arg3: memref<72x8xbf16, #tpu.memory_space<vmem>>, %arg4: memref<3x8xf32, #tpu.memory_space<vmem>>, %arg5: memref<2x16x16x8xf32, #tpu.memory_space<vmem>>, %arg6: memref<2x8x8x8xbf16, #tpu.memory_space<vmem>>, %arg7: memref<2x18x18x4xf32, #tpu.memory_space<vmem>>, %arg8: memref<2x18x18x8xf32, #tpu.memory_space<vmem>>) attributes {dimension_semantics = [], scalar_prefetch = 0 : i64, scratch_operands = 2 : i64, tpu.core_type = #tpu.core_type<tc>} {
    %c0 = arith.constant 0 : index
    %c0_0 = arith.constant 0 : index
    %c0_1 = arith.constant 0 : index
    %c0_2 = arith.constant 0 : index
    %0 = vector.load %arg0[%c0, %c0_0, %c0_1, %c0_2] : memref<2x16x16x4xf32, #tpu.memory_space<vmem>>, vector<2x16x16x4xf32>
    %cst = arith.constant 0.000000e+00 : f32
    %1 = vector.broadcast %cst : f32 to vector<2x18x18x4xf32>
    %c0_3 = arith.constant 0 : index
    %c0_4 = arith.constant 0 : index
    %c0_5 = arith.constant 0 : index
    %c0_6 = arith.constant 0 : index
    %2 = vector.load %arg7[%c0_3, %c0_4, %c0_5, %c0_6] : memref<2x18x18x4xf32, #tpu.memory_space<vmem>>, vector<2x18x18x4xf32>
    tpu.vector_store %arg7[%c0_3, %c0_4, %c0_5, %c0_6], %1 {strides = array<i32>} : memref<2x18x18x4xf32, #tpu.memory_space<vmem>>, vector<2x18x18x4xf32>,
    %c0_7 = arith.constant 0 : index
    %c1 = arith.constant 1 : index
    %c1_8 = arith.constant 1 : index
    %c0_9 = arith.constant 0 : index
    %3 = vector.load %arg7[%c0_7, %c1, %c1_8, %c0_9] : memref<2x18x18x4xf32, #tpu.memory_space<vmem>>, vector<2x16x16x4xf32>
    tpu.vector_store %arg7[%c0_7, %c1, %c1_8, %c0_9], %0 {strides = array<i32>} : memref<2x18x18x4xf32, #tpu.memory_space<vmem>>, vector<2x16x16x4xf32>,
    %c0_10 = arith.constant 0 : index
    %c0_11 = arith.constant 0 : index
    %c0_12 = arith.constant 0 : index
    %c0_13 = arith.constant 0 : index
    %4 = vector.load %arg7[%c0_10, %c0_11, %c0_12, %c0_13] : memref<2x18x18x4xf32, #tpu.memory_space<vmem>>, vector<2x18x18x4xf32>
    %5 = arith.truncf %4 : vector<2x18x18x4xf32> to vector<2x18x18x4xbf16>
    %6 = vector.extract_strided_slice %5 {offsets = [0, 0, 0, 0], sizes = [2, 16, 16, 4], strides = [1, 1, 1, 1]} : vector<2x18x18x4xbf16> to vector<2x16x16x4xbf16>
    %7 = vector.extract_strided_slice %5 {offsets = [0, 0, 1, 0], sizes = [2, 16, 16, 4], strides = [1, 1, 1, 1]} : vector<2x18x18x4xbf16> to vector<2x16x16x4xbf16>
    %8 = vector.extract_strided_slice %5 {offsets = [0, 0, 2, 0], sizes = [2, 16, 16, 4], strides = [1, 1, 1, 1]} : vector<2x18x18x4xbf16> to vector<2x16x16x4xbf16>
    %9 = vector.extract_strided_slice %5 {offsets = [0, 1, 0, 0], sizes = [2, 16, 16, 4], strides = [1, 1, 1, 1]} : vector<2x18x18x4xbf16> to vector<2x16x16x4xbf16>
    %10 = vector.extract_strided_slice %5 {offsets = [0, 1, 1, 0], sizes = [2, 16, 16, 4], strides = [1, 1, 1, 1]} : vector<2x18x18x4xbf16> to vector<2x16x16x4xbf16>
    %11 = vector.extract_strided_slice %5 {offsets = [0, 1, 2, 0], sizes = [2, 16, 16, 4], strides = [1, 1, 1, 1]} : vector<2x18x18x4xbf16> to vector<2x16x16x4xbf16>
    %12 = vector.extract_strided_slice %5 {offsets = [0, 2, 0, 0], sizes = [2, 16, 16, 4], strides = [1, 1, 1, 1]} : vector<2x18x18x4xbf16> to vector<2x16x16x4xbf16>
    %13 = vector.extract_strided_slice %5 {offsets = [0, 2, 1, 0], sizes = [2, 16, 16, 4], strides = [1, 1, 1, 1]} : vector<2x18x18x4xbf16> to vector<2x16x16x4xbf16>
    %14 = vector.extract_strided_slice %5 {offsets = [0, 2, 2, 0], sizes = [2, 16, 16, 4], strides = [1, 1, 1, 1]} : vector<2x18x18x4xbf16> to vector<2x16x16x4xbf16>
    %15 = tpu.concatenate %6, %7, %8, %9, %10, %11, %12, %13, %14 in 3 : vector<2x16x16x4xbf16>, vector<2x16x16x4xbf16>, vector<2x16x16x4xbf16>, vector<2x16x16x4xbf16>, vector<2x16x16x4xbf16>, vector<2x16x16x4xbf16>, vector<2x16x16x4xbf16>, vector<2x16x16x4xbf16>, vector<2x16x16x4xbf16> -> vector<2x16x16x36xbf16>
    %16 = vector.shape_cast %15 : vector<2x16x16x36xbf16> to vector<512x36xbf16>
    %c0_14 = arith.constant 0 : index
    %c0_15 = arith.constant 0 : index
    %17 = vector.load %arg1[%c0_14, %c0_15] : memref<36x8xbf16, #tpu.memory_space<vmem>>, vector<36x8xbf16>
    %cst_16 = arith.constant dense<0.000000e+00> : vector<512x8xf32>
    %18 = tpu.matmul %16, %17, %cst_16 {dimension_numbers = #tpu.dot_dimension_numbers<[1], [0], [0], [1], [0, 0, 1, 1], [], []>} : vector<512x36xbf16>, vector<36x8xbf16>, vector<512x8xf32> -> vector<512x8xf32>
    %c0_17 = arith.constant 0 : index
    %c0_18 = arith.constant 0 : index
    %19 = vector.load %arg2[%c0_17, %c0_18] : memref<3x8xf32, #tpu.memory_space<vmem>>, vector<1x8xf32>
    %20 = vector.broadcast %19 : vector<1x8xf32> to vector<512x8xf32>
    %21 = arith.addf %18, %20 : vector<512x8xf32>
    %cst_19 = arith.constant dense<0.000000e+00> : vector<8xf32>
    %22 = vector.multi_reduction <add>, %21, %cst_19 [0] : vector<512x8xf32> to vector<8xf32>
    %23 = vector.shape_cast %22 : vector<8xf32> to vector<1x8xf32>
    %24 = arith.mulf %21, %21 : vector<512x8xf32>
    %cst_20 = arith.constant dense<0.000000e+00> : vector<8xf32>
    %25 = vector.multi_reduction <add>, %24, %cst_20 [0] : vector<512x8xf32> to vector<8xf32>
    %26 = vector.shape_cast %25 : vector<8xf32> to vector<1x8xf32>
    %cst_21 = arith.constant 0.001953125 : f32
    %27 = vector.broadcast %cst_21 : f32 to vector<1x8xf32>
    %28 = arith.mulf %23, %27 : vector<1x8xf32>
    %cst_22 = arith.constant 0.001953125 : f32
    %29 = vector.broadcast %cst_22 : f32 to vector<1x8xf32>
    %30 = arith.mulf %26, %29 : vector<1x8xf32>
    %31 = arith.mulf %28, %28 : vector<1x8xf32>
    %32 = arith.subf %30, %31 : vector<1x8xf32>
    %cst_23 = arith.constant 0.000000e+00 : f32
    %33 = vector.broadcast %cst_23 : f32 to vector<1x8xf32>
    %34 = arith.maximumf %32, %33 : vector<1x8xf32>
    %c1_24 = arith.constant 1 : index
    %c0_25 = arith.constant 0 : index
    %35 = vector.load %arg2[%c1_24, %c0_25] : memref<3x8xf32, #tpu.memory_space<vmem>>, vector<1x8xf32>
    %cst_26 = arith.constant 9.99999974E-6 : f32
    %36 = vector.broadcast %cst_26 : f32 to vector<1x8xf32>
    %37 = arith.addf %34, %36 : vector<1x8xf32>
    %38 = math.rsqrt %37 : vector<1x8xf32>
    %39 = arith.mulf %35, %38 : vector<1x8xf32>
    %c2 = arith.constant 2 : index
    %c0_27 = arith.constant 0 : index
    %40 = vector.load %arg2[%c2, %c0_27] : memref<3x8xf32, #tpu.memory_space<vmem>>, vector<1x8xf32>
    %41 = arith.mulf %28, %39 : vector<1x8xf32>
    %42 = arith.subf %40, %41 : vector<1x8xf32>
    %43 = vector.broadcast %39 : vector<1x8xf32> to vector<512x8xf32>
    %44 = arith.mulf %21, %43 : vector<512x8xf32>
    %45 = vector.broadcast %42 : vector<1x8xf32> to vector<512x8xf32>
    %46 = arith.addf %44, %45 : vector<512x8xf32>
    %cst_28 = arith.constant 0.000000e+00 : f32
    %47 = vector.broadcast %cst_28 : f32 to vector<512x8xf32>
    %48 = arith.maximumf %46, %47 : vector<512x8xf32>
    %49 = vector.shape_cast %48 : vector<512x8xf32> to vector<2x16x16x8xf32>
    %cst_29 = arith.constant 0.000000e+00 : f32
    %50 = vector.broadcast %cst_29 : f32 to vector<2x18x18x8xf32>
    %c0_30 = arith.constant 0 : index
    %c0_31 = arith.constant 0 : index
    %c0_32 = arith.constant 0 : index
    %c0_33 = arith.constant 0 : index
    %51 = vector.load %arg8[%c0_30, %c0_31, %c0_32, %c0_33] : memref<2x18x18x8xf32, #tpu.memory_space<vmem>>, vector<2x18x18x8xf32>
    tpu.vector_store %arg8[%c0_30, %c0_31, %c0_32, %c0_33], %50 {strides = array<i32>} : memref<2x18x18x8xf32, #tpu.memory_space<vmem>>, vector<2x18x18x8xf32>,
    %c0_34 = arith.constant 0 : index
    %c1_35 = arith.constant 1 : index
    %c1_36 = arith.constant 1 : index
    %c0_37 = arith.constant 0 : index
    %52 = vector.load %arg8[%c0_34, %c1_35, %c1_36, %c0_37] : memref<2x18x18x8xf32, #tpu.memory_space<vmem>>, vector<2x16x16x8xf32>
    tpu.vector_store %arg8[%c0_34, %c1_35, %c1_36, %c0_37], %49 {strides = array<i32>} : memref<2x18x18x8xf32, #tpu.memory_space<vmem>>, vector<2x16x16x8xf32>,
    %c0_38 = arith.constant 0 : index
    %c0_39 = arith.constant 0 : index
    %c0_40 = arith.constant 0 : index
    %c0_41 = arith.constant 0 : index
    %53 = vector.load %arg8[%c0_38, %c0_39, %c0_40, %c0_41] : memref<2x18x18x8xf32, #tpu.memory_space<vmem>>, vector<2x18x18x8xf32>
    %54 = arith.truncf %53 : vector<2x18x18x8xf32> to vector<2x18x18x8xbf16>
    %55 = vector.extract_strided_slice %54 {offsets = [0, 0, 0, 0], sizes = [2, 16, 16, 8], strides = [1, 1, 1, 1]} : vector<2x18x18x8xbf16> to vector<2x16x16x8xbf16>
    %56 = vector.extract_strided_slice %54 {offsets = [0, 0, 1, 0], sizes = [2, 16, 16, 8], strides = [1, 1, 1, 1]} : vector<2x18x18x8xbf16> to vector<2x16x16x8xbf16>
    %57 = vector.extract_strided_slice %54 {offsets = [0, 0, 2, 0], sizes = [2, 16, 16, 8], strides = [1, 1, 1, 1]} : vector<2x18x18x8xbf16> to vector<2x16x16x8xbf16>
    %58 = vector.extract_strided_slice %54 {offsets = [0, 1, 0, 0], sizes = [2, 16, 16, 8], strides = [1, 1, 1, 1]} : vector<2x18x18x8xbf16> to vector<2x16x16x8xbf16>
    %59 = vector.extract_strided_slice %54 {offsets = [0, 1, 1, 0], sizes = [2, 16, 16, 8], strides = [1, 1, 1, 1]} : vector<2x18x18x8xbf16> to vector<2x16x16x8xbf16>
    %60 = vector.extract_strided_slice %54 {offsets = [0, 1, 2, 0], sizes = [2, 16, 16, 8], strides = [1, 1, 1, 1]} : vector<2x18x18x8xbf16> to vector<2x16x16x8xbf16>
    %61 = vector.extract_strided_slice %54 {offsets = [0, 2, 0, 0], sizes = [2, 16, 16, 8], strides = [1, 1, 1, 1]} : vector<2x18x18x8xbf16> to vector<2x16x16x8xbf16>
    %62 = vector.extract_strided_slice %54 {offsets = [0, 2, 1, 0], sizes = [2, 16, 16, 8], strides = [1, 1, 1, 1]} : vector<2x18x18x8xbf16> to vector<2x16x16x8xbf16>
    %63 = vector.extract_strided_slice %54 {offsets = [0, 2, 2, 0], sizes = [2, 16, 16, 8], strides = [1, 1, 1, 1]} : vector<2x18x18x8xbf16> to vector<2x16x16x8xbf16>
    %64 = tpu.concatenate %55, %56, %57, %58, %59, %60, %61, %62, %63 in 3 : vector<2x16x16x8xbf16>, vector<2x16x16x8xbf16>, vector<2x16x16x8xbf16>, vector<2x16x16x8xbf16>, vector<2x16x16x8xbf16>, vector<2x16x16x8xbf16>, vector<2x16x16x8xbf16>, vector<2x16x16x8xbf16>, vector<2x16x16x8xbf16> -> vector<2x16x16x72xbf16>
    %65 = vector.shape_cast %64 : vector<2x16x16x72xbf16> to vector<512x72xbf16>
    %c0_42 = arith.constant 0 : index
    %c0_43 = arith.constant 0 : index
    %66 = vector.load %arg3[%c0_42, %c0_43] : memref<72x8xbf16, #tpu.memory_space<vmem>>, vector<72x8xbf16>
    %cst_44 = arith.constant dense<0.000000e+00> : vector<512x8xf32>
    %67 = tpu.matmul %65, %66, %cst_44 {dimension_numbers = #tpu.dot_dimension_numbers<[1], [0], [0], [1], [0, 0, 1, 1], [], []>} : vector<512x72xbf16>, vector<72x8xbf16>, vector<512x8xf32> -> vector<512x8xf32>
    %c0_45 = arith.constant 0 : index
    %c0_46 = arith.constant 0 : index
    %68 = vector.load %arg4[%c0_45, %c0_46] : memref<3x8xf32, #tpu.memory_space<vmem>>, vector<1x8xf32>
    %69 = vector.broadcast %68 : vector<1x8xf32> to vector<512x8xf32>
    %70 = arith.addf %67, %69 : vector<512x8xf32>
    %cst_47 = arith.constant dense<0.000000e+00> : vector<8xf32>
    %71 = vector.multi_reduction <add>, %70, %cst_47 [0] : vector<512x8xf32> to vector<8xf32>
    %72 = vector.shape_cast %71 : vector<8xf32> to vector<1x8xf32>
    %73 = arith.mulf %70, %70 : vector<512x8xf32>
    %cst_48 = arith.constant dense<0.000000e+00> : vector<8xf32>
    %74 = vector.multi_reduction <add>, %73, %cst_48 [0] : vector<512x8xf32> to vector<8xf32>
    %75 = vector.shape_cast %74 : vector<8xf32> to vector<1x8xf32>
    %cst_49 = arith.constant 0.001953125 : f32
    %76 = vector.broadcast %cst_49 : f32 to vector<1x8xf32>
    %77 = arith.mulf %72, %76 : vector<1x8xf32>
    %cst_50 = arith.constant 0.001953125 : f32
    %78 = vector.broadcast %cst_50 : f32 to vector<1x8xf32>
    %79 = arith.mulf %75, %78 : vector<1x8xf32>
    %80 = arith.mulf %77, %77 : vector<1x8xf32>
    %81 = arith.subf %79, %80 : vector<1x8xf32>
    %cst_51 = arith.constant 0.000000e+00 : f32
    %82 = vector.broadcast %cst_51 : f32 to vector<1x8xf32>
    %83 = arith.maximumf %81, %82 : vector<1x8xf32>
    %c1_52 = arith.constant 1 : index
    %c0_53 = arith.constant 0 : index
    %84 = vector.load %arg4[%c1_52, %c0_53] : memref<3x8xf32, #tpu.memory_space<vmem>>, vector<1x8xf32>
    %cst_54 = arith.constant 9.99999974E-6 : f32
    %85 = vector.broadcast %cst_54 : f32 to vector<1x8xf32>
    %86 = arith.addf %83, %85 : vector<1x8xf32>
    %87 = math.rsqrt %86 : vector<1x8xf32>
    %88 = arith.mulf %84, %87 : vector<1x8xf32>
    %c2_55 = arith.constant 2 : index
    %c0_56 = arith.constant 0 : index
    %89 = vector.load %arg4[%c2_55, %c0_56] : memref<3x8xf32, #tpu.memory_space<vmem>>, vector<1x8xf32>
    %90 = arith.mulf %77, %88 : vector<1x8xf32>
    %91 = arith.subf %89, %90 : vector<1x8xf32>
    %92 = vector.broadcast %88 : vector<1x8xf32> to vector<512x8xf32>
    %93 = arith.mulf %70, %92 : vector<512x8xf32>
    %94 = vector.broadcast %91 : vector<1x8xf32> to vector<512x8xf32>
    %95 = arith.addf %93, %94 : vector<512x8xf32>
    %cst_57 = arith.constant 0.000000e+00 : f32
    %96 = vector.broadcast %cst_57 : f32 to vector<512x8xf32>
    %97 = arith.maximumf %95, %96 : vector<512x8xf32>
    %98 = vector.shape_cast %97 : vector<512x8xf32> to vector<2x16x16x8xf32>
    %c0_58 = arith.constant 0 : index
    %c0_59 = arith.constant 0 : index
    %c0_60 = arith.constant 0 : index
    %c0_61 = arith.constant 0 : index
    %99 = vector.load %arg5[%c0_58, %c0_59, %c0_60, %c0_61] : memref<2x16x16x8xf32, #tpu.memory_space<vmem>>, vector<2x16x16x8xf32>
    tpu.vector_store %arg5[%c0_58, %c0_59, %c0_60, %c0_61], %98 {strides = array<i32>} : memref<2x16x16x8xf32, #tpu.memory_space<vmem>>, vector<2x16x16x8xf32>,
    %c0_62 = arith.constant 0 : index
    %c0_63 = arith.constant 0 : index
    %c0_64 = arith.constant 0 : index
    %c0_65 = arith.constant 0 : index
    %100 = tpu.strided_load %arg5[%c0_62, %c0_63, %c0_64, %c0_65] {strides = array<i32: 1, 2, 2, 1>} : memref<2x16x16x8xf32, #tpu.memory_space<vmem>>, vector<2x8x8x8xf32>
    %c0_66 = arith.constant 0 : index
    %c0_67 = arith.constant 0 : index
    %c1_68 = arith.constant 1 : index
    %c0_69 = arith.constant 0 : index
    %101 = tpu.strided_load %arg5[%c0_66, %c0_67, %c1_68, %c0_69] {strides = array<i32: 1, 2, 2, 1>} : memref<2x16x16x8xf32, #tpu.memory_space<vmem>>, vector<2x8x8x8xf32>
    %c0_70 = arith.constant 0 : index
    %c1_71 = arith.constant 1 : index
    %c0_72 = arith.constant 0 : index
    %c0_73 = arith.constant 0 : index
    %102 = tpu.strided_load %arg5[%c0_70, %c1_71, %c0_72, %c0_73] {strides = array<i32: 1, 2, 2, 1>} : memref<2x16x16x8xf32, #tpu.memory_space<vmem>>, vector<2x8x8x8xf32>
    %c0_74 = arith.constant 0 : index
    %c1_75 = arith.constant 1 : index
    %c1_76 = arith.constant 1 : index
    %c0_77 = arith.constant 0 : index
    %103 = tpu.strided_load %arg5[%c0_74, %c1_75, %c1_76, %c0_77] {strides = array<i32: 1, 2, 2, 1>} : memref<2x16x16x8xf32, #tpu.memory_space<vmem>>, vector<2x8x8x8xf32>
    %104 = arith.maximumf %100, %101 : vector<2x8x8x8xf32>
    %105 = arith.maximumf %102, %103 : vector<2x8x8x8xf32>
    %106 = arith.maximumf %104, %105 : vector<2x8x8x8xf32>
    %107 = arith.truncf %106 : vector<2x8x8x8xf32> to vector<2x8x8x8xbf16>
    %c0_78 = arith.constant 0 : index
    %c0_79 = arith.constant 0 : index
    %c0_80 = arith.constant 0 : index
    %c0_81 = arith.constant 0 : index
    %108 = vector.load %arg6[%c0_78, %c0_79, %c0_80, %c0_81] : memref<2x8x8x8xbf16, #tpu.memory_space<vmem>>, vector<2x8x8x8xbf16>
    tpu.vector_store %arg6[%c0_78, %c0_79, %c0_80, %c0_81], %107 {strides = array<i32>} : memref<2x8x8x8xbf16, #tpu.memory_space<vmem>>, vector<2x8x8x8xbf16>,
    return
  }
}

module attributes {stable_mosaic.version = 11 : i64} {
  func.func @kernel(%arg0: memref<2x8x8x8xbf16, #tpu.memory_space<vmem>>, %arg1: memref<72x16xbf16, #tpu.memory_space<vmem>>, %arg2: memref<3x16xf32, #tpu.memory_space<vmem>>, %arg3: memref<144x16xbf16, #tpu.memory_space<vmem>>, %arg4: memref<3x16xf32, #tpu.memory_space<vmem>>, %arg5: memref<2x8x8x16xf32, #tpu.memory_space<vmem>>, %arg6: memref<2x10x10x8xf32, #tpu.memory_space<vmem>>, %arg7: memref<2x10x10x16xf32, #tpu.memory_space<vmem>>) attributes {dimension_semantics = [], scalar_prefetch = 0 : i64, scratch_operands = 2 : i64, tpu.core_type = #tpu.core_type<tc>} {
    %c0 = arith.constant 0 : index
    %c0_0 = arith.constant 0 : index
    %c0_1 = arith.constant 0 : index
    %c0_2 = arith.constant 0 : index
    %0 = vector.load %arg0[%c0, %c0_0, %c0_1, %c0_2] : memref<2x8x8x8xbf16, #tpu.memory_space<vmem>>, vector<2x8x8x8xbf16>
    %cst = arith.constant 0.000000e+00 : f32
    %1 = vector.broadcast %cst : f32 to vector<2x10x10x8xf32>
    %c0_3 = arith.constant 0 : index
    %c0_4 = arith.constant 0 : index
    %c0_5 = arith.constant 0 : index
    %c0_6 = arith.constant 0 : index
    %2 = vector.load %arg6[%c0_3, %c0_4, %c0_5, %c0_6] : memref<2x10x10x8xf32, #tpu.memory_space<vmem>>, vector<2x10x10x8xf32>
    tpu.vector_store %arg6[%c0_3, %c0_4, %c0_5, %c0_6], %1 {strides = array<i32>} : memref<2x10x10x8xf32, #tpu.memory_space<vmem>>, vector<2x10x10x8xf32>,
    %3 = arith.extf %0 : vector<2x8x8x8xbf16> to vector<2x8x8x8xf32>
    %c0_7 = arith.constant 0 : index
    %c1 = arith.constant 1 : index
    %c1_8 = arith.constant 1 : index
    %c0_9 = arith.constant 0 : index
    %4 = vector.load %arg6[%c0_7, %c1, %c1_8, %c0_9] : memref<2x10x10x8xf32, #tpu.memory_space<vmem>>, vector<2x8x8x8xf32>
    tpu.vector_store %arg6[%c0_7, %c1, %c1_8, %c0_9], %3 {strides = array<i32>} : memref<2x10x10x8xf32, #tpu.memory_space<vmem>>, vector<2x8x8x8xf32>,
    %c0_10 = arith.constant 0 : index
    %c0_11 = arith.constant 0 : index
    %c0_12 = arith.constant 0 : index
    %c0_13 = arith.constant 0 : index
    %5 = vector.load %arg6[%c0_10, %c0_11, %c0_12, %c0_13] : memref<2x10x10x8xf32, #tpu.memory_space<vmem>>, vector<2x10x10x8xf32>
    %6 = arith.truncf %5 : vector<2x10x10x8xf32> to vector<2x10x10x8xbf16>
    %7 = vector.extract_strided_slice %6 {offsets = [0, 0, 0, 0], sizes = [2, 8, 8, 8], strides = [1, 1, 1, 1]} : vector<2x10x10x8xbf16> to vector<2x8x8x8xbf16>
    %8 = vector.extract_strided_slice %6 {offsets = [0, 0, 1, 0], sizes = [2, 8, 8, 8], strides = [1, 1, 1, 1]} : vector<2x10x10x8xbf16> to vector<2x8x8x8xbf16>
    %9 = vector.extract_strided_slice %6 {offsets = [0, 0, 2, 0], sizes = [2, 8, 8, 8], strides = [1, 1, 1, 1]} : vector<2x10x10x8xbf16> to vector<2x8x8x8xbf16>
    %10 = vector.extract_strided_slice %6 {offsets = [0, 1, 0, 0], sizes = [2, 8, 8, 8], strides = [1, 1, 1, 1]} : vector<2x10x10x8xbf16> to vector<2x8x8x8xbf16>
    %11 = vector.extract_strided_slice %6 {offsets = [0, 1, 1, 0], sizes = [2, 8, 8, 8], strides = [1, 1, 1, 1]} : vector<2x10x10x8xbf16> to vector<2x8x8x8xbf16>
    %12 = vector.extract_strided_slice %6 {offsets = [0, 1, 2, 0], sizes = [2, 8, 8, 8], strides = [1, 1, 1, 1]} : vector<2x10x10x8xbf16> to vector<2x8x8x8xbf16>
    %13 = vector.extract_strided_slice %6 {offsets = [0, 2, 0, 0], sizes = [2, 8, 8, 8], strides = [1, 1, 1, 1]} : vector<2x10x10x8xbf16> to vector<2x8x8x8xbf16>
    %14 = vector.extract_strided_slice %6 {offsets = [0, 2, 1, 0], sizes = [2, 8, 8, 8], strides = [1, 1, 1, 1]} : vector<2x10x10x8xbf16> to vector<2x8x8x8xbf16>
    %15 = vector.extract_strided_slice %6 {offsets = [0, 2, 2, 0], sizes = [2, 8, 8, 8], strides = [1, 1, 1, 1]} : vector<2x10x10x8xbf16> to vector<2x8x8x8xbf16>
    %16 = tpu.concatenate %7, %8, %9, %10, %11, %12, %13, %14, %15 in 3 : vector<2x8x8x8xbf16>, vector<2x8x8x8xbf16>, vector<2x8x8x8xbf16>, vector<2x8x8x8xbf16>, vector<2x8x8x8xbf16>, vector<2x8x8x8xbf16>, vector<2x8x8x8xbf16>, vector<2x8x8x8xbf16>, vector<2x8x8x8xbf16> -> vector<2x8x8x72xbf16>
    %17 = vector.shape_cast %16 : vector<2x8x8x72xbf16> to vector<128x72xbf16>
    %c0_14 = arith.constant 0 : index
    %c0_15 = arith.constant 0 : index
    %18 = vector.load %arg1[%c0_14, %c0_15] : memref<72x16xbf16, #tpu.memory_space<vmem>>, vector<72x16xbf16>
    %cst_16 = arith.constant dense<0.000000e+00> : vector<128x16xf32>
    %19 = tpu.matmul %17, %18, %cst_16 {dimension_numbers = #tpu.dot_dimension_numbers<[1], [0], [0], [1], [0, 0, 1, 1], [], []>} : vector<128x72xbf16>, vector<72x16xbf16>, vector<128x16xf32> -> vector<128x16xf32>
    %c0_17 = arith.constant 0 : index
    %c0_18 = arith.constant 0 : index
    %20 = vector.load %arg2[%c0_17, %c0_18] : memref<3x16xf32, #tpu.memory_space<vmem>>, vector<1x16xf32>
    %21 = vector.broadcast %20 : vector<1x16xf32> to vector<128x16xf32>
    %22 = arith.addf %19, %21 : vector<128x16xf32>
    %cst_19 = arith.constant dense<0.000000e+00> : vector<16xf32>
    %23 = vector.multi_reduction <add>, %22, %cst_19 [0] : vector<128x16xf32> to vector<16xf32>
    %24 = vector.shape_cast %23 : vector<16xf32> to vector<1x16xf32>
    %25 = arith.mulf %22, %22 : vector<128x16xf32>
    %cst_20 = arith.constant dense<0.000000e+00> : vector<16xf32>
    %26 = vector.multi_reduction <add>, %25, %cst_20 [0] : vector<128x16xf32> to vector<16xf32>
    %27 = vector.shape_cast %26 : vector<16xf32> to vector<1x16xf32>
    %cst_21 = arith.constant 7.812500e-03 : f32
    %28 = vector.broadcast %cst_21 : f32 to vector<1x16xf32>
    %29 = arith.mulf %24, %28 : vector<1x16xf32>
    %cst_22 = arith.constant 7.812500e-03 : f32
    %30 = vector.broadcast %cst_22 : f32 to vector<1x16xf32>
    %31 = arith.mulf %27, %30 : vector<1x16xf32>
    %32 = arith.mulf %29, %29 : vector<1x16xf32>
    %33 = arith.subf %31, %32 : vector<1x16xf32>
    %cst_23 = arith.constant 0.000000e+00 : f32
    %34 = vector.broadcast %cst_23 : f32 to vector<1x16xf32>
    %35 = arith.maximumf %33, %34 : vector<1x16xf32>
    %c1_24 = arith.constant 1 : index
    %c0_25 = arith.constant 0 : index
    %36 = vector.load %arg2[%c1_24, %c0_25] : memref<3x16xf32, #tpu.memory_space<vmem>>, vector<1x16xf32>
    %cst_26 = arith.constant 9.99999974E-6 : f32
    %37 = vector.broadcast %cst_26 : f32 to vector<1x16xf32>
    %38 = arith.addf %35, %37 : vector<1x16xf32>
    %39 = math.rsqrt %38 : vector<1x16xf32>
    %40 = arith.mulf %36, %39 : vector<1x16xf32>
    %c2 = arith.constant 2 : index
    %c0_27 = arith.constant 0 : index
    %41 = vector.load %arg2[%c2, %c0_27] : memref<3x16xf32, #tpu.memory_space<vmem>>, vector<1x16xf32>
    %42 = arith.mulf %29, %40 : vector<1x16xf32>
    %43 = arith.subf %41, %42 : vector<1x16xf32>
    %44 = vector.broadcast %40 : vector<1x16xf32> to vector<128x16xf32>
    %45 = arith.mulf %22, %44 : vector<128x16xf32>
    %46 = vector.broadcast %43 : vector<1x16xf32> to vector<128x16xf32>
    %47 = arith.addf %45, %46 : vector<128x16xf32>
    %cst_28 = arith.constant 0.000000e+00 : f32
    %48 = vector.broadcast %cst_28 : f32 to vector<128x16xf32>
    %49 = arith.maximumf %47, %48 : vector<128x16xf32>
    %50 = vector.shape_cast %49 : vector<128x16xf32> to vector<2x8x8x16xf32>
    %cst_29 = arith.constant 0.000000e+00 : f32
    %51 = vector.broadcast %cst_29 : f32 to vector<2x10x10x16xf32>
    %c0_30 = arith.constant 0 : index
    %c0_31 = arith.constant 0 : index
    %c0_32 = arith.constant 0 : index
    %c0_33 = arith.constant 0 : index
    %52 = vector.load %arg7[%c0_30, %c0_31, %c0_32, %c0_33] : memref<2x10x10x16xf32, #tpu.memory_space<vmem>>, vector<2x10x10x16xf32>
    tpu.vector_store %arg7[%c0_30, %c0_31, %c0_32, %c0_33], %51 {strides = array<i32>} : memref<2x10x10x16xf32, #tpu.memory_space<vmem>>, vector<2x10x10x16xf32>,
    %c0_34 = arith.constant 0 : index
    %c1_35 = arith.constant 1 : index
    %c1_36 = arith.constant 1 : index
    %c0_37 = arith.constant 0 : index
    %53 = vector.load %arg7[%c0_34, %c1_35, %c1_36, %c0_37] : memref<2x10x10x16xf32, #tpu.memory_space<vmem>>, vector<2x8x8x16xf32>
    tpu.vector_store %arg7[%c0_34, %c1_35, %c1_36, %c0_37], %50 {strides = array<i32>} : memref<2x10x10x16xf32, #tpu.memory_space<vmem>>, vector<2x8x8x16xf32>,
    %c0_38 = arith.constant 0 : index
    %c0_39 = arith.constant 0 : index
    %c0_40 = arith.constant 0 : index
    %c0_41 = arith.constant 0 : index
    %54 = vector.load %arg7[%c0_38, %c0_39, %c0_40, %c0_41] : memref<2x10x10x16xf32, #tpu.memory_space<vmem>>, vector<2x10x10x16xf32>
    %55 = arith.truncf %54 : vector<2x10x10x16xf32> to vector<2x10x10x16xbf16>
    %56 = vector.extract_strided_slice %55 {offsets = [0, 0, 0, 0], sizes = [2, 8, 8, 16], strides = [1, 1, 1, 1]} : vector<2x10x10x16xbf16> to vector<2x8x8x16xbf16>
    %57 = vector.extract_strided_slice %55 {offsets = [0, 0, 1, 0], sizes = [2, 8, 8, 16], strides = [1, 1, 1, 1]} : vector<2x10x10x16xbf16> to vector<2x8x8x16xbf16>
    %58 = vector.extract_strided_slice %55 {offsets = [0, 0, 2, 0], sizes = [2, 8, 8, 16], strides = [1, 1, 1, 1]} : vector<2x10x10x16xbf16> to vector<2x8x8x16xbf16>
    %59 = vector.extract_strided_slice %55 {offsets = [0, 1, 0, 0], sizes = [2, 8, 8, 16], strides = [1, 1, 1, 1]} : vector<2x10x10x16xbf16> to vector<2x8x8x16xbf16>
    %60 = vector.extract_strided_slice %55 {offsets = [0, 1, 1, 0], sizes = [2, 8, 8, 16], strides = [1, 1, 1, 1]} : vector<2x10x10x16xbf16> to vector<2x8x8x16xbf16>
    %61 = vector.extract_strided_slice %55 {offsets = [0, 1, 2, 0], sizes = [2, 8, 8, 16], strides = [1, 1, 1, 1]} : vector<2x10x10x16xbf16> to vector<2x8x8x16xbf16>
    %62 = vector.extract_strided_slice %55 {offsets = [0, 2, 0, 0], sizes = [2, 8, 8, 16], strides = [1, 1, 1, 1]} : vector<2x10x10x16xbf16> to vector<2x8x8x16xbf16>
    %63 = vector.extract_strided_slice %55 {offsets = [0, 2, 1, 0], sizes = [2, 8, 8, 16], strides = [1, 1, 1, 1]} : vector<2x10x10x16xbf16> to vector<2x8x8x16xbf16>
    %64 = vector.extract_strided_slice %55 {offsets = [0, 2, 2, 0], sizes = [2, 8, 8, 16], strides = [1, 1, 1, 1]} : vector<2x10x10x16xbf16> to vector<2x8x8x16xbf16>
    %65 = tpu.concatenate %56, %57, %58, %59, %60, %61, %62, %63, %64 in 3 : vector<2x8x8x16xbf16>, vector<2x8x8x16xbf16>, vector<2x8x8x16xbf16>, vector<2x8x8x16xbf16>, vector<2x8x8x16xbf16>, vector<2x8x8x16xbf16>, vector<2x8x8x16xbf16>, vector<2x8x8x16xbf16>, vector<2x8x8x16xbf16> -> vector<2x8x8x144xbf16>
    %66 = vector.shape_cast %65 : vector<2x8x8x144xbf16> to vector<128x144xbf16>
    %c0_42 = arith.constant 0 : index
    %c0_43 = arith.constant 0 : index
    %67 = vector.load %arg3[%c0_42, %c0_43] : memref<144x16xbf16, #tpu.memory_space<vmem>>, vector<144x16xbf16>
    %cst_44 = arith.constant dense<0.000000e+00> : vector<128x16xf32>
    %68 = tpu.matmul %66, %67, %cst_44 {dimension_numbers = #tpu.dot_dimension_numbers<[1], [0], [0], [1], [0, 0, 1, 1], [], []>} : vector<128x144xbf16>, vector<144x16xbf16>, vector<128x16xf32> -> vector<128x16xf32>
    %c0_45 = arith.constant 0 : index
    %c0_46 = arith.constant 0 : index
    %69 = vector.load %arg4[%c0_45, %c0_46] : memref<3x16xf32, #tpu.memory_space<vmem>>, vector<1x16xf32>
    %70 = vector.broadcast %69 : vector<1x16xf32> to vector<128x16xf32>
    %71 = arith.addf %68, %70 : vector<128x16xf32>
    %cst_47 = arith.constant dense<0.000000e+00> : vector<16xf32>
    %72 = vector.multi_reduction <add>, %71, %cst_47 [0] : vector<128x16xf32> to vector<16xf32>
    %73 = vector.shape_cast %72 : vector<16xf32> to vector<1x16xf32>
    %74 = arith.mulf %71, %71 : vector<128x16xf32>
    %cst_48 = arith.constant dense<0.000000e+00> : vector<16xf32>
    %75 = vector.multi_reduction <add>, %74, %cst_48 [0] : vector<128x16xf32> to vector<16xf32>
    %76 = vector.shape_cast %75 : vector<16xf32> to vector<1x16xf32>
    %cst_49 = arith.constant 7.812500e-03 : f32
    %77 = vector.broadcast %cst_49 : f32 to vector<1x16xf32>
    %78 = arith.mulf %73, %77 : vector<1x16xf32>
    %cst_50 = arith.constant 7.812500e-03 : f32
    %79 = vector.broadcast %cst_50 : f32 to vector<1x16xf32>
    %80 = arith.mulf %76, %79 : vector<1x16xf32>
    %81 = arith.mulf %78, %78 : vector<1x16xf32>
    %82 = arith.subf %80, %81 : vector<1x16xf32>
    %cst_51 = arith.constant 0.000000e+00 : f32
    %83 = vector.broadcast %cst_51 : f32 to vector<1x16xf32>
    %84 = arith.maximumf %82, %83 : vector<1x16xf32>
    %c1_52 = arith.constant 1 : index
    %c0_53 = arith.constant 0 : index
    %85 = vector.load %arg4[%c1_52, %c0_53] : memref<3x16xf32, #tpu.memory_space<vmem>>, vector<1x16xf32>
    %cst_54 = arith.constant 9.99999974E-6 : f32
    %86 = vector.broadcast %cst_54 : f32 to vector<1x16xf32>
    %87 = arith.addf %84, %86 : vector<1x16xf32>
    %88 = math.rsqrt %87 : vector<1x16xf32>
    %89 = arith.mulf %85, %88 : vector<1x16xf32>
    %c2_55 = arith.constant 2 : index
    %c0_56 = arith.constant 0 : index
    %90 = vector.load %arg4[%c2_55, %c0_56] : memref<3x16xf32, #tpu.memory_space<vmem>>, vector<1x16xf32>
    %91 = arith.mulf %78, %89 : vector<1x16xf32>
    %92 = arith.subf %90, %91 : vector<1x16xf32>
    %93 = vector.broadcast %89 : vector<1x16xf32> to vector<128x16xf32>
    %94 = arith.mulf %71, %93 : vector<128x16xf32>
    %95 = vector.broadcast %92 : vector<1x16xf32> to vector<128x16xf32>
    %96 = arith.addf %94, %95 : vector<128x16xf32>
    %cst_57 = arith.constant 0.000000e+00 : f32
    %97 = vector.broadcast %cst_57 : f32 to vector<128x16xf32>
    %98 = arith.maximumf %96, %97 : vector<128x16xf32>
    %99 = vector.shape_cast %98 : vector<128x16xf32> to vector<2x8x8x16xf32>
    %c0_58 = arith.constant 0 : index
    %c0_59 = arith.constant 0 : index
    %c0_60 = arith.constant 0 : index
    %c0_61 = arith.constant 0 : index
    %100 = vector.load %arg5[%c0_58, %c0_59, %c0_60, %c0_61] : memref<2x8x8x16xf32, #tpu.memory_space<vmem>>, vector<2x8x8x16xf32>
    tpu.vector_store %arg5[%c0_58, %c0_59, %c0_60, %c0_61], %99 {strides = array<i32>} : memref<2x8x8x16xf32, #tpu.memory_space<vmem>>, vector<2x8x8x16xf32>,
    return
  }
}

</mosaic_0001>

<llo_original>
// kernel: downward_layers_forward.3
$region0: #{downward_layers_forward.3}
  #allocation0 [shape = 'u32[]', space=smem, size = 0x4, offset = 0x4, fixed_abs, tag = 'smem constant byte address 0x4 - core index']
  #allocation1 [shape = 'u32[144,128]{1,0:T(1,128)}', space=vmem, size = 0x12000, scoped, tag = 'internal scratch']
  #allocation2 [shape = 'f32[2,10,10,8]{3,2,1,0:T(8,128)}', space=vmem, size = 0x28000, scoped, tag = 'scratch operand']
  #allocation3 [shape = 'f32[2,10,10,16]{3,2,1,0:T(8,128)}', space=vmem, size = 0x28000, scoped, tag = 'scratch operand']
  %s0 = inlined_call_operand.vmem [shape: bf16[2,8,8,8], index: 0, kind: input, shape index: {}]
  %s1 = inlined_call_operand.vmem [shape: bf16[72,16], index: 1, kind: input, shape index: {}]
  %s2 = inlined_call_operand.vmem [shape: f32[3,16], index: 2, kind: input, shape index: {}]
  %s3 = inlined_call_operand.vmem [shape: bf16[144,16], index: 3, kind: input, shape index: {}]
  %s4 = inlined_call_operand.vmem [shape: f32[3,16], index: 4, kind: input, shape index: {}]
  %s5 = inlined_call_operand.hbm [shape: f32[2,8,8,16], index: 5, kind: output, shape index: {}]
  %s6 = sld [smem:[#allocation0]]
  $region30: #{downward_layers_forward.3} parent=0
    _
  %s8 = ssub.s32 1, %s6
  %s9 = scalar_select 0, %s8, %s6
  $region1: #{downward_layers_forward.3} parent=0
    #allocation4 [shape = 'u8[65536]{0}', space=vmem, size = 0x10000, scoped, tag = 'output window, operand 0, single buffered']
    #allocation5 [shape = 's32[1]{0}', space=sflag, size = 0x4, scoped, tag = 'scoped memory for downward_layers_forward.3']
    %10 = vsyncpa [#allocation5], 0
    // Predicated region
    $region2: #{downward_layers_forward.3} parent=1 // pred_check
      _
    $region3: #{downward_layers_forward.3} parent=1 // pred_check_branch
      %12 = sbr.rel (0) target = $region5
    $region4: #{downward_layers_forward.3} parent=1 // pred_region
      _
    $region5: #{downward_layers_forward.3} parent=1 // pred_fallthru
      _
    // Predicated region
    $region6: #{downward_layers_forward.3} parent=1 // pred_check
      _
    $region7: #{downward_layers_forward.3} parent=1 // pred_check_branch
      %14 = sbr.rel (0) target = $region9
    $region8: #{downward_layers_forward.3} parent=1 // pred_region
      _
    $region9: #{downward_layers_forward.3} parent=1 // pred_fallthru
      _
    // Predicated region
    $region10: #{downward_layers_forward.3} parent=1 // pred_check
      _
    $region11: #{downward_layers_forward.3} parent=1 // pred_check_branch
      %16 = sbr.rel (0) target = $region13
    $region12: #{downward_layers_forward.3} parent=1 // pred_region
      _
    $region13: #{downward_layers_forward.3} parent=1 // pred_fallthru
      _
    // Predicated region
    $region14: #{downward_layers_forward.3} parent=1 // pred_check
      _
    $region15: #{downward_layers_forward.3} parent=1 // pred_check_branch
      %18 = sbr.rel (0) target = $region17
    $region16: #{downward_layers_forward.3} parent=1 // pred_region
      _
    $region17: #{downward_layers_forward.3} parent=1 // pred_fallthru
      _
    // Predicated region
    $region18: #{downward_layers_forward.3} parent=1 // pred_check
      _
    $region19: #{downward_layers_forward.3} parent=1 // pred_check_branch
      %20 = sbr.rel (0) target = $region21
    $region20: #{downward_layers_forward.3} parent=1 // pred_region
      _
    $region21: #{downward_layers_forward.3} parent=1 // pred_fallthru
      _
    %v22 = vld [vmem:[%s0] sm:$0xf]
    %v23 = vld [vmem:[%s0 + $0x4] sm:$0xf]
    %v24 = vld [vmem:[%s0 + $0x8] sm:$0xf]
    %v25 = vld [vmem:[%s0 + $0xc] sm:$0xf]
    %v26 = vld [vmem:[%s0 + $0x10] sm:$0xf]
    %v27 = vld [vmem:[%s0 + $0x14] sm:$0xf]
    %v28 = vld [vmem:[%s0 + $0x18] sm:$0xf]
    %v29 = vld [vmem:[%s0 + $0x1c] sm:$0xf]
    %v30 = vld [vmem:[%s0 + $0x20] sm:$0xf]
    %v31 = vld [vmem:[%s0 + $0x24] sm:$0xf]
    %v32 = vld [vmem:[%s0 + $0x28] sm:$0xf]
    %v33 = vld [vmem:[%s0 + $0x2c] sm:$0xf]
    %v34 = vld [vmem:[%s0 + $0x30] sm:$0xf]
    %v35 = vld [vmem:[%s0 + $0x34] sm:$0xf]
    %v36 = vld [vmem:[%s0 + $0x38] sm:$0xf]
    %v37 = vld [vmem:[%s0 + $0x3c] sm:$0xf]
    %vm38 = vcmask 64512
    %39 = vst.msk [vmem:[#allocation2] sm:$0xff] %vm38, 0.0
    %vm40 = vcmask 58368
    %41 = vst.msk [vmem:[#allocation2 + $0x8] sm:$0x3] %vm40, 0.0
    %42 = vst.msk [vmem:[#allocation2 + $0x10] sm:$0xff] %vm38, 0.0
    %43 = vst.msk [vmem:[#allocation2 + $0x18] sm:$0x3] %vm40, 0.0
    %44 = vst.msk [vmem:[#allocation2 + $0x20] sm:$0xff] %vm38, 0.0
    %45 = vst.msk [vmem:[#allocation2 + $0x28] sm:$0x3] %vm40, 0.0
    %46 = vst.msk [vmem:[#allocation2 + $0x30] sm:$0xff] %vm38, 0.0
    %47 = vst.msk [vmem:[#allocation2 + $0x38] sm:$0x3] %vm40, 0.0
    %48 = vst.msk [vmem:[#allocation2 + $0x40] sm:$0xff] %vm38, 0.0
    %49 = vst.msk [vmem:[#allocation2 + $0x48] sm:$0x3] %vm40, 0.0
    %50 = vst.msk [vmem:[#allocation2 + $0x50] sm:$0xff] %vm38, 0.0
    %51 = vst.msk [vmem:[#allocation2 + $0x58] sm:$0x3] %vm40, 0.0
    %52 = vst.msk [vmem:[#allocation2 + $0x60] sm:$0xff] %vm38, 0.0
    %53 = vst.msk [vmem:[#allocation2 + $0x68] sm:$0x3] %vm40, 0.0
    %54 = vst.msk [vmem:[#allocation2 + $0x70] sm:$0xff] %vm38, 0.0
    %55 = vst.msk [vmem:[#allocation2 + $0x78] sm:$0x3] %vm40, 0.0
    %56 = vst.msk [vmem:[#allocation2 + $0x80] sm:$0xff] %vm38, 0.0
    %57 = vst.msk [vmem:[#allocation2 + $0x88] sm:$0x3] %vm40, 0.0
    %58 = vst.msk [vmem:[#allocation2 + $0x90] sm:$0xff] %vm38, 0.0
    %59 = vst.msk [vmem:[#allocation2 + $0x98] sm:$0x3] %vm40, 0.0
    %60 = vst.msk [vmem:[#allocation2 + $0xa0] sm:$0xff] %vm38, 0.0
    %61 = vst.msk [vmem:[#allocation2 + $0xa8] sm:$0x3] %vm40, 0.0
    %62 = vst.msk [vmem:[#allocation2 + $0xb0] sm:$0xff] %vm38, 0.0
    %63 = vst.msk [vmem:[#allocation2 + $0xb8] sm:$0x3] %vm40, 0.0
    %64 = vst.msk [vmem:[#allocation2 + $0xc0] sm:$0xff] %vm38, 0.0
    %65 = vst.msk [vmem:[#allocation2 + $0xc8] sm:$0x3] %vm40, 0.0
    %66 = vst.msk [vmem:[#allocation2 + $0xd0] sm:$0xff] %vm38, 0.0
    %67 = vst.msk [vmem:[#allocation2 + $0xd8] sm:$0x3] %vm40, 0.0
    %68 = vst.msk [vmem:[#allocation2 + $0xe0] sm:$0xff] %vm38, 0.0
    %69 = vst.msk [vmem:[#allocation2 + $0xe8] sm:$0x3] %vm40, 0.0
    %70 = vst.msk [vmem:[#allocation2 + $0xf0] sm:$0xff] %vm38, 0.0
    %71 = vst.msk [vmem:[#allocation2 + $0xf8] sm:$0x3] %vm40, 0.0
    %72 = vst.msk [vmem:[#allocation2 + $0x100] sm:$0xff] %vm38, 0.0
    %73 = vst.msk [vmem:[#allocation2 + $0x108] sm:$0x3] %vm40, 0.0
    %74 = vst.msk [vmem:[#allocation2 + $0x110] sm:$0xff] %vm38, 0.0
    %75 = vst.msk [vmem:[#allocation2 + $0x118] sm:$0x3] %vm40, 0.0
    %76 = vst.msk [vmem:[#allocation2 + $0x120] sm:$0xff] %vm38, 0.0
    %77 = vst.msk [vmem:[#allocation2 + $0x128] sm:$0x3] %vm40, 0.0
    %78 = vst.msk [vmem:[#allocation2 + $0x130] sm:$0xff] %vm38, 0.0
    %79 = vst.msk [vmem:[#allocation2 + $0x138] sm:$0x3] %vm40, 0.0
    %v80 = vunpack.c.l.bf16 %v22
    %v81 = vunpack.c.l.bf16 %v23
    %v82 = vunpack.c.l.bf16 %v24
    %v83 = vunpack.c.l.bf16 %v25
    %v84 = vunpack.c.l.bf16 %v26
    %v85 = vunpack.c.l.bf16 %v27
    %v86 = vunpack.c.l.bf16 %v28
    %v87 = vunpack.c.l.bf16 %v29
    %v88 = vunpack.c.l.bf16 %v30
    %v89 = vunpack.c.l.bf16 %v31
    %v90 = vunpack.c.l.bf16 %v32
    %v91 = vunpack.c.l.bf16 %v33
    %v92 = vunpack.c.l.bf16 %v34
    %v93 = vunpack.c.l.bf16 %v35
    %v94 = vunpack.c.l.bf16 %v36
    %v95 = vunpack.c.l.bf16 %v37
    %s96 = scalar_lea.vmem [#allocation2], 16
    %97 = vst.msk [vmem:[%s96 + $0x1] sm:$0xff] %vm38, %v80
    %98 = vst.msk [vmem:[%s96 + $0x11] sm:$0xff] %vm38, %v81
    %99 = vst.msk [vmem:[%s96 + $0x21] sm:$0xff] %vm38, %v82
    %100 = vst.msk [vmem:[%s96 + $0x31] sm:$0xff] %vm38, %v83
    %101 = vst.msk [vmem:[%s96 + $0x41] sm:$0xff] %vm38, %v84
    %102 = vst.msk [vmem:[%s96 + $0x51] sm:$0xff] %vm38, %v85
    %103 = vst.msk [vmem:[%s96 + $0x61] sm:$0xff] %vm38, %v86
    %104 = vst.msk [vmem:[%s96 + $0x71] sm:$0xff] %vm38, %v87
    %105 = vst.msk [vmem:[%s96 + $0xa1] sm:$0xff] %vm38, %v88
    %106 = vst.msk [vmem:[%s96 + $0xb1] sm:$0xff] %vm38, %v89
    %107 = vst.msk [vmem:[%s96 + $0xc1] sm:$0xff] %vm38, %v90
    %108 = vst.msk [vmem:[%s96 + $0xd1] sm:$0xff] %vm38, %v91
    %109 = vst.msk [vmem:[%s96 + $0xe1] sm:$0xff] %vm38, %v92
    %110 = vst.msk [vmem:[%s96 + $0xf1] sm:$0xff] %vm38, %v93
    %111 = vst.msk [vmem:[%s96 + $0x101] sm:$0xff] %vm38, %v94
    %112 = vst.msk [vmem:[%s96 + $0x111] sm:$0xff] %vm38, %v95
    %v113 = vld [vmem:[#allocation2] sm:$0xff]
    %v114 = vld [vmem:[#allocation2 + $0x8] sm:$0x3]
    %v115 = vld [vmem:[#allocation2 + $0x10] sm:$0xff]
    %v116 = vld [vmem:[#allocation2 + $0x18] sm:$0x3]
    %v117 = vld [vmem:[#allocation2 + $0x20] sm:$0xff]
    %v118 = vld [vmem:[#allocation2 + $0x28] sm:$0x3]
    %v119 = vld [vmem:[#allocation2 + $0x30] sm:$0xff]
    %v120 = vld [vmem:[#allocation2 + $0x38] sm:$0x3]
    %v121 = vld [vmem:[#allocation2 + $0x40] sm:$0xff]
    %v122 = vld [vmem:[#allocation2 + $0x48] sm:$0x3]
    %v123 = vld [vmem:[#allocation2 + $0x50] sm:$0xff]
    %v124 = vld [vmem:[#allocation2 + $0x58] sm:$0x3]
    %v125 = vld [vmem:[#allocation2 + $0x60] sm:$0xff]
    %v126 = vld [vmem:[#allocation2 + $0x68] sm:$0x3]
    %v127 = vld [vmem:[#allocation2 + $0x70] sm:$0xff]
    %v128 = vld [vmem:[#allocation2 + $0x78] sm:$0x3]
    %v129 = vld [vmem:[#allocation2 + $0x80] sm:$0xff]
    %v130 = vld [vmem:[#allocation2 + $0x88] sm:$0x3]
    %v131 = vld [vmem:[#allocation2 + $0x90] sm:$0xff]
    %v132 = vld [vmem:[#allocation2 + $0x98] sm:$0x3]
    %v133 = vld [vmem:[#allocation2 + $0xa0] sm:$0xff]
    %v134 = vld [vmem:[#allocation2 + $0xa8] sm:$0x3]
    %v135 = vld [vmem:[#allocation2 + $0xb0] sm:$0xff]
    %v136 = vld [vmem:[#allocation2 + $0xb8] sm:$0x3]
    %v137 = vld [vmem:[#allocation2 + $0xc0] sm:$0xff]
    %v138 = vld [vmem:[#allocation2 + $0xc8] sm:$0x3]
    %v139 = vld [vmem:[#allocation2 + $0xd0] sm:$0xff]
    %v140 = vld [vmem:[#allocation2 + $0xd8] sm:$0x3]
    %v141 = vld [vmem:[#allocation2 + $0xe0] sm:$0xff]
    %v142 = vld [vmem:[#allocation2 + $0xe8] sm:$0x3]
    %v143 = vld [vmem:[#allocation2 + $0xf0] sm:$0xff]
    %v144 = vld [vmem:[#allocation2 + $0xf8] sm:$0x3]
    %v145 = vld [vmem:[#allocation2 + $0x100] sm:$0xff]
    %v146 = vld [vmem:[#allocation2 + $0x108] sm:$0x3]
    %v147 = vld [vmem:[#allocation2 + $0x110] sm:$0xff]
    %v148 = vld [vmem:[#allocation2 + $0x118] sm:$0x3]
    %v149 = vld [vmem:[#allocation2 + $0x120] sm:$0xff]
    %v150 = vld [vmem:[#allocation2 + $0x128] sm:$0x3]
    %v151 = vld [vmem:[#allocation2 + $0x130] sm:$0xff]
    %v152 = vld [vmem:[#allocation2 + $0x138] sm:$0x3]
    %v153 = vpack.c.bf16 %v114, %v113
    %v154 = vpack.c.bf16 %v116, %v115
    %v155 = vpack.c.bf16 %v118, %v117
    %v156 = vpack.c.bf16 %v120, %v119
    %v157 = vpack.c.bf16 %v122, %v121
    %v158 = vpack.c.bf16 %v124, %v123
    %v159 = vpack.c.bf16 %v126, %v125
    %v160 = vpack.c.bf16 %v128, %v127
    %v161 = vpack.c.bf16 %v130, %v129
    %v162 = vpack.c.bf16 %v132, %v131
    %v163 = vpack.c.bf16 %v134, %v133
    %v164 = vpack.c.bf16 %v136, %v135
    %v165 = vpack.c.bf16 %v138, %v137
    %v166 = vpack.c.bf16 %v140, %v139
    %v167 = vpack.c.bf16 %v142, %v141
    %v168 = vpack.c.bf16 %v144, %v143
    %v169 = vpack.c.bf16 %v146, %v145
    %v170 = vpack.c.bf16 %v148, %v147
    %v171 = vpack.c.bf16 %v150, %v149
    %v172 = vpack.c.bf16 %v152, %v151
    %v174 = vshrl.u32 %v153, 16
    %v176 = vshll.u32 %v153, 16
    %v178 = vrot.slane %v176, 1
    %v179 = vor.u32 %v174, %v178
    %v181 = vshrl.u32 %v154, 16
    %v183 = vshll.u32 %v154, 16
    %v185 = vrot.slane %v183, 1
    %v186 = vor.u32 %v181, %v185
    %v188 = vshrl.u32 %v155, 16
    %v190 = vshll.u32 %v155, 16
    %v192 = vrot.slane %v190, 1
    %v193 = vor.u32 %v188, %v192
    %v195 = vshrl.u32 %v156, 16
    %v197 = vshll.u32 %v156, 16
    %v199 = vrot.slane %v197, 1
    %v200 = vor.u32 %v195, %v199
    %v202 = vshrl.u32 %v157, 16
    %v204 = vshll.u32 %v157, 16
    %v206 = vrot.slane %v204, 1
    %v207 = vor.u32 %v202, %v206
    %v209 = vshrl.u32 %v158, 16
    %v211 = vshll.u32 %v158, 16
    %v213 = vrot.slane %v211, 1
    %v214 = vor.u32 %v209, %v213
    %v216 = vshrl.u32 %v159, 16
    %v218 = vshll.u32 %v159, 16
    %v220 = vrot.slane %v218, 1
    %v221 = vor.u32 %v216, %v220
    %v223 = vshrl.u32 %v160, 16
    %v225 = vshll.u32 %v160, 16
    %v227 = vrot.slane %v225, 1
    %v228 = vor.u32 %v223, %v227
    %v230 = vshrl.u32 %v163, 16
    %v232 = vshll.u32 %v163, 16
    %v234 = vrot.slane %v232, 1
    %v235 = vor.u32 %v230, %v234
    %v237 = vshrl.u32 %v164, 16
    %v239 = vshll.u32 %v164, 16
    %v241 = vrot.slane %v239, 1
    %v242 = vor.u32 %v237, %v241
    %v244 = vshrl.u32 %v165, 16
    %v246 = vshll.u32 %v165, 16
    %v248 = vrot.slane %v246, 1
    %v249 = vor.u32 %v244, %v248
    %v251 = vshrl.u32 %v166, 16
    %v253 = vshll.u32 %v166, 16
    %v255 = vrot.slane %v253, 1
    %v256 = vor.u32 %v251, %v255
    %v258 = vshrl.u32 %v167, 16
    %v260 = vshll.u32 %v167, 16
    %v262 = vrot.slane %v260, 1
    %v263 = vor.u32 %v258, %v262
    %v265 = vshrl.u32 %v168, 16
    %v267 = vshll.u32 %v168, 16
    %v269 = vrot.slane %v267, 1
    %v270 = vor.u32 %v265, %v269
    %v272 = vshrl.u32 %v169, 16
    %v274 = vshll.u32 %v169, 16
    %v276 = vrot.slane %v274, 1
    %v277 = vor.u32 %v272, %v276
    %v279 = vshrl.u32 %v170, 16
    %v281 = vshll.u32 %v170, 16
    %v283 = vrot.slane %v281, 1
    %v284 = vor.u32 %v279, %v283
    %285 = vrot.lane.b32.xlu0 %v179, 8
    %v286 = vpop.permute.xlu0 %285
    %287 = vrot.lane.b32.xlu0 %v186, 8
    %v288 = vpop.permute.xlu0 %287
    %289 = vrot.lane.b32.xlu0 %v193, 8
    %v290 = vpop.permute.xlu0 %289
    %291 = vrot.lane.b32.xlu0 %v200, 8
    %v292 = vpop.permute.xlu0 %291
    %293 = vrot.lane.b32.xlu0 %v207, 8
    %v294 = vpop.permute.xlu0 %293
    %295 = vrot.lane.b32.xlu0 %v214, 8
    %v296 = vpop.permute.xlu0 %295
    %297 = vrot.lane.b32.xlu0 %v221, 8
    %v298 = vpop.permute.xlu0 %297
    %299 = vrot.lane.b32.xlu0 %v228, 8
    %v300 = vpop.permute.xlu0 %299
    %301 = vrot.lane.b32.xlu0 %v235, 8
    %v302 = vpop.permute.xlu0 %301
    %303 = vrot.lane.b32.xlu0 %v242, 8
    %v304 = vpop.permute.xlu0 %303
    %305 = vrot.lane.b32.xlu0 %v249, 8
    %v306 = vpop.permute.xlu0 %305
    %307 = vrot.lane.b32.xlu0 %v256, 8
    %v308 = vpop.permute.xlu0 %307
    %309 = vrot.lane.b32.xlu0 %v263, 8
    %v310 = vpop.permute.xlu0 %309
    %311 = vrot.lane.b32.xlu0 %v270, 8
    %v312 = vpop.permute.xlu0 %311
    %313 = vrot.lane.b32.xlu0 %v277, 8
    %v314 = vpop.permute.xlu0 %313
    %315 = vrot.lane.b32.xlu0 %v284, 8
    %v316 = vpop.permute.xlu0 %315
    %v333 = vrot.slane %v153, 1
    %v334 = vrot.slane %v154, 1
    %v335 = vrot.slane %v155, 1
    %v336 = vrot.slane %v156, 1
    %v337 = vrot.slane %v157, 1
    %v338 = vrot.slane %v158, 1
    %v339 = vrot.slane %v159, 1
    %v340 = vrot.slane %v160, 1
    %v341 = vrot.slane %v163, 1
    %v342 = vrot.slane %v164, 1
    %v343 = vrot.slane %v165, 1
    %v344 = vrot.slane %v166, 1
    %v345 = vrot.slane %v167, 1
    %v346 = vrot.slane %v168, 1
    %v347 = vrot.slane %v169, 1
    %v348 = vrot.slane %v170, 1
    %349 = vrot.lane.b32.xlu0 %v333, 16
    %v350 = vpop.permute.xlu0 %349
    %351 = vrot.lane.b32.xlu0 %v334, 16
    %v352 = vpop.permute.xlu0 %351
    %353 = vrot.lane.b32.xlu0 %v335, 16
    %v354 = vpop.permute.xlu0 %353
    %355 = vrot.lane.b32.xlu0 %v336, 16
    %v356 = vpop.permute.xlu0 %355
    %357 = vrot.lane.b32.xlu0 %v337, 16
    %v358 = vpop.permute.xlu0 %357
    %359 = vrot.lane.b32.xlu0 %v338, 16
    %v360 = vpop.permute.xlu0 %359
    %361 = vrot.lane.b32.xlu0 %v339, 16
    %v362 = vpop.permute.xlu0 %361
    %363 = vrot.lane.b32.xlu0 %v340, 16
    %v364 = vpop.permute.xlu0 %363
    %365 = vrot.lane.b32.xlu0 %v341, 16
    %v366 = vpop.permute.xlu0 %365
    %367 = vrot.lane.b32.xlu0 %v342, 16
    %v368 = vpop.permute.xlu0 %367
    %369 = vrot.lane.b32.xlu0 %v343, 16
    %v370 = vpop.permute.xlu0 %369
    %371 = vrot.lane.b32.xlu0 %v344, 16
    %v372 = vpop.permute.xlu0 %371
    %373 = vrot.lane.b32.xlu0 %v345, 16
    %v374 = vpop.permute.xlu0 %373
    %375 = vrot.lane.b32.xlu0 %v346, 16
    %v376 = vpop.permute.xlu0 %375
    %377 = vrot.lane.b32.xlu0 %v347, 16
    %v378 = vpop.permute.xlu0 %377
    %379 = vrot.lane.b32.xlu0 %v348, 16
    %v380 = vpop.permute.xlu0 %379
    %383 = vrot.lane.b32.xlu0 %v154, 24
    %v384 = vpop.permute.xlu0 %383
    %385 = vrot.lane.b32.xlu0 %v155, 24
    %v386 = vpop.permute.xlu0 %385
    %387 = vrot.lane.b32.xlu0 %v156, 24
    %v388 = vpop.permute.xlu0 %387
    %389 = vrot.lane.b32.xlu0 %v157, 24
    %v390 = vpop.permute.xlu0 %389
    %391 = vrot.lane.b32.xlu0 %v158, 24
    %v392 = vpop.permute.xlu0 %391
    %393 = vrot.lane.b32.xlu0 %v159, 24
    %v394 = vpop.permute.xlu0 %393
    %395 = vrot.lane.b32.xlu0 %v160, 24
    %v396 = vpop.permute.xlu0 %395
    %397 = vrot.lane.b32.xlu0 %v161, 24
    %v398 = vpop.permute.xlu0 %397
    %399 = vrot.lane.b32.xlu0 %v164, 24
    %v400 = vpop.permute.xlu0 %399
    %401 = vrot.lane.b32.xlu0 %v165, 24
    %v402 = vpop.permute.xlu0 %401
    %403 = vrot.lane.b32.xlu0 %v166, 24
    %v404 = vpop.permute.xlu0 %403
    %405 = vrot.lane.b32.xlu0 %v167, 24
    %v406 = vpop.permute.xlu0 %405
    %407 = vrot.lane.b32.xlu0 %v168, 24
    %v408 = vpop.permute.xlu0 %407
    %409 = vrot.lane.b32.xlu0 %v169, 24
    %v410 = vpop.permute.xlu0 %409
    %411 = vrot.lane.b32.xlu0 %v170, 24
    %v412 = vpop.permute.xlu0 %411
    %413 = vrot.lane.b32.xlu0 %v171, 24
    %v414 = vpop.permute.xlu0 %413
    %v416 = vshrl.u32 %v161, 16
    %v418 = vshll.u32 %v161, 16
    %v420 = vrot.slane %v418, 1
    %v421 = vor.u32 %v416, %v420
    %v423 = vshrl.u32 %v171, 16
    %v425 = vshll.u32 %v171, 16
    %v427 = vrot.slane %v425, 1
    %v428 = vor.u32 %v423, %v427
    %429 = vrot.lane.b32.xlu0 %v186, 32
    %v430 = vpop.permute.xlu0 %429
    %431 = vrot.lane.b32.xlu0 %v193, 32
    %v432 = vpop.permute.xlu0 %431
    %433 = vrot.lane.b32.xlu0 %v200, 32
    %v434 = vpop.permute.xlu0 %433
    %435 = vrot.lane.b32.xlu0 %v207, 32
    %v436 = vpop.permute.xlu0 %435
    %437 = vrot.lane.b32.xlu0 %v214, 32
    %v438 = vpop.permute.xlu0 %437
    %439 = vrot.lane.b32.xlu0 %v221, 32
    %v440 = vpop.permute.xlu0 %439
    %441 = vrot.lane.b32.xlu0 %v228, 32
    %v442 = vpop.permute.xlu0 %441
    %443 = vrot.lane.b32.xlu0 %v421, 32
    %v444 = vpop.permute.xlu0 %443
    %445 = vrot.lane.b32.xlu0 %v242, 32
    %v446 = vpop.permute.xlu0 %445
    %447 = vrot.lane.b32.xlu0 %v249, 32
    %v448 = vpop.permute.xlu0 %447
    %449 = vrot.lane.b32.xlu0 %v256, 32
    %v450 = vpop.permute.xlu0 %449
    %451 = vrot.lane.b32.xlu0 %v263, 32
    %v452 = vpop.permute.xlu0 %451
    %453 = vrot.lane.b32.xlu0 %v270, 32
    %v454 = vpop.permute.xlu0 %453
    %455 = vrot.lane.b32.xlu0 %v277, 32
    %v456 = vpop.permute.xlu0 %455
    %457 = vrot.lane.b32.xlu0 %v284, 32
    %v458 = vpop.permute.xlu0 %457
    %459 = vrot.lane.b32.xlu0 %v428, 32
    %v460 = vpop.permute.xlu0 %459
    %v461 = vrot.slane %v161, 1
    %v462 = vrot.slane %v171, 1
    %463 = vrot.lane.b32.xlu0 %v334, 40
    %v464 = vpop.permute.xlu0 %463
    %465 = vrot.lane.b32.xlu0 %v335, 40
    %v466 = vpop.permute.xlu0 %465
    %467 = vrot.lane.b32.xlu0 %v336, 40
    %v468 = vpop.permute.xlu0 %467
    %469 = vrot.lane.b32.xlu0 %v337, 40
    %v470 = vpop.permute.xlu0 %469
    %471 = vrot.lane.b32.xlu0 %v338, 40
    %v472 = vpop.permute.xlu0 %471
    %473 = vrot.lane.b32.xlu0 %v339, 40
    %v474 = vpop.permute.xlu0 %473
    %475 = vrot.lane.b32.xlu0 %v340, 40
    %v476 = vpop.permute.xlu0 %475
    %477 = vrot.lane.b32.xlu0 %v461, 40
    %v478 = vpop.permute.xlu0 %477
    %479 = vrot.lane.b32.xlu0 %v342, 40
    %v480 = vpop.permute.xlu0 %479
    %481 = vrot.lane.b32.xlu0 %v343, 40
    %v482 = vpop.permute.xlu0 %481
    %483 = vrot.lane.b32.xlu0 %v344, 40
    %v484 = vpop.permute.xlu0 %483
    %485 = vrot.lane.b32.xlu0 %v345, 40
    %v486 = vpop.permute.xlu0 %485
    %487 = vrot.lane.b32.xlu0 %v346, 40
    %v488 = vpop.permute.xlu0 %487
    %489 = vrot.lane.b32.xlu0 %v347, 40
    %v490 = vpop.permute.xlu0 %489
    %491 = vrot.lane.b32.xlu0 %v348, 40
    %v492 = vpop.permute.xlu0 %491
    %493 = vrot.lane.b32.xlu0 %v462, 40
    %v494 = vpop.permute.xlu0 %493
    %497 = vrot.lane.b32.xlu0 %v155, 48
    %v498 = vpop.permute.xlu0 %497
    %499 = vrot.lane.b32.xlu0 %v156, 48
    %v500 = vpop.permute.xlu0 %499
    %501 = vrot.lane.b32.xlu0 %v157, 48
    %v502 = vpop.permute.xlu0 %501
    %503 = vrot.lane.b32.xlu0 %v158, 48
    %v504 = vpop.permute.xlu0 %503
    %505 = vrot.lane.b32.xlu0 %v159, 48
    %v506 = vpop.permute.xlu0 %505
    %507 = vrot.lane.b32.xlu0 %v160, 48
    %v508 = vpop.permute.xlu0 %507
    %509 = vrot.lane.b32.xlu0 %v161, 48
    %v510 = vpop.permute.xlu0 %509
    %511 = vrot.lane.b32.xlu0 %v162, 48
    %v512 = vpop.permute.xlu0 %511
    %513 = vrot.lane.b32.xlu0 %v165, 48
    %v514 = vpop.permute.xlu0 %513
    %515 = vrot.lane.b32.xlu0 %v166, 48
    %v516 = vpop.permute.xlu0 %515
    %517 = vrot.lane.b32.xlu0 %v167, 48
    %v518 = vpop.permute.xlu0 %517
    %519 = vrot.lane.b32.xlu0 %v168, 48
    %v520 = vpop.permute.xlu0 %519
    %521 = vrot.lane.b32.xlu0 %v169, 48
    %v522 = vpop.permute.xlu0 %521
    %523 = vrot.lane.b32.xlu0 %v170, 48
    %v524 = vpop.permute.xlu0 %523
    %525 = vrot.lane.b32.xlu0 %v171, 48
    %v526 = vpop.permute.xlu0 %525
    %527 = vrot.lane.b32.xlu0 %v172, 48
    %v528 = vpop.permute.xlu0 %527
    %v530 = vshrl.u32 %v162, 16
    %v532 = vshll.u32 %v162, 16
    %v534 = vrot.slane %v532, 1
    %v535 = vor.u32 %v530, %v534
    %v537 = vshrl.u32 %v172, 16
    %v539 = vshll.u32 %v172, 16
    %v541 = vrot.slane %v539, 1
    %v542 = vor.u32 %v537, %v541
    %543 = vrot.lane.b32.xlu0 %v193, 56
    %v544 = vpop.permute.xlu0 %543
    %545 = vrot.lane.b32.xlu0 %v200, 56
    %v546 = vpop.permute.xlu0 %545
    %547 = vrot.lane.b32.xlu0 %v207, 56
    %v548 = vpop.permute.xlu0 %547
    %549 = vrot.lane.b32.xlu0 %v214, 56
    %v550 = vpop.permute.xlu0 %549
    %551 = vrot.lane.b32.xlu0 %v221, 56
    %v552 = vpop.permute.xlu0 %551
    %553 = vrot.lane.b32.xlu0 %v228, 56
    %v554 = vpop.permute.xlu0 %553
    %555 = vrot.lane.b32.xlu0 %v421, 56
    %v556 = vpop.permute.xlu0 %555
    %557 = vrot.lane.b32.xlu0 %v535, 56
    %v558 = vpop.permute.xlu0 %557
    %559 = vrot.lane.b32.xlu0 %v249, 56
    %v560 = vpop.permute.xlu0 %559
    %561 = vrot.lane.b32.xlu0 %v256, 56
    %v562 = vpop.permute.xlu0 %561
    %563 = vrot.lane.b32.xlu0 %v263, 56
    %v564 = vpop.permute.xlu0 %563
    %565 = vrot.lane.b32.xlu0 %v270, 56
    %v566 = vpop.permute.xlu0 %565
    %567 = vrot.lane.b32.xlu0 %v277, 56
    %v568 = vpop.permute.xlu0 %567
    %569 = vrot.lane.b32.xlu0 %v284, 56
    %v570 = vpop.permute.xlu0 %569
    %571 = vrot.lane.b32.xlu0 %v428, 56
    %v572 = vpop.permute.xlu0 %571
    %573 = vrot.lane.b32.xlu0 %v542, 56
    %v574 = vpop.permute.xlu0 %573
    %v575 = vrot.slane %v162, 1
    %v576 = vrot.slane %v172, 1
    %577 = vrot.lane.b32.xlu0 %v335, 64
    %v578 = vpop.permute.xlu0 %577
    %579 = vrot.lane.b32.xlu0 %v336, 64
    %v580 = vpop.permute.xlu0 %579
    %581 = vrot.lane.b32.xlu0 %v337, 64
    %v582 = vpop.permute.xlu0 %581
    %583 = vrot.lane.b32.xlu0 %v338, 64
    %v584 = vpop.permute.xlu0 %583
    %585 = vrot.lane.b32.xlu0 %v339, 64
    %v586 = vpop.permute.xlu0 %585
    %587 = vrot.lane.b32.xlu0 %v340, 64
    %v588 = vpop.permute.xlu0 %587
    %589 = vrot.lane.b32.xlu0 %v461, 64
    %v590 = vpop.permute.xlu0 %589
    %591 = vrot.lane.b32.xlu0 %v575, 64
    %v592 = vpop.permute.xlu0 %591
    %593 = vrot.lane.b32.xlu0 %v343, 64
    %v594 = vpop.permute.xlu0 %593
    %595 = vrot.lane.b32.xlu0 %v344, 64
    %v596 = vpop.permute.xlu0 %595
    %597 = vrot.lane.b32.xlu0 %v345, 64
    %v598 = vpop.permute.xlu0 %597
    %599 = vrot.lane.b32.xlu0 %v346, 64
    %v600 = vpop.permute.xlu0 %599
    %601 = vrot.lane.b32.xlu0 %v347, 64
    %v602 = vpop.permute.xlu0 %601
    %603 = vrot.lane.b32.xlu0 %v348, 64
    %v604 = vpop.permute.xlu0 %603
    %605 = vrot.lane.b32.xlu0 %v462, 64
    %v606 = vpop.permute.xlu0 %605
    %607 = vrot.lane.b32.xlu0 %v576, 64
    %v608 = vpop.permute.xlu0 %607
    %v610 = vsel %vm38, %v153, %v286
    %v612 = vsel %vm38, %v154, %v288
    %v614 = vsel %vm38, %v155, %v290
    %v616 = vsel %vm38, %v156, %v292
    %v618 = vsel %vm38, %v157, %v294
    %v620 = vsel %vm38, %v158, %v296
    %v622 = vsel %vm38, %v159, %v298
    %v624 = vsel %vm38, %v160, %v300
    %v626 = vsel %vm38, %v163, %v302
    %v628 = vsel %vm38, %v164, %v304
    %v630 = vsel %vm38, %v165, %v306
    %v632 = vsel %vm38, %v166, %v308
    %v634 = vsel %vm38, %v167, %v310
    %v636 = vsel %vm38, %v168, %v312
    %v638 = vsel %vm38, %v169, %v314
    %v640 = vsel %vm38, %v170, %v316
    %vm641 = vcmask 130048
    %v643 = vsel %vm641, %v610, %v350
    %v645 = vsel %vm641, %v612, %v352
    %v647 = vsel %vm641, %v614, %v354
    %v649 = vsel %vm641, %v616, %v356
    %v651 = vsel %vm641, %v618, %v358
    %v653 = vsel %vm641, %v620, %v360
    %v655 = vsel %vm641, %v622, %v362
    %v657 = vsel %vm641, %v624, %v364
    %v659 = vsel %vm641, %v626, %v366
    %v661 = vsel %vm641, %v628, %v368
    %v663 = vsel %vm641, %v630, %v370
    %v665 = vsel %vm641, %v632, %v372
    %v667 = vsel %vm641, %v634, %v374
    %v669 = vsel %vm641, %v636, %v376
    %v671 = vsel %vm641, %v638, %v378
    %v673 = vsel %vm641, %v640, %v380
    %vm674 = vcmask 195584
    %v676 = vsel %vm674, %v643, %v384
    %v678 = vsel %vm674, %v645, %v386
    %v680 = vsel %vm674, %v647, %v388
    %v682 = vsel %vm674, %v649, %v390
    %v684 = vsel %vm674, %v651, %v392
    %v686 = vsel %vm674, %v653, %v394
    %v688 = vsel %vm674, %v655, %v396
    %v690 = vsel %vm674, %v657, %v398
    %v692 = vsel %vm674, %v659, %v400
    %v694 = vsel %vm674, %v661, %v402
    %v696 = vsel %vm674, %v663, %v404
    %v698 = vsel %vm674, %v665, %v406
    %v700 = vsel %vm674, %v667, %v408
    %v702 = vsel %vm674, %v669, %v410
    %v704 = vsel %vm674, %v671, %v412
    %v706 = vsel %vm674, %v673, %v414
    %vm707 = vcmask 261120
    %v709 = vsel %vm707, %v676, %v430
    %v711 = vsel %vm707, %v678, %v432
    %v713 = vsel %vm707, %v680, %v434
    %v715 = vsel %vm707, %v682, %v436
    %v717 = vsel %vm707, %v684, %v438
    %v719 = vsel %vm707, %v686, %v440
    %v721 = vsel %vm707, %v688, %v442
    %v723 = vsel %vm707, %v690, %v444
    %v725 = vsel %vm707, %v692, %v446
    %v727 = vsel %vm707, %v694, %v448
    %v729 = vsel %vm707, %v696, %v450
    %v731 = vsel %vm707, %v698, %v452
    %v733 = vsel %vm707, %v700, %v454
    %v735 = vsel %vm707, %v702, %v456
    %v737 = vsel %vm707, %v704, %v458
    %v739 = vsel %vm707, %v706, %v460
    %vm740 = vcmask 326656
    %v742 = vsel %vm740, %v709, %v464
    %v744 = vsel %vm740, %v711, %v466
    %v746 = vsel %vm740, %v713, %v468
    %v748 = vsel %vm740, %v715, %v470
    %v750 = vsel %vm740, %v717, %v472
    %v752 = vsel %vm740, %v719, %v474
    %v754 = vsel %vm740, %v721, %v476
    %v756 = vsel %vm740, %v723, %v478
    %v758 = vsel %vm740, %v725, %v480
    %v760 = vsel %vm740, %v727, %v482
    %v762 = vsel %vm740, %v729, %v484
    %v764 = vsel %vm740, %v731, %v486
    %v766 = vsel %vm740, %v733, %v488
    %v768 = vsel %vm740, %v735, %v490
    %v770 = vsel %vm740, %v737, %v492
    %v772 = vsel %vm740, %v739, %v494
    %vm773 = vcmask 392192
    %v775 = vsel %vm773, %v742, %v498
    %v777 = vsel %vm773, %v744, %v500
    %v779 = vsel %vm773, %v746, %v502
    %v781 = vsel %vm773, %v748, %v504
    %v783 = vsel %vm773, %v750, %v506
    %v785 = vsel %vm773, %v752, %v508
    %v787 = vsel %vm773, %v754, %v510
    %v789 = vsel %vm773, %v756, %v512
    %v791 = vsel %vm773, %v758, %v514
    %v793 = vsel %vm773, %v760, %v516
    %v795 = vsel %vm773, %v762, %v518
    %v797 = vsel %vm773, %v764, %v520
    %v799 = vsel %vm773, %v766, %v522
    %v801 = vsel %vm773, %v768, %v524
    %v803 = vsel %vm773, %v770, %v526
    %v805 = vsel %vm773, %v772, %v528
    %vm806 = vcmask 457728
    %v808 = vsel %vm806, %v775, %v544
    %v810 = vsel %vm806, %v777, %v546
    %v812 = vsel %vm806, %v779, %v548
    %v814 = vsel %vm806, %v781, %v550
    %v816 = vsel %vm806, %v783, %v552
    %v818 = vsel %vm806, %v785, %v554
    %v820 = vsel %vm806, %v787, %v556
    %v822 = vsel %vm806, %v789, %v558
    %v824 = vsel %vm806, %v791, %v560
    %v826 = vsel %vm806, %v793, %v562
    %v828 = vsel %vm806, %v795, %v564
    %v830 = vsel %vm806, %v797, %v566
    %v832 = vsel %vm806, %v799, %v568
    %v834 = vsel %vm806, %v801, %v570
    %v836 = vsel %vm806, %v803, %v572
    %v838 = vsel %vm806, %v805, %v574
    %vm839 = vcmask 523264
    %v841 = vsel %vm839, %v808, %v578
    %v843 = vsel %vm839, %v810, %v580
    %v845 = vsel %vm839, %v812, %v582
    %v847 = vsel %vm839, %v814, %v584
    %v849 = vsel %vm839, %v816, %v586
    %v851 = vsel %vm839, %v818, %v588
    %v853 = vsel %vm839, %v820, %v590
    %v855 = vsel %vm839, %v822, %v592
    %v857 = vsel %vm839, %v824, %v594
    %v859 = vsel %vm839, %v826, %v596
    %v861 = vsel %vm839, %v828, %v598
    %v863 = vsel %vm839, %v830, %v600
    %v865 = vsel %vm839, %v832, %v602
    %v867 = vsel %vm839, %v834, %v604
    %v869 = vsel %vm839, %v836, %v606
    %v871 = vsel %vm839, %v838, %v608
    %v872 = vld [vmem:[%s1] sm:$0xf]
    %v873 = vld [vmem:[%s1 + $0x4] sm:$0xf]
    %v874 = vld [vmem:[%s1 + $0x8] sm:$0xf]
    %v875 = vld [vmem:[%s1 + $0xc] sm:$0xf]
    %v876 = vld [vmem:[%s1 + $0x10] sm:$0xf]
    %v877 = vld [vmem:[%s1 + $0x14] sm:$0xf]
    %v878 = vld [vmem:[%s1 + $0x18] sm:$0xf]
    %v879 = vld [vmem:[%s1 + $0x1c] sm:$0xf]
    %v880 = vld [vmem:[%s1 + $0x20] sm:$0xf]
    %v881 = vld [vmem:[%s2] sm:$0x1]
    %v882 = vlaneseq
    %v883 = vshrl.u32 %v882, 7
    %v884 = vsub.s32 0, %v883
    %v885 = vrot.slane %v881, %v884
    %v902 = vunpack.c.l.b16 %v841
    %v903 = vunpack.c.l.b16 %v843
    %v904 = vunpack.c.l.b16 %v845
    %v905 = vunpack.c.l.b16 %v847
    %v906 = vunpack.c.l.b16 %v849
    %v907 = vunpack.c.l.b16 %v851
    %v908 = vunpack.c.l.b16 %v853
    %v909 = vunpack.c.l.b16 %v855
    %v910 = vunpack.c.l.b16 %v857
    %v911 = vunpack.c.l.b16 %v859
    %v912 = vunpack.c.l.b16 %v861
    %v913 = vunpack.c.l.b16 %v863
    %v914 = vunpack.c.l.b16 %v865
    %v915 = vunpack.c.l.b16 %v867
    %v916 = vunpack.c.l.b16 %v869
    %v917 = vunpack.c.l.b16 %v871
    %v918 = vpack.c.b16 %v903, %v902
    %v919 = vpack.c.b16 %v905, %v904
    %v920 = vpack.c.b16 %v907, %v906
    %v921 = vpack.c.b16 %v909, %v908
    %v922 = vpack.c.b16 %v911, %v910
    %v923 = vpack.c.b16 %v913, %v912
    %v924 = vpack.c.b16 %v915, %v914
    %v925 = vpack.c.b16 %v917, %v916
    %v935 = vunpack.c.l.b16 %v872
    %v936 = vunpack.c.l.b16 %v873
    %v937 = vunpack.c.l.b16 %v874
    %v938 = vunpack.c.l.b16 %v875
    %v939 = vunpack.c.l.b16 %v876
    %v940 = vunpack.c.l.b16 %v877
    %v941 = vunpack.c.l.b16 %v878
    %v942 = vunpack.c.l.b16 %v879
    %v943 = vunpack.c.l.b16 %v880
    %v944 = vpack.c.b16 %v936, %v935
    %v945 = vpack.c.b16 %v938, %v937
    %v946 = vpack.c.b16 %v940, %v939
    %v947 = vpack.c.b16 %v942, %v941
    %v948 = vpack.c.b16 %v943, %v943
    %vm953 = vcmask 588800
    %v955 = vsel %vm953, %v918, 0
    %v958 = vsel %vm953, %v919, 0
    %v961 = vsel %vm953, %v920, 0
    %v964 = vsel %vm953, %v921, 0
    %v967 = vsel %vm953, %v922, 0
    %v970 = vsel %vm953, %v923, 0
    %v973 = vsel %vm953, %v924, 0
    %v976 = vsel %vm953, %v925, 0
    %vm978 = vcmask 1043456
    %v980 = vsel %vm978, %v948, 0
    %982 = vmatprep.subr.bf16.mxu0 0
    %983 = vmatpush1.bf16.msra.mxu0 0
    %984 = vmatprep.subr.bf16.mxu0 0
    %985 = vmatpush1.bf16.msra.mxu0 0
    %986 = vmatprep.subr.bf16.mxu0 0
    %987 = vmatpush1.bf16.msra.mxu0 0
    %988 = vmatprep.subr.bf16.mxu0 0
    %989 = vmatpush1.bf16.msra.mxu0 %v980
    %990 = vmatprep.subr.bf16.mxu0 0
    %991 = vmatpush1.bf16.msra.mxu0 %v947
    %992 = vmatprep.subr.bf16.mxu0 0
    %993 = vmatpush1.bf16.msra.mxu0 %v946
    %994 = vmatprep.subr.bf16.mxu0 0
    %995 = vmatpush1.bf16.msra.mxu0 %v945
    %996 = vmatprep.subr.bf16.mxu0 0
    %997 = vmatpush1.bf16.msra.mxu0 %v944
    %998 = vmatprep.subr.bf16.mxu0 0
    %999 = vmatpush2.bf16.msra.mxu0 0
    %1000 = vmatprep.subr.bf16.mxu0 0
    %1001 = vmatpush2.bf16.msra.mxu0 0
    %1002 = vmatprep.subr.bf16.mxu0 0
    %1003 = vmatpush2.bf16.msra.mxu0 0
    %1004 = vmatprep.subr.bf16.mxu0 0
    %1005 = vmatpush2.bf16.msra.mxu0 0
    %1006 = vmatprep.subr.bf16.mxu0 0
    %1007 = vmatpush2.bf16.msra.mxu0 0
    %1008 = vmatprep.subr.bf16.mxu0 0
    %1009 = vmatpush2.bf16.msra.mxu0 0
    %1010 = vmatprep.subr.bf16.mxu0 0
    %1011 = vmatpush2.bf16.msra.mxu0 0
    %1012 = vmatprep.subr.bf16.mxu0 0
    %1013 = vmatpush2.bf16.msra.mxu0 0
    %1014 = vmatprep.mubr.bf16.mxu0 0
    %1015 = vmatmul.mubr.bf16.gmra.mxu0 %v955
    %v1016 = vpop.f32.mrf.mxu0
    %v1017 = vadd.f32 %v885, %v1016
    %v1018 = vpop.f32.mrf.mxu0
    %v1019 = vpop.f32.mrf.mxu0
    %v1020 = vadd.f32 %v885, %v1019
    %v1021 = vpop.f32.mrf.mxu0
    %1022 = vmatprep.mubr.bf16.mxu0 0
    %1023 = vmatmul.mubr.bf16.gmra.mxu0 %v958
    %v1024 = vpop.f32.mrf.mxu0
    %v1025 = vadd.f32 %v885, %v1024
    %v1026 = vpop.f32.mrf.mxu0
    %v1027 = vpop.f32.mrf.mxu0
    %v1028 = vadd.f32 %v885, %v1027
    %v1029 = vpop.f32.mrf.mxu0
    %1030 = vmatprep.mubr.bf16.mxu0 0
    %1031 = vmatmul.mubr.bf16.gmra.mxu0 %v961
    %v1032 = vpop.f32.mrf.mxu0
    %v1033 = vadd.f32 %v885, %v1032
    %v1034 = vpop.f32.mrf.mxu0
    %v1035 = vpop.f32.mrf.mxu0
    %v1036 = vadd.f32 %v885, %v1035
    %v1037 = vpop.f32.mrf.mxu0
    %1038 = vmatprep.mubr.bf16.mxu0 0
    %1039 = vmatmul.mubr.bf16.gmra.mxu0 %v964
    %v1040 = vpop.f32.mrf.mxu0
    %v1041 = vadd.f32 %v885, %v1040
    %v1042 = vpop.f32.mrf.mxu0
    %v1043 = vpop.f32.mrf.mxu0
    %v1044 = vadd.f32 %v885, %v1043
    %v1045 = vpop.f32.mrf.mxu0
    %1046 = vmatprep.mubr.bf16.mxu0 0
    %1047 = vmatmul.mubr.bf16.gmra.mxu0 %v967
    %v1048 = vpop.f32.mrf.mxu0
    %v1049 = vadd.f32 %v885, %v1048
    %v1050 = vpop.f32.mrf.mxu0
    %v1051 = vpop.f32.mrf.mxu0
    %v1052 = vadd.f32 %v885, %v1051
    %v1053 = vpop.f32.mrf.mxu0
    %1054 = vmatprep.mubr.bf16.mxu0 0
    %1055 = vmatmul.mubr.bf16.gmra.mxu0 %v970
    %v1056 = vpop.f32.mrf.mxu0
    %v1057 = vadd.f32 %v885, %v1056
    %v1058 = vpop.f32.mrf.mxu0
    %v1059 = vpop.f32.mrf.mxu0
    %v1060 = vadd.f32 %v885, %v1059
    %v1061 = vpop.f32.mrf.mxu0
    %1062 = vmatprep.mubr.bf16.mxu0 0
    %1063 = vmatmul.mubr.bf16.gmra.mxu0 %v973
    %v1064 = vpop.f32.mrf.mxu0
    %v1065 = vadd.f32 %v885, %v1064
    %v1066 = vpop.f32.mrf.mxu0
    %v1067 = vpop.f32.mrf.mxu0
    %v1068 = vadd.f32 %v885, %v1067
    %v1069 = vpop.f32.mrf.mxu0
    %1070 = vmatprep.mubr.bf16.mxu0 0
    %1071 = vmatmul.mubr.bf16.gmra.mxu0 %v976
    %v1072 = vpop.f32.mrf.mxu0
    %v1073 = vadd.f32 %v885, %v1072
    %v1074 = vpop.f32.mrf.mxu0
    %v1075 = vpop.f32.mrf.mxu0
    %v1076 = vadd.f32 %v885, %v1075
    %v1077 = vpop.f32.mrf.mxu0
    %1078 = vdwg.mxu0
    %v1079 = vsel %vm641, %v1017, 0.0
    %v1080 = vsel %vm641, %v1020, 0.0
    %v1081 = vadd.f32 %v1079, %v1080
    %v1082 = vsel %vm641, %v1025, 0.0
    %v1083 = vadd.f32 %v1081, %v1082
    %v1084 = vsel %vm641, %v1028, 0.0
    %v1085 = vadd.f32 %v1083, %v1084
    %v1086 = vsel %vm641, %v1033, 0.0
    %v1087 = vadd.f32 %v1085, %v1086
    %v1088 = vsel %vm641, %v1036, 0.0
    %v1089 = vadd.f32 %v1087, %v1088
    %v1090 = vsel %vm641, %v1041, 0.0
    %v1091 = vadd.f32 %v1089, %v1090
    %v1092 = vsel %vm641, %v1044, 0.0
    %v1093 = vadd.f32 %v1091, %v1092
    %v1094 = vsel %vm641, %v1049, 0.0
    %v1095 = vadd.f32 %v1093, %v1094
    %v1096 = vsel %vm641, %v1052, 0.0
    %v1097 = vadd.f32 %v1095, %v1096
    %v1098 = vsel %vm641, %v1057, 0.0
    %v1099 = vadd.f32 %v1097, %v1098
    %v1100 = vsel %vm641, %v1060, 0.0
    %v1101 = vadd.f32 %v1099, %v1100
    %v1102 = vsel %vm641, %v1065, 0.0
    %v1103 = vadd.f32 %v1101, %v1102
    %v1104 = vsel %vm641, %v1068, 0.0
    %v1105 = vadd.f32 %v1103, %v1104
    %v1106 = vsel %vm641, %v1073, 0.0
    %v1107 = vadd.f32 %v1105, %v1106
    %v1108 = vsel %vm641, %v1076, 0.0
    %v1109 = vadd.f32 %v1107, %v1108
    %v1110 = vrot.slane %v1109, 4
    %v1111 = vadd.f32 %v1109, %v1110
    %v1112 = vrot.slane %v1111, 2
    %v1113 = vadd.f32 %v1111, %v1112
    %v1114 = vrot.slane %v1113, 1
    %v1115 = vadd.f32 %v1113, %v1114
    %v1116 = vmul.f32 %v1017, %v1017
    %v1117 = vmul.f32 %v1020, %v1020
    %v1118 = vmul.f32 %v1025, %v1025
    %v1119 = vmul.f32 %v1028, %v1028
    %v1120 = vmul.f32 %v1033, %v1033
    %v1121 = vmul.f32 %v1036, %v1036
    %v1122 = vmul.f32 %v1041, %v1041
    %v1123 = vmul.f32 %v1044, %v1044
    %v1124 = vmul.f32 %v1049, %v1049
    %v1125 = vmul.f32 %v1052, %v1052
    %v1126 = vmul.f32 %v1057, %v1057
    %v1127 = vmul.f32 %v1060, %v1060
    %v1128 = vmul.f32 %v1065, %v1065
    %v1129 = vmul.f32 %v1068, %v1068
    %v1130 = vmul.f32 %v1073, %v1073
    %v1131 = vmul.f32 %v1076, %v1076
    %v1132 = vsel %vm641, %v1116, 0.0
    %v1133 = vsel %vm641, %v1117, 0.0
    %v1134 = vadd.f32 %v1132, %v1133
    %v1135 = vsel %vm641, %v1118, 0.0
    %v1136 = vadd.f32 %v1134, %v1135
    %v1137 = vsel %vm641, %v1119, 0.0
    %v1138 = vadd.f32 %v1136, %v1137
    %v1139 = vsel %vm641, %v1120, 0.0
    %v1140 = vadd.f32 %v1138, %v1139
    %v1141 = vsel %vm641, %v1121, 0.0
    %v1142 = vadd.f32 %v1140, %v1141
    %v1143 = vsel %vm641, %v1122, 0.0
    %v1144 = vadd.f32 %v1142, %v1143
    %v1145 = vsel %vm641, %v1123, 0.0
    %v1146 = vadd.f32 %v1144, %v1145
    %v1147 = vsel %vm641, %v1124, 0.0
    %v1148 = vadd.f32 %v1146, %v1147
    %v1149 = vsel %vm641, %v1125, 0.0
    %v1150 = vadd.f32 %v1148, %v1149
    %v1151 = vsel %vm641, %v1126, 0.0
    %v1152 = vadd.f32 %v1150, %v1151
    %v1153 = vsel %vm641, %v1127, 0.0
    %v1154 = vadd.f32 %v1152, %v1153
    %v1155 = vsel %vm641, %v1128, 0.0
    %v1156 = vadd.f32 %v1154, %v1155
    %v1157 = vsel %vm641, %v1129, 0.0
    %v1158 = vadd.f32 %v1156, %v1157
    %v1159 = vsel %vm641, %v1130, 0.0
    %v1160 = vadd.f32 %v1158, %v1159
    %v1161 = vsel %vm641, %v1131, 0.0
    %v1162 = vadd.f32 %v1160, %v1161
    %v1163 = vrot.slane %v1162, 4
    %v1164 = vadd.f32 %v1162, %v1163
    %v1165 = vrot.slane %v1164, 2
    %v1166 = vadd.f32 %v1164, %v1165
    %v1167 = vrot.slane %v1166, 1
    %v1168 = vadd.f32 %v1166, %v1167
    %v1169 = vmul.f32 %v1115, 0.0078125
    %v1170 = vmul.f32 %v1168, 0.0078125
    %v1171 = vmul.f32 %v1169, %v1169
    %v1172 = vsub.f32 %v1170, %v1171
    %v1173 = vmax.f32 %v1172, 0.0
    %v1174 = vld [vmem:[%s2 + $0x1] sm:$0x1]
    %v1175 = vadd.f32 %v1173, 1e-05
    %v1176 = vrsqrt.pop %v1175
    %v1177 = vmul.f32 %v1174, %v1176
    %v1178 = vld [vmem:[%s2 + $0x2] sm:$0x1]
    %v1179 = vmul.f32 %v1169, %v1177
    %v1180 = vsub.f32 %v1178, %v1179
    %v1181 = vlaneseq
    %v1182 = vshrl.u32 %v1181, 7
    %v1183 = vsub.s32 0, %v1182
    %v1184 = vrot.slane %v1177, %v1183
    %v1185 = vmul.f32 %v1017, %v1184
    %v1186 = vmul.f32 %v1020, %v1184
    %v1187 = vmul.f32 %v1025, %v1184
    %v1188 = vmul.f32 %v1028, %v1184
    %v1189 = vmul.f32 %v1033, %v1184
    %v1190 = vmul.f32 %v1036, %v1184
    %v1191 = vmul.f32 %v1041, %v1184
    %v1192 = vmul.f32 %v1044, %v1184
    %v1193 = vmul.f32 %v1049, %v1184
    %v1194 = vmul.f32 %v1052, %v1184
    %v1195 = vmul.f32 %v1057, %v1184
    %v1196 = vmul.f32 %v1060, %v1184
    %v1197 = vmul.f32 %v1065, %v1184
    %v1198 = vmul.f32 %v1068, %v1184
    %v1199 = vmul.f32 %v1073, %v1184
    %v1200 = vmul.f32 %v1076, %v1184
    %v1201 = vlaneseq
    %v1202 = vshrl.u32 %v1201, 7
    %v1203 = vsub.s32 0, %v1202
    %v1204 = vrot.slane %v1180, %v1203
    %v1205 = vadd.f32 %v1185, %v1204
    %v1206 = vadd.f32 %v1186, %v1204
    %v1207 = vadd.f32 %v1187, %v1204
    %v1208 = vadd.f32 %v1188, %v1204
    %v1209 = vadd.f32 %v1189, %v1204
    %v1210 = vadd.f32 %v1190, %v1204
    %v1211 = vadd.f32 %v1191, %v1204
    %v1212 = vadd.f32 %v1192, %v1204
    %v1213 = vadd.f32 %v1193, %v1204
    %v1214 = vadd.f32 %v1194, %v1204
    %v1215 = vadd.f32 %v1195, %v1204
    %v1216 = vadd.f32 %v1196, %v1204
    %v1217 = vadd.f32 %v1197, %v1204
    %v1218 = vadd.f32 %v1198, %v1204
    %v1219 = vadd.f32 %v1199, %v1204
    %v1220 = vadd.f32 %v1200, %v1204
    %v1221 = vmax.f32 %v1205, 0.0
    %v1222 = vmax.f32 %v1206, 0.0
    %v1223 = vmax.f32 %v1207, 0.0
    %v1224 = vmax.f32 %v1208, 0.0
    %v1225 = vmax.f32 %v1209, 0.0
    %v1226 = vmax.f32 %v1210, 0.0
    %v1227 = vmax.f32 %v1211, 0.0
    %v1228 = vmax.f32 %v1212, 0.0
    %v1229 = vmax.f32 %v1213, 0.0
    %v1230 = vmax.f32 %v1214, 0.0
    %v1231 = vmax.f32 %v1215, 0.0
    %v1232 = vmax.f32 %v1216, 0.0
    %v1233 = vmax.f32 %v1217, 0.0
    %v1234 = vmax.f32 %v1218, 0.0
    %v1235 = vmax.f32 %v1219, 0.0
    %v1236 = vmax.f32 %v1220, 0.0
    %1237 = vst.msk [vmem:[#allocation3] sm:$0xff] %vm641, 0.0
    %vm1238 = vcmask 123904
    %1239 = vst.msk [vmem:[#allocation3 + $0x8] sm:$0x3] %vm1238, 0.0
    %1240 = vst.msk [vmem:[#allocation3 + $0x10] sm:$0xff] %vm641, 0.0
    %1241 = vst.msk [vmem:[#allocation3 + $0x18] sm:$0x3] %vm1238, 0.0
    %1242 = vst.msk [vmem:[#allocation3 + $0x20] sm:$0xff] %vm641, 0.0
    %1243 = vst.msk [vmem:[#allocation3 + $0x28] sm:$0x3] %vm1238, 0.0
    %1244 = vst.msk [vmem:[#allocation3 + $0x30] sm:$0xff] %vm641, 0.0
    %1245 = vst.msk [vmem:[#allocation3 + $0x38] sm:$0x3] %vm1238, 0.0
    %1246 = vst.msk [vmem:[#allocation3 + $0x40] sm:$0xff] %vm641, 0.0
    %1247 = vst.msk [vmem:[#allocation3 + $0x48] sm:$0x3] %vm1238, 0.0
    %1248 = vst.msk [vmem:[#allocation3 + $0x50] sm:$0xff] %vm641, 0.0
    %1249 = vst.msk [vmem:[#allocation3 + $0x58] sm:$0x3] %vm1238, 0.0
    %1250 = vst.msk [vmem:[#allocation3 + $0x60] sm:$0xff] %vm641, 0.0
    %1251 = vst.msk [vmem:[#allocation3 + $0x68] sm:$0x3] %vm1238, 0.0
    %1252 = vst.msk [vmem:[#allocation3 + $0x70] sm:$0xff] %vm641, 0.0
    %1253 = vst.msk [vmem:[#allocation3 + $0x78] sm:$0x3] %vm1238, 0.0
    %1254 = vst.msk [vmem:[#allocation3 + $0x80] sm:$0xff] %vm641, 0.0
    %1255 = vst.msk [vmem:[#allocation3 + $0x88] sm:$0x3] %vm1238, 0.0
    %1256 = vst.msk [vmem:[#allocation3 + $0x90] sm:$0xff] %vm641, 0.0
    %1257 = vst.msk [vmem:[#allocation3 + $0x98] sm:$0x3] %vm1238, 0.0
    %1258 = vst.msk [vmem:[#allocation3 + $0xa0] sm:$0xff] %vm641, 0.0
    %1259 = vst.msk [vmem:[#allocation3 + $0xa8] sm:$0x3] %vm1238, 0.0
    %1260 = vst.msk [vmem:[#allocation3 + $0xb0] sm:$0xff] %vm641, 0.0
    %1261 = vst.msk [vmem:[#allocation3 + $0xb8] sm:$0x3] %vm1238, 0.0
    %1262 = vst.msk [vmem:[#allocation3 + $0xc0] sm:$0xff] %vm641, 0.0
    %1263 = vst.msk [vmem:[#allocation3 + $0xc8] sm:$0x3] %vm1238, 0.0
    %1264 = vst.msk [vmem:[#allocation3 + $0xd0] sm:$0xff] %vm641, 0.0
    %1265 = vst.msk [vmem:[#allocation3 + $0xd8] sm:$0x3] %vm1238, 0.0
    %1266 = vst.msk [vmem:[#allocation3 + $0xe0] sm:$0xff] %vm641, 0.0
    %1267 = vst.msk [vmem:[#allocation3 + $0xe8] sm:$0x3] %vm1238, 0.0
    %1268 = vst.msk [vmem:[#allocation3 + $0xf0] sm:$0xff] %vm641, 0.0
    %1269 = vst.msk [vmem:[#allocation3 + $0xf8] sm:$0x3] %vm1238, 0.0
    %1270 = vst.msk [vmem:[#allocation3 + $0x100] sm:$0xff] %vm641, 0.0
    %1271 = vst.msk [vmem:[#allocation3 + $0x108] sm:$0x3] %vm1238, 0.0
    %1272 = vst.msk [vmem:[#allocation3 + $0x110] sm:$0xff] %vm641, 0.0
    %1273 = vst.msk [vmem:[#allocation3 + $0x118] sm:$0x3] %vm1238, 0.0
    %1274 = vst.msk [vmem:[#allocation3 + $0x120] sm:$0xff] %vm641, 0.0
    %1275 = vst.msk [vmem:[#allocation3 + $0x128] sm:$0x3] %vm1238, 0.0
    %1276 = vst.msk [vmem:[#allocation3 + $0x130] sm:$0xff] %vm641, 0.0
    %1277 = vst.msk [vmem:[#allocation3 + $0x138] sm:$0x3] %vm1238, 0.0
    %s1278 = scalar_lea.vmem [#allocation3], 16
    %1279 = vst.msk [vmem:[%s1278 + $0x1] sm:$0xff] %vm641, %v1221
    %1280 = vst.msk [vmem:[%s1278 + $0x11] sm:$0xff] %vm641, %v1222
    %1281 = vst.msk [vmem:[%s1278 + $0x21] sm:$0xff] %vm641, %v1223
    %1282 = vst.msk [vmem:[%s1278 + $0x31] sm:$0xff] %vm641, %v1224
    %1283 = vst.msk [vmem:[%s1278 + $0x41] sm:$0xff] %vm641, %v1225
    %1284 = vst.msk [vmem:[%s1278 + $0x51] sm:$0xff] %vm641, %v1226
    %1285 = vst.msk [vmem:[%s1278 + $0x61] sm:$0xff] %vm641, %v1227
    %1286 = vst.msk [vmem:[%s1278 + $0x71] sm:$0xff] %vm641, %v1228
    %1287 = vst.msk [vmem:[%s1278 + $0xa1] sm:$0xff] %vm641, %v1229
    %1288 = vst.msk [vmem:[%s1278 + $0xb1] sm:$0xff] %vm641, %v1230
    %1289 = vst.msk [vmem:[%s1278 + $0xc1] sm:$0xff] %vm641, %v1231
    %1290 = vst.msk [vmem:[%s1278 + $0xd1] sm:$0xff] %vm641, %v1232
    %1291 = vst.msk [vmem:[%s1278 + $0xe1] sm:$0xff] %vm641, %v1233
    %1292 = vst.msk [vmem:[%s1278 + $0xf1] sm:$0xff] %vm641, %v1234
    %1293 = vst.msk [vmem:[%s1278 + $0x101] sm:$0xff] %vm641, %v1235
    %1294 = vst.msk [vmem:[%s1278 + $0x111] sm:$0xff] %vm641, %v1236
    %v1295 = vld [vmem:[#allocation3] sm:$0xff]
    %v1296 = vld [vmem:[#allocation3 + $0x8] sm:$0x3]
    %v1297 = vld [vmem:[#allocation3 + $0x10] sm:$0xff]
    %v1298 = vld [vmem:[#allocation3 + $0x18] sm:$0x3]
    %v1299 = vld [vmem:[#allocation3 + $0x20] sm:$0xff]
    %v1300 = vld [vmem:[#allocation3 + $0x28] sm:$0x3]
    %v1301 = vld [vmem:[#allocation3 + $0x30] sm:$0xff]
    %v1302 = vld [vmem:[#allocation3 + $0x38] sm:$0x3]
    %v1303 = vld [vmem:[#allocation3 + $0x40] sm:$0xff]
    %v1304 = vld [vmem:[#allocation3 + $0x48] sm:$0x3]
    %v1305 = vld [vmem:[#allocation3 + $0x50] sm:$0xff]
    %v1306 = vld [vmem:[#allocation3 + $0x58] sm:$0x3]
    %v1307 = vld [vmem:[#allocation3 + $0x60] sm:$0xff]
    %v1308 = vld [vmem:[#allocation3 + $0x68] sm:$0x3]
    %v1309 = vld [vmem:[#allocation3 + $0x70] sm:$0xff]
    %v1310 = vld [vmem:[#allocation3 + $0x78] sm:$0x3]
    %v1311 = vld [vmem:[#allocation3 + $0x80] sm:$0xff]
    %v1312 = vld [vmem:[#allocation3 + $0x88] sm:$0x3]
    %v1313 = vld [vmem:[#allocation3 + $0x90] sm:$0xff]
    %v1314 = vld [vmem:[#allocation3 + $0x98] sm:$0x3]
    %v1315 = vld [vmem:[#allocation3 + $0xa0] sm:$0xff]
    %v1316 = vld [vmem:[#allocation3 + $0xa8] sm:$0x3]
    %v1317 = vld [vmem:[#allocation3 + $0xb0] sm:$0xff]
    %v1318 = vld [vmem:[#allocation3 + $0xb8] sm:$0x3]
    %v1319 = vld [vmem:[#allocation3 + $0xc0] sm:$0xff]
    %v1320 = vld [vmem:[#allocation3 + $0xc8] sm:$0x3]
    %v1321 = vld [vmem:[#allocation3 + $0xd0] sm:$0xff]
    %v1322 = vld [vmem:[#allocation3 + $0xd8] sm:$0x3]
    %v1323 = vld [vmem:[#allocation3 + $0xe0] sm:$0xff]
    %v1324 = vld [vmem:[#allocation3 + $0xe8] sm:$0x3]
    %v1325 = vld [vmem:[#allocation3 + $0xf0] sm:$0xff]
    %v1326 = vld [vmem:[#allocation3 + $0xf8] sm:$0x3]
    %v1327 = vld [vmem:[#allocation3 + $0x100] sm:$0xff]
    %v1328 = vld [vmem:[#allocation3 + $0x108] sm:$0x3]
    %v1329 = vld [vmem:[#allocation3 + $0x110] sm:$0xff]
    %v1330 = vld [vmem:[#allocation3 + $0x118] sm:$0x3]
    %v1331 = vld [vmem:[#allocation3 + $0x120] sm:$0xff]
    %v1332 = vld [vmem:[#allocation3 + $0x128] sm:$0x3]
    %v1333 = vld [vmem:[#allocation3 + $0x130] sm:$0xff]
    %v1334 = vld [vmem:[#allocation3 + $0x138] sm:$0x3]
    %v1335 = vpack.c.bf16 %v1296, %v1295
    %v1336 = vpack.c.bf16 %v1298, %v1297
    %v1337 = vpack.c.bf16 %v1300, %v1299
    %v1338 = vpack.c.bf16 %v1302, %v1301
    %v1339 = vpack.c.bf16 %v1304, %v1303
    %v1340 = vpack.c.bf16 %v1306, %v1305
    %v1341 = vpack.c.bf16 %v1308, %v1307
    %v1342 = vpack.c.bf16 %v1310, %v1309
    %v1343 = vpack.c.bf16 %v1312, %v1311
    %v1344 = vpack.c.bf16 %v1314, %v1313
    %v1345 = vpack.c.bf16 %v1316, %v1315
    %v1346 = vpack.c.bf16 %v1318, %v1317
    %v1347 = vpack.c.bf16 %v1320, %v1319
    %v1348 = vpack.c.bf16 %v1322, %v1321
    %v1349 = vpack.c.bf16 %v1324, %v1323
    %v1350 = vpack.c.bf16 %v1326, %v1325
    %v1351 = vpack.c.bf16 %v1328, %v1327
    %v1352 = vpack.c.bf16 %v1330, %v1329
    %v1353 = vpack.c.bf16 %v1332, %v1331
    %v1354 = vpack.c.bf16 %v1334, %v1333
    %v1356 = vshrl.u32 %v1335, 16
    %v1358 = vshll.u32 %v1335, 16
    %v1360 = vrot.slane %v1358, 1
    %v1361 = vor.u32 %v1356, %v1360
    %v1363 = vshrl.u32 %v1336, 16
    %v1365 = vshll.u32 %v1336, 16
    %v1367 = vrot.slane %v1365, 1
    %v1368 = vor.u32 %v1363, %v1367
    %v1370 = vshrl.u32 %v1337, 16
    %v1372 = vshll.u32 %v1337, 16
    %v1374 = vrot.slane %v1372, 1
    %v1375 = vor.u32 %v1370, %v1374
    %v1377 = vshrl.u32 %v1338, 16
    %v1379 = vshll.u32 %v1338, 16
    %v1381 = vrot.slane %v1379, 1
    %v1382 = vor.u32 %v1377, %v1381
    %v1384 = vshrl.u32 %v1339, 16
    %v1386 = vshll.u32 %v1339, 16
    %v1388 = vrot.slane %v1386, 1
    %v1389 = vor.u32 %v1384, %v1388
    %v1391 = vshrl.u32 %v1340, 16
    %v1393 = vshll.u32 %v1340, 16
    %v1395 = vrot.slane %v1393, 1
    %v1396 = vor.u32 %v1391, %v1395
    %v1398 = vshrl.u32 %v1341, 16
    %v1400 = vshll.u32 %v1341, 16
    %v1402 = vrot.slane %v1400, 1
    %v1403 = vor.u32 %v1398, %v1402
    %v1405 = vshrl.u32 %v1342, 16
    %v1407 = vshll.u32 %v1342, 16
    %v1409 = vrot.slane %v1407, 1
    %v1410 = vor.u32 %v1405, %v1409
    %v1412 = vshrl.u32 %v1345, 16
    %v1414 = vshll.u32 %v1345, 16
    %v1416 = vrot.slane %v1414, 1
    %v1417 = vor.u32 %v1412, %v1416
    %v1419 = vshrl.u32 %v1346, 16
    %v1421 = vshll.u32 %v1346, 16
    %v1423 = vrot.slane %v1421, 1
    %v1424 = vor.u32 %v1419, %v1423
    %v1426 = vshrl.u32 %v1347, 16
    %v1428 = vshll.u32 %v1347, 16
    %v1430 = vrot.slane %v1428, 1
    %v1431 = vor.u32 %v1426, %v1430
    %v1433 = vshrl.u32 %v1348, 16
    %v1435 = vshll.u32 %v1348, 16
    %v1437 = vrot.slane %v1435, 1
    %v1438 = vor.u32 %v1433, %v1437
    %v1440 = vshrl.u32 %v1349, 16
    %v1442 = vshll.u32 %v1349, 16
    %v1444 = vrot.slane %v1442, 1
    %v1445 = vor.u32 %v1440, %v1444
    %v1447 = vshrl.u32 %v1350, 16
    %v1449 = vshll.u32 %v1350, 16
    %v1451 = vrot.slane %v1449, 1
    %v1452 = vor.u32 %v1447, %v1451
    %v1454 = vshrl.u32 %v1351, 16
    %v1456 = vshll.u32 %v1351, 16
    %v1458 = vrot.slane %v1456, 1
    %v1459 = vor.u32 %v1454, %v1458
    %v1461 = vshrl.u32 %v1352, 16
    %v1463 = vshll.u32 %v1352, 16
    %v1465 = vrot.slane %v1463, 1
    %v1466 = vor.u32 %v1461, %v1465
    %1467 = vrot.lane.b32.xlu0 %v1361, 16
    %v1468 = vpop.permute.xlu0 %1467
    %1469 = vrot.lane.b32.xlu0 %v1368, 16
    %v1470 = vpop.permute.xlu0 %1469
    %1471 = vrot.lane.b32.xlu0 %v1375, 16
    %v1472 = vpop.permute.xlu0 %1471
    %1473 = vrot.lane.b32.xlu0 %v1382, 16
    %v1474 = vpop.permute.xlu0 %1473
    %1475 = vrot.lane.b32.xlu0 %v1389, 16
    %v1476 = vpop.permute.xlu0 %1475
    %1477 = vrot.lane.b32.xlu0 %v1396, 16
    %v1478 = vpop.permute.xlu0 %1477
    %1479 = vrot.lane.b32.xlu0 %v1403, 16
    %v1480 = vpop.permute.xlu0 %1479
    %1481 = vrot.lane.b32.xlu0 %v1410, 16
    %v1482 = vpop.permute.xlu0 %1481
    %1483 = vrot.lane.b32.xlu0 %v1417, 16
    %v1484 = vpop.permute.xlu0 %1483
    %1485 = vrot.lane.b32.xlu0 %v1424, 16
    %v1486 = vpop.permute.xlu0 %1485
    %1487 = vrot.lane.b32.xlu0 %v1431, 16
    %v1488 = vpop.permute.xlu0 %1487
    %1489 = vrot.lane.b32.xlu0 %v1438, 16
    %v1490 = vpop.permute.xlu0 %1489
    %1491 = vrot.lane.b32.xlu0 %v1445, 16
    %v1492 = vpop.permute.xlu0 %1491
    %1493 = vrot.lane.b32.xlu0 %v1452, 16
    %v1494 = vpop.permute.xlu0 %1493
    %1495 = vrot.lane.b32.xlu0 %v1459, 16
    %v1496 = vpop.permute.xlu0 %1495
    %1497 = vrot.lane.b32.xlu0 %v1466, 16
    %v1498 = vpop.permute.xlu0 %1497
    %v1515 = vrot.slane %v1335, 1
    %v1516 = vrot.slane %v1336, 1
    %v1517 = vrot.slane %v1337, 1
    %v1518 = vrot.slane %v1338, 1
    %v1519 = vrot.slane %v1339, 1
    %v1520 = vrot.slane %v1340, 1
    %v1521 = vrot.slane %v1341, 1
    %v1522 = vrot.slane %v1342, 1
    %v1523 = vrot.slane %v1345, 1
    %v1524 = vrot.slane %v1346, 1
    %v1525 = vrot.slane %v1347, 1
    %v1526 = vrot.slane %v1348, 1
    %v1527 = vrot.slane %v1349, 1
    %v1528 = vrot.slane %v1350, 1
    %v1529 = vrot.slane %v1351, 1
    %v1530 = vrot.slane %v1352, 1
    %1531 = vrot.lane.b32.xlu0 %v1515, 32
    %v1532 = vpop.permute.xlu0 %1531
    %1533 = vrot.lane.b32.xlu0 %v1516, 32
    %v1534 = vpop.permute.xlu0 %1533
    %1535 = vrot.lane.b32.xlu0 %v1517, 32
    %v1536 = vpop.permute.xlu0 %1535
    %1537 = vrot.lane.b32.xlu0 %v1518, 32
    %v1538 = vpop.permute.xlu0 %1537
    %1539 = vrot.lane.b32.xlu0 %v1519, 32
    %v1540 = vpop.permute.xlu0 %1539
    %1541 = vrot.lane.b32.xlu0 %v1520, 32
    %v1542 = vpop.permute.xlu0 %1541
    %1543 = vrot.lane.b32.xlu0 %v1521, 32
    %v1544 = vpop.permute.xlu0 %1543
    %1545 = vrot.lane.b32.xlu0 %v1522, 32
    %v1546 = vpop.permute.xlu0 %1545
    %1547 = vrot.lane.b32.xlu0 %v1523, 32
    %v1548 = vpop.permute.xlu0 %1547
    %1549 = vrot.lane.b32.xlu0 %v1524, 32
    %v1550 = vpop.permute.xlu0 %1549
    %1551 = vrot.lane.b32.xlu0 %v1525, 32
    %v1552 = vpop.permute.xlu0 %1551
    %1553 = vrot.lane.b32.xlu0 %v1526, 32
    %v1554 = vpop.permute.xlu0 %1553
    %1555 = vrot.lane.b32.xlu0 %v1527, 32
    %v1556 = vpop.permute.xlu0 %1555
    %1557 = vrot.lane.b32.xlu0 %v1528, 32
    %v1558 = vpop.permute.xlu0 %1557
    %1559 = vrot.lane.b32.xlu0 %v1529, 32
    %v1560 = vpop.permute.xlu0 %1559
    %1561 = vrot.lane.b32.xlu0 %v1530, 32
    %v1562 = vpop.permute.xlu0 %1561
    %1565 = vrot.lane.b32.xlu0 %v1336, 48
    %v1566 = vpop.permute.xlu0 %1565
    %1567 = vrot.lane.b32.xlu0 %v1337, 48
    %v1568 = vpop.permute.xlu0 %1567
    %1569 = vrot.lane.b32.xlu0 %v1338, 48
    %v1570 = vpop.permute.xlu0 %1569
    %1571 = vrot.lane.b32.xlu0 %v1339, 48
    %v1572 = vpop.permute.xlu0 %1571
    %1573 = vrot.lane.b32.xlu0 %v1340, 48
    %v1574 = vpop.permute.xlu0 %1573
    %1575 = vrot.lane.b32.xlu0 %v1341, 48
    %v1576 = vpop.permute.xlu0 %1575
    %1577 = vrot.lane.b32.xlu0 %v1342, 48
    %v1578 = vpop.permute.xlu0 %1577
    %1579 = vrot.lane.b32.xlu0 %v1343, 48
    %v1580 = vpop.permute.xlu0 %1579
    %1581 = vrot.lane.b32.xlu0 %v1346, 48
    %v1582 = vpop.permute.xlu0 %1581
    %1583 = vrot.lane.b32.xlu0 %v1347, 48
    %v1584 = vpop.permute.xlu0 %1583
    %1585 = vrot.lane.b32.xlu0 %v1348, 48
    %v1586 = vpop.permute.xlu0 %1585
    %1587 = vrot.lane.b32.xlu0 %v1349, 48
    %v1588 = vpop.permute.xlu0 %1587
    %1589 = vrot.lane.b32.xlu0 %v1350, 48
    %v1590 = vpop.permute.xlu0 %1589
    %1591 = vrot.lane.b32.xlu0 %v1351, 48
    %v1592 = vpop.permute.xlu0 %1591
    %1593 = vrot.lane.b32.xlu0 %v1352, 48
    %v1594 = vpop.permute.xlu0 %1593
    %1595 = vrot.lane.b32.xlu0 %v1353, 48
    %v1596 = vpop.permute.xlu0 %1595
    %v1598 = vshrl.u32 %v1343, 16
    %v1600 = vshll.u32 %v1343, 16
    %v1602 = vrot.slane %v1600, 1
    %v1603 = vor.u32 %v1598, %v1602
    %v1605 = vshrl.u32 %v1353, 16
    %v1607 = vshll.u32 %v1353, 16
    %v1609 = vrot.slane %v1607, 1
    %v1610 = vor.u32 %v1605, %v1609
    %1611 = vrot.lane.b32.xlu0 %v1368, 64
    %v1612 = vpop.permute.xlu0 %1611
    %1613 = vrot.lane.b32.xlu0 %v1375, 64
    %v1614 = vpop.permute.xlu0 %1613
    %1615 = vrot.lane.b32.xlu0 %v1382, 64
    %v1616 = vpop.permute.xlu0 %1615
    %1617 = vrot.lane.b32.xlu0 %v1389, 64
    %v1618 = vpop.permute.xlu0 %1617
    %1619 = vrot.lane.b32.xlu0 %v1396, 64
    %v1620 = vpop.permute.xlu0 %1619
    %1621 = vrot.lane.b32.xlu0 %v1403, 64
    %v1622 = vpop.permute.xlu0 %1621
    %1623 = vrot.lane.b32.xlu0 %v1410, 64
    %v1624 = vpop.permute.xlu0 %1623
    %1625 = vrot.lane.b32.xlu0 %v1603, 64
    %v1626 = vpop.permute.xlu0 %1625
    %1627 = vrot.lane.b32.xlu0 %v1424, 64
    %v1628 = vpop.permute.xlu0 %1627
    %1629 = vrot.lane.b32.xlu0 %v1431, 64
    %v1630 = vpop.permute.xlu0 %1629
    %1631 = vrot.lane.b32.xlu0 %v1438, 64
    %v1632 = vpop.permute.xlu0 %1631
    %1633 = vrot.lane.b32.xlu0 %v1445, 64
    %v1634 = vpop.permute.xlu0 %1633
    %1635 = vrot.lane.b32.xlu0 %v1452, 64
    %v1636 = vpop.permute.xlu0 %1635
    %1637 = vrot.lane.b32.xlu0 %v1459, 64
    %v1638 = vpop.permute.xlu0 %1637
    %1639 = vrot.lane.b32.xlu0 %v1466, 64
    %v1640 = vpop.permute.xlu0 %1639
    %1641 = vrot.lane.b32.xlu0 %v1610, 64
    %v1642 = vpop.permute.xlu0 %1641
    %v1643 = vrot.slane %v1343, 1
    %v1644 = vrot.slane %v1353, 1
    %1645 = vrot.lane.b32.xlu0 %v1516, 80
    %v1646 = vpop.permute.xlu0 %1645
    %1647 = vrot.lane.b32.xlu0 %v1517, 80
    %v1648 = vpop.permute.xlu0 %1647
    %1649 = vrot.lane.b32.xlu0 %v1518, 80
    %v1650 = vpop.permute.xlu0 %1649
    %1651 = vrot.lane.b32.xlu0 %v1519, 80
    %v1652 = vpop.permute.xlu0 %1651
    %1653 = vrot.lane.b32.xlu0 %v1520, 80
    %v1654 = vpop.permute.xlu0 %1653
    %1655 = vrot.lane.b32.xlu0 %v1521, 80
    %v1656 = vpop.permute.xlu0 %1655
    %1657 = vrot.lane.b32.xlu0 %v1522, 80
    %v1658 = vpop.permute.xlu0 %1657
    %1659 = vrot.lane.b32.xlu0 %v1643, 80
    %v1660 = vpop.permute.xlu0 %1659
    %1661 = vrot.lane.b32.xlu0 %v1524, 80
    %v1662 = vpop.permute.xlu0 %1661
    %1663 = vrot.lane.b32.xlu0 %v1525, 80
    %v1664 = vpop.permute.xlu0 %1663
    %1665 = vrot.lane.b32.xlu0 %v1526, 80
    %v1666 = vpop.permute.xlu0 %1665
    %1667 = vrot.lane.b32.xlu0 %v1527, 80
    %v1668 = vpop.permute.xlu0 %1667
    %1669 = vrot.lane.b32.xlu0 %v1528, 80
    %v1670 = vpop.permute.xlu0 %1669
    %1671 = vrot.lane.b32.xlu0 %v1529, 80
    %v1672 = vpop.permute.xlu0 %1671
    %1673 = vrot.lane.b32.xlu0 %v1530, 80
    %v1674 = vpop.permute.xlu0 %1673
    %1675 = vrot.lane.b32.xlu0 %v1644, 80
    %v1676 = vpop.permute.xlu0 %1675
    %1679 = vrot.lane.b32.xlu0 %v1337, 96
    %v1680 = vpop.permute.xlu0 %1679
    %1681 = vrot.lane.b32.xlu0 %v1338, 96
    %v1682 = vpop.permute.xlu0 %1681
    %1683 = vrot.lane.b32.xlu0 %v1339, 96
    %v1684 = vpop.permute.xlu0 %1683
    %1685 = vrot.lane.b32.xlu0 %v1340, 96
    %v1686 = vpop.permute.xlu0 %1685
    %1687 = vrot.lane.b32.xlu0 %v1341, 96
    %v1688 = vpop.permute.xlu0 %1687
    %1689 = vrot.lane.b32.xlu0 %v1342, 96
    %v1690 = vpop.permute.xlu0 %1689
    %1691 = vrot.lane.b32.xlu0 %v1343, 96
    %v1692 = vpop.permute.xlu0 %1691
    %1693 = vrot.lane.b32.xlu0 %v1344, 96
    %v1694 = vpop.permute.xlu0 %1693
    %1695 = vrot.lane.b32.xlu0 %v1347, 96
    %v1696 = vpop.permute.xlu0 %1695
    %1697 = vrot.lane.b32.xlu0 %v1348, 96
    %v1698 = vpop.permute.xlu0 %1697
    %1699 = vrot.lane.b32.xlu0 %v1349, 96
    %v1700 = vpop.permute.xlu0 %1699
    %1701 = vrot.lane.b32.xlu0 %v1350, 96
    %v1702 = vpop.permute.xlu0 %1701
    %1703 = vrot.lane.b32.xlu0 %v1351, 96
    %v1704 = vpop.permute.xlu0 %1703
    %1705 = vrot.lane.b32.xlu0 %v1352, 96
    %v1706 = vpop.permute.xlu0 %1705
    %1707 = vrot.lane.b32.xlu0 %v1353, 96
    %v1708 = vpop.permute.xlu0 %1707
    %1709 = vrot.lane.b32.xlu0 %v1354, 96
    %v1710 = vpop.permute.xlu0 %1709
    %v1712 = vshrl.u32 %v1344, 16
    %v1714 = vshll.u32 %v1344, 16
    %v1716 = vrot.slane %v1714, 1
    %v1717 = vor.u32 %v1712, %v1716
    %v1719 = vshrl.u32 %v1354, 16
    %v1721 = vshll.u32 %v1354, 16
    %v1723 = vrot.slane %v1721, 1
    %v1724 = vor.u32 %v1719, %v1723
    %1725 = vrot.lane.b32.xlu0 %v1375, 112
    %v1726 = vpop.permute.xlu0 %1725
    %1727 = vrot.lane.b32.xlu0 %v1382, 112
    %v1728 = vpop.permute.xlu0 %1727
    %1729 = vrot.lane.b32.xlu0 %v1389, 112
    %v1730 = vpop.permute.xlu0 %1729
    %1731 = vrot.lane.b32.xlu0 %v1396, 112
    %v1732 = vpop.permute.xlu0 %1731
    %1733 = vrot.lane.b32.xlu0 %v1403, 112
    %v1734 = vpop.permute.xlu0 %1733
    %1735 = vrot.lane.b32.xlu0 %v1410, 112
    %v1736 = vpop.permute.xlu0 %1735
    %1737 = vrot.lane.b32.xlu0 %v1603, 112
    %v1738 = vpop.permute.xlu0 %1737
    %1739 = vrot.lane.b32.xlu0 %v1717, 112
    %v1740 = vpop.permute.xlu0 %1739
    %1741 = vrot.lane.b32.xlu0 %v1431, 112
    %v1742 = vpop.permute.xlu0 %1741
    %1743 = vrot.lane.b32.xlu0 %v1438, 112
    %v1744 = vpop.permute.xlu0 %1743
    %1745 = vrot.lane.b32.xlu0 %v1445, 112
    %v1746 = vpop.permute.xlu0 %1745
    %1747 = vrot.lane.b32.xlu0 %v1452, 112
    %v1748 = vpop.permute.xlu0 %1747
    %1749 = vrot.lane.b32.xlu0 %v1459, 112
    %v1750 = vpop.permute.xlu0 %1749
    %1751 = vrot.lane.b32.xlu0 %v1466, 112
    %v1752 = vpop.permute.xlu0 %1751
    %1753 = vrot.lane.b32.xlu0 %v1610, 112
    %v1754 = vpop.permute.xlu0 %1753
    %1755 = vrot.lane.b32.xlu0 %v1724, 112
    %v1756 = vpop.permute.xlu0 %1755
    %v1757 = vrot.slane %v1344, 1
    %v1758 = vrot.slane %v1354, 1
    %v1760 = vsel %vm641, %v1335, %v1468
    %v1762 = vsel %vm641, %v1336, %v1470
    %v1764 = vsel %vm641, %v1337, %v1472
    %v1766 = vsel %vm641, %v1338, %v1474
    %v1768 = vsel %vm641, %v1339, %v1476
    %v1770 = vsel %vm641, %v1340, %v1478
    %v1772 = vsel %vm641, %v1341, %v1480
    %v1774 = vsel %vm641, %v1342, %v1482
    %v1776 = vsel %vm641, %v1345, %v1484
    %v1778 = vsel %vm641, %v1346, %v1486
    %v1780 = vsel %vm641, %v1347, %v1488
    %v1782 = vsel %vm641, %v1348, %v1490
    %v1784 = vsel %vm641, %v1349, %v1492
    %v1786 = vsel %vm641, %v1350, %v1494
    %v1788 = vsel %vm641, %v1351, %v1496
    %v1790 = vsel %vm641, %v1352, %v1498
    %v1792 = vsel %vm707, %v1760, %v1532
    %v1794 = vsel %vm707, %v1762, %v1534
    %v1796 = vsel %vm707, %v1764, %v1536
    %v1798 = vsel %vm707, %v1766, %v1538
    %v1800 = vsel %vm707, %v1768, %v1540
    %v1802 = vsel %vm707, %v1770, %v1542
    %v1804 = vsel %vm707, %v1772, %v1544
    %v1806 = vsel %vm707, %v1774, %v1546
    %v1808 = vsel %vm707, %v1776, %v1548
    %v1810 = vsel %vm707, %v1778, %v1550
    %v1812 = vsel %vm707, %v1780, %v1552
    %v1814 = vsel %vm707, %v1782, %v1554
    %v1816 = vsel %vm707, %v1784, %v1556
    %v1818 = vsel %vm707, %v1786, %v1558
    %v1820 = vsel %vm707, %v1788, %v1560
    %v1822 = vsel %vm707, %v1790, %v1562
    %v1824 = vsel %vm773, %v1792, %v1566
    %v1826 = vsel %vm773, %v1794, %v1568
    %v1828 = vsel %vm773, %v1796, %v1570
    %v1830 = vsel %vm773, %v1798, %v1572
    %v1832 = vsel %vm773, %v1800, %v1574
    %v1834 = vsel %vm773, %v1802, %v1576
    %v1836 = vsel %vm773, %v1804, %v1578
    %v1838 = vsel %vm773, %v1806, %v1580
    %v1840 = vsel %vm773, %v1808, %v1582
    %v1842 = vsel %vm773, %v1810, %v1584
    %v1844 = vsel %vm773, %v1812, %v1586
    %v1846 = vsel %vm773, %v1814, %v1588
    %v1848 = vsel %vm773, %v1816, %v1590
    %v1850 = vsel %vm773, %v1818, %v1592
    %v1852 = vsel %vm773, %v1820, %v1594
    %v1854 = vsel %vm773, %v1822, %v1596
    %v1856 = vsel %vm839, %v1824, %v1612
    %v1858 = vsel %vm839, %v1826, %v1614
    %v1860 = vsel %vm839, %v1828, %v1616
    %v1862 = vsel %vm839, %v1830, %v1618
    %v1864 = vsel %vm839, %v1832, %v1620
    %v1866 = vsel %vm839, %v1834, %v1622
    %v1868 = vsel %vm839, %v1836, %v1624
    %v1870 = vsel %vm839, %v1838, %v1626
    %v1872 = vsel %vm839, %v1840, %v1628
    %v1874 = vsel %vm839, %v1842, %v1630
    %v1876 = vsel %vm839, %v1844, %v1632
    %v1878 = vsel %vm839, %v1846, %v1634
    %v1880 = vsel %vm839, %v1848, %v1636
    %v1882 = vsel %vm839, %v1850, %v1638
    %v1884 = vsel %vm839, %v1852, %v1640
    %v1886 = vsel %vm839, %v1854, %v1642
    %vm1887 = vcmask 654336
    %v1889 = vsel %vm1887, %v1856, %v1646
    %v1891 = vsel %vm1887, %v1858, %v1648
    %v1893 = vsel %vm1887, %v1860, %v1650
    %v1895 = vsel %vm1887, %v1862, %v1652
    %v1897 = vsel %vm1887, %v1864, %v1654
    %v1899 = vsel %vm1887, %v1866, %v1656
    %v1901 = vsel %vm1887, %v1868, %v1658
    %v1903 = vsel %vm1887, %v1870, %v1660
    %v1905 = vsel %vm1887, %v1872, %v1662
    %v1907 = vsel %vm1887, %v1874, %v1664
    %v1909 = vsel %vm1887, %v1876, %v1666
    %v1911 = vsel %vm1887, %v1878, %v1668
    %v1913 = vsel %vm1887, %v1880, %v1670
    %v1915 = vsel %vm1887, %v1882, %v1672
    %v1917 = vsel %vm1887, %v1884, %v1674
    %v1919 = vsel %vm1887, %v1886, %v1676
    %vm1920 = vcmask 785408
    %v1922 = vsel %vm1920, %v1889, %v1680
    %v1924 = vsel %vm1920, %v1891, %v1682
    %v1926 = vsel %vm1920, %v1893, %v1684
    %v1928 = vsel %vm1920, %v1895, %v1686
    %v1930 = vsel %vm1920, %v1897, %v1688
    %v1932 = vsel %vm1920, %v1899, %v1690
    %v1934 = vsel %vm1920, %v1901, %v1692
    %v1936 = vsel %vm1920, %v1903, %v1694
    %v1938 = vsel %vm1920, %v1905, %v1696
    %v1940 = vsel %vm1920, %v1907, %v1698
    %v1942 = vsel %vm1920, %v1909, %v1700
    %v1944 = vsel %vm1920, %v1911, %v1702
    %v1946 = vsel %vm1920, %v1913, %v1704
    %v1948 = vsel %vm1920, %v1915, %v1706
    %v1950 = vsel %vm1920, %v1917, %v1708
    %v1952 = vsel %vm1920, %v1919, %v1710
    %vm1953 = vcmask 916480
    %v1955 = vsel %vm1953, %v1922, %v1726
    %v1957 = vsel %vm1953, %v1924, %v1728
    %v1959 = vsel %vm1953, %v1926, %v1730
    %v1961 = vsel %vm1953, %v1928, %v1732
    %v1963 = vsel %vm1953, %v1930, %v1734
    %v1965 = vsel %vm1953, %v1932, %v1736
    %v1967 = vsel %vm1953, %v1934, %v1738
    %v1969 = vsel %vm1953, %v1936, %v1740
    %v1971 = vsel %vm1953, %v1938, %v1742
    %v1973 = vsel %vm1953, %v1940, %v1744
    %v1975 = vsel %vm1953, %v1942, %v1746
    %v1977 = vsel %vm1953, %v1944, %v1748
    %v1979 = vsel %vm1953, %v1946, %v1750
    %v1981 = vsel %vm1953, %v1948, %v1752
    %v1983 = vsel %vm1953, %v1950, %v1754
    %v1985 = vsel %vm1953, %v1952, %v1756
    %v2002 = vunpack.c.l.b16 %v1955
    %v2003 = vunpack.c.l.b16 %v1517
    %v2004 = vunpack.c.l.b16 %v1957
    %v2005 = vunpack.c.l.b16 %v1518
    %v2006 = vunpack.c.l.b16 %v1959
    %v2007 = vunpack.c.l.b16 %v1519
    %v2008 = vunpack.c.l.b16 %v1961
    %v2009 = vunpack.c.l.b16 %v1520
    %v2010 = vunpack.c.l.b16 %v1963
    %v2011 = vunpack.c.l.b16 %v1521
    %v2012 = vunpack.c.l.b16 %v1965
    %v2013 = vunpack.c.l.b16 %v1522
    %v2014 = vunpack.c.l.b16 %v1967
    %v2015 = vunpack.c.l.b16 %v1643
    %v2016 = vunpack.c.l.b16 %v1969
    %v2017 = vunpack.c.l.b16 %v1757
    %v2018 = vunpack.c.l.b16 %v1971
    %v2019 = vunpack.c.l.b16 %v1525
    %v2020 = vunpack.c.l.b16 %v1973
    %v2021 = vunpack.c.l.b16 %v1526
    %v2022 = vunpack.c.l.b16 %v1975
    %v2023 = vunpack.c.l.b16 %v1527
    %v2024 = vunpack.c.l.b16 %v1977
    %v2025 = vunpack.c.l.b16 %v1528
    %v2026 = vunpack.c.l.b16 %v1979
    %v2027 = vunpack.c.l.b16 %v1529
    %v2028 = vunpack.c.l.b16 %v1981
    %v2029 = vunpack.c.l.b16 %v1530
    %v2030 = vunpack.c.l.b16 %v1983
    %v2031 = vunpack.c.l.b16 %v1644
    %v2032 = vunpack.c.l.b16 %v1985
    %v2033 = vunpack.c.l.b16 %v1758
    %v2034 = vld [vmem:[%s3] sm:$0xf]
    %v2035 = vld [vmem:[%s3 + $0x4] sm:$0xf]
    %v2036 = vld [vmem:[%s3 + $0x8] sm:$0xf]
    %v2037 = vld [vmem:[%s3 + $0xc] sm:$0xf]
    %v2038 = vld [vmem:[%s3 + $0x10] sm:$0xf]
    %v2039 = vld [vmem:[%s3 + $0x14] sm:$0xf]
    %v2040 = vld [vmem:[%s3 + $0x18] sm:$0xf]
    %v2041 = vld [vmem:[%s3 + $0x1c] sm:$0xf]
    %v2042 = vld [vmem:[%s3 + $0x20] sm:$0xf]
    %v2043 = vld [vmem:[%s3 + $0x24] sm:$0xf]
    %v2044 = vld [vmem:[%s3 + $0x28] sm:$0xf]
    %v2045 = vld [vmem:[%s3 + $0x2c] sm:$0xf]
    %v2046 = vld [vmem:[%s3 + $0x30] sm:$0xf]
    %v2047 = vld [vmem:[%s3 + $0x34] sm:$0xf]
    %v2048 = vld [vmem:[%s3 + $0x38] sm:$0xf]
    %v2049 = vld [vmem:[%s3 + $0x3c] sm:$0xf]
    %v2050 = vld [vmem:[%s3 + $0x40] sm:$0xf]
    %v2051 = vld [vmem:[%s3 + $0x44] sm:$0xf]
    %v2052 = vld [vmem:[%s4] sm:$0x1]
    %v2053 = vlaneseq
    %v2054 = vshrl.u32 %v2053, 7
    %v2055 = vsub.s32 0, %v2054
    %v2056 = vrot.slane %v2052, %v2055
    %v2057 = vpack.c.b16 %v2004, %v2002
    %v2058 = vpack.c.b16 %v2005, %v2003
    %v2059 = vpack.c.b16 %v2008, %v2006
    %v2060 = vpack.c.b16 %v2009, %v2007
    %v2061 = vpack.c.b16 %v2012, %v2010
    %v2062 = vpack.c.b16 %v2013, %v2011
    %v2063 = vpack.c.b16 %v2016, %v2014
    %v2064 = vpack.c.b16 %v2017, %v2015
    %v2065 = vpack.c.b16 %v2020, %v2018
    %v2066 = vpack.c.b16 %v2021, %v2019
    %v2067 = vpack.c.b16 %v2024, %v2022
    %v2068 = vpack.c.b16 %v2025, %v2023
    %v2069 = vpack.c.b16 %v2028, %v2026
    %v2070 = vpack.c.b16 %v2029, %v2027
    %v2071 = vpack.c.b16 %v2032, %v2030
    %v2072 = vpack.c.b16 %v2033, %v2031
    %v2099 = vunpack.c.l.b16 %v2034
    %v2100 = vunpack.c.l.b16 %v2035
    %v2101 = vunpack.c.l.b16 %v2036
    %v2102 = vunpack.c.l.b16 %v2037
    %v2103 = vunpack.c.l.b16 %v2038
    %v2104 = vunpack.c.l.b16 %v2039
    %v2105 = vunpack.c.l.b16 %v2040
    %v2106 = vunpack.c.l.b16 %v2041
    %v2107 = vunpack.c.l.b16 %v2042
    %v2108 = vunpack.c.l.b16 %v2043
    %v2109 = vunpack.c.l.b16 %v2044
    %v2110 = vunpack.c.l.b16 %v2045
    %v2111 = vunpack.c.l.b16 %v2046
    %v2112 = vunpack.c.l.b16 %v2047
    %v2113 = vunpack.c.l.b16 %v2048
    %v2114 = vunpack.c.l.b16 %v2049
    %v2115 = vunpack.c.l.b16 %v2050
    %v2116 = vunpack.c.l.b16 %v2051
    %v2117 = vpack.c.b16 %v2100, %v2099
    %v2118 = vpack.c.b16 %v2102, %v2101
    %v2119 = vpack.c.b16 %v2104, %v2103
    %v2120 = vpack.c.b16 %v2106, %v2105
    %v2121 = vpack.c.b16 %v2108, %v2107
    %v2122 = vpack.c.b16 %v2110, %v2109
    %v2123 = vpack.c.b16 %v2112, %v2111
    %v2124 = vpack.c.b16 %v2114, %v2113
    %v2125 = vpack.c.b16 %v2116, %v2115
    %v2136 = vsel %vm641, %v2058, 0
    %v2139 = vsel %vm641, %v2060, 0
    %v2142 = vsel %vm641, %v2062, 0
    %v2145 = vsel %vm641, %v2064, 0
    %v2148 = vsel %vm641, %v2066, 0
    %v2151 = vsel %vm641, %v2068, 0
    %v2154 = vsel %vm641, %v2070, 0
    %v2157 = vsel %vm641, %v2072, 0
    %2159 = vmatprep.subr.bf16.mxu0 0
    %2160 = vmatpush1.bf16.msra.mxu0 %v2124
    %2161 = vmatprep.subr.bf16.mxu0 0
    %2162 = vmatpush1.bf16.msra.mxu0 %v2123
    %2163 = vmatprep.subr.bf16.mxu0 0
    %2164 = vmatpush1.bf16.msra.mxu0 %v2122
    %2165 = vmatprep.subr.bf16.mxu0 0
    %2166 = vmatpush1.bf16.msra.mxu0 %v2121
    %2167 = vmatprep.subr.bf16.mxu0 0
    %2168 = vmatpush1.bf16.msra.mxu0 %v2120
    %2169 = vmatprep.subr.bf16.mxu0 0
    %2170 = vmatpush1.bf16.msra.mxu0 %v2119
    %2171 = vmatprep.subr.bf16.mxu0 0
    %2172 = vmatpush1.bf16.msra.mxu0 %v2118
    %2173 = vmatprep.subr.bf16.mxu0 0
    %2174 = vmatpush1.bf16.msra.mxu0 %v2117
    %2175 = vmatprep.subr.bf16.mxu0 0
    %2176 = vmatpush2.bf16.msra.mxu0 0
    %2177 = vmatprep.subr.bf16.mxu0 0
    %2178 = vmatpush2.bf16.msra.mxu0 0
    %2179 = vmatprep.subr.bf16.mxu0 0
    %2180 = vmatpush2.bf16.msra.mxu0 0
    %2181 = vmatprep.subr.bf16.mxu0 0
    %2182 = vmatpush2.bf16.msra.mxu0 0
    %2183 = vmatprep.subr.bf16.mxu0 0
    %2184 = vmatpush2.bf16.msra.mxu0 0
    %2185 = vmatprep.subr.bf16.mxu0 0
    %2186 = vmatpush2.bf16.msra.mxu0 0
    %2187 = vmatprep.subr.bf16.mxu0 0
    %2188 = vmatpush2.bf16.msra.mxu0 0
    %2189 = vmatprep.subr.bf16.mxu0 0
    %2190 = vmatpush2.bf16.msra.mxu0 %v2125
    %2191 = vmatprep.mubr.bf16.mxu0 %v2136
    %2192 = vmatmul.mubr.bf16.gmra.mxu0 %v2057
    %v2193 = vpop.f32.mrf.mxu0
    %v2194 = vadd.f32 %v2056, %v2193
    %v2195 = vpop.f32.mrf.mxu0
    %v2196 = vpop.f32.mrf.mxu0
    %v2197 = vadd.f32 %v2056, %v2196
    %v2198 = vpop.f32.mrf.mxu0
    %2199 = vmatprep.mubr.bf16.mxu0 %v2139
    %2200 = vmatmul.mubr.bf16.gmra.mxu0 %v2059
    %v2201 = vpop.f32.mrf.mxu0
    %v2202 = vadd.f32 %v2056, %v2201
    %v2203 = vpop.f32.mrf.mxu0
    %v2204 = vpop.f32.mrf.mxu0
    %v2205 = vadd.f32 %v2056, %v2204
    %v2206 = vpop.f32.mrf.mxu0
    %2207 = vmatprep.mubr.bf16.mxu0 %v2142
    %2208 = vmatmul.mubr.bf16.gmra.mxu0 %v2061
    %v2209 = vpop.f32.mrf.mxu0
    %v2210 = vadd.f32 %v2056, %v2209
    %v2211 = vpop.f32.mrf.mxu0
    %v2212 = vpop.f32.mrf.mxu0
    %v2213 = vadd.f32 %v2056, %v2212
    %v2214 = vpop.f32.mrf.mxu0
    %2215 = vmatprep.mubr.bf16.mxu0 %v2145
    %2216 = vmatmul.mubr.bf16.gmra.mxu0 %v2063
    %v2217 = vpop.f32.mrf.mxu0
    %v2218 = vadd.f32 %v2056, %v2217
    %v2219 = vpop.f32.mrf.mxu0
    %v2220 = vpop.f32.mrf.mxu0
    %v2221 = vadd.f32 %v2056, %v2220
    %v2222 = vpop.f32.mrf.mxu0
    %2223 = vmatprep.mubr.bf16.mxu0 %v2148
    %2224 = vmatmul.mubr.bf16.gmra.mxu0 %v2065
    %v2225 = vpop.f32.mrf.mxu0
    %v2226 = vadd.f32 %v2056, %v2225
    %v2227 = vpop.f32.mrf.mxu0
    %v2228 = vpop.f32.mrf.mxu0
    %v2229 = vadd.f32 %v2056, %v2228
    %v2230 = vpop.f32.mrf.mxu0
    %2231 = vmatprep.mubr.bf16.mxu0 %v2151
    %2232 = vmatmul.mubr.bf16.gmra.mxu0 %v2067
    %v2233 = vpop.f32.mrf.mxu0
    %v2234 = vadd.f32 %v2056, %v2233
    %v2235 = vpop.f32.mrf.mxu0
    %v2236 = vpop.f32.mrf.mxu0
    %v2237 = vadd.f32 %v2056, %v2236
    %v2238 = vpop.f32.mrf.mxu0
    %2239 = vmatprep.mubr.bf16.mxu0 %v2154
    %2240 = vmatmul.mubr.bf16.gmra.mxu0 %v2069
    %v2241 = vpop.f32.mrf.mxu0
    %v2242 = vadd.f32 %v2056, %v2241
    %v2243 = vpop.f32.mrf.mxu0
    %v2244 = vpop.f32.mrf.mxu0
    %v2245 = vadd.f32 %v2056, %v2244
    %v2246 = vpop.f32.mrf.mxu0
    %2247 = vmatprep.mubr.bf16.mxu0 %v2157
    %2248 = vmatmul.mubr.bf16.gmra.mxu0 %v2071
    %v2249 = vpop.f32.mrf.mxu0
    %v2250 = vadd.f32 %v2056, %v2249
    %v2251 = vpop.f32.mrf.mxu0
    %v2252 = vpop.f32.mrf.mxu0
    %v2253 = vadd.f32 %v2056, %v2252
    %v2254 = vpop.f32.mrf.mxu0
    %2255 = vdwg.mxu0
    %v2256 = vsel %vm641, %v2194, 0.0
    %v2257 = vsel %vm641, %v2197, 0.0
    %v2258 = vadd.f32 %v2256, %v2257
    %v2259 = vsel %vm641, %v2202, 0.0
    %v2260 = vadd.f32 %v2258, %v2259
    %v2261 = vsel %vm641, %v2205, 0.0
    %v2262 = vadd.f32 %v2260, %v2261
    %v2263 = vsel %vm641, %v2210, 0.0
    %v2264 = vadd.f32 %v2262, %v2263
    %v2265 = vsel %vm641, %v2213, 0.0
    %v2266 = vadd.f32 %v2264, %v2265
    %v2267 = vsel %vm641, %v2218, 0.0
    %v2268 = vadd.f32 %v2266, %v2267
    %v2269 = vsel %vm641, %v2221, 0.0
    %v2270 = vadd.f32 %v2268, %v2269
    %v2271 = vsel %vm641, %v2226, 0.0
    %v2272 = vadd.f32 %v2270, %v2271
    %v2273 = vsel %vm641, %v2229, 0.0
    %v2274 = vadd.f32 %v2272, %v2273
    %v2275 = vsel %vm641, %v2234, 0.0
    %v2276 = vadd.f32 %v2274, %v2275
    %v2277 = vsel %vm641, %v2237, 0.0
    %v2278 = vadd.f32 %v2276, %v2277
    %v2279 = vsel %vm641, %v2242, 0.0
    %v2280 = vadd.f32 %v2278, %v2279
    %v2281 = vsel %vm641, %v2245, 0.0
    %v2282 = vadd.f32 %v2280, %v2281
    %v2283 = vsel %vm641, %v2250, 0.0
    %v2284 = vadd.f32 %v2282, %v2283
    %v2285 = vsel %vm641, %v2253, 0.0
    %v2286 = vadd.f32 %v2284, %v2285
    %v2287 = vrot.slane %v2286, 4
    %v2288 = vadd.f32 %v2286, %v2287
    %v2289 = vrot.slane %v2288, 2
    %v2290 = vadd.f32 %v2288, %v2289
    %v2291 = vrot.slane %v2290, 1
    %v2292 = vadd.f32 %v2290, %v2291
    %v2293 = vmul.f32 %v2194, %v2194
    %v2294 = vmul.f32 %v2197, %v2197
    %v2295 = vmul.f32 %v2202, %v2202
    %v2296 = vmul.f32 %v2205, %v2205
    %v2297 = vmul.f32 %v2210, %v2210
    %v2298 = vmul.f32 %v2213, %v2213
    %v2299 = vmul.f32 %v2218, %v2218
    %v2300 = vmul.f32 %v2221, %v2221
    %v2301 = vmul.f32 %v2226, %v2226
    %v2302 = vmul.f32 %v2229, %v2229
    %v2303 = vmul.f32 %v2234, %v2234
    %v2304 = vmul.f32 %v2237, %v2237
    %v2305 = vmul.f32 %v2242, %v2242
    %v2306 = vmul.f32 %v2245, %v2245
    %v2307 = vmul.f32 %v2250, %v2250
    %v2308 = vmul.f32 %v2253, %v2253
    %v2309 = vsel %vm641, %v2293, 0.0
    %v2310 = vsel %vm641, %v2294, 0.0
    %v2311 = vadd.f32 %v2309, %v2310
    %v2312 = vsel %vm641, %v2295, 0.0
    %v2313 = vadd.f32 %v2311, %v2312
    %v2314 = vsel %vm641, %v2296, 0.0
    %v2315 = vadd.f32 %v2313, %v2314
    %v2316 = vsel %vm641, %v2297, 0.0
    %v2317 = vadd.f32 %v2315, %v2316
    %v2318 = vsel %vm641, %v2298, 0.0
    %v2319 = vadd.f32 %v2317, %v2318
    %v2320 = vsel %vm641, %v2299, 0.0
    %v2321 = vadd.f32 %v2319, %v2320
    %v2322 = vsel %vm641, %v2300, 0.0
    %v2323 = vadd.f32 %v2321, %v2322
    %v2324 = vsel %vm641, %v2301, 0.0
    %v2325 = vadd.f32 %v2323, %v2324
    %v2326 = vsel %vm641, %v2302, 0.0
    %v2327 = vadd.f32 %v2325, %v2326
    %v2328 = vsel %vm641, %v2303, 0.0
    %v2329 = vadd.f32 %v2327, %v2328
    %v2330 = vsel %vm641, %v2304, 0.0
    %v2331 = vadd.f32 %v2329, %v2330
    %v2332 = vsel %vm641, %v2305, 0.0
    %v2333 = vadd.f32 %v2331, %v2332
    %v2334 = vsel %vm641, %v2306, 0.0
    %v2335 = vadd.f32 %v2333, %v2334
    %v2336 = vsel %vm641, %v2307, 0.0
    %v2337 = vadd.f32 %v2335, %v2336
    %v2338 = vsel %vm641, %v2308, 0.0
    %v2339 = vadd.f32 %v2337, %v2338
    %v2340 = vrot.slane %v2339, 4
    %v2341 = vadd.f32 %v2339, %v2340
    %v2342 = vrot.slane %v2341, 2
    %v2343 = vadd.f32 %v2341, %v2342
    %v2344 = vrot.slane %v2343, 1
    %v2345 = vadd.f32 %v2343, %v2344
    %v2346 = vmul.f32 %v2292, 0.0078125
    %v2347 = vmul.f32 %v2345, 0.0078125
    %v2348 = vmul.f32 %v2346, %v2346
    %v2349 = vsub.f32 %v2347, %v2348
    %v2350 = vmax.f32 %v2349, 0.0
    %v2351 = vld [vmem:[%s4 + $0x1] sm:$0x1]
    %v2352 = vadd.f32 %v2350, 1e-05
    %v2353 = vrsqrt.pop %v2352
    %v2354 = vmul.f32 %v2351, %v2353
    %v2355 = vld [vmem:[%s4 + $0x2] sm:$0x1]
    %v2356 = vmul.f32 %v2346, %v2354
    %v2357 = vsub.f32 %v2355, %v2356
    %v2358 = vlaneseq
    %v2359 = vshrl.u32 %v2358, 7
    %v2360 = vsub.s32 0, %v2359
    %v2361 = vrot.slane %v2354, %v2360
    %v2362 = vmul.f32 %v2194, %v2361
    %v2363 = vmul.f32 %v2197, %v2361
    %v2364 = vmul.f32 %v2202, %v2361
    %v2365 = vmul.f32 %v2205, %v2361
    %v2366 = vmul.f32 %v2210, %v2361
    %v2367 = vmul.f32 %v2213, %v2361
    %v2368 = vmul.f32 %v2218, %v2361
    %v2369 = vmul.f32 %v2221, %v2361
    %v2370 = vmul.f32 %v2226, %v2361
    %v2371 = vmul.f32 %v2229, %v2361
    %v2372 = vmul.f32 %v2234, %v2361
    %v2373 = vmul.f32 %v2237, %v2361
    %v2374 = vmul.f32 %v2242, %v2361
    %v2375 = vmul.f32 %v2245, %v2361
    %v2376 = vmul.f32 %v2250, %v2361
    %v2377 = vmul.f32 %v2253, %v2361
    %v2378 = vlaneseq
    %v2379 = vshrl.u32 %v2378, 7
    %v2380 = vsub.s32 0, %v2379
    %v2381 = vrot.slane %v2357, %v2380
    %v2382 = vadd.f32 %v2362, %v2381
    %v2383 = vadd.f32 %v2363, %v2381
    %v2384 = vadd.f32 %v2364, %v2381
    %v2385 = vadd.f32 %v2365, %v2381
    %v2386 = vadd.f32 %v2366, %v2381
    %v2387 = vadd.f32 %v2367, %v2381
    %v2388 = vadd.f32 %v2368, %v2381
    %v2389 = vadd.f32 %v2369, %v2381
    %v2390 = vadd.f32 %v2370, %v2381
    %v2391 = vadd.f32 %v2371, %v2381
    %v2392 = vadd.f32 %v2372, %v2381
    %v2393 = vadd.f32 %v2373, %v2381
    %v2394 = vadd.f32 %v2374, %v2381
    %v2395 = vadd.f32 %v2375, %v2381
    %v2396 = vadd.f32 %v2376, %v2381
    %v2397 = vadd.f32 %v2377, %v2381
    %v2398 = vmax.f32 %v2382, 0.0
    %v2399 = vmax.f32 %v2383, 0.0
    %v2400 = vmax.f32 %v2384, 0.0
    %v2401 = vmax.f32 %v2385, 0.0
    %v2402 = vmax.f32 %v2386, 0.0
    %v2403 = vmax.f32 %v2387, 0.0
    %v2404 = vmax.f32 %v2388, 0.0
    %v2405 = vmax.f32 %v2389, 0.0
    %v2406 = vmax.f32 %v2390, 0.0
    %v2407 = vmax.f32 %v2391, 0.0
    %v2408 = vmax.f32 %v2392, 0.0
    %v2409 = vmax.f32 %v2393, 0.0
    %v2410 = vmax.f32 %v2394, 0.0
    %v2411 = vmax.f32 %v2395, 0.0
    %v2412 = vmax.f32 %v2396, 0.0
    %v2413 = vmax.f32 %v2397, 0.0
    %2414 = vst.msk [vmem:[#allocation4] sm:$0xff] %vm641, %v2398
    %2415 = vst.msk [vmem:[#allocation4 + $0x8] sm:$0xff] %vm641, %v2399
    %2416 = vst.msk [vmem:[#allocation4 + $0x10] sm:$0xff] %vm641, %v2400
    %2417 = vst.msk [vmem:[#allocation4 + $0x18] sm:$0xff] %vm641, %v2401
    %2418 = vst.msk [vmem:[#allocation4 + $0x20] sm:$0xff] %vm641, %v2402
    %2419 = vst.msk [vmem:[#allocation4 + $0x28] sm:$0xff] %vm641, %v2403
    %2420 = vst.msk [vmem:[#allocation4 + $0x30] sm:$0xff] %vm641, %v2404
    %2421 = vst.msk [vmem:[#allocation4 + $0x38] sm:$0xff] %vm641, %v2405
    %2422 = vst.msk [vmem:[#allocation4 + $0x40] sm:$0xff] %vm641, %v2406
    %2423 = vst.msk [vmem:[#allocation4 + $0x48] sm:$0xff] %vm641, %v2407
    %2424 = vst.msk [vmem:[#allocation4 + $0x50] sm:$0xff] %vm641, %v2408
    %2425 = vst.msk [vmem:[#allocation4 + $0x58] sm:$0xff] %vm641, %v2409
    %2426 = vst.msk [vmem:[#allocation4 + $0x60] sm:$0xff] %vm641, %v2410
    %2427 = vst.msk [vmem:[#allocation4 + $0x68] sm:$0xff] %vm641, %v2411
    %2428 = vst.msk [vmem:[#allocation4 + $0x70] sm:$0xff] %vm641, %v2412
    %2429 = vst.msk [vmem:[#allocation4 + $0x78] sm:$0xff] %vm641, %v2413
    // Predicated region
    $region22: #{downward_layers_forward.3} parent=1 // pred_check
      _
    $region23: #{downward_layers_forward.3} parent=1 // pred_check_branch
      %2431 = sbr.rel (0) target = $region25
    $region24: #{downward_layers_forward.3} parent=1 // pred_region
      %s2433 = ssub.s32 2048, 2048
      %2434 = vsyncadd [#allocation5], %s2433
      %s2435 = sshll.u32 [#allocation4], 4
      %s2436 = int_to_ptr.vmem [resolvable:$true] %s2435
      %2441 = dma.vmem_to_hbm [thread:$0]  %s2436, 2048, %s5, [#allocation5], 128, 128, 8
    $region25: #{downward_layers_forward.3} parent=1 // pred_fallthru
      _
    // Predicated region
    $region26: #{downward_layers_forward.3} parent=1 // pred_check
      _
    $region27: #{downward_layers_forward.3} parent=1 // pred_check_branch
      %2443 = sbr.rel (0) target = $region29
    $region28: #{downward_layers_forward.3} parent=1 // pred_region
      %2444 = dma.done [#allocation5], 2048
    $region29: #{downward_layers_forward.3} parent=1 // pred_fallthru
      _
    %2445 = vsyncpa [#allocation5], 1

// kernel: downward_layers_forward.2
$region0: #{downward_layers_forward.2}
  #allocation0 [shape = 'u32[]', space=smem, size = 0x4, offset = 0x4, fixed_abs, tag = 'smem constant byte address 0x4 - core index']
  #allocation1 [shape = 'u32[144,128]{1,0:T(1,128)}', space=vmem, size = 0x12000, scoped, tag = 'internal scratch']
  #allocation2 [shape = 'f32[2,18,18,4]{3,2,1,0:T(8,128)}', space=vmem, size = 0x6c000, scoped, tag = 'scratch operand']
  #allocation3 [shape = 'f32[2,18,18,8]{3,2,1,0:T(8,128)}', space=vmem, size = 0x6c000, scoped, tag = 'scratch operand']
  %s0 = inlined_call_operand.vmem [shape: f32[2,16,16,4], index: 0, kind: input, shape index: {}]
  %s1 = inlined_call_operand.vmem [shape: bf16[36,8], index: 1, kind: input, shape index: {}]
  %s2 = inlined_call_operand.vmem [shape: f32[3,8], index: 2, kind: input, shape index: {}]
  %s3 = inlined_call_operand.vmem [shape: bf16[72,8], index: 3, kind: input, shape index: {}]
  %s4 = inlined_call_operand.vmem [shape: f32[3,8], index: 4, kind: input, shape index: {}]
  %s5 = inlined_call_operand.vmem [shape: f32[2,16,16,8], index: 5, kind: output, shape index: {0}]
  %s6 = inlined_call_operand.vmem [shape: bf16[2,8,8,8], index: 6, kind: output, shape index: {1}]
  %7 = xla_tuple %s5, %s6
  %s8 = sld [smem:[#allocation0]]
  $region38: #{downward_layers_forward.2} parent=0
    _
  %s10 = ssub.s32 1, %s8
  %s11 = scalar_select 0, %s10, %s8
  // Predicated region
  $region2: #{downward_layers_forward.2} parent=0 // pred_check
    _
  $region3: #{downward_layers_forward.2} parent=0 // pred_check_branch
    %13 = sbr.rel (0) target = $region5
  $region4: #{downward_layers_forward.2} parent=0 // pred_region
    _
  $region5: #{downward_layers_forward.2} parent=0 // pred_fallthru
    _
  // Predicated region
  $region6: #{downward_layers_forward.2} parent=0 // pred_check
    _
  $region7: #{downward_layers_forward.2} parent=0 // pred_check_branch
    %15 = sbr.rel (0) target = $region9
  $region8: #{downward_layers_forward.2} parent=0 // pred_region
    _
  $region9: #{downward_layers_forward.2} parent=0 // pred_fallthru
    _
  // Predicated region
  $region10: #{downward_layers_forward.2} parent=0 // pred_check
    _
  $region11: #{downward_layers_forward.2} parent=0 // pred_check_branch
    %17 = sbr.rel (0) target = $region13
  $region12: #{downward_layers_forward.2} parent=0 // pred_region
    _
  $region13: #{downward_layers_forward.2} parent=0 // pred_fallthru
    _
  // Predicated region
  $region14: #{downward_layers_forward.2} parent=0 // pred_check
    _
  $region15: #{downward_layers_forward.2} parent=0 // pred_check_branch
    %19 = sbr.rel (0) target = $region17
  $region16: #{downward_layers_forward.2} parent=0 // pred_region
    _
  $region17: #{downward_layers_forward.2} parent=0 // pred_fallthru
    _
  // Predicated region
  $region18: #{downward_layers_forward.2} parent=0 // pred_check
    _
  $region19: #{downward_layers_forward.2} parent=0 // pred_check_branch
    %21 = sbr.rel (0) target = $region21
  $region20: #{downward_layers_forward.2} parent=0 // pred_region
    _
  $region21: #{downward_layers_forward.2} parent=0 // pred_fallthru
    _
  %v23 = vld [vmem:[%s0] sm:$0xff]
  %v24 = vld [vmem:[%s0 + $0x8] sm:$0xff]
  %v25 = vld [vmem:[%s0 + $0x10] sm:$0xff]
  %v26 = vld [vmem:[%s0 + $0x18] sm:$0xff]
  %v27 = vld [vmem:[%s0 + $0x20] sm:$0xff]
  %v28 = vld [vmem:[%s0 + $0x28] sm:$0xff]
  %v29 = vld [vmem:[%s0 + $0x30] sm:$0xff]
  %v30 = vld [vmem:[%s0 + $0x38] sm:$0xff]
  %v31 = vld [vmem:[%s0 + $0x40] sm:$0xff]
  %v32 = vld [vmem:[%s0 + $0x48] sm:$0xff]
  %v33 = vld [vmem:[%s0 + $0x50] sm:$0xff]
  %v34 = vld [vmem:[%s0 + $0x58] sm:$0xff]
  %v35 = vld [vmem:[%s0 + $0x60] sm:$0xff]
  %v36 = vld [vmem:[%s0 + $0x68] sm:$0xff]
  %v37 = vld [vmem:[%s0 + $0x70] sm:$0xff]
  %v38 = vld [vmem:[%s0 + $0x78] sm:$0xff]
  %v39 = vld [vmem:[%s0 + $0x80] sm:$0xff]
  %v40 = vld [vmem:[%s0 + $0x88] sm:$0xff]
  %v41 = vld [vmem:[%s0 + $0x90] sm:$0xff]
  %v42 = vld [vmem:[%s0 + $0x98] sm:$0xff]
  %v43 = vld [vmem:[%s0 + $0xa0] sm:$0xff]
  %v44 = vld [vmem:[%s0 + $0xa8] sm:$0xff]
  %v45 = vld [vmem:[%s0 + $0xb0] sm:$0xff]
  %v46 = vld [vmem:[%s0 + $0xb8] sm:$0xff]
  %v47 = vld [vmem:[%s0 + $0xc0] sm:$0xff]
  %v48 = vld [vmem:[%s0 + $0xc8] sm:$0xff]
  %v49 = vld [vmem:[%s0 + $0xd0] sm:$0xff]
  %v50 = vld [vmem:[%s0 + $0xd8] sm:$0xff]
  %v51 = vld [vmem:[%s0 + $0xe0] sm:$0xff]
  %v52 = vld [vmem:[%s0 + $0xe8] sm:$0xff]
  %v53 = vld [vmem:[%s0 + $0xf0] sm:$0xff]
  %v54 = vld [vmem:[%s0 + $0xf8] sm:$0xff]
  %v55 = vld [vmem:[%s0 + $0x100] sm:$0xff]
  %v56 = vld [vmem:[%s0 + $0x108] sm:$0xff]
  %v57 = vld [vmem:[%s0 + $0x110] sm:$0xff]
  %v58 = vld [vmem:[%s0 + $0x118] sm:$0xff]
  %v59 = vld [vmem:[%s0 + $0x120] sm:$0xff]
  %v60 = vld [vmem:[%s0 + $0x128] sm:$0xff]
  %v61 = vld [vmem:[%s0 + $0x130] sm:$0xff]
  %v62 = vld [vmem:[%s0 + $0x138] sm:$0xff]
  %v63 = vld [vmem:[%s0 + $0x140] sm:$0xff]
  %v64 = vld [vmem:[%s0 + $0x148] sm:$0xff]
  %v65 = vld [vmem:[%s0 + $0x150] sm:$0xff]
  %v66 = vld [vmem:[%s0 + $0x158] sm:$0xff]
  %v67 = vld [vmem:[%s0 + $0x160] sm:$0xff]
  %v68 = vld [vmem:[%s0 + $0x168] sm:$0xff]
  %v69 = vld [vmem:[%s0 + $0x170] sm:$0xff]
  %v70 = vld [vmem:[%s0 + $0x178] sm:$0xff]
  %v71 = vld [vmem:[%s0 + $0x180] sm:$0xff]
  %v72 = vld [vmem:[%s0 + $0x188] sm:$0xff]
  %v73 = vld [vmem:[%s0 + $0x190] sm:$0xff]
  %v74 = vld [vmem:[%s0 + $0x198] sm:$0xff]
  %v75 = vld [vmem:[%s0 + $0x1a0] sm:$0xff]
  %v76 = vld [vmem:[%s0 + $0x1a8] sm:$0xff]
  %v77 = vld [vmem:[%s0 + $0x1b0] sm:$0xff]
  %v78 = vld [vmem:[%s0 + $0x1b8] sm:$0xff]
  %v79 = vld [vmem:[%s0 + $0x1c0] sm:$0xff]
  %v80 = vld [vmem:[%s0 + $0x1c8] sm:$0xff]
  %v81 = vld [vmem:[%s0 + $0x1d0] sm:$0xff]
  %v82 = vld [vmem:[%s0 + $0x1d8] sm:$0xff]
  %v83 = vld [vmem:[%s0 + $0x1e0] sm:$0xff]
  %v84 = vld [vmem:[%s0 + $0x1e8] sm:$0xff]
  %v85 = vld [vmem:[%s0 + $0x1f0] sm:$0xff]
  %v86 = vld [vmem:[%s0 + $0x1f8] sm:$0xff]
  %vm87 = vcmask 31744
  %88 = vst.msk [vmem:[#allocation2] sm:$0xff] %vm87, 0.0
  %89 = vst.msk [vmem:[#allocation2 + $0x8] sm:$0xff] %vm87, 0.0
  %vm90 = vcmask 25600
  %91 = vst.msk [vmem:[#allocation2 + $0x10] sm:$0x3] %vm90, 0.0
  %92 = vst.msk [vmem:[#allocation2 + $0x18] sm:$0xff] %vm87, 0.0
  %93 = vst.msk [vmem:[#allocation2 + $0x20] sm:$0xff] %vm87, 0.0
  %94 = vst.msk [vmem:[#allocation2 + $0x28] sm:$0x3] %vm90, 0.0
  %95 = vst.msk [vmem:[#allocation2 + $0x30] sm:$0xff] %vm87, 0.0
  %96 = vst.msk [vmem:[#allocation2 + $0x38] sm:$0xff] %vm87, 0.0
  %97 = vst.msk [vmem:[#allocation2 + $0x40] sm:$0x3] %vm90, 0.0
  %98 = vst.msk [vmem:[#allocation2 + $0x48] sm:$0xff] %vm87, 0.0
  %99 = vst.msk [vmem:[#allocation2 + $0x50] sm:$0xff] %vm87, 0.0
  %100 = vst.msk [vmem:[#allocation2 + $0x58] sm:$0x3] %vm90, 0.0
  %101 = vst.msk [vmem:[#allocation2 + $0x60] sm:$0xff] %vm87, 0.0
  %102 = vst.msk [vmem:[#allocation2 + $0x68] sm:$0xff] %vm87, 0.0
  %103 = vst.msk [vmem:[#allocation2 + $0x70] sm:$0x3] %vm90, 0.0
  %104 = vst.msk [vmem:[#allocation2 + $0x78] sm:$0xff] %vm87, 0.0
  %105 = vst.msk [vmem:[#allocation2 + $0x80] sm:$0xff] %vm87, 0.0
  %106 = vst.msk [vmem:[#allocation2 + $0x88] sm:$0x3] %vm90, 0.0
  %107 = vst.msk [vmem:[#allocation2 + $0x90] sm:$0xff] %vm87, 0.0
  %108 = vst.msk [vmem:[#allocation2 + $0x98] sm:$0xff] %vm87, 0.0
  %109 = vst.msk [vmem:[#allocation2 + $0xa0] sm:$0x3] %vm90, 0.0
  %110 = vst.msk [vmem:[#allocation2 + $0xa8] sm:$0xff] %vm87, 0.0
  %111 = vst.msk [vmem:[#allocation2 + $0xb0] sm:$0xff] %vm87, 0.0
  %112 = vst.msk [vmem:[#allocation2 + $0xb8] sm:$0x3] %vm90, 0.0
  %113 = vst.msk [vmem:[#allocation2 + $0xc0] sm:$0xff] %vm87, 0.0
  %114 = vst.msk [vmem:[#allocation2 + $0xc8] sm:$0xff] %vm87, 0.0
  %115 = vst.msk [vmem:[#allocation2 + $0xd0] sm:$0x3] %vm90, 0.0
  %116 = vst.msk [vmem:[#allocation2 + $0xd8] sm:$0xff] %vm87, 0.0
  %117 = vst.msk [vmem:[#allocation2 + $0xe0] sm:$0xff] %vm87, 0.0
  %118 = vst.msk [vmem:[#allocation2 + $0xe8] sm:$0x3] %vm90, 0.0
  %119 = vst.msk [vmem:[#allocation2 + $0xf0] sm:$0xff] %vm87, 0.0
  %120 = vst.msk [vmem:[#allocation2 + $0xf8] sm:$0xff] %vm87, 0.0
  %121 = vst.msk [vmem:[#allocation2 + $0x100] sm:$0x3] %vm90, 0.0
  %122 = vst.msk [vmem:[#allocation2 + $0x108] sm:$0xff] %vm87, 0.0
  %123 = vst.msk [vmem:[#allocation2 + $0x110] sm:$0xff] %vm87, 0.0
  %124 = vst.msk [vmem:[#allocation2 + $0x118] sm:$0x3] %vm90, 0.0
  %125 = vst.msk [vmem:[#allocation2 + $0x120] sm:$0xff] %vm87, 0.0
  %126 = vst.msk [vmem:[#allocation2 + $0x128] sm:$0xff] %vm87, 0.0
  %127 = vst.msk [vmem:[#allocation2 + $0x130] sm:$0x3] %vm90, 0.0
  %128 = vst.msk [vmem:[#allocation2 + $0x138] sm:$0xff] %vm87, 0.0
  %129 = vst.msk [vmem:[#allocation2 + $0x140] sm:$0xff] %vm87, 0.0
  %130 = vst.msk [vmem:[#allocation2 + $0x148] sm:$0x3] %vm90, 0.0
  %131 = vst.msk [vmem:[#allocation2 + $0x150] sm:$0xff] %vm87, 0.0
  %132 = vst.msk [vmem:[#allocation2 + $0x158] sm:$0xff] %vm87, 0.0
  %133 = vst.msk [vmem:[#allocation2 + $0x160] sm:$0x3] %vm90, 0.0
  %134 = vst.msk [vmem:[#allocation2 + $0x168] sm:$0xff] %vm87, 0.0
  %135 = vst.msk [vmem:[#allocation2 + $0x170] sm:$0xff] %vm87, 0.0
  %136 = vst.msk [vmem:[#allocation2 + $0x178] sm:$0x3] %vm90, 0.0
  %137 = vst.msk [vmem:[#allocation2 + $0x180] sm:$0xff] %vm87, 0.0
  %138 = vst.msk [vmem:[#allocation2 + $0x188] sm:$0xff] %vm87, 0.0
  %139 = vst.msk [vmem:[#allocation2 + $0x190] sm:$0x3] %vm90, 0.0
  %140 = vst.msk [vmem:[#allocation2 + $0x198] sm:$0xff] %vm87, 0.0
  %141 = vst.msk [vmem:[#allocation2 + $0x1a0] sm:$0xff] %vm87, 0.0
  %142 = vst.msk [vmem:[#allocation2 + $0x1a8] sm:$0x3] %vm90, 0.0
  %143 = vst.msk [vmem:[#allocation2 + $0x1b0] sm:$0xff] %vm87, 0.0
  %144 = vst.msk [vmem:[#allocation2 + $0x1b8] sm:$0xff] %vm87, 0.0
  %145 = vst.msk [vmem:[#allocation2 + $0x1c0] sm:$0x3] %vm90, 0.0
  %146 = vst.msk [vmem:[#allocation2 + $0x1c8] sm:$0xff] %vm87, 0.0
  %147 = vst.msk [vmem:[#allocation2 + $0x1d0] sm:$0xff] %vm87, 0.0
  %148 = vst.msk [vmem:[#allocation2 + $0x1d8] sm:$0x3] %vm90, 0.0
  %149 = vst.msk [vmem:[#allocation2 + $0x1e0] sm:$0xff] %vm87, 0.0
  %150 = vst.msk [vmem:[#allocation2 + $0x1e8] sm:$0xff] %vm87, 0.0
  %151 = vst.msk [vmem:[#allocation2 + $0x1f0] sm:$0x3] %vm90, 0.0
  %152 = vst.msk [vmem:[#allocation2 + $0x1f8] sm:$0xff] %vm87, 0.0
  %153 = vst.msk [vmem:[#allocation2 + $0x200] sm:$0xff] %vm87, 0.0
  %154 = vst.msk [vmem:[#allocation2 + $0x208] sm:$0x3] %vm90, 0.0
  %155 = vst.msk [vmem:[#allocation2 + $0x210] sm:$0xff] %vm87, 0.0
  %156 = vst.msk [vmem:[#allocation2 + $0x218] sm:$0xff] %vm87, 0.0
  %157 = vst.msk [vmem:[#allocation2 + $0x220] sm:$0x3] %vm90, 0.0
  %158 = vst.msk [vmem:[#allocation2 + $0x228] sm:$0xff] %vm87, 0.0
  %159 = vst.msk [vmem:[#allocation2 + $0x230] sm:$0xff] %vm87, 0.0
  %160 = vst.msk [vmem:[#allocation2 + $0x238] sm:$0x3] %vm90, 0.0
  %161 = vst.msk [vmem:[#allocation2 + $0x240] sm:$0xff] %vm87, 0.0
  %162 = vst.msk [vmem:[#allocation2 + $0x248] sm:$0xff] %vm87, 0.0
  %163 = vst.msk [vmem:[#allocation2 + $0x250] sm:$0x3] %vm90, 0.0
  %164 = vst.msk [vmem:[#allocation2 + $0x258] sm:$0xff] %vm87, 0.0
  %165 = vst.msk [vmem:[#allocation2 + $0x260] sm:$0xff] %vm87, 0.0
  %166 = vst.msk [vmem:[#allocation2 + $0x268] sm:$0x3] %vm90, 0.0
  %167 = vst.msk [vmem:[#allocation2 + $0x270] sm:$0xff] %vm87, 0.0
  %168 = vst.msk [vmem:[#allocation2 + $0x278] sm:$0xff] %vm87, 0.0
  %169 = vst.msk [vmem:[#allocation2 + $0x280] sm:$0x3] %vm90, 0.0
  %170 = vst.msk [vmem:[#allocation2 + $0x288] sm:$0xff] %vm87, 0.0
  %171 = vst.msk [vmem:[#allocation2 + $0x290] sm:$0xff] %vm87, 0.0
  %172 = vst.msk [vmem:[#allocation2 + $0x298] sm:$0x3] %vm90, 0.0
  %173 = vst.msk [vmem:[#allocation2 + $0x2a0] sm:$0xff] %vm87, 0.0
  %174 = vst.msk [vmem:[#allocation2 + $0x2a8] sm:$0xff] %vm87, 0.0
  %175 = vst.msk [vmem:[#allocation2 + $0x2b0] sm:$0x3] %vm90, 0.0
  %176 = vst.msk [vmem:[#allocation2 + $0x2b8] sm:$0xff] %vm87, 0.0
  %177 = vst.msk [vmem:[#allocation2 + $0x2c0] sm:$0xff] %vm87, 0.0
  %178 = vst.msk [vmem:[#allocation2 + $0x2c8] sm:$0x3] %vm90, 0.0
  %179 = vst.msk [vmem:[#allocation2 + $0x2d0] sm:$0xff] %vm87, 0.0
  %180 = vst.msk [vmem:[#allocation2 + $0x2d8] sm:$0xff] %vm87, 0.0
  %181 = vst.msk [vmem:[#allocation2 + $0x2e0] sm:$0x3] %vm90, 0.0
  %182 = vst.msk [vmem:[#allocation2 + $0x2e8] sm:$0xff] %vm87, 0.0
  %183 = vst.msk [vmem:[#allocation2 + $0x2f0] sm:$0xff] %vm87, 0.0
  %184 = vst.msk [vmem:[#allocation2 + $0x2f8] sm:$0x3] %vm90, 0.0
  %185 = vst.msk [vmem:[#allocation2 + $0x300] sm:$0xff] %vm87, 0.0
  %186 = vst.msk [vmem:[#allocation2 + $0x308] sm:$0xff] %vm87, 0.0
  %187 = vst.msk [vmem:[#allocation2 + $0x310] sm:$0x3] %vm90, 0.0
  %188 = vst.msk [vmem:[#allocation2 + $0x318] sm:$0xff] %vm87, 0.0
  %189 = vst.msk [vmem:[#allocation2 + $0x320] sm:$0xff] %vm87, 0.0
  %190 = vst.msk [vmem:[#allocation2 + $0x328] sm:$0x3] %vm90, 0.0
  %191 = vst.msk [vmem:[#allocation2 + $0x330] sm:$0xff] %vm87, 0.0
  %192 = vst.msk [vmem:[#allocation2 + $0x338] sm:$0xff] %vm87, 0.0
  %193 = vst.msk [vmem:[#allocation2 + $0x340] sm:$0x3] %vm90, 0.0
  %194 = vst.msk [vmem:[#allocation2 + $0x348] sm:$0xff] %vm87, 0.0
  %195 = vst.msk [vmem:[#allocation2 + $0x350] sm:$0xff] %vm87, 0.0
  %196 = vst.msk [vmem:[#allocation2 + $0x358] sm:$0x3] %vm90, 0.0
  %s197 = scalar_lea.vmem [#allocation2], 24
  %198 = vst.msk [vmem:[%s197 + $0x1] sm:$0xff] %vm87, %v23
  %199 = vst.msk [vmem:[%s197 + $0x9] sm:$0xff] %vm87, %v24
  %200 = vst.msk [vmem:[%s197 + $0x19] sm:$0xff] %vm87, %v25
  %201 = vst.msk [vmem:[%s197 + $0x21] sm:$0xff] %vm87, %v26
  %202 = vst.msk [vmem:[%s197 + $0x31] sm:$0xff] %vm87, %v27
  %203 = vst.msk [vmem:[%s197 + $0x39] sm:$0xff] %vm87, %v28
  %204 = vst.msk [vmem:[%s197 + $0x49] sm:$0xff] %vm87, %v29
  %205 = vst.msk [vmem:[%s197 + $0x51] sm:$0xff] %vm87, %v30
  %206 = vst.msk [vmem:[%s197 + $0x61] sm:$0xff] %vm87, %v31
  %207 = vst.msk [vmem:[%s197 + $0x69] sm:$0xff] %vm87, %v32
  %208 = vst.msk [vmem:[%s197 + $0x79] sm:$0xff] %vm87, %v33
  %209 = vst.msk [vmem:[%s197 + $0x81] sm:$0xff] %vm87, %v34
  %210 = vst.msk [vmem:[%s197 + $0x91] sm:$0xff] %vm87, %v35
  %211 = vst.msk [vmem:[%s197 + $0x99] sm:$0xff] %vm87, %v36
  %212 = vst.msk [vmem:[%s197 + $0xa9] sm:$0xff] %vm87, %v37
  %213 = vst.msk [vmem:[%s197 + $0xb1] sm:$0xff] %vm87, %v38
  %214 = vst.msk [vmem:[%s197 + $0xc1] sm:$0xff] %vm87, %v39
  %215 = vst.msk [vmem:[%s197 + $0xc9] sm:$0xff] %vm87, %v40
  %216 = vst.msk [vmem:[%s197 + $0xd9] sm:$0xff] %vm87, %v41
  %217 = vst.msk [vmem:[%s197 + $0xe1] sm:$0xff] %vm87, %v42
  %218 = vst.msk [vmem:[%s197 + $0xf1] sm:$0xff] %vm87, %v43
  %219 = vst.msk [vmem:[%s197 + $0xf9] sm:$0xff] %vm87, %v44
  %220 = vst.msk [vmem:[%s197 + $0x109] sm:$0xff] %vm87, %v45
  %221 = vst.msk [vmem:[%s197 + $0x111] sm:$0xff] %vm87, %v46
  %222 = vst.msk [vmem:[%s197 + $0x121] sm:$0xff] %vm87, %v47
  %223 = vst.msk [vmem:[%s197 + $0x129] sm:$0xff] %vm87, %v48
  %224 = vst.msk [vmem:[%s197 + $0x139] sm:$0xff] %vm87, %v49
  %225 = vst.msk [vmem:[%s197 + $0x141] sm:$0xff] %vm87, %v50
  %226 = vst.msk [vmem:[%s197 + $0x151] sm:$0xff] %vm87, %v51
  %227 = vst.msk [vmem:[%s197 + $0x159] sm:$0xff] %vm87, %v52
  %228 = vst.msk [vmem:[%s197 + $0x169] sm:$0xff] %vm87, %v53
  %229 = vst.msk [vmem:[%s197 + $0x171] sm:$0xff] %vm87, %v54
  %230 = vst.msk [vmem:[%s197 + $0x1b1] sm:$0xff] %vm87, %v55
  %231 = vst.msk [vmem:[%s197 + $0x1b9] sm:$0xff] %vm87, %v56
  %232 = vst.msk [vmem:[%s197 + $0x1c9] sm:$0xff] %vm87, %v57
  %233 = vst.msk [vmem:[%s197 + $0x1d1] sm:$0xff] %vm87, %v58
  %234 = vst.msk [vmem:[%s197 + $0x1e1] sm:$0xff] %vm87, %v59
  %235 = vst.msk [vmem:[%s197 + $0x1e9] sm:$0xff] %vm87, %v60
  %236 = vst.msk [vmem:[%s197 + $0x1f9] sm:$0xff] %vm87, %v61
  %237 = vst.msk [vmem:[%s197 + $0x201] sm:$0xff] %vm87, %v62
  %238 = vst.msk [vmem:[%s197 + $0x211] sm:$0xff] %vm87, %v63
  %239 = vst.msk [vmem:[%s197 + $0x219] sm:$0xff] %vm87, %v64
  %240 = vst.msk [vmem:[%s197 + $0x229] sm:$0xff] %vm87, %v65
  %241 = vst.msk [vmem:[%s197 + $0x231] sm:$0xff] %vm87, %v66
  %242 = vst.msk [vmem:[%s197 + $0x241] sm:$0xff] %vm87, %v67
  %243 = vst.msk [vmem:[%s197 + $0x249] sm:$0xff] %vm87, %v68
  %244 = vst.msk [vmem:[%s197 + $0x259] sm:$0xff] %vm87, %v69
  %245 = vst.msk [vmem:[%s197 + $0x261] sm:$0xff] %vm87, %v70
  %246 = vst.msk [vmem:[%s197 + $0x271] sm:$0xff] %vm87, %v71
  %247 = vst.msk [vmem:[%s197 + $0x279] sm:$0xff] %vm87, %v72
  %248 = vst.msk [vmem:[%s197 + $0x289] sm:$0xff] %vm87, %v73
  %249 = vst.msk [vmem:[%s197 + $0x291] sm:$0xff] %vm87, %v74
  %250 = vst.msk [vmem:[%s197 + $0x2a1] sm:$0xff] %vm87, %v75
  %251 = vst.msk [vmem:[%s197 + $0x2a9] sm:$0xff] %vm87, %v76
  %252 = vst.msk [vmem:[%s197 + $0x2b9] sm:$0xff] %vm87, %v77
  %253 = vst.msk [vmem:[%s197 + $0x2c1] sm:$0xff] %vm87, %v78
  %254 = vst.msk [vmem:[%s197 + $0x2d1] sm:$0xff] %vm87, %v79
  %255 = vst.msk [vmem:[%s197 + $0x2d9] sm:$0xff] %vm87, %v80
  %256 = vst.msk [vmem:[%s197 + $0x2e9] sm:$0xff] %vm87, %v81
  %257 = vst.msk [vmem:[%s197 + $0x2f1] sm:$0xff] %vm87, %v82
  %258 = vst.msk [vmem:[%s197 + $0x301] sm:$0xff] %vm87, %v83
  %259 = vst.msk [vmem:[%s197 + $0x309] sm:$0xff] %vm87, %v84
  %260 = vst.msk [vmem:[%s197 + $0x319] sm:$0xff] %vm87, %v85
  %261 = vst.msk [vmem:[%s197 + $0x321] sm:$0xff] %vm87, %v86
  %v262 = vld [vmem:[#allocation2] sm:$0xff]
  %v263 = vld [vmem:[#allocation2 + $0x8] sm:$0xff]
  %v264 = vld [vmem:[#allocation2 + $0x10] sm:$0x3]
  %v265 = vld [vmem:[#allocation2 + $0x18] sm:$0xff]
  %v266 = vld [vmem:[#allocation2 + $0x20] sm:$0xff]
  %v267 = vld [vmem:[#allocation2 + $0x28] sm:$0x3]
  %v268 = vld [vmem:[#allocation2 + $0x30] sm:$0xff]
  %v269 = vld [vmem:[#allocation2 + $0x38] sm:$0xff]
  %v270 = vld [vmem:[#allocation2 + $0x40] sm:$0x3]
  %v271 = vld [vmem:[#allocation2 + $0x48] sm:$0xff]
  %v272 = vld [vmem:[#allocation2 + $0x50] sm:$0xff]
  %v273 = vld [vmem:[#allocation2 + $0x58] sm:$0x3]
  %v274 = vld [vmem:[#allocation2 + $0x60] sm:$0xff]
  %v275 = vld [vmem:[#allocation2 + $0x68] sm:$0xff]
  %v276 = vld [vmem:[#allocation2 + $0x70] sm:$0x3]
  %v277 = vld [vmem:[#allocation2 + $0x78] sm:$0xff]
  %v278 = vld [vmem:[#allocation2 + $0x80] sm:$0xff]
  %v279 = vld [vmem:[#allocation2 + $0x88] sm:$0x3]
  %v280 = vld [vmem:[#allocation2 + $0x90] sm:$0xff]
  %v281 = vld [vmem:[#allocation2 + $0x98] sm:$0xff]
  %v282 = vld [vmem:[#allocation2 + $0xa0] sm:$0x3]
  %v283 = vld [vmem:[#allocation2 + $0xa8] sm:$0xff]
  %v284 = vld [vmem:[#allocation2 + $0xb0] sm:$0xff]
  %v285 = vld [vmem:[#allocation2 + $0xb8] sm:$0x3]
  %v286 = vld [vmem:[#allocation2 + $0xc0] sm:$0xff]
  %v287 = vld [vmem:[#allocation2 + $0xc8] sm:$0xff]
  %v288 = vld [vmem:[#allocation2 + $0xd0] sm:$0x3]
  %v289 = vld [vmem:[#allocation2 + $0xd8] sm:$0xff]
  %v290 = vld [vmem:[#allocation2 + $0xe0] sm:$0xff]
  %v291 = vld [vmem:[#allocation2 + $0xe8] sm:$0x3]
  %v292 = vld [vmem:[#allocation2 + $0xf0] sm:$0xff]
  %v293 = vld [vmem:[#allocation2 + $0xf8] sm:$0xff]
  %v294 = vld [vmem:[#allocation2 + $0x100] sm:$0x3]
  %v295 = vld [vmem:[#allocation2 + $0x108] sm:$0xff]
  %v296 = vld [vmem:[#allocation2 + $0x110] sm:$0xff]
  %v297 = vld [vmem:[#allocation2 + $0x118] sm:$0x3]
  %v298 = vld [vmem:[#allocation2 + $0x120] sm:$0xff]
  %v299 = vld [vmem:[#allocation2 + $0x128] sm:$0xff]
  %v300 = vld [vmem:[#allocation2 + $0x130] sm:$0x3]
  %v301 = vld [vmem:[#allocation2 + $0x138] sm:$0xff]
  %v302 = vld [vmem:[#allocation2 + $0x140] sm:$0xff]
  %v303 = vld [vmem:[#allocation2 + $0x148] sm:$0x3]
  %v304 = vld [vmem:[#allocation2 + $0x150] sm:$0xff]
  %v305 = vld [vmem:[#allocation2 + $0x158] sm:$0xff]
  %v306 = vld [vmem:[#allocation2 + $0x160] sm:$0x3]
  %v307 = vld [vmem:[#allocation2 + $0x168] sm:$0xff]
  %v308 = vld [vmem:[#allocation2 + $0x170] sm:$0xff]
  %v309 = vld [vmem:[#allocation2 + $0x178] sm:$0x3]
  %v310 = vld [vmem:[#allocation2 + $0x180] sm:$0xff]
  %v311 = vld [vmem:[#allocation2 + $0x188] sm:$0xff]
  %v312 = vld [vmem:[#allocation2 + $0x190] sm:$0x3]
  %v313 = vld [vmem:[#allocation2 + $0x198] sm:$0xff]
  %v314 = vld [vmem:[#allocation2 + $0x1a0] sm:$0xff]
  %v315 = vld [vmem:[#allocation2 + $0x1a8] sm:$0x3]
  %v316 = vld [vmem:[#allocation2 + $0x1b0] sm:$0xff]
  %v317 = vld [vmem:[#allocation2 + $0x1b8] sm:$0xff]
  %v318 = vld [vmem:[#allocation2 + $0x1c0] sm:$0x3]
  %v319 = vld [vmem:[#allocation2 + $0x1c8] sm:$0xff]
  %v320 = vld [vmem:[#allocation2 + $0x1d0] sm:$0xff]
  %v321 = vld [vmem:[#allocation2 + $0x1d8] sm:$0x3]
  %v322 = vld [vmem:[#allocation2 + $0x1e0] sm:$0xff]
  %v323 = vld [vmem:[#allocation2 + $0x1e8] sm:$0xff]
  %v324 = vld [vmem:[#allocation2 + $0x1f0] sm:$0x3]
  %v325 = vld [vmem:[#allocation2 + $0x1f8] sm:$0xff]
  %v326 = vld [vmem:[#allocation2 + $0x200] sm:$0xff]
  %v327 = vld [vmem:[#allocation2 + $0x208] sm:$0x3]
  %v328 = vld [vmem:[#allocation2 + $0x210] sm:$0xff]
  %v329 = vld [vmem:[#allocation2 + $0x218] sm:$0xff]
  %v330 = vld [vmem:[#allocation2 + $0x220] sm:$0x3]
  %v331 = vld [vmem:[#allocation2 + $0x228] sm:$0xff]
  %v332 = vld [vmem:[#allocation2 + $0x230] sm:$0xff]
  %v333 = vld [vmem:[#allocation2 + $0x238] sm:$0x3]
  %v334 = vld [vmem:[#allocation2 + $0x240] sm:$0xff]
  %v335 = vld [vmem:[#allocation2 + $0x248] sm:$0xff]
  %v336 = vld [vmem:[#allocation2 + $0x250] sm:$0x3]
  %v337 = vld [vmem:[#allocation2 + $0x258] sm:$0xff]
  %v338 = vld [vmem:[#allocation2 + $0x260] sm:$0xff]
  %v339 = vld [vmem:[#allocation2 + $0x268] sm:$0x3]
  %v340 = vld [vmem:[#allocation2 + $0x270] sm:$0xff]
  %v341 = vld [vmem:[#allocation2 + $0x278] sm:$0xff]
  %v342 = vld [vmem:[#allocation2 + $0x280] sm:$0x3]
  %v343 = vld [vmem:[#allocation2 + $0x288] sm:$0xff]
  %v344 = vld [vmem:[#allocation2 + $0x290] sm:$0xff]
  %v345 = vld [vmem:[#allocation2 + $0x298] sm:$0x3]
  %v346 = vld [vmem:[#allocation2 + $0x2a0] sm:$0xff]
  %v347 = vld [vmem:[#allocation2 + $0x2a8] sm:$0xff]
  %v348 = vld [vmem:[#allocation2 + $0x2b0] sm:$0x3]
  %v349 = vld [vmem:[#allocation2 + $0x2b8] sm:$0xff]
  %v350 = vld [vmem:[#allocation2 + $0x2c0] sm:$0xff]
  %v351 = vld [vmem:[#allocation2 + $0x2c8] sm:$0x3]
  %v352 = vld [vmem:[#allocation2 + $0x2d0] sm:$0xff]
  %v353 = vld [vmem:[#allocation2 + $0x2d8] sm:$0xff]
  %v354 = vld [vmem:[#allocation2 + $0x2e0] sm:$0x3]
  %v355 = vld [vmem:[#allocation2 + $0x2e8] sm:$0xff]
  %v356 = vld [vmem:[#allocation2 + $0x2f0] sm:$0xff]
  %v357 = vld [vmem:[#allocation2 + $0x2f8] sm:$0x3]
  %v358 = vld [vmem:[#allocation2 + $0x300] sm:$0xff]
  %v359 = vld [vmem:[#allocation2 + $0x308] sm:$0xff]
  %v360 = vld [vmem:[#allocation2 + $0x310] sm:$0x3]
  %v361 = vld [vmem:[#allocation2 + $0x318] sm:$0xff]
  %v362 = vld [vmem:[#allocation2 + $0x320] sm:$0xff]
  %v363 = vld [vmem:[#allocation2 + $0x328] sm:$0x3]
  %v364 = vld [vmem:[#allocation2 + $0x330] sm:$0xff]
  %v365 = vld [vmem:[#allocation2 + $0x338] sm:$0xff]
  %v366 = vld [vmem:[#allocation2 + $0x340] sm:$0x3]
  %v367 = vld [vmem:[#allocation2 + $0x348] sm:$0xff]
  %v368 = vld [vmem:[#allocation2 + $0x350] sm:$0xff]
  %v369 = vld [vmem:[#allocation2 + $0x358] sm:$0x3]
  %v370 = vpack.c.bf16 %v263, %v262
  %v371 = vpack.c.bf16 %v264, %v264
  %v372 = vpack.c.bf16 %v266, %v265
  %v373 = vpack.c.bf16 %v267, %v267
  %v374 = vpack.c.bf16 %v269, %v268
  %v375 = vpack.c.bf16 %v270, %v270
  %v376 = vpack.c.bf16 %v272, %v271
  %v377 = vpack.c.bf16 %v273, %v273
  %v378 = vpack.c.bf16 %v275, %v274
  %v379 = vpack.c.bf16 %v276, %v276
  %v380 = vpack.c.bf16 %v278, %v277
  %v381 = vpack.c.bf16 %v279, %v279
  %v382 = vpack.c.bf16 %v281, %v280
  %v383 = vpack.c.bf16 %v282, %v282
  %v384 = vpack.c.bf16 %v284, %v283
  %v385 = vpack.c.bf16 %v285, %v285
  %v386 = vpack.c.bf16 %v287, %v286
  %v387 = vpack.c.bf16 %v288, %v288
  %v388 = vpack.c.bf16 %v290, %v289
  %v389 = vpack.c.bf16 %v291, %v291
  %v390 = vpack.c.bf16 %v293, %v292
  %v391 = vpack.c.bf16 %v294, %v294
  %v392 = vpack.c.bf16 %v296, %v295
  %v393 = vpack.c.bf16 %v297, %v297
  %v394 = vpack.c.bf16 %v299, %v298
  %v395 = vpack.c.bf16 %v300, %v300
  %v396 = vpack.c.bf16 %v302, %v301
  %v397 = vpack.c.bf16 %v303, %v303
  %v398 = vpack.c.bf16 %v305, %v304
  %v399 = vpack.c.bf16 %v306, %v306
  %v400 = vpack.c.bf16 %v308, %v307
  %v401 = vpack.c.bf16 %v309, %v309
  %v402 = vpack.c.bf16 %v311, %v310
  %v403 = vpack.c.bf16 %v312, %v312
  %v404 = vpack.c.bf16 %v314, %v313
  %v405 = vpack.c.bf16 %v315, %v315
  %v406 = vpack.c.bf16 %v317, %v316
  %v407 = vpack.c.bf16 %v318, %v318
  %v408 = vpack.c.bf16 %v320, %v319
  %v409 = vpack.c.bf16 %v321, %v321
  %v410 = vpack.c.bf16 %v323, %v322
  %v411 = vpack.c.bf16 %v324, %v324
  %v412 = vpack.c.bf16 %v326, %v325
  %v413 = vpack.c.bf16 %v327, %v327
  %v414 = vpack.c.bf16 %v329, %v328
  %v415 = vpack.c.bf16 %v330, %v330
  %v416 = vpack.c.bf16 %v332, %v331
  %v417 = vpack.c.bf16 %v333, %v333
  %v418 = vpack.c.bf16 %v335, %v334
  %v419 = vpack.c.bf16 %v336, %v336
  %v420 = vpack.c.bf16 %v338, %v337
  %v421 = vpack.c.bf16 %v339, %v339
  %v422 = vpack.c.bf16 %v341, %v340
  %v423 = vpack.c.bf16 %v342, %v342
  %v424 = vpack.c.bf16 %v344, %v343
  %v425 = vpack.c.bf16 %v345, %v345
  %v426 = vpack.c.bf16 %v347, %v346
  %v427 = vpack.c.bf16 %v348, %v348
  %v428 = vpack.c.bf16 %v350, %v349
  %v429 = vpack.c.bf16 %v351, %v351
  %v430 = vpack.c.bf16 %v353, %v352
  %v431 = vpack.c.bf16 %v354, %v354
  %v432 = vpack.c.bf16 %v356, %v355
  %v433 = vpack.c.bf16 %v357, %v357
  %v434 = vpack.c.bf16 %v359, %v358
  %v435 = vpack.c.bf16 %v360, %v360
  %v436 = vpack.c.bf16 %v362, %v361
  %v437 = vpack.c.bf16 %v363, %v363
  %v438 = vpack.c.bf16 %v365, %v364
  %v439 = vpack.c.bf16 %v366, %v366
  %v440 = vpack.c.bf16 %v368, %v367
  %v441 = vpack.c.bf16 %v369, %v369
  %vm442 = vsmask.f32 7424
  %v444 = vshrl.u32 %v370, 16
  %v446 = vshll.u32 %v370, 16
  %v448 = vrot.slane %v446, 1
  %v449 = vor.u32 %v444, %v448
  %v451 = vshll.u32 %v371, 16
  %v453 = vrot.slane %v451, 1
  %v454 = vsel %vm442, %v449, %v453
  %v456 = vshrl.u32 %v372, 16
  %v458 = vshll.u32 %v372, 16
  %v460 = vrot.slane %v458, 1
  %v461 = vor.u32 %v456, %v460
  %v463 = vshll.u32 %v373, 16
  %v465 = vrot.slane %v463, 1
  %v466 = vsel %vm442, %v461, %v465
  %v468 = vshrl.u32 %v374, 16
  %v470 = vshll.u32 %v374, 16
  %v472 = vrot.slane %v470, 1
  %v473 = vor.u32 %v468, %v472
  %v475 = vshll.u32 %v375, 16
  %v477 = vrot.slane %v475, 1
  %v478 = vsel %vm442, %v473, %v477
  %v480 = vshrl.u32 %v376, 16
  %v482 = vshll.u32 %v376, 16
  %v484 = vrot.slane %v482, 1
  %v485 = vor.u32 %v480, %v484
  %v487 = vshll.u32 %v377, 16
  %v489 = vrot.slane %v487, 1
  %v490 = vsel %vm442, %v485, %v489
  %v492 = vshrl.u32 %v378, 16
  %v494 = vshll.u32 %v378, 16
  %v496 = vrot.slane %v494, 1
  %v497 = vor.u32 %v492, %v496
  %v499 = vshll.u32 %v379, 16
  %v501 = vrot.slane %v499, 1
  %v502 = vsel %vm442, %v497, %v501
  %v504 = vshrl.u32 %v380, 16
  %v506 = vshll.u32 %v380, 16
  %v508 = vrot.slane %v506, 1
  %v509 = vor.u32 %v504, %v508
  %v511 = vshll.u32 %v381, 16
  %v513 = vrot.slane %v511, 1
  %v514 = vsel %vm442, %v509, %v513
  %v516 = vshrl.u32 %v382, 16
  %v518 = vshll.u32 %v382, 16
  %v520 = vrot.slane %v518, 1
  %v521 = vor.u32 %v516, %v520
  %v523 = vshll.u32 %v383, 16
  %v525 = vrot.slane %v523, 1
  %v526 = vsel %vm442, %v521, %v525
  %v528 = vshrl.u32 %v384, 16
  %v530 = vshll.u32 %v384, 16
  %v532 = vrot.slane %v530, 1
  %v533 = vor.u32 %v528, %v532
  %v535 = vshll.u32 %v385, 16
  %v537 = vrot.slane %v535, 1
  %v538 = vsel %vm442, %v533, %v537
  %v540 = vshrl.u32 %v386, 16
  %v542 = vshll.u32 %v386, 16
  %v544 = vrot.slane %v542, 1
  %v545 = vor.u32 %v540, %v544
  %v547 = vshll.u32 %v387, 16
  %v549 = vrot.slane %v547, 1
  %v550 = vsel %vm442, %v545, %v549
  %v552 = vshrl.u32 %v388, 16
  %v554 = vshll.u32 %v388, 16
  %v556 = vrot.slane %v554, 1
  %v557 = vor.u32 %v552, %v556
  %v559 = vshll.u32 %v389, 16
  %v561 = vrot.slane %v559, 1
  %v562 = vsel %vm442, %v557, %v561
  %v564 = vshrl.u32 %v390, 16
  %v566 = vshll.u32 %v390, 16
  %v568 = vrot.slane %v566, 1
  %v569 = vor.u32 %v564, %v568
  %v571 = vshll.u32 %v391, 16
  %v573 = vrot.slane %v571, 1
  %v574 = vsel %vm442, %v569, %v573
  %v576 = vshrl.u32 %v392, 16
  %v578 = vshll.u32 %v392, 16
  %v580 = vrot.slane %v578, 1
  %v581 = vor.u32 %v576, %v580
  %v583 = vshll.u32 %v393, 16
  %v585 = vrot.slane %v583, 1
  %v586 = vsel %vm442, %v581, %v585
  %v588 = vshrl.u32 %v394, 16
  %v590 = vshll.u32 %v394, 16
  %v592 = vrot.slane %v590, 1
  %v593 = vor.u32 %v588, %v592
  %v595 = vshll.u32 %v395, 16
  %v597 = vrot.slane %v595, 1
  %v598 = vsel %vm442, %v593, %v597
  %v600 = vshrl.u32 %v396, 16
  %v602 = vshll.u32 %v396, 16
  %v604 = vrot.slane %v602, 1
  %v605 = vor.u32 %v600, %v604
  %v607 = vshll.u32 %v397, 16
  %v609 = vrot.slane %v607, 1
  %v610 = vsel %vm442, %v605, %v609
  %v612 = vshrl.u32 %v398, 16
  %v614 = vshll.u32 %v398, 16
  %v616 = vrot.slane %v614, 1
  %v617 = vor.u32 %v612, %v616
  %v619 = vshll.u32 %v399, 16
  %v621 = vrot.slane %v619, 1
  %v622 = vsel %vm442, %v617, %v621
  %v624 = vshrl.u32 %v400, 16
  %v626 = vshll.u32 %v400, 16
  %v628 = vrot.slane %v626, 1
  %v629 = vor.u32 %v624, %v628
  %v631 = vshll.u32 %v401, 16
  %v633 = vrot.slane %v631, 1
  %v634 = vsel %vm442, %v629, %v633
  %v636 = vshrl.u32 %v406, 16
  %v638 = vshll.u32 %v406, 16
  %v640 = vrot.slane %v638, 1
  %v641 = vor.u32 %v636, %v640
  %v643 = vshll.u32 %v407, 16
  %v645 = vrot.slane %v643, 1
  %v646 = vsel %vm442, %v641, %v645
  %v648 = vshrl.u32 %v408, 16
  %v650 = vshll.u32 %v408, 16
  %v652 = vrot.slane %v650, 1
  %v653 = vor.u32 %v648, %v652
  %v655 = vshll.u32 %v409, 16
  %v657 = vrot.slane %v655, 1
  %v658 = vsel %vm442, %v653, %v657
  %v660 = vshrl.u32 %v410, 16
  %v662 = vshll.u32 %v410, 16
  %v664 = vrot.slane %v662, 1
  %v665 = vor.u32 %v660, %v664
  %v667 = vshll.u32 %v411, 16
  %v669 = vrot.slane %v667, 1
  %v670 = vsel %vm442, %v665, %v669
  %v672 = vshrl.u32 %v412, 16
  %v674 = vshll.u32 %v412, 16
  %v676 = vrot.slane %v674, 1
  %v677 = vor.u32 %v672, %v676
  %v679 = vshll.u32 %v413, 16
  %v681 = vrot.slane %v679, 1
  %v682 = vsel %vm442, %v677, %v681
  %v684 = vshrl.u32 %v414, 16
  %v686 = vshll.u32 %v414, 16
  %v688 = vrot.slane %v686, 1
  %v689 = vor.u32 %v684, %v688
  %v691 = vshll.u32 %v415, 16
  %v693 = vrot.slane %v691, 1
  %v694 = vsel %vm442, %v689, %v693
  %v696 = vshrl.u32 %v416, 16
  %v698 = vshll.u32 %v416, 16
  %v700 = vrot.slane %v698, 1
  %v701 = vor.u32 %v696, %v700
  %v703 = vshll.u32 %v417, 16
  %v705 = vrot.slane %v703, 1
  %v706 = vsel %vm442, %v701, %v705
  %v708 = vshrl.u32 %v418, 16
  %v710 = vshll.u32 %v418, 16
  %v712 = vrot.slane %v710, 1
  %v713 = vor.u32 %v708, %v712
  %v715 = vshll.u32 %v419, 16
  %v717 = vrot.slane %v715, 1
  %v718 = vsel %vm442, %v713, %v717
  %v720 = vshrl.u32 %v420, 16
  %v722 = vshll.u32 %v420, 16
  %v724 = vrot.slane %v722, 1
  %v725 = vor.u32 %v720, %v724
  %v727 = vshll.u32 %v421, 16
  %v729 = vrot.slane %v727, 1
  %v730 = vsel %vm442, %v725, %v729
  %v732 = vshrl.u32 %v422, 16
  %v734 = vshll.u32 %v422, 16
  %v736 = vrot.slane %v734, 1
  %v737 = vor.u32 %v732, %v736
  %v739 = vshll.u32 %v423, 16
  %v741 = vrot.slane %v739, 1
  %v742 = vsel %vm442, %v737, %v741
  %v744 = vshrl.u32 %v424, 16
  %v746 = vshll.u32 %v424, 16
  %v748 = vrot.slane %v746, 1
  %v749 = vor.u32 %v744, %v748
  %v751 = vshll.u32 %v425, 16
  %v753 = vrot.slane %v751, 1
  %v754 = vsel %vm442, %v749, %v753
  %v756 = vshrl.u32 %v426, 16
  %v758 = vshll.u32 %v426, 16
  %v760 = vrot.slane %v758, 1
  %v761 = vor.u32 %v756, %v760
  %v763 = vshll.u32 %v427, 16
  %v765 = vrot.slane %v763, 1
  %v766 = vsel %vm442, %v761, %v765
  %v768 = vshrl.u32 %v428, 16
  %v770 = vshll.u32 %v428, 16
  %v772 = vrot.slane %v770, 1
  %v773 = vor.u32 %v768, %v772
  %v775 = vshll.u32 %v429, 16
  %v777 = vrot.slane %v775, 1
  %v778 = vsel %vm442, %v773, %v777
  %v780 = vshrl.u32 %v430, 16
  %v782 = vshll.u32 %v430, 16
  %v784 = vrot.slane %v782, 1
  %v785 = vor.u32 %v780, %v784
  %v787 = vshll.u32 %v431, 16
  %v789 = vrot.slane %v787, 1
  %v790 = vsel %vm442, %v785, %v789
  %v792 = vshrl.u32 %v432, 16
  %v794 = vshll.u32 %v432, 16
  %v796 = vrot.slane %v794, 1
  %v797 = vor.u32 %v792, %v796
  %v799 = vshll.u32 %v433, 16
  %v801 = vrot.slane %v799, 1
  %v802 = vsel %vm442, %v797, %v801
  %v804 = vshrl.u32 %v434, 16
  %v806 = vshll.u32 %v434, 16
  %v808 = vrot.slane %v806, 1
  %v809 = vor.u32 %v804, %v808
  %v811 = vshll.u32 %v435, 16
  %v813 = vrot.slane %v811, 1
  %v814 = vsel %vm442, %v809, %v813
  %v816 = vshrl.u32 %v436, 16
  %v818 = vshll.u32 %v436, 16
  %v820 = vrot.slane %v818, 1
  %v821 = vor.u32 %v816, %v820
  %v823 = vshll.u32 %v437, 16
  %v825 = vrot.slane %v823, 1
  %v826 = vsel %vm442, %v821, %v825
  %827 = vrot.lane.b32.xlu0 %v454, 4
  %v828 = vpop.permute.xlu0 %827
  %829 = vrot.lane.b32.xlu0 %v466, 4
  %v830 = vpop.permute.xlu0 %829
  %831 = vrot.lane.b32.xlu0 %v478, 4
  %v832 = vpop.permute.xlu0 %831
  %833 = vrot.lane.b32.xlu0 %v490, 4
  %v834 = vpop.permute.xlu0 %833
  %835 = vrot.lane.b32.xlu0 %v502, 4
  %v836 = vpop.permute.xlu0 %835
  %837 = vrot.lane.b32.xlu0 %v514, 4
  %v838 = vpop.permute.xlu0 %837
  %839 = vrot.lane.b32.xlu0 %v526, 4
  %v840 = vpop.permute.xlu0 %839
  %841 = vrot.lane.b32.xlu0 %v538, 4
  %v842 = vpop.permute.xlu0 %841
  %843 = vrot.lane.b32.xlu0 %v550, 4
  %v844 = vpop.permute.xlu0 %843
  %845 = vrot.lane.b32.xlu0 %v562, 4
  %v846 = vpop.permute.xlu0 %845
  %847 = vrot.lane.b32.xlu0 %v574, 4
  %v848 = vpop.permute.xlu0 %847
  %849 = vrot.lane.b32.xlu0 %v586, 4
  %v850 = vpop.permute.xlu0 %849
  %851 = vrot.lane.b32.xlu0 %v598, 4
  %v852 = vpop.permute.xlu0 %851
  %853 = vrot.lane.b32.xlu0 %v610, 4
  %v854 = vpop.permute.xlu0 %853
  %855 = vrot.lane.b32.xlu0 %v622, 4
  %v856 = vpop.permute.xlu0 %855
  %857 = vrot.lane.b32.xlu0 %v634, 4
  %v858 = vpop.permute.xlu0 %857
  %859 = vrot.lane.b32.xlu0 %v646, 4
  %v860 = vpop.permute.xlu0 %859
  %861 = vrot.lane.b32.xlu0 %v658, 4
  %v862 = vpop.permute.xlu0 %861
  %863 = vrot.lane.b32.xlu0 %v670, 4
  %v864 = vpop.permute.xlu0 %863
  %865 = vrot.lane.b32.xlu0 %v682, 4
  %v866 = vpop.permute.xlu0 %865
  %867 = vrot.lane.b32.xlu0 %v694, 4
  %v868 = vpop.permute.xlu0 %867
  %869 = vrot.lane.b32.xlu0 %v706, 4
  %v870 = vpop.permute.xlu0 %869
  %871 = vrot.lane.b32.xlu0 %v718, 4
  %v872 = vpop.permute.xlu0 %871
  %873 = vrot.lane.b32.xlu0 %v730, 4
  %v874 = vpop.permute.xlu0 %873
  %875 = vrot.lane.b32.xlu0 %v742, 4
  %v876 = vpop.permute.xlu0 %875
  %877 = vrot.lane.b32.xlu0 %v754, 4
  %v878 = vpop.permute.xlu0 %877
  %879 = vrot.lane.b32.xlu0 %v766, 4
  %v880 = vpop.permute.xlu0 %879
  %881 = vrot.lane.b32.xlu0 %v778, 4
  %v882 = vpop.permute.xlu0 %881
  %883 = vrot.lane.b32.xlu0 %v790, 4
  %v884 = vpop.permute.xlu0 %883
  %885 = vrot.lane.b32.xlu0 %v802, 4
  %v886 = vpop.permute.xlu0 %885
  %887 = vrot.lane.b32.xlu0 %v814, 4
  %v888 = vpop.permute.xlu0 %887
  %889 = vrot.lane.b32.xlu0 %v826, 4
  %v890 = vpop.permute.xlu0 %889
  %vm955 = vcmask 1046528
  %v956 = vrot.slane %v370, 1
  %v957 = vrot.slane %v371, 1
  %v958 = vsel %vm955, %v956, %v957
  %v959 = vrot.slane %v372, 1
  %v960 = vrot.slane %v373, 1
  %v961 = vsel %vm955, %v959, %v960
  %v962 = vrot.slane %v374, 1
  %v963 = vrot.slane %v375, 1
  %v964 = vsel %vm955, %v962, %v963
  %v965 = vrot.slane %v376, 1
  %v966 = vrot.slane %v377, 1
  %v967 = vsel %vm955, %v965, %v966
  %v968 = vrot.slane %v378, 1
  %v969 = vrot.slane %v379, 1
  %v970 = vsel %vm955, %v968, %v969
  %v971 = vrot.slane %v380, 1
  %v972 = vrot.slane %v381, 1
  %v973 = vsel %vm955, %v971, %v972
  %v974 = vrot.slane %v382, 1
  %v975 = vrot.slane %v383, 1
  %v976 = vsel %vm955, %v974, %v975
  %v977 = vrot.slane %v384, 1
  %v978 = vrot.slane %v385, 1
  %v979 = vsel %vm955, %v977, %v978
  %v980 = vrot.slane %v386, 1
  %v981 = vrot.slane %v387, 1
  %v982 = vsel %vm955, %v980, %v981
  %v983 = vrot.slane %v388, 1
  %v984 = vrot.slane %v389, 1
  %v985 = vsel %vm955, %v983, %v984
  %v986 = vrot.slane %v390, 1
  %v987 = vrot.slane %v391, 1
  %v988 = vsel %vm955, %v986, %v987
  %v989 = vrot.slane %v392, 1
  %v990 = vrot.slane %v393, 1
  %v991 = vsel %vm955, %v989, %v990
  %v992 = vrot.slane %v394, 1
  %v993 = vrot.slane %v395, 1
  %v994 = vsel %vm955, %v992, %v993
  %v995 = vrot.slane %v396, 1
  %v996 = vrot.slane %v397, 1
  %v997 = vsel %vm955, %v995, %v996
  %v998 = vrot.slane %v398, 1
  %v999 = vrot.slane %v399, 1
  %v1000 = vsel %vm955, %v998, %v999
  %v1001 = vrot.slane %v400, 1
  %v1002 = vrot.slane %v401, 1
  %v1003 = vsel %vm955, %v1001, %v1002
  %v1004 = vrot.slane %v406, 1
  %v1005 = vrot.slane %v407, 1
  %v1006 = vsel %vm955, %v1004, %v1005
  %v1007 = vrot.slane %v408, 1
  %v1008 = vrot.slane %v409, 1
  %v1009 = vsel %vm955, %v1007, %v1008
  %v1010 = vrot.slane %v410, 1
  %v1011 = vrot.slane %v411, 1
  %v1012 = vsel %vm955, %v1010, %v1011
  %v1013 = vrot.slane %v412, 1
  %v1014 = vrot.slane %v413, 1
  %v1015 = vsel %vm955, %v1013, %v1014
  %v1016 = vrot.slane %v414, 1
  %v1017 = vrot.slane %v415, 1
  %v1018 = vsel %vm955, %v1016, %v1017
  %v1019 = vrot.slane %v416, 1
  %v1020 = vrot.slane %v417, 1
  %v1021 = vsel %vm955, %v1019, %v1020
  %v1022 = vrot.slane %v418, 1
  %v1023 = vrot.slane %v419, 1
  %v1024 = vsel %vm955, %v1022, %v1023
  %v1025 = vrot.slane %v420, 1
  %v1026 = vrot.slane %v421, 1
  %v1027 = vsel %vm955, %v1025, %v1026
  %v1028 = vrot.slane %v422, 1
  %v1029 = vrot.slane %v423, 1
  %v1030 = vsel %vm955, %v1028, %v1029
  %v1031 = vrot.slane %v424, 1
  %v1032 = vrot.slane %v425, 1
  %v1033 = vsel %vm955, %v1031, %v1032
  %v1034 = vrot.slane %v426, 1
  %v1035 = vrot.slane %v427, 1
  %v1036 = vsel %vm955, %v1034, %v1035
  %v1037 = vrot.slane %v428, 1
  %v1038 = vrot.slane %v429, 1
  %v1039 = vsel %vm955, %v1037, %v1038
  %v1040 = vrot.slane %v430, 1
  %v1041 = vrot.slane %v431, 1
  %v1042 = vsel %vm955, %v1040, %v1041
  %v1043 = vrot.slane %v432, 1
  %v1044 = vrot.slane %v433, 1
  %v1045 = vsel %vm955, %v1043, %v1044
  %v1046 = vrot.slane %v434, 1
  %v1047 = vrot.slane %v435, 1
  %v1048 = vsel %vm955, %v1046, %v1047
  %v1049 = vrot.slane %v436, 1
  %v1050 = vrot.slane %v437, 1
  %v1051 = vsel %vm955, %v1049, %v1050
  %1052 = vrot.lane.b32.xlu0 %v958, 8
  %v1053 = vpop.permute.xlu0 %1052
  %1054 = vrot.lane.b32.xlu0 %v961, 8
  %v1055 = vpop.permute.xlu0 %1054
  %1056 = vrot.lane.b32.xlu0 %v964, 8
  %v1057 = vpop.permute.xlu0 %1056
  %1058 = vrot.lane.b32.xlu0 %v967, 8
  %v1059 = vpop.permute.xlu0 %1058
  %1060 = vrot.lane.b32.xlu0 %v970, 8
  %v1061 = vpop.permute.xlu0 %1060
  %1062 = vrot.lane.b32.xlu0 %v973, 8
  %v1063 = vpop.permute.xlu0 %1062
  %1064 = vrot.lane.b32.xlu0 %v976, 8
  %v1065 = vpop.permute.xlu0 %1064
  %1066 = vrot.lane.b32.xlu0 %v979, 8
  %v1067 = vpop.permute.xlu0 %1066
  %1068 = vrot.lane.b32.xlu0 %v982, 8
  %v1069 = vpop.permute.xlu0 %1068
  %1070 = vrot.lane.b32.xlu0 %v985, 8
  %v1071 = vpop.permute.xlu0 %1070
  %1072 = vrot.lane.b32.xlu0 %v988, 8
  %v1073 = vpop.permute.xlu0 %1072
  %1074 = vrot.lane.b32.xlu0 %v991, 8
  %v1075 = vpop.permute.xlu0 %1074
  %1076 = vrot.lane.b32.xlu0 %v994, 8
  %v1077 = vpop.permute.xlu0 %1076
  %1078 = vrot.lane.b32.xlu0 %v997, 8
  %v1079 = vpop.permute.xlu0 %1078
  %1080 = vrot.lane.b32.xlu0 %v1000, 8
  %v1081 = vpop.permute.xlu0 %1080
  %1082 = vrot.lane.b32.xlu0 %v1003, 8
  %v1083 = vpop.permute.xlu0 %1082
  %1084 = vrot.lane.b32.xlu0 %v1006, 8
  %v1085 = vpop.permute.xlu0 %1084
  %1086 = vrot.lane.b32.xlu0 %v1009, 8
  %v1087 = vpop.permute.xlu0 %1086
  %1088 = vrot.lane.b32.xlu0 %v1012, 8
  %v1089 = vpop.permute.xlu0 %1088
  %1090 = vrot.lane.b32.xlu0 %v1015, 8
  %v1091 = vpop.permute.xlu0 %1090
  %1092 = vrot.lane.b32.xlu0 %v1018, 8
  %v1093 = vpop.permute.xlu0 %1092
  %1094 = vrot.lane.b32.xlu0 %v1021, 8
  %v1095 = vpop.permute.xlu0 %1094
  %1096 = vrot.lane.b32.xlu0 %v1024, 8
  %v1097 = vpop.permute.xlu0 %1096
  %1098 = vrot.lane.b32.xlu0 %v1027, 8
  %v1099 = vpop.permute.xlu0 %1098
  %1100 = vrot.lane.b32.xlu0 %v1030, 8
  %v1101 = vpop.permute.xlu0 %1100
  %1102 = vrot.lane.b32.xlu0 %v1033, 8
  %v1103 = vpop.permute.xlu0 %1102
  %1104 = vrot.lane.b32.xlu0 %v1036, 8
  %v1105 = vpop.permute.xlu0 %1104
  %1106 = vrot.lane.b32.xlu0 %v1039, 8
  %v1107 = vpop.permute.xlu0 %1106
  %1108 = vrot.lane.b32.xlu0 %v1042, 8
  %v1109 = vpop.permute.xlu0 %1108
  %1110 = vrot.lane.b32.xlu0 %v1045, 8
  %v1111 = vpop.permute.xlu0 %1110
  %1112 = vrot.lane.b32.xlu0 %v1048, 8
  %v1113 = vpop.permute.xlu0 %1112
  %1114 = vrot.lane.b32.xlu0 %v1051, 8
  %v1115 = vpop.permute.xlu0 %1114
  %1118 = vrot.lane.b32.xlu0 %v372, 12
  %v1119 = vpop.permute.xlu0 %1118
  %1120 = vrot.lane.b32.xlu0 %v374, 12
  %v1121 = vpop.permute.xlu0 %1120
  %1122 = vrot.lane.b32.xlu0 %v376, 12
  %v1123 = vpop.permute.xlu0 %1122
  %1124 = vrot.lane.b32.xlu0 %v378, 12
  %v1125 = vpop.permute.xlu0 %1124
  %1126 = vrot.lane.b32.xlu0 %v380, 12
  %v1127 = vpop.permute.xlu0 %1126
  %1128 = vrot.lane.b32.xlu0 %v382, 12
  %v1129 = vpop.permute.xlu0 %1128
  %1130 = vrot.lane.b32.xlu0 %v384, 12
  %v1131 = vpop.permute.xlu0 %1130
  %1132 = vrot.lane.b32.xlu0 %v386, 12
  %v1133 = vpop.permute.xlu0 %1132
  %1134 = vrot.lane.b32.xlu0 %v388, 12
  %v1135 = vpop.permute.xlu0 %1134
  %1136 = vrot.lane.b32.xlu0 %v390, 12
  %v1137 = vpop.permute.xlu0 %1136
  %1138 = vrot.lane.b32.xlu0 %v392, 12
  %v1139 = vpop.permute.xlu0 %1138
  %1140 = vrot.lane.b32.xlu0 %v394, 12
  %v1141 = vpop.permute.xlu0 %1140
  %1142 = vrot.lane.b32.xlu0 %v396, 12
  %v1143 = vpop.permute.xlu0 %1142
  %1144 = vrot.lane.b32.xlu0 %v398, 12
  %v1145 = vpop.permute.xlu0 %1144
  %1146 = vrot.lane.b32.xlu0 %v400, 12
  %v1147 = vpop.permute.xlu0 %1146
  %1148 = vrot.lane.b32.xlu0 %v402, 12
  %v1149 = vpop.permute.xlu0 %1148
  %1150 = vrot.lane.b32.xlu0 %v408, 12
  %v1151 = vpop.permute.xlu0 %1150
  %1152 = vrot.lane.b32.xlu0 %v410, 12
  %v1153 = vpop.permute.xlu0 %1152
  %1154 = vrot.lane.b32.xlu0 %v412, 12
  %v1155 = vpop.permute.xlu0 %1154
  %1156 = vrot.lane.b32.xlu0 %v414, 12
  %v1157 = vpop.permute.xlu0 %1156
  %1158 = vrot.lane.b32.xlu0 %v416, 12
  %v1159 = vpop.permute.xlu0 %1158
  %1160 = vrot.lane.b32.xlu0 %v418, 12
  %v1161 = vpop.permute.xlu0 %1160
  %1162 = vrot.lane.b32.xlu0 %v420, 12
  %v1163 = vpop.permute.xlu0 %1162
  %1164 = vrot.lane.b32.xlu0 %v422, 12
  %v1165 = vpop.permute.xlu0 %1164
  %1166 = vrot.lane.b32.xlu0 %v424, 12
  %v1167 = vpop.permute.xlu0 %1166
  %1168 = vrot.lane.b32.xlu0 %v426, 12
  %v1169 = vpop.permute.xlu0 %1168
  %1170 = vrot.lane.b32.xlu0 %v428, 12
  %v1171 = vpop.permute.xlu0 %1170
  %1172 = vrot.lane.b32.xlu0 %v430, 12
  %v1173 = vpop.permute.xlu0 %1172
  %1174 = vrot.lane.b32.xlu0 %v432, 12
  %v1175 = vpop.permute.xlu0 %1174
  %1176 = vrot.lane.b32.xlu0 %v434, 12
  %v1177 = vpop.permute.xlu0 %1176
  %1178 = vrot.lane.b32.xlu0 %v436, 12
  %v1179 = vpop.permute.xlu0 %1178
  %1180 = vrot.lane.b32.xlu0 %v438, 12
  %v1181 = vpop.permute.xlu0 %1180
  %v1183 = vshrl.u32 %v402, 16
  %v1185 = vshll.u32 %v402, 16
  %v1187 = vrot.slane %v1185, 1
  %v1188 = vor.u32 %v1183, %v1187
  %v1190 = vshll.u32 %v403, 16
  %v1192 = vrot.slane %v1190, 1
  %v1193 = vsel %vm442, %v1188, %v1192
  %v1195 = vshrl.u32 %v438, 16
  %v1197 = vshll.u32 %v438, 16
  %v1199 = vrot.slane %v1197, 1
  %v1200 = vor.u32 %v1195, %v1199
  %v1202 = vshll.u32 %v439, 16
  %v1204 = vrot.slane %v1202, 1
  %v1205 = vsel %vm442, %v1200, %v1204
  %1206 = vrot.lane.b32.xlu0 %v466, 16
  %v1207 = vpop.permute.xlu0 %1206
  %1208 = vrot.lane.b32.xlu0 %v478, 16
  %v1209 = vpop.permute.xlu0 %1208
  %1210 = vrot.lane.b32.xlu0 %v490, 16
  %v1211 = vpop.permute.xlu0 %1210
  %1212 = vrot.lane.b32.xlu0 %v502, 16
  %v1213 = vpop.permute.xlu0 %1212
  %1214 = vrot.lane.b32.xlu0 %v514, 16
  %v1215 = vpop.permute.xlu0 %1214
  %1216 = vrot.lane.b32.xlu0 %v526, 16
  %v1217 = vpop.permute.xlu0 %1216
  %1218 = vrot.lane.b32.xlu0 %v538, 16
  %v1219 = vpop.permute.xlu0 %1218
  %1220 = vrot.lane.b32.xlu0 %v550, 16
  %v1221 = vpop.permute.xlu0 %1220
  %1222 = vrot.lane.b32.xlu0 %v562, 16
  %v1223 = vpop.permute.xlu0 %1222
  %1224 = vrot.lane.b32.xlu0 %v574, 16
  %v1225 = vpop.permute.xlu0 %1224
  %1226 = vrot.lane.b32.xlu0 %v586, 16
  %v1227 = vpop.permute.xlu0 %1226
  %1228 = vrot.lane.b32.xlu0 %v598, 16
  %v1229 = vpop.permute.xlu0 %1228
  %1230 = vrot.lane.b32.xlu0 %v610, 16
  %v1231 = vpop.permute.xlu0 %1230
  %1232 = vrot.lane.b32.xlu0 %v622, 16
  %v1233 = vpop.permute.xlu0 %1232
  %1234 = vrot.lane.b32.xlu0 %v634, 16
  %v1235 = vpop.permute.xlu0 %1234
  %1236 = vrot.lane.b32.xlu0 %v1193, 16
  %v1237 = vpop.permute.xlu0 %1236
  %1238 = vrot.lane.b32.xlu0 %v658, 16
  %v1239 = vpop.permute.xlu0 %1238
  %1240 = vrot.lane.b32.xlu0 %v670, 16
  %v1241 = vpop.permute.xlu0 %1240
  %1242 = vrot.lane.b32.xlu0 %v682, 16
  %v1243 = vpop.permute.xlu0 %1242
  %1244 = vrot.lane.b32.xlu0 %v694, 16
  %v1245 = vpop.permute.xlu0 %1244
  %1246 = vrot.lane.b32.xlu0 %v706, 16
  %v1247 = vpop.permute.xlu0 %1246
  %1248 = vrot.lane.b32.xlu0 %v718, 16
  %v1249 = vpop.permute.xlu0 %1248
  %1250 = vrot.lane.b32.xlu0 %v730, 16
  %v1251 = vpop.permute.xlu0 %1250
  %1252 = vrot.lane.b32.xlu0 %v742, 16
  %v1253 = vpop.permute.xlu0 %1252
  %1254 = vrot.lane.b32.xlu0 %v754, 16
  %v1255 = vpop.permute.xlu0 %1254
  %1256 = vrot.lane.b32.xlu0 %v766, 16
  %v1257 = vpop.permute.xlu0 %1256
  %1258 = vrot.lane.b32.xlu0 %v778, 16
  %v1259 = vpop.permute.xlu0 %1258
  %1260 = vrot.lane.b32.xlu0 %v790, 16
  %v1261 = vpop.permute.xlu0 %1260
  %1262 = vrot.lane.b32.xlu0 %v802, 16
  %v1263 = vpop.permute.xlu0 %1262
  %1264 = vrot.lane.b32.xlu0 %v814, 16
  %v1265 = vpop.permute.xlu0 %1264
  %1266 = vrot.lane.b32.xlu0 %v826, 16
  %v1267 = vpop.permute.xlu0 %1266
  %1268 = vrot.lane.b32.xlu0 %v1205, 16
  %v1269 = vpop.permute.xlu0 %1268
  %v1272 = vrot.slane %v402, 1
  %v1273 = vrot.slane %v403, 1
  %v1274 = vsel %vm955, %v1272, %v1273
  %v1275 = vrot.slane %v438, 1
  %v1276 = vrot.slane %v439, 1
  %v1277 = vsel %vm955, %v1275, %v1276
  %1278 = vrot.lane.b32.xlu0 %v961, 20
  %v1279 = vpop.permute.xlu0 %1278
  %1280 = vrot.lane.b32.xlu0 %v964, 20
  %v1281 = vpop.permute.xlu0 %1280
  %1282 = vrot.lane.b32.xlu0 %v967, 20
  %v1283 = vpop.permute.xlu0 %1282
  %1284 = vrot.lane.b32.xlu0 %v970, 20
  %v1285 = vpop.permute.xlu0 %1284
  %1286 = vrot.lane.b32.xlu0 %v973, 20
  %v1287 = vpop.permute.xlu0 %1286
  %1288 = vrot.lane.b32.xlu0 %v976, 20
  %v1289 = vpop.permute.xlu0 %1288
  %1290 = vrot.lane.b32.xlu0 %v979, 20
  %v1291 = vpop.permute.xlu0 %1290
  %1292 = vrot.lane.b32.xlu0 %v982, 20
  %v1293 = vpop.permute.xlu0 %1292
  %1294 = vrot.lane.b32.xlu0 %v985, 20
  %v1295 = vpop.permute.xlu0 %1294
  %1296 = vrot.lane.b32.xlu0 %v988, 20
  %v1297 = vpop.permute.xlu0 %1296
  %1298 = vrot.lane.b32.xlu0 %v991, 20
  %v1299 = vpop.permute.xlu0 %1298
  %1300 = vrot.lane.b32.xlu0 %v994, 20
  %v1301 = vpop.permute.xlu0 %1300
  %1302 = vrot.lane.b32.xlu0 %v997, 20
  %v1303 = vpop.permute.xlu0 %1302
  %1304 = vrot.lane.b32.xlu0 %v1000, 20
  %v1305 = vpop.permute.xlu0 %1304
  %1306 = vrot.lane.b32.xlu0 %v1003, 20
  %v1307 = vpop.permute.xlu0 %1306
  %1308 = vrot.lane.b32.xlu0 %v1274, 20
  %v1309 = vpop.permute.xlu0 %1308
  %1310 = vrot.lane.b32.xlu0 %v1009, 20
  %v1311 = vpop.permute.xlu0 %1310
  %1312 = vrot.lane.b32.xlu0 %v1012, 20
  %v1313 = vpop.permute.xlu0 %1312
  %1314 = vrot.lane.b32.xlu0 %v1015, 20
  %v1315 = vpop.permute.xlu0 %1314
  %1316 = vrot.lane.b32.xlu0 %v1018, 20
  %v1317 = vpop.permute.xlu0 %1316
  %1318 = vrot.lane.b32.xlu0 %v1021, 20
  %v1319 = vpop.permute.xlu0 %1318
  %1320 = vrot.lane.b32.xlu0 %v1024, 20
  %v1321 = vpop.permute.xlu0 %1320
  %1322 = vrot.lane.b32.xlu0 %v1027, 20
  %v1323 = vpop.permute.xlu0 %1322
  %1324 = vrot.lane.b32.xlu0 %v1030, 20
  %v1325 = vpop.permute.xlu0 %1324
  %1326 = vrot.lane.b32.xlu0 %v1033, 20
  %v1327 = vpop.permute.xlu0 %1326
  %1328 = vrot.lane.b32.xlu0 %v1036, 20
  %v1329 = vpop.permute.xlu0 %1328
  %1330 = vrot.lane.b32.xlu0 %v1039, 20
  %v1331 = vpop.permute.xlu0 %1330
  %1332 = vrot.lane.b32.xlu0 %v1042, 20
  %v1333 = vpop.permute.xlu0 %1332
  %1334 = vrot.lane.b32.xlu0 %v1045, 20
  %v1335 = vpop.permute.xlu0 %1334
  %1336 = vrot.lane.b32.xlu0 %v1048, 20
  %v1337 = vpop.permute.xlu0 %1336
  %1338 = vrot.lane.b32.xlu0 %v1051, 20
  %v1339 = vpop.permute.xlu0 %1338
  %1340 = vrot.lane.b32.xlu0 %v1277, 20
  %v1341 = vpop.permute.xlu0 %1340
  %1344 = vrot.lane.b32.xlu0 %v374, 24
  %v1345 = vpop.permute.xlu0 %1344
  %1346 = vrot.lane.b32.xlu0 %v376, 24
  %v1347 = vpop.permute.xlu0 %1346
  %1348 = vrot.lane.b32.xlu0 %v378, 24
  %v1349 = vpop.permute.xlu0 %1348
  %1350 = vrot.lane.b32.xlu0 %v380, 24
  %v1351 = vpop.permute.xlu0 %1350
  %1352 = vrot.lane.b32.xlu0 %v382, 24
  %v1353 = vpop.permute.xlu0 %1352
  %1354 = vrot.lane.b32.xlu0 %v384, 24
  %v1355 = vpop.permute.xlu0 %1354
  %1356 = vrot.lane.b32.xlu0 %v386, 24
  %v1357 = vpop.permute.xlu0 %1356
  %1358 = vrot.lane.b32.xlu0 %v388, 24
  %v1359 = vpop.permute.xlu0 %1358
  %1360 = vrot.lane.b32.xlu0 %v390, 24
  %v1361 = vpop.permute.xlu0 %1360
  %1362 = vrot.lane.b32.xlu0 %v392, 24
  %v1363 = vpop.permute.xlu0 %1362
  %1364 = vrot.lane.b32.xlu0 %v394, 24
  %v1365 = vpop.permute.xlu0 %1364
  %1366 = vrot.lane.b32.xlu0 %v396, 24
  %v1367 = vpop.permute.xlu0 %1366
  %1368 = vrot.lane.b32.xlu0 %v398, 24
  %v1369 = vpop.permute.xlu0 %1368
  %1370 = vrot.lane.b32.xlu0 %v400, 24
  %v1371 = vpop.permute.xlu0 %1370
  %1372 = vrot.lane.b32.xlu0 %v402, 24
  %v1373 = vpop.permute.xlu0 %1372
  %1374 = vrot.lane.b32.xlu0 %v404, 24
  %v1375 = vpop.permute.xlu0 %1374
  %1376 = vrot.lane.b32.xlu0 %v410, 24
  %v1377 = vpop.permute.xlu0 %1376
  %1378 = vrot.lane.b32.xlu0 %v412, 24
  %v1379 = vpop.permute.xlu0 %1378
  %1380 = vrot.lane.b32.xlu0 %v414, 24
  %v1381 = vpop.permute.xlu0 %1380
  %1382 = vrot.lane.b32.xlu0 %v416, 24
  %v1383 = vpop.permute.xlu0 %1382
  %1384 = vrot.lane.b32.xlu0 %v418, 24
  %v1385 = vpop.permute.xlu0 %1384
  %1386 = vrot.lane.b32.xlu0 %v420, 24
  %v1387 = vpop.permute.xlu0 %1386
  %1388 = vrot.lane.b32.xlu0 %v422, 24
  %v1389 = vpop.permute.xlu0 %1388
  %1390 = vrot.lane.b32.xlu0 %v424, 24
  %v1391 = vpop.permute.xlu0 %1390
  %1392 = vrot.lane.b32.xlu0 %v426, 24
  %v1393 = vpop.permute.xlu0 %1392
  %1394 = vrot.lane.b32.xlu0 %v428, 24
  %v1395 = vpop.permute.xlu0 %1394
  %1396 = vrot.lane.b32.xlu0 %v430, 24
  %v1397 = vpop.permute.xlu0 %1396
  %1398 = vrot.lane.b32.xlu0 %v432, 24
  %v1399 = vpop.permute.xlu0 %1398
  %1400 = vrot.lane.b32.xlu0 %v434, 24
  %v1401 = vpop.permute.xlu0 %1400
  %1402 = vrot.lane.b32.xlu0 %v436, 24
  %v1403 = vpop.permute.xlu0 %1402
  %1404 = vrot.lane.b32.xlu0 %v438, 24
  %v1405 = vpop.permute.xlu0 %1404
  %1406 = vrot.lane.b32.xlu0 %v440, 24
  %v1407 = vpop.permute.xlu0 %1406
  %v1409 = vshrl.u32 %v404, 16
  %v1411 = vshll.u32 %v404, 16
  %v1413 = vrot.slane %v1411, 1
  %v1414 = vor.u32 %v1409, %v1413
  %v1416 = vshll.u32 %v405, 16
  %v1418 = vrot.slane %v1416, 1
  %v1419 = vsel %vm442, %v1414, %v1418
  %v1421 = vshrl.u32 %v440, 16
  %v1423 = vshll.u32 %v440, 16
  %v1425 = vrot.slane %v1423, 1
  %v1426 = vor.u32 %v1421, %v1425
  %v1428 = vshll.u32 %v441, 16
  %v1430 = vrot.slane %v1428, 1
  %v1431 = vsel %vm442, %v1426, %v1430
  %1432 = vrot.lane.b32.xlu0 %v478, 28
  %v1433 = vpop.permute.xlu0 %1432
  %1434 = vrot.lane.b32.xlu0 %v490, 28
  %v1435 = vpop.permute.xlu0 %1434
  %1436 = vrot.lane.b32.xlu0 %v502, 28
  %v1437 = vpop.permute.xlu0 %1436
  %1438 = vrot.lane.b32.xlu0 %v514, 28
  %v1439 = vpop.permute.xlu0 %1438
  %1440 = vrot.lane.b32.xlu0 %v526, 28
  %v1441 = vpop.permute.xlu0 %1440
  %1442 = vrot.lane.b32.xlu0 %v538, 28
  %v1443 = vpop.permute.xlu0 %1442
  %1444 = vrot.lane.b32.xlu0 %v550, 28
  %v1445 = vpop.permute.xlu0 %1444
  %1446 = vrot.lane.b32.xlu0 %v562, 28
  %v1447 = vpop.permute.xlu0 %1446
  %1448 = vrot.lane.b32.xlu0 %v574, 28
  %v1449 = vpop.permute.xlu0 %1448
  %1450 = vrot.lane.b32.xlu0 %v586, 28
  %v1451 = vpop.permute.xlu0 %1450
  %1452 = vrot.lane.b32.xlu0 %v598, 28
  %v1453 = vpop.permute.xlu0 %1452
  %1454 = vrot.lane.b32.xlu0 %v610, 28
  %v1455 = vpop.permute.xlu0 %1454
  %1456 = vrot.lane.b32.xlu0 %v622, 28
  %v1457 = vpop.permute.xlu0 %1456
  %1458 = vrot.lane.b32.xlu0 %v634, 28
  %v1459 = vpop.permute.xlu0 %1458
  %1460 = vrot.lane.b32.xlu0 %v1193, 28
  %v1461 = vpop.permute.xlu0 %1460
  %1462 = vrot.lane.b32.xlu0 %v1419, 28
  %v1463 = vpop.permute.xlu0 %1462
  %1464 = vrot.lane.b32.xlu0 %v670, 28
  %v1465 = vpop.permute.xlu0 %1464
  %1466 = vrot.lane.b32.xlu0 %v682, 28
  %v1467 = vpop.permute.xlu0 %1466
  %1468 = vrot.lane.b32.xlu0 %v694, 28
  %v1469 = vpop.permute.xlu0 %1468
  %1470 = vrot.lane.b32.xlu0 %v706, 28
  %v1471 = vpop.permute.xlu0 %1470
  %1472 = vrot.lane.b32.xlu0 %v718, 28
  %v1473 = vpop.permute.xlu0 %1472
  %1474 = vrot.lane.b32.xlu0 %v730, 28
  %v1475 = vpop.permute.xlu0 %1474
  %1476 = vrot.lane.b32.xlu0 %v742, 28
  %v1477 = vpop.permute.xlu0 %1476
  %1478 = vrot.lane.b32.xlu0 %v754, 28
  %v1479 = vpop.permute.xlu0 %1478
  %1480 = vrot.lane.b32.xlu0 %v766, 28
  %v1481 = vpop.permute.xlu0 %1480
  %1482 = vrot.lane.b32.xlu0 %v778, 28
  %v1483 = vpop.permute.xlu0 %1482
  %1484 = vrot.lane.b32.xlu0 %v790, 28
  %v1485 = vpop.permute.xlu0 %1484
  %1486 = vrot.lane.b32.xlu0 %v802, 28
  %v1487 = vpop.permute.xlu0 %1486
  %1488 = vrot.lane.b32.xlu0 %v814, 28
  %v1489 = vpop.permute.xlu0 %1488
  %1490 = vrot.lane.b32.xlu0 %v826, 28
  %v1491 = vpop.permute.xlu0 %1490
  %1492 = vrot.lane.b32.xlu0 %v1205, 28
  %v1493 = vpop.permute.xlu0 %1492
  %1494 = vrot.lane.b32.xlu0 %v1431, 28
  %v1495 = vpop.permute.xlu0 %1494
  %v1498 = vrot.slane %v404, 1
  %v1499 = vrot.slane %v405, 1
  %v1500 = vsel %vm955, %v1498, %v1499
  %v1501 = vrot.slane %v440, 1
  %v1502 = vrot.slane %v441, 1
  %v1503 = vsel %vm955, %v1501, %v1502
  %1504 = vrot.lane.b32.xlu0 %v964, 32
  %v1505 = vpop.permute.xlu0 %1504
  %1506 = vrot.lane.b32.xlu0 %v967, 32
  %v1507 = vpop.permute.xlu0 %1506
  %1508 = vrot.lane.b32.xlu0 %v970, 32
  %v1509 = vpop.permute.xlu0 %1508
  %1510 = vrot.lane.b32.xlu0 %v973, 32
  %v1511 = vpop.permute.xlu0 %1510
  %1512 = vrot.lane.b32.xlu0 %v976, 32
  %v1513 = vpop.permute.xlu0 %1512
  %1514 = vrot.lane.b32.xlu0 %v979, 32
  %v1515 = vpop.permute.xlu0 %1514
  %1516 = vrot.lane.b32.xlu0 %v982, 32
  %v1517 = vpop.permute.xlu0 %1516
  %1518 = vrot.lane.b32.xlu0 %v985, 32
  %v1519 = vpop.permute.xlu0 %1518
  %1520 = vrot.lane.b32.xlu0 %v988, 32
  %v1521 = vpop.permute.xlu0 %1520
  %1522 = vrot.lane.b32.xlu0 %v991, 32
  %v1523 = vpop.permute.xlu0 %1522
  %1524 = vrot.lane.b32.xlu0 %v994, 32
  %v1525 = vpop.permute.xlu0 %1524
  %1526 = vrot.lane.b32.xlu0 %v997, 32
  %v1527 = vpop.permute.xlu0 %1526
  %1528 = vrot.lane.b32.xlu0 %v1000, 32
  %v1529 = vpop.permute.xlu0 %1528
  %1530 = vrot.lane.b32.xlu0 %v1003, 32
  %v1531 = vpop.permute.xlu0 %1530
  %1532 = vrot.lane.b32.xlu0 %v1274, 32
  %v1533 = vpop.permute.xlu0 %1532
  %1534 = vrot.lane.b32.xlu0 %v1500, 32
  %v1535 = vpop.permute.xlu0 %1534
  %1536 = vrot.lane.b32.xlu0 %v1012, 32
  %v1537 = vpop.permute.xlu0 %1536
  %1538 = vrot.lane.b32.xlu0 %v1015, 32
  %v1539 = vpop.permute.xlu0 %1538
  %1540 = vrot.lane.b32.xlu0 %v1018, 32
  %v1541 = vpop.permute.xlu0 %1540
  %1542 = vrot.lane.b32.xlu0 %v1021, 32
  %v1543 = vpop.permute.xlu0 %1542
  %1544 = vrot.lane.b32.xlu0 %v1024, 32
  %v1545 = vpop.permute.xlu0 %1544
  %1546 = vrot.lane.b32.xlu0 %v1027, 32
  %v1547 = vpop.permute.xlu0 %1546
  %1548 = vrot.lane.b32.xlu0 %v1030, 32
  %v1549 = vpop.permute.xlu0 %1548
  %1550 = vrot.lane.b32.xlu0 %v1033, 32
  %v1551 = vpop.permute.xlu0 %1550
  %1552 = vrot.lane.b32.xlu0 %v1036, 32
  %v1553 = vpop.permute.xlu0 %1552
  %1554 = vrot.lane.b32.xlu0 %v1039, 32
  %v1555 = vpop.permute.xlu0 %1554
  %1556 = vrot.lane.b32.xlu0 %v1042, 32
  %v1557 = vpop.permute.xlu0 %1556
  %1558 = vrot.lane.b32.xlu0 %v1045, 32
  %v1559 = vpop.permute.xlu0 %1558
  %1560 = vrot.lane.b32.xlu0 %v1048, 32
  %v1561 = vpop.permute.xlu0 %1560
  %1562 = vrot.lane.b32.xlu0 %v1051, 32
  %v1563 = vpop.permute.xlu0 %1562
  %1564 = vrot.lane.b32.xlu0 %v1277, 32
  %v1565 = vpop.permute.xlu0 %1564
  %1566 = vrot.lane.b32.xlu0 %v1503, 32
  %v1567 = vpop.permute.xlu0 %1566
  %v1569 = vsel %vm87, %v370, %v828
  %v1571 = vsel %vm87, %v372, %v830
  %v1573 = vsel %vm87, %v374, %v832
  %v1575 = vsel %vm87, %v376, %v834
  %v1577 = vsel %vm87, %v378, %v836
  %v1579 = vsel %vm87, %v380, %v838
  %v1581 = vsel %vm87, %v382, %v840
  %v1583 = vsel %vm87, %v384, %v842
  %v1585 = vsel %vm87, %v386, %v844
  %v1587 = vsel %vm87, %v388, %v846
  %v1589 = vsel %vm87, %v390, %v848
  %v1591 = vsel %vm87, %v392, %v850
  %v1593 = vsel %vm87, %v394, %v852
  %v1595 = vsel %vm87, %v396, %v854
  %v1597 = vsel %vm87, %v398, %v856
  %v1599 = vsel %vm87, %v400, %v858
  %v1601 = vsel %vm87, %v406, %v860
  %v1603 = vsel %vm87, %v408, %v862
  %v1605 = vsel %vm87, %v410, %v864
  %v1607 = vsel %vm87, %v412, %v866
  %v1609 = vsel %vm87, %v414, %v868
  %v1611 = vsel %vm87, %v416, %v870
  %v1613 = vsel %vm87, %v418, %v872
  %v1615 = vsel %vm87, %v420, %v874
  %v1617 = vsel %vm87, %v422, %v876
  %v1619 = vsel %vm87, %v424, %v878
  %v1621 = vsel %vm87, %v426, %v880
  %v1623 = vsel %vm87, %v428, %v882
  %v1625 = vsel %vm87, %v430, %v884
  %v1627 = vsel %vm87, %v432, %v886
  %v1629 = vsel %vm87, %v434, %v888
  %v1631 = vsel %vm87, %v436, %v890
  %vm1632 = vcmask 64512
  %v1634 = vsel %vm1632, %v1569, %v1053
  %v1636 = vsel %vm1632, %v1571, %v1055
  %v1638 = vsel %vm1632, %v1573, %v1057
  %v1640 = vsel %vm1632, %v1575, %v1059
  %v1642 = vsel %vm1632, %v1577, %v1061
  %v1644 = vsel %vm1632, %v1579, %v1063
  %v1646 = vsel %vm1632, %v1581, %v1065
  %v1648 = vsel %vm1632, %v1583, %v1067
  %v1650 = vsel %vm1632, %v1585, %v1069
  %v1652 = vsel %vm1632, %v1587, %v1071
  %v1654 = vsel %vm1632, %v1589, %v1073
  %v1656 = vsel %vm1632, %v1591, %v1075
  %v1658 = vsel %vm1632, %v1593, %v1077
  %v1660 = vsel %vm1632, %v1595, %v1079
  %v1662 = vsel %vm1632, %v1597, %v1081
  %v1664 = vsel %vm1632, %v1599, %v1083
  %v1666 = vsel %vm1632, %v1601, %v1085
  %v1668 = vsel %vm1632, %v1603, %v1087
  %v1670 = vsel %vm1632, %v1605, %v1089
  %v1672 = vsel %vm1632, %v1607, %v1091
  %v1674 = vsel %vm1632, %v1609, %v1093
  %v1676 = vsel %vm1632, %v1611, %v1095
  %v1678 = vsel %vm1632, %v1613, %v1097
  %v1680 = vsel %vm1632, %v1615, %v1099
  %v1682 = vsel %vm1632, %v1617, %v1101
  %v1684 = vsel %vm1632, %v1619, %v1103
  %v1686 = vsel %vm1632, %v1621, %v1105
  %v1688 = vsel %vm1632, %v1623, %v1107
  %v1690 = vsel %vm1632, %v1625, %v1109
  %v1692 = vsel %vm1632, %v1627, %v1111
  %v1694 = vsel %vm1632, %v1629, %v1113
  %v1696 = vsel %vm1632, %v1631, %v1115
  %vm1697 = vcmask 97280
  %v1699 = vsel %vm1697, %v1634, %v1119
  %v1701 = vsel %vm1697, %v1636, %v1121
  %v1703 = vsel %vm1697, %v1638, %v1123
  %v1705 = vsel %vm1697, %v1640, %v1125
  %v1707 = vsel %vm1697, %v1642, %v1127
  %v1709 = vsel %vm1697, %v1644, %v1129
  %v1711 = vsel %vm1697, %v1646, %v1131
  %v1713 = vsel %vm1697, %v1648, %v1133
  %v1715 = vsel %vm1697, %v1650, %v1135
  %v1717 = vsel %vm1697, %v1652, %v1137
  %v1719 = vsel %vm1697, %v1654, %v1139
  %v1721 = vsel %vm1697, %v1656, %v1141
  %v1723 = vsel %vm1697, %v1658, %v1143
  %v1725 = vsel %vm1697, %v1660, %v1145
  %v1727 = vsel %vm1697, %v1662, %v1147
  %v1729 = vsel %vm1697, %v1664, %v1149
  %v1731 = vsel %vm1697, %v1666, %v1151
  %v1733 = vsel %vm1697, %v1668, %v1153
  %v1735 = vsel %vm1697, %v1670, %v1155
  %v1737 = vsel %vm1697, %v1672, %v1157
  %v1739 = vsel %vm1697, %v1674, %v1159
  %v1741 = vsel %vm1697, %v1676, %v1161
  %v1743 = vsel %vm1697, %v1678, %v1163
  %v1745 = vsel %vm1697, %v1680, %v1165
  %v1747 = vsel %vm1697, %v1682, %v1167
  %v1749 = vsel %vm1697, %v1684, %v1169
  %v1751 = vsel %vm1697, %v1686, %v1171
  %v1753 = vsel %vm1697, %v1688, %v1173
  %v1755 = vsel %vm1697, %v1690, %v1175
  %v1757 = vsel %vm1697, %v1692, %v1177
  %v1759 = vsel %vm1697, %v1694, %v1179
  %v1761 = vsel %vm1697, %v1696, %v1181
  %vm1762 = vcmask 130048
  %v1764 = vsel %vm1762, %v1699, %v1207
  %v1766 = vsel %vm1762, %v1701, %v1209
  %v1768 = vsel %vm1762, %v1703, %v1211
  %v1770 = vsel %vm1762, %v1705, %v1213
  %v1772 = vsel %vm1762, %v1707, %v1215
  %v1774 = vsel %vm1762, %v1709, %v1217
  %v1776 = vsel %vm1762, %v1711, %v1219
  %v1778 = vsel %vm1762, %v1713, %v1221
  %v1780 = vsel %vm1762, %v1715, %v1223
  %v1782 = vsel %vm1762, %v1717, %v1225
  %v1784 = vsel %vm1762, %v1719, %v1227
  %v1786 = vsel %vm1762, %v1721, %v1229
  %v1788 = vsel %vm1762, %v1723, %v1231
  %v1790 = vsel %vm1762, %v1725, %v1233
  %v1792 = vsel %vm1762, %v1727, %v1235
  %v1794 = vsel %vm1762, %v1729, %v1237
  %v1796 = vsel %vm1762, %v1731, %v1239
  %v1798 = vsel %vm1762, %v1733, %v1241
  %v1800 = vsel %vm1762, %v1735, %v1243
  %v1802 = vsel %vm1762, %v1737, %v1245
  %v1804 = vsel %vm1762, %v1739, %v1247
  %v1806 = vsel %vm1762, %v1741, %v1249
  %v1808 = vsel %vm1762, %v1743, %v1251
  %v1810 = vsel %vm1762, %v1745, %v1253
  %v1812 = vsel %vm1762, %v1747, %v1255
  %v1814 = vsel %vm1762, %v1749, %v1257
  %v1816 = vsel %vm1762, %v1751, %v1259
  %v1818 = vsel %vm1762, %v1753, %v1261
  %v1820 = vsel %vm1762, %v1755, %v1263
  %v1822 = vsel %vm1762, %v1757, %v1265
  %v1824 = vsel %vm1762, %v1759, %v1267
  %v1826 = vsel %vm1762, %v1761, %v1269
  %vm1827 = vcmask 162816
  %v1829 = vsel %vm1827, %v1764, %v1279
  %v1831 = vsel %vm1827, %v1766, %v1281
  %v1833 = vsel %vm1827, %v1768, %v1283
  %v1835 = vsel %vm1827, %v1770, %v1285
  %v1837 = vsel %vm1827, %v1772, %v1287
  %v1839 = vsel %vm1827, %v1774, %v1289
  %v1841 = vsel %vm1827, %v1776, %v1291
  %v1843 = vsel %vm1827, %v1778, %v1293
  %v1845 = vsel %vm1827, %v1780, %v1295
  %v1847 = vsel %vm1827, %v1782, %v1297
  %v1849 = vsel %vm1827, %v1784, %v1299
  %v1851 = vsel %vm1827, %v1786, %v1301
  %v1853 = vsel %vm1827, %v1788, %v1303
  %v1855 = vsel %vm1827, %v1790, %v1305
  %v1857 = vsel %vm1827, %v1792, %v1307
  %v1859 = vsel %vm1827, %v1794, %v1309
  %v1861 = vsel %vm1827, %v1796, %v1311
  %v1863 = vsel %vm1827, %v1798, %v1313
  %v1865 = vsel %vm1827, %v1800, %v1315
  %v1867 = vsel %vm1827, %v1802, %v1317
  %v1869 = vsel %vm1827, %v1804, %v1319
  %v1871 = vsel %vm1827, %v1806, %v1321
  %v1873 = vsel %vm1827, %v1808, %v1323
  %v1875 = vsel %vm1827, %v1810, %v1325
  %v1877 = vsel %vm1827, %v1812, %v1327
  %v1879 = vsel %vm1827, %v1814, %v1329
  %v1881 = vsel %vm1827, %v1816, %v1331
  %v1883 = vsel %vm1827, %v1818, %v1333
  %v1885 = vsel %vm1827, %v1820, %v1335
  %v1887 = vsel %vm1827, %v1822, %v1337
  %v1889 = vsel %vm1827, %v1824, %v1339
  %v1891 = vsel %vm1827, %v1826, %v1341
  %vm1892 = vcmask 195584
  %v1894 = vsel %vm1892, %v1829, %v1345
  %v1896 = vsel %vm1892, %v1831, %v1347
  %v1898 = vsel %vm1892, %v1833, %v1349
  %v1900 = vsel %vm1892, %v1835, %v1351
  %v1902 = vsel %vm1892, %v1837, %v1353
  %v1904 = vsel %vm1892, %v1839, %v1355
  %v1906 = vsel %vm1892, %v1841, %v1357
  %v1908 = vsel %vm1892, %v1843, %v1359
  %v1910 = vsel %vm1892, %v1845, %v1361
  %v1912 = vsel %vm1892, %v1847, %v1363
  %v1914 = vsel %vm1892, %v1849, %v1365
  %v1916 = vsel %vm1892, %v1851, %v1367
  %v1918 = vsel %vm1892, %v1853, %v1369
  %v1920 = vsel %vm1892, %v1855, %v1371
  %v1922 = vsel %vm1892, %v1857, %v1373
  %v1924 = vsel %vm1892, %v1859, %v1375
  %v1926 = vsel %vm1892, %v1861, %v1377
  %v1928 = vsel %vm1892, %v1863, %v1379
  %v1930 = vsel %vm1892, %v1865, %v1381
  %v1932 = vsel %vm1892, %v1867, %v1383
  %v1934 = vsel %vm1892, %v1869, %v1385
  %v1936 = vsel %vm1892, %v1871, %v1387
  %v1938 = vsel %vm1892, %v1873, %v1389
  %v1940 = vsel %vm1892, %v1875, %v1391
  %v1942 = vsel %vm1892, %v1877, %v1393
  %v1944 = vsel %vm1892, %v1879, %v1395
  %v1946 = vsel %vm1892, %v1881, %v1397
  %v1948 = vsel %vm1892, %v1883, %v1399
  %v1950 = vsel %vm1892, %v1885, %v1401
  %v1952 = vsel %vm1892, %v1887, %v1403
  %v1954 = vsel %vm1892, %v1889, %v1405
  %v1956 = vsel %vm1892, %v1891, %v1407
  %vm1957 = vcmask 228352
  %v1959 = vsel %vm1957, %v1894, %v1433
  %v1961 = vsel %vm1957, %v1896, %v1435
  %v1963 = vsel %vm1957, %v1898, %v1437
  %v1965 = vsel %vm1957, %v1900, %v1439
  %v1967 = vsel %vm1957, %v1902, %v1441
  %v1969 = vsel %vm1957, %v1904, %v1443
  %v1971 = vsel %vm1957, %v1906, %v1445
  %v1973 = vsel %vm1957, %v1908, %v1447
  %v1975 = vsel %vm1957, %v1910, %v1449
  %v1977 = vsel %vm1957, %v1912, %v1451
  %v1979 = vsel %vm1957, %v1914, %v1453
  %v1981 = vsel %vm1957, %v1916, %v1455
  %v1983 = vsel %vm1957, %v1918, %v1457
  %v1985 = vsel %vm1957, %v1920, %v1459
  %v1987 = vsel %vm1957, %v1922, %v1461
  %v1989 = vsel %vm1957, %v1924, %v1463
  %v1991 = vsel %vm1957, %v1926, %v1465
  %v1993 = vsel %vm1957, %v1928, %v1467
  %v1995 = vsel %vm1957, %v1930, %v1469
  %v1997 = vsel %vm1957, %v1932, %v1471
  %v1999 = vsel %vm1957, %v1934, %v1473
  %v2001 = vsel %vm1957, %v1936, %v1475
  %v2003 = vsel %vm1957, %v1938, %v1477
  %v2005 = vsel %vm1957, %v1940, %v1479
  %v2007 = vsel %vm1957, %v1942, %v1481
  %v2009 = vsel %vm1957, %v1944, %v1483
  %v2011 = vsel %vm1957, %v1946, %v1485
  %v2013 = vsel %vm1957, %v1948, %v1487
  %v2015 = vsel %vm1957, %v1950, %v1489
  %v2017 = vsel %vm1957, %v1952, %v1491
  %v2019 = vsel %vm1957, %v1954, %v1493
  %v2021 = vsel %vm1957, %v1956, %v1495
  %vm2022 = vcmask 261120
  %v2024 = vsel %vm2022, %v1959, %v1505
  %v2026 = vsel %vm2022, %v1961, %v1507
  %v2028 = vsel %vm2022, %v1963, %v1509
  %v2030 = vsel %vm2022, %v1965, %v1511
  %v2032 = vsel %vm2022, %v1967, %v1513
  %v2034 = vsel %vm2022, %v1969, %v1515
  %v2036 = vsel %vm2022, %v1971, %v1517
  %v2038 = vsel %vm2022, %v1973, %v1519
  %v2040 = vsel %vm2022, %v1975, %v1521
  %v2042 = vsel %vm2022, %v1977, %v1523
  %v2044 = vsel %vm2022, %v1979, %v1525
  %v2046 = vsel %vm2022, %v1981, %v1527
  %v2048 = vsel %vm2022, %v1983, %v1529
  %v2050 = vsel %vm2022, %v1985, %v1531
  %v2052 = vsel %vm2022, %v1987, %v1533
  %v2054 = vsel %vm2022, %v1989, %v1535
  %v2056 = vsel %vm2022, %v1991, %v1537
  %v2058 = vsel %vm2022, %v1993, %v1539
  %v2060 = vsel %vm2022, %v1995, %v1541
  %v2062 = vsel %vm2022, %v1997, %v1543
  %v2064 = vsel %vm2022, %v1999, %v1545
  %v2066 = vsel %vm2022, %v2001, %v1547
  %v2068 = vsel %vm2022, %v2003, %v1549
  %v2070 = vsel %vm2022, %v2005, %v1551
  %v2072 = vsel %vm2022, %v2007, %v1553
  %v2074 = vsel %vm2022, %v2009, %v1555
  %v2076 = vsel %vm2022, %v2011, %v1557
  %v2078 = vsel %vm2022, %v2013, %v1559
  %v2080 = vsel %vm2022, %v2015, %v1561
  %v2082 = vsel %vm2022, %v2017, %v1563
  %v2084 = vsel %vm2022, %v2019, %v1565
  %v2086 = vsel %vm2022, %v2021, %v1567
  %v2087 = vld [vmem:[%s1] sm:$0xf]
  %v2088 = vld [vmem:[%s1 + $0x4] sm:$0xf]
  %v2089 = vld [vmem:[%s1 + $0x8] sm:$0xf]
  %v2090 = vld [vmem:[%s1 + $0xc] sm:$0xf]
  %v2091 = vld [vmem:[%s1 + $0x10] sm:$0x3]
  %v2092 = vld [vmem:[%s2] sm:$0x1]
  %v2093 = vlaneseq
  %v2094 = vshrl.u32 %v2093, 7
  %v2095 = vsub.s32 0, %v2094
  %v2096 = vrot.slane %v2092, %v2095
  %v2102 = vunpack.c.l.b16 %v2087
  %v2103 = vunpack.c.l.b16 %v2088
  %v2104 = vunpack.c.l.b16 %v2089
  %v2105 = vunpack.c.l.b16 %v2090
  %v2106 = vunpack.c.l.b16 %v2091
  %v2107 = vpack.c.b16 %v2103, %v2102
  %v2108 = vpack.c.b16 %v2105, %v2104
  %v2109 = vpack.c.b16 %v2106, %v2106
  %vm2112 = vcmask 293888
  %v2113 = vsel %vm2112, %v2024, 0
  %v2115 = vsel %vm2112, %v2026, 0
  %v2117 = vsel %vm2112, %v2028, 0
  %v2119 = vsel %vm2112, %v2030, 0
  %v2121 = vsel %vm2112, %v2032, 0
  %v2123 = vsel %vm2112, %v2034, 0
  %v2125 = vsel %vm2112, %v2036, 0
  %v2127 = vsel %vm2112, %v2038, 0
  %v2129 = vsel %vm2112, %v2040, 0
  %v2131 = vsel %vm2112, %v2042, 0
  %v2133 = vsel %vm2112, %v2044, 0
  %v2135 = vsel %vm2112, %v2046, 0
  %v2137 = vsel %vm2112, %v2048, 0
  %v2139 = vsel %vm2112, %v2050, 0
  %v2141 = vsel %vm2112, %v2052, 0
  %v2143 = vsel %vm2112, %v2054, 0
  %v2145 = vsel %vm2112, %v2056, 0
  %v2147 = vsel %vm2112, %v2058, 0
  %v2149 = vsel %vm2112, %v2060, 0
  %v2151 = vsel %vm2112, %v2062, 0
  %v2153 = vsel %vm2112, %v2064, 0
  %v2155 = vsel %vm2112, %v2066, 0
  %v2157 = vsel %vm2112, %v2068, 0
  %v2159 = vsel %vm2112, %v2070, 0
  %v2161 = vsel %vm2112, %v2072, 0
  %v2163 = vsel %vm2112, %v2074, 0
  %v2165 = vsel %vm2112, %v2076, 0
  %v2167 = vsel %vm2112, %v2078, 0
  %v2169 = vsel %vm2112, %v2080, 0
  %v2171 = vsel %vm2112, %v2082, 0
  %v2173 = vsel %vm2112, %v2084, 0
  %v2175 = vsel %vm2112, %v2086, 0
  %vm2177 = vcmask 1041408
  %v2179 = vsel %vm2177, %v2109, 0
  %2181 = vmatprep.subr.bf16.mxu0 0
  %2182 = vmatpush1.bf16.msra.mxu0 0
  %2183 = vmatprep.subr.bf16.mxu0 0
  %2184 = vmatpush1.bf16.msra.mxu0 0
  %2185 = vmatprep.subr.bf16.mxu0 0
  %2186 = vmatpush1.bf16.msra.mxu0 0
  %2187 = vmatprep.subr.bf16.mxu0 0
  %2188 = vmatpush1.bf16.msra.mxu0 0
  %2189 = vmatprep.subr.bf16.mxu0 0
  %2190 = vmatpush1.bf16.msra.mxu0 0
  %2191 = vmatprep.subr.bf16.mxu0 0
  %2192 = vmatpush1.bf16.msra.mxu0 %v2179
  %2193 = vmatprep.subr.bf16.mxu0 0
  %2194 = vmatpush1.bf16.msra.mxu0 %v2108
  %2195 = vmatprep.subr.bf16.mxu0 0
  %2196 = vmatpush1.bf16.msra.mxu0 %v2107
  %2197 = vmatprep.subr.bf16.mxu0 0
  %2198 = vmatpush2.bf16.msra.mxu0 0
  %2199 = vmatprep.subr.bf16.mxu0 0
  %2200 = vmatpush2.bf16.msra.mxu0 0
  %2201 = vmatprep.subr.bf16.mxu0 0
  %2202 = vmatpush2.bf16.msra.mxu0 0
  %2203 = vmatprep.subr.bf16.mxu0 0
  %2204 = vmatpush2.bf16.msra.mxu0 0
  %2205 = vmatprep.subr.bf16.mxu0 0
  %2206 = vmatpush2.bf16.msra.mxu0 0
  %2207 = vmatprep.subr.bf16.mxu0 0
  %2208 = vmatpush2.bf16.msra.mxu0 0
  %2209 = vmatprep.subr.bf16.mxu0 0
  %2210 = vmatpush2.bf16.msra.mxu0 0
  %2211 = vmatprep.subr.bf16.mxu0 0
  %2212 = vmatpush2.bf16.msra.mxu0 0
  %2213 = vmatprep.mubr.bf16.mxu0 0
  %2214 = vmatmul.mubr.bf16.gmra.mxu0 %v2113
  %v2215 = vpop.f32.mrf.mxu0
  %v2216 = vadd.f32 %v2096, %v2215
  %v2217 = vpop.f32.mrf.mxu0
  %v2218 = vpop.f32.mrf.mxu0
  %v2219 = vadd.f32 %v2096, %v2218
  %v2220 = vpop.f32.mrf.mxu0
  %2221 = vmatprep.mubr.bf16.mxu0 0
  %2222 = vmatmul.mubr.bf16.gmra.mxu0 %v2115
  %v2223 = vpop.f32.mrf.mxu0
  %v2224 = vadd.f32 %v2096, %v2223
  %v2225 = vpop.f32.mrf.mxu0
  %v2226 = vpop.f32.mrf.mxu0
  %v2227 = vadd.f32 %v2096, %v2226
  %v2228 = vpop.f32.mrf.mxu0
  %2229 = vmatprep.mubr.bf16.mxu0 0
  %2230 = vmatmul.mubr.bf16.gmra.mxu0 %v2117
  %v2231 = vpop.f32.mrf.mxu0
  %v2232 = vadd.f32 %v2096, %v2231
  %v2233 = vpop.f32.mrf.mxu0
  %v2234 = vpop.f32.mrf.mxu0
  %v2235 = vadd.f32 %v2096, %v2234
  %v2236 = vpop.f32.mrf.mxu0
  %2237 = vmatprep.mubr.bf16.mxu0 0
  %2238 = vmatmul.mubr.bf16.gmra.mxu0 %v2119
  %v2239 = vpop.f32.mrf.mxu0
  %v2240 = vadd.f32 %v2096, %v2239
  %v2241 = vpop.f32.mrf.mxu0
  %v2242 = vpop.f32.mrf.mxu0
  %v2243 = vadd.f32 %v2096, %v2242
  %v2244 = vpop.f32.mrf.mxu0
  %2245 = vmatprep.mubr.bf16.mxu0 0
  %2246 = vmatmul.mubr.bf16.gmra.mxu0 %v2121
  %v2247 = vpop.f32.mrf.mxu0
  %v2248 = vadd.f32 %v2096, %v2247
  %v2249 = vpop.f32.mrf.mxu0
  %v2250 = vpop.f32.mrf.mxu0
  %v2251 = vadd.f32 %v2096, %v2250
  %v2252 = vpop.f32.mrf.mxu0
  %2253 = vmatprep.mubr.bf16.mxu0 0
  %2254 = vmatmul.mubr.bf16.gmra.mxu0 %v2123
  %v2255 = vpop.f32.mrf.mxu0
  %v2256 = vadd.f32 %v2096, %v2255
  %v2257 = vpop.f32.mrf.mxu0
  %v2258 = vpop.f32.mrf.mxu0
  %v2259 = vadd.f32 %v2096, %v2258
  %v2260 = vpop.f32.mrf.mxu0
  %2261 = vmatprep.mubr.bf16.mxu0 0
  %2262 = vmatmul.mubr.bf16.gmra.mxu0 %v2125
  %v2263 = vpop.f32.mrf.mxu0
  %v2264 = vadd.f32 %v2096, %v2263
  %v2265 = vpop.f32.mrf.mxu0
  %v2266 = vpop.f32.mrf.mxu0
  %v2267 = vadd.f32 %v2096, %v2266
  %v2268 = vpop.f32.mrf.mxu0
  %2269 = vmatprep.mubr.bf16.mxu0 0
  %2270 = vmatmul.mubr.bf16.gmra.mxu0 %v2127
  %v2271 = vpop.f32.mrf.mxu0
  %v2272 = vadd.f32 %v2096, %v2271
  %v2273 = vpop.f32.mrf.mxu0
  %v2274 = vpop.f32.mrf.mxu0
  %v2275 = vadd.f32 %v2096, %v2274
  %v2276 = vpop.f32.mrf.mxu0
  %2277 = vmatprep.mubr.bf16.mxu0 0
  %2278 = vmatmul.mubr.bf16.gmra.mxu0 %v2129
  %v2279 = vpop.f32.mrf.mxu0
  %v2280 = vadd.f32 %v2096, %v2279
  %v2281 = vpop.f32.mrf.mxu0
  %v2282 = vpop.f32.mrf.mxu0
  %v2283 = vadd.f32 %v2096, %v2282
  %v2284 = vpop.f32.mrf.mxu0
  %2285 = vmatprep.mubr.bf16.mxu0 0
  %2286 = vmatmul.mubr.bf16.gmra.mxu0 %v2131
  %v2287 = vpop.f32.mrf.mxu0
  %v2288 = vadd.f32 %v2096, %v2287
  %v2289 = vpop.f32.mrf.mxu0
  %v2290 = vpop.f32.mrf.mxu0
  %v2291 = vadd.f32 %v2096, %v2290
  %v2292 = vpop.f32.mrf.mxu0
  %2293 = vmatprep.mubr.bf16.mxu0 0
  %2294 = vmatmul.mubr.bf16.gmra.mxu0 %v2133
  %v2295 = vpop.f32.mrf.mxu0
  %v2296 = vadd.f32 %v2096, %v2295
  %v2297 = vpop.f32.mrf.mxu0
  %v2298 = vpop.f32.mrf.mxu0
  %v2299 = vadd.f32 %v2096, %v2298
  %v2300 = vpop.f32.mrf.mxu0
  %2301 = vmatprep.mubr.bf16.mxu0 0
  %2302 = vmatmul.mubr.bf16.gmra.mxu0 %v2135
  %v2303 = vpop.f32.mrf.mxu0
  %v2304 = vadd.f32 %v2096, %v2303
  %v2305 = vpop.f32.mrf.mxu0
  %v2306 = vpop.f32.mrf.mxu0
  %v2307 = vadd.f32 %v2096, %v2306
  %v2308 = vpop.f32.mrf.mxu0
  %2309 = vmatprep.mubr.bf16.mxu0 0
  %2310 = vmatmul.mubr.bf16.gmra.mxu0 %v2137
  %v2311 = vpop.f32.mrf.mxu0
  %v2312 = vadd.f32 %v2096, %v2311
  %v2313 = vpop.f32.mrf.mxu0
  %v2314 = vpop.f32.mrf.mxu0
  %v2315 = vadd.f32 %v2096, %v2314
  %v2316 = vpop.f32.mrf.mxu0
  %2317 = vmatprep.mubr.bf16.mxu0 0
  %2318 = vmatmul.mubr.bf16.gmra.mxu0 %v2139
  %v2319 = vpop.f32.mrf.mxu0
  %v2320 = vadd.f32 %v2096, %v2319
  %v2321 = vpop.f32.mrf.mxu0
  %v2322 = vpop.f32.mrf.mxu0
  %v2323 = vadd.f32 %v2096, %v2322
  %v2324 = vpop.f32.mrf.mxu0
  %2325 = vmatprep.mubr.bf16.mxu0 0
  %2326 = vmatmul.mubr.bf16.gmra.mxu0 %v2141
  %v2327 = vpop.f32.mrf.mxu0
  %v2328 = vadd.f32 %v2096, %v2327
  %v2329 = vpop.f32.mrf.mxu0
  %v2330 = vpop.f32.mrf.mxu0
  %v2331 = vadd.f32 %v2096, %v2330
  %v2332 = vpop.f32.mrf.mxu0
  %2333 = vmatprep.mubr.bf16.mxu0 0
  %2334 = vmatmul.mubr.bf16.gmra.mxu0 %v2143
  %v2335 = vpop.f32.mrf.mxu0
  %v2336 = vadd.f32 %v2096, %v2335
  %v2337 = vpop.f32.mrf.mxu0
  %v2338 = vpop.f32.mrf.mxu0
  %v2339 = vadd.f32 %v2096, %v2338
  %v2340 = vpop.f32.mrf.mxu0
  %2341 = vmatprep.mubr.bf16.mxu0 0
  %2342 = vmatmul.mubr.bf16.gmra.mxu0 %v2145
  %v2343 = vpop.f32.mrf.mxu0
  %v2344 = vadd.f32 %v2096, %v2343
  %v2345 = vpop.f32.mrf.mxu0
  %v2346 = vpop.f32.mrf.mxu0
  %v2347 = vadd.f32 %v2096, %v2346
  %v2348 = vpop.f32.mrf.mxu0
  %2349 = vmatprep.mubr.bf16.mxu0 0
  %2350 = vmatmul.mubr.bf16.gmra.mxu0 %v2147
  %v2351 = vpop.f32.mrf.mxu0
  %v2352 = vadd.f32 %v2096, %v2351
  %v2353 = vpop.f32.mrf.mxu0
  %v2354 = vpop.f32.mrf.mxu0
  %v2355 = vadd.f32 %v2096, %v2354
  %v2356 = vpop.f32.mrf.mxu0
  %2357 = vmatprep.mubr.bf16.mxu0 0
  %2358 = vmatmul.mubr.bf16.gmra.mxu0 %v2149
  %v2359 = vpop.f32.mrf.mxu0
  %v2360 = vadd.f32 %v2096, %v2359
  %v2361 = vpop.f32.mrf.mxu0
  %v2362 = vpop.f32.mrf.mxu0
  %v2363 = vadd.f32 %v2096, %v2362
  %v2364 = vpop.f32.mrf.mxu0
  %2365 = vmatprep.mubr.bf16.mxu0 0
  %2366 = vmatmul.mubr.bf16.gmra.mxu0 %v2151
  %v2367 = vpop.f32.mrf.mxu0
  %v2368 = vadd.f32 %v2096, %v2367
  %v2369 = vpop.f32.mrf.mxu0
  %v2370 = vpop.f32.mrf.mxu0
  %v2371 = vadd.f32 %v2096, %v2370
  %v2372 = vpop.f32.mrf.mxu0
  %2373 = vmatprep.mubr.bf16.mxu0 0
  %2374 = vmatmul.mubr.bf16.gmra.mxu0 %v2153
  %v2375 = vpop.f32.mrf.mxu0
  %v2376 = vadd.f32 %v2096, %v2375
  %v2377 = vpop.f32.mrf.mxu0
  %v2378 = vpop.f32.mrf.mxu0
  %v2379 = vadd.f32 %v2096, %v2378
  %v2380 = vpop.f32.mrf.mxu0
  %2381 = vmatprep.mubr.bf16.mxu0 0
  %2382 = vmatmul.mubr.bf16.gmra.mxu0 %v2155
  %v2383 = vpop.f32.mrf.mxu0
  %v2384 = vadd.f32 %v2096, %v2383
  %v2385 = vpop.f32.mrf.mxu0
  %v2386 = vpop.f32.mrf.mxu0
  %v2387 = vadd.f32 %v2096, %v2386
  %v2388 = vpop.f32.mrf.mxu0
  %2389 = vmatprep.mubr.bf16.mxu0 0
  %2390 = vmatmul.mubr.bf16.gmra.mxu0 %v2157
  %v2391 = vpop.f32.mrf.mxu0
  %v2392 = vadd.f32 %v2096, %v2391
  %v2393 = vpop.f32.mrf.mxu0
  %v2394 = vpop.f32.mrf.mxu0
  %v2395 = vadd.f32 %v2096, %v2394
  %v2396 = vpop.f32.mrf.mxu0
  %2397 = vmatprep.mubr.bf16.mxu0 0
  %2398 = vmatmul.mubr.bf16.gmra.mxu0 %v2159
  %v2399 = vpop.f32.mrf.mxu0
  %v2400 = vadd.f32 %v2096, %v2399
  %v2401 = vpop.f32.mrf.mxu0
  %v2402 = vpop.f32.mrf.mxu0
  %v2403 = vadd.f32 %v2096, %v2402
  %v2404 = vpop.f32.mrf.mxu0
  %2405 = vmatprep.mubr.bf16.mxu0 0
  %2406 = vmatmul.mubr.bf16.gmra.mxu0 %v2161
  %v2407 = vpop.f32.mrf.mxu0
  %v2408 = vadd.f32 %v2096, %v2407
  %v2409 = vpop.f32.mrf.mxu0
  %v2410 = vpop.f32.mrf.mxu0
  %v2411 = vadd.f32 %v2096, %v2410
  %v2412 = vpop.f32.mrf.mxu0
  %2413 = vmatprep.mubr.bf16.mxu0 0
  %2414 = vmatmul.mubr.bf16.gmra.mxu0 %v2163
  %v2415 = vpop.f32.mrf.mxu0
  %v2416 = vadd.f32 %v2096, %v2415
  %v2417 = vpop.f32.mrf.mxu0
  %v2418 = vpop.f32.mrf.mxu0
  %v2419 = vadd.f32 %v2096, %v2418
  %v2420 = vpop.f32.mrf.mxu0
  %2421 = vmatprep.mubr.bf16.mxu0 0
  %2422 = vmatmul.mubr.bf16.gmra.mxu0 %v2165
  %v2423 = vpop.f32.mrf.mxu0
  %v2424 = vadd.f32 %v2096, %v2423
  %v2425 = vpop.f32.mrf.mxu0
  %v2426 = vpop.f32.mrf.mxu0
  %v2427 = vadd.f32 %v2096, %v2426
  %v2428 = vpop.f32.mrf.mxu0
  %2429 = vmatprep.mubr.bf16.mxu0 0
  %2430 = vmatmul.mubr.bf16.gmra.mxu0 %v2167
  %v2431 = vpop.f32.mrf.mxu0
  %v2432 = vadd.f32 %v2096, %v2431
  %v2433 = vpop.f32.mrf.mxu0
  %v2434 = vpop.f32.mrf.mxu0
  %v2435 = vadd.f32 %v2096, %v2434
  %v2436 = vpop.f32.mrf.mxu0
  %2437 = vmatprep.mubr.bf16.mxu0 0
  %2438 = vmatmul.mubr.bf16.gmra.mxu0 %v2169
  %v2439 = vpop.f32.mrf.mxu0
  %v2440 = vadd.f32 %v2096, %v2439
  %v2441 = vpop.f32.mrf.mxu0
  %v2442 = vpop.f32.mrf.mxu0
  %v2443 = vadd.f32 %v2096, %v2442
  %v2444 = vpop.f32.mrf.mxu0
  %2445 = vmatprep.mubr.bf16.mxu0 0
  %2446 = vmatmul.mubr.bf16.gmra.mxu0 %v2171
  %v2447 = vpop.f32.mrf.mxu0
  %v2448 = vadd.f32 %v2096, %v2447
  %v2449 = vpop.f32.mrf.mxu0
  %v2450 = vpop.f32.mrf.mxu0
  %v2451 = vadd.f32 %v2096, %v2450
  %v2452 = vpop.f32.mrf.mxu0
  %2453 = vmatprep.mubr.bf16.mxu0 0
  %2454 = vmatmul.mubr.bf16.gmra.mxu0 %v2173
  %v2455 = vpop.f32.mrf.mxu0
  %v2456 = vadd.f32 %v2096, %v2455
  %v2457 = vpop.f32.mrf.mxu0
  %v2458 = vpop.f32.mrf.mxu0
  %v2459 = vadd.f32 %v2096, %v2458
  %v2460 = vpop.f32.mrf.mxu0
  %2461 = vmatprep.mubr.bf16.mxu0 0
  %2462 = vmatmul.mubr.bf16.gmra.mxu0 %v2175
  %v2463 = vpop.f32.mrf.mxu0
  %v2464 = vadd.f32 %v2096, %v2463
  %v2465 = vpop.f32.mrf.mxu0
  %v2466 = vpop.f32.mrf.mxu0
  %v2467 = vadd.f32 %v2096, %v2466
  %v2468 = vpop.f32.mrf.mxu0
  %2469 = vdwg.mxu0
  %v2470 = vsel %vm1632, %v2216, 0.0
  %v2471 = vsel %vm1632, %v2219, 0.0
  %v2472 = vadd.f32 %v2470, %v2471
  %v2473 = vsel %vm1632, %v2224, 0.0
  %v2474 = vadd.f32 %v2472, %v2473
  %v2475 = vsel %vm1632, %v2227, 0.0
  %v2476 = vadd.f32 %v2474, %v2475
  %v2477 = vsel %vm1632, %v2232, 0.0
  %v2478 = vadd.f32 %v2476, %v2477
  %v2479 = vsel %vm1632, %v2235, 0.0
  %v2480 = vadd.f32 %v2478, %v2479
  %v2481 = vsel %vm1632, %v2240, 0.0
  %v2482 = vadd.f32 %v2480, %v2481
  %v2483 = vsel %vm1632, %v2243, 0.0
  %v2484 = vadd.f32 %v2482, %v2483
  %v2485 = vsel %vm1632, %v2248, 0.0
  %v2486 = vadd.f32 %v2484, %v2485
  %v2487 = vsel %vm1632, %v2251, 0.0
  %v2488 = vadd.f32 %v2486, %v2487
  %v2489 = vsel %vm1632, %v2256, 0.0
  %v2490 = vadd.f32 %v2488, %v2489
  %v2491 = vsel %vm1632, %v2259, 0.0
  %v2492 = vadd.f32 %v2490, %v2491
  %v2493 = vsel %vm1632, %v2264, 0.0
  %v2494 = vadd.f32 %v2492, %v2493
  %v2495 = vsel %vm1632, %v2267, 0.0
  %v2496 = vadd.f32 %v2494, %v2495
  %v2497 = vsel %vm1632, %v2272, 0.0
  %v2498 = vadd.f32 %v2496, %v2497
  %v2499 = vsel %vm1632, %v2275, 0.0
  %v2500 = vadd.f32 %v2498, %v2499
  %v2501 = vsel %vm1632, %v2280, 0.0
  %v2502 = vadd.f32 %v2500, %v2501
  %v2503 = vsel %vm1632, %v2283, 0.0
  %v2504 = vadd.f32 %v2502, %v2503
  %v2505 = vsel %vm1632, %v2288, 0.0
  %v2506 = vadd.f32 %v2504, %v2505
  %v2507 = vsel %vm1632, %v2291, 0.0
  %v2508 = vadd.f32 %v2506, %v2507
  %v2509 = vsel %vm1632, %v2296, 0.0
  %v2510 = vadd.f32 %v2508, %v2509
  %v2511 = vsel %vm1632, %v2299, 0.0
  %v2512 = vadd.f32 %v2510, %v2511
  %v2513 = vsel %vm1632, %v2304, 0.0
  %v2514 = vadd.f32 %v2512, %v2513
  %v2515 = vsel %vm1632, %v2307, 0.0
  %v2516 = vadd.f32 %v2514, %v2515
  %v2517 = vsel %vm1632, %v2312, 0.0
  %v2518 = vadd.f32 %v2516, %v2517
  %v2519 = vsel %vm1632, %v2315, 0.0
  %v2520 = vadd.f32 %v2518, %v2519
  %v2521 = vsel %vm1632, %v2320, 0.0
  %v2522 = vadd.f32 %v2520, %v2521
  %v2523 = vsel %vm1632, %v2323, 0.0
  %v2524 = vadd.f32 %v2522, %v2523
  %v2525 = vsel %vm1632, %v2328, 0.0
  %v2526 = vadd.f32 %v2524, %v2525
  %v2527 = vsel %vm1632, %v2331, 0.0
  %v2528 = vadd.f32 %v2526, %v2527
  %v2529 = vsel %vm1632, %v2336, 0.0
  %v2530 = vadd.f32 %v2528, %v2529
  %v2531 = vsel %vm1632, %v2339, 0.0
  %v2532 = vadd.f32 %v2530, %v2531
  %v2533 = vsel %vm1632, %v2344, 0.0
  %v2534 = vadd.f32 %v2532, %v2533
  %v2535 = vsel %vm1632, %v2347, 0.0
  %v2536 = vadd.f32 %v2534, %v2535
  %v2537 = vsel %vm1632, %v2352, 0.0
  %v2538 = vadd.f32 %v2536, %v2537
  %v2539 = vsel %vm1632, %v2355, 0.0
  %v2540 = vadd.f32 %v2538, %v2539
  %v2541 = vsel %vm1632, %v2360, 0.0
  %v2542 = vadd.f32 %v2540, %v2541
  %v2543 = vsel %vm1632, %v2363, 0.0
  %v2544 = vadd.f32 %v2542, %v2543
  %v2545 = vsel %vm1632, %v2368, 0.0
  %v2546 = vadd.f32 %v2544, %v2545
  %v2547 = vsel %vm1632, %v2371, 0.0
  %v2548 = vadd.f32 %v2546, %v2547
  %v2549 = vsel %vm1632, %v2376, 0.0
  %v2550 = vadd.f32 %v2548, %v2549
  %v2551 = vsel %vm1632, %v2379, 0.0
  %v2552 = vadd.f32 %v2550, %v2551
  %v2553 = vsel %vm1632, %v2384, 0.0
  %v2554 = vadd.f32 %v2552, %v2553
  %v2555 = vsel %vm1632, %v2387, 0.0
  %v2556 = vadd.f32 %v2554, %v2555
  %v2557 = vsel %vm1632, %v2392, 0.0
  %v2558 = vadd.f32 %v2556, %v2557
  %v2559 = vsel %vm1632, %v2395, 0.0
  %v2560 = vadd.f32 %v2558, %v2559
  %v2561 = vsel %vm1632, %v2400, 0.0
  %v2562 = vadd.f32 %v2560, %v2561
  %v2563 = vsel %vm1632, %v2403, 0.0
  %v2564 = vadd.f32 %v2562, %v2563
  %v2565 = vsel %vm1632, %v2408, 0.0
  %v2566 = vadd.f32 %v2564, %v2565
  %v2567 = vsel %vm1632, %v2411, 0.0
  %v2568 = vadd.f32 %v2566, %v2567
  %v2569 = vsel %vm1632, %v2416, 0.0
  %v2570 = vadd.f32 %v2568, %v2569
  %v2571 = vsel %vm1632, %v2419, 0.0
  %v2572 = vadd.f32 %v2570, %v2571
  %v2573 = vsel %vm1632, %v2424, 0.0
  %v2574 = vadd.f32 %v2572, %v2573
  %v2575 = vsel %vm1632, %v2427, 0.0
  %v2576 = vadd.f32 %v2574, %v2575
  %v2577 = vsel %vm1632, %v2432, 0.0
  %v2578 = vadd.f32 %v2576, %v2577
  %v2579 = vsel %vm1632, %v2435, 0.0
  %v2580 = vadd.f32 %v2578, %v2579
  %v2581 = vsel %vm1632, %v2440, 0.0
  %v2582 = vadd.f32 %v2580, %v2581
  %v2583 = vsel %vm1632, %v2443, 0.0
  %v2584 = vadd.f32 %v2582, %v2583
  %v2585 = vsel %vm1632, %v2448, 0.0
  %v2586 = vadd.f32 %v2584, %v2585
  %v2587 = vsel %vm1632, %v2451, 0.0
  %v2588 = vadd.f32 %v2586, %v2587
  %v2589 = vsel %vm1632, %v2456, 0.0
  %v2590 = vadd.f32 %v2588, %v2589
  %v2591 = vsel %vm1632, %v2459, 0.0
  %v2592 = vadd.f32 %v2590, %v2591
  %v2593 = vsel %vm1632, %v2464, 0.0
  %v2594 = vadd.f32 %v2592, %v2593
  %v2595 = vsel %vm1632, %v2467, 0.0
  %v2596 = vadd.f32 %v2594, %v2595
  %v2597 = vrot.slane %v2596, 4
  %v2598 = vadd.f32 %v2596, %v2597
  %v2599 = vrot.slane %v2598, 2
  %v2600 = vadd.f32 %v2598, %v2599
  %v2601 = vrot.slane %v2600, 1
  %v2602 = vadd.f32 %v2600, %v2601
  %v2603 = vmul.f32 %v2216, %v2216
  %v2604 = vmul.f32 %v2219, %v2219
  %v2605 = vmul.f32 %v2224, %v2224
  %v2606 = vmul.f32 %v2227, %v2227
  %v2607 = vmul.f32 %v2232, %v2232
  %v2608 = vmul.f32 %v2235, %v2235
  %v2609 = vmul.f32 %v2240, %v2240
  %v2610 = vmul.f32 %v2243, %v2243
  %v2611 = vmul.f32 %v2248, %v2248
  %v2612 = vmul.f32 %v2251, %v2251
  %v2613 = vmul.f32 %v2256, %v2256
  %v2614 = vmul.f32 %v2259, %v2259
  %v2615 = vmul.f32 %v2264, %v2264
  %v2616 = vmul.f32 %v2267, %v2267
  %v2617 = vmul.f32 %v2272, %v2272
  %v2618 = vmul.f32 %v2275, %v2275
  %v2619 = vmul.f32 %v2280, %v2280
  %v2620 = vmul.f32 %v2283, %v2283
  %v2621 = vmul.f32 %v2288, %v2288
  %v2622 = vmul.f32 %v2291, %v2291
  %v2623 = vmul.f32 %v2296, %v2296
  %v2624 = vmul.f32 %v2299, %v2299
  %v2625 = vmul.f32 %v2304, %v2304
  %v2626 = vmul.f32 %v2307, %v2307
  %v2627 = vmul.f32 %v2312, %v2312
  %v2628 = vmul.f32 %v2315, %v2315
  %v2629 = vmul.f32 %v2320, %v2320
  %v2630 = vmul.f32 %v2323, %v2323
  %v2631 = vmul.f32 %v2328, %v2328
  %v2632 = vmul.f32 %v2331, %v2331
  %v2633 = vmul.f32 %v2336, %v2336
  %v2634 = vmul.f32 %v2339, %v2339
  %v2635 = vmul.f32 %v2344, %v2344
  %v2636 = vmul.f32 %v2347, %v2347
  %v2637 = vmul.f32 %v2352, %v2352
  %v2638 = vmul.f32 %v2355, %v2355
  %v2639 = vmul.f32 %v2360, %v2360
  %v2640 = vmul.f32 %v2363, %v2363
  %v2641 = vmul.f32 %v2368, %v2368
  %v2642 = vmul.f32 %v2371, %v2371
  %v2643 = vmul.f32 %v2376, %v2376
  %v2644 = vmul.f32 %v2379, %v2379
  %v2645 = vmul.f32 %v2384, %v2384
  %v2646 = vmul.f32 %v2387, %v2387
  %v2647 = vmul.f32 %v2392, %v2392
  %v2648 = vmul.f32 %v2395, %v2395
  %v2649 = vmul.f32 %v2400, %v2400
  %v2650 = vmul.f32 %v2403, %v2403
  %v2651 = vmul.f32 %v2408, %v2408
  %v2652 = vmul.f32 %v2411, %v2411
  %v2653 = vmul.f32 %v2416, %v2416
  %v2654 = vmul.f32 %v2419, %v2419
  %v2655 = vmul.f32 %v2424, %v2424
  %v2656 = vmul.f32 %v2427, %v2427
  %v2657 = vmul.f32 %v2432, %v2432
  %v2658 = vmul.f32 %v2435, %v2435
  %v2659 = vmul.f32 %v2440, %v2440
  %v2660 = vmul.f32 %v2443, %v2443
  %v2661 = vmul.f32 %v2448, %v2448
  %v2662 = vmul.f32 %v2451, %v2451
  %v2663 = vmul.f32 %v2456, %v2456
  %v2664 = vmul.f32 %v2459, %v2459
  %v2665 = vmul.f32 %v2464, %v2464
  %v2666 = vmul.f32 %v2467, %v2467
  %v2667 = vsel %vm1632, %v2603, 0.0
  %v2668 = vsel %vm1632, %v2604, 0.0
  %v2669 = vadd.f32 %v2667, %v2668
  %v2670 = vsel %vm1632, %v2605, 0.0
  %v2671 = vadd.f32 %v2669, %v2670
  %v2672 = vsel %vm1632, %v2606, 0.0
  %v2673 = vadd.f32 %v2671, %v2672
  %v2674 = vsel %vm1632, %v2607, 0.0
  %v2675 = vadd.f32 %v2673, %v2674
  %v2676 = vsel %vm1632, %v2608, 0.0
  %v2677 = vadd.f32 %v2675, %v2676
  %v2678 = vsel %vm1632, %v2609, 0.0
  %v2679 = vadd.f32 %v2677, %v2678
  %v2680 = vsel %vm1632, %v2610, 0.0
  %v2681 = vadd.f32 %v2679, %v2680
  %v2682 = vsel %vm1632, %v2611, 0.0
  %v2683 = vadd.f32 %v2681, %v2682
  %v2684 = vsel %vm1632, %v2612, 0.0
  %v2685 = vadd.f32 %v2683, %v2684
  %v2686 = vsel %vm1632, %v2613, 0.0
  %v2687 = vadd.f32 %v2685, %v2686
  %v2688 = vsel %vm1632, %v2614, 0.0
  %v2689 = vadd.f32 %v2687, %v2688
  %v2690 = vsel %vm1632, %v2615, 0.0
  %v2691 = vadd.f32 %v2689, %v2690
  %v2692 = vsel %vm1632, %v2616, 0.0
  %v2693 = vadd.f32 %v2691, %v2692
  %v2694 = vsel %vm1632, %v2617, 0.0
  %v2695 = vadd.f32 %v2693, %v2694
  %v2696 = vsel %vm1632, %v2618, 0.0
  %v2697 = vadd.f32 %v2695, %v2696
  %v2698 = vsel %vm1632, %v2619, 0.0
  %v2699 = vadd.f32 %v2697, %v2698
  %v2700 = vsel %vm1632, %v2620, 0.0
  %v2701 = vadd.f32 %v2699, %v2700
  %v2702 = vsel %vm1632, %v2621, 0.0
  %v2703 = vadd.f32 %v2701, %v2702
  %v2704 = vsel %vm1632, %v2622, 0.0
  %v2705 = vadd.f32 %v2703, %v2704
  %v2706 = vsel %vm1632, %v2623, 0.0
  %v2707 = vadd.f32 %v2705, %v2706
  %v2708 = vsel %vm1632, %v2624, 0.0
  %v2709 = vadd.f32 %v2707, %v2708
  %v2710 = vsel %vm1632, %v2625, 0.0
  %v2711 = vadd.f32 %v2709, %v2710
  %v2712 = vsel %vm1632, %v2626, 0.0
  %v2713 = vadd.f32 %v2711, %v2712
  %v2714 = vsel %vm1632, %v2627, 0.0
  %v2715 = vadd.f32 %v2713, %v2714
  %v2716 = vsel %vm1632, %v2628, 0.0
  %v2717 = vadd.f32 %v2715, %v2716
  %v2718 = vsel %vm1632, %v2629, 0.0
  %v2719 = vadd.f32 %v2717, %v2718
  %v2720 = vsel %vm1632, %v2630, 0.0
  %v2721 = vadd.f32 %v2719, %v2720
  %v2722 = vsel %vm1632, %v2631, 0.0
  %v2723 = vadd.f32 %v2721, %v2722
  %v2724 = vsel %vm1632, %v2632, 0.0
  %v2725 = vadd.f32 %v2723, %v2724
  %v2726 = vsel %vm1632, %v2633, 0.0
  %v2727 = vadd.f32 %v2725, %v2726
  %v2728 = vsel %vm1632, %v2634, 0.0
  %v2729 = vadd.f32 %v2727, %v2728
  %v2730 = vsel %vm1632, %v2635, 0.0
  %v2731 = vadd.f32 %v2729, %v2730
  %v2732 = vsel %vm1632, %v2636, 0.0
  %v2733 = vadd.f32 %v2731, %v2732
  %v2734 = vsel %vm1632, %v2637, 0.0
  %v2735 = vadd.f32 %v2733, %v2734
  %v2736 = vsel %vm1632, %v2638, 0.0
  %v2737 = vadd.f32 %v2735, %v2736
  %v2738 = vsel %vm1632, %v2639, 0.0
  %v2739 = vadd.f32 %v2737, %v2738
  %v2740 = vsel %vm1632, %v2640, 0.0
  %v2741 = vadd.f32 %v2739, %v2740
  %v2742 = vsel %vm1632, %v2641, 0.0
  %v2743 = vadd.f32 %v2741, %v2742
  %v2744 = vsel %vm1632, %v2642, 0.0
  %v2745 = vadd.f32 %v2743, %v2744
  %v2746 = vsel %vm1632, %v2643, 0.0
  %v2747 = vadd.f32 %v2745, %v2746
  %v2748 = vsel %vm1632, %v2644, 0.0
  %v2749 = vadd.f32 %v2747, %v2748
  %v2750 = vsel %vm1632, %v2645, 0.0
  %v2751 = vadd.f32 %v2749, %v2750
  %v2752 = vsel %vm1632, %v2646, 0.0
  %v2753 = vadd.f32 %v2751, %v2752
  %v2754 = vsel %vm1632, %v2647, 0.0
  %v2755 = vadd.f32 %v2753, %v2754
  %v2756 = vsel %vm1632, %v2648, 0.0
  %v2757 = vadd.f32 %v2755, %v2756
  %v2758 = vsel %vm1632, %v2649, 0.0
  %v2759 = vadd.f32 %v2757, %v2758
  %v2760 = vsel %vm1632, %v2650, 0.0
  %v2761 = vadd.f32 %v2759, %v2760
  %v2762 = vsel %vm1632, %v2651, 0.0
  %v2763 = vadd.f32 %v2761, %v2762
  %v2764 = vsel %vm1632, %v2652, 0.0
  %v2765 = vadd.f32 %v2763, %v2764
  %v2766 = vsel %vm1632, %v2653, 0.0
  %v2767 = vadd.f32 %v2765, %v2766
  %v2768 = vsel %vm1632, %v2654, 0.0
  %v2769 = vadd.f32 %v2767, %v2768
  %v2770 = vsel %vm1632, %v2655, 0.0
  %v2771 = vadd.f32 %v2769, %v2770
  %v2772 = vsel %vm1632, %v2656, 0.0
  %v2773 = vadd.f32 %v2771, %v2772
  %v2774 = vsel %vm1632, %v2657, 0.0
  %v2775 = vadd.f32 %v2773, %v2774
  %v2776 = vsel %vm1632, %v2658, 0.0
  %v2777 = vadd.f32 %v2775, %v2776
  %v2778 = vsel %vm1632, %v2659, 0.0
  %v2779 = vadd.f32 %v2777, %v2778
  %v2780 = vsel %vm1632, %v2660, 0.0
  %v2781 = vadd.f32 %v2779, %v2780
  %v2782 = vsel %vm1632, %v2661, 0.0
  %v2783 = vadd.f32 %v2781, %v2782
  %v2784 = vsel %vm1632, %v2662, 0.0
  %v2785 = vadd.f32 %v2783, %v2784
  %v2786 = vsel %vm1632, %v2663, 0.0
  %v2787 = vadd.f32 %v2785, %v2786
  %v2788 = vsel %vm1632, %v2664, 0.0
  %v2789 = vadd.f32 %v2787, %v2788
  %v2790 = vsel %vm1632, %v2665, 0.0
  %v2791 = vadd.f32 %v2789, %v2790
  %v2792 = vsel %vm1632, %v2666, 0.0
  %v2793 = vadd.f32 %v2791, %v2792
  %v2794 = vrot.slane %v2793, 4
  %v2795 = vadd.f32 %v2793, %v2794
  %v2796 = vrot.slane %v2795, 2
  %v2797 = vadd.f32 %v2795, %v2796
  %v2798 = vrot.slane %v2797, 1
  %v2799 = vadd.f32 %v2797, %v2798
  %v2800 = vmul.f32 %v2602, 0.001953125
  %v2801 = vmul.f32 %v2799, 0.001953125
  %v2802 = vmul.f32 %v2800, %v2800
  %v2803 = vsub.f32 %v2801, %v2802
  %v2804 = vmax.f32 %v2803, 0.0
  %v2805 = vld [vmem:[%s2 + $0x1] sm:$0x1]
  %v2806 = vadd.f32 %v2804, 1e-05
  %v2807 = vrsqrt.pop %v2806
  %v2808 = vmul.f32 %v2805, %v2807
  %v2809 = vld [vmem:[%s2 + $0x2] sm:$0x1]
  %v2810 = vmul.f32 %v2800, %v2808
  %v2811 = vsub.f32 %v2809, %v2810
  %v2812 = vlaneseq
  %v2813 = vshrl.u32 %v2812, 7
  %v2814 = vsub.s32 0, %v2813
  %v2815 = vrot.slane %v2808, %v2814
  %v2816 = vmul.f32 %v2216, %v2815
  %v2817 = vmul.f32 %v2219, %v2815
  %v2818 = vmul.f32 %v2224, %v2815
  %v2819 = vmul.f32 %v2227, %v2815
  %v2820 = vmul.f32 %v2232, %v2815
  %v2821 = vmul.f32 %v2235, %v2815
  %v2822 = vmul.f32 %v2240, %v2815
  %v2823 = vmul.f32 %v2243, %v2815
  %v2824 = vmul.f32 %v2248, %v2815
  %v2825 = vmul.f32 %v2251, %v2815
  %v2826 = vmul.f32 %v2256, %v2815
  %v2827 = vmul.f32 %v2259, %v2815
  %v2828 = vmul.f32 %v2264, %v2815
  %v2829 = vmul.f32 %v2267, %v2815
  %v2830 = vmul.f32 %v2272, %v2815
  %v2831 = vmul.f32 %v2275, %v2815
  %v2832 = vmul.f32 %v2280, %v2815
  %v2833 = vmul.f32 %v2283, %v2815
  %v2834 = vmul.f32 %v2288, %v2815
  %v2835 = vmul.f32 %v2291, %v2815
  %v2836 = vmul.f32 %v2296, %v2815
  %v2837 = vmul.f32 %v2299, %v2815
  %v2838 = vmul.f32 %v2304, %v2815
  %v2839 = vmul.f32 %v2307, %v2815
  %v2840 = vmul.f32 %v2312, %v2815
  %v2841 = vmul.f32 %v2315, %v2815
  %v2842 = vmul.f32 %v2320, %v2815
  %v2843 = vmul.f32 %v2323, %v2815
  %v2844 = vmul.f32 %v2328, %v2815
  %v2845 = vmul.f32 %v2331, %v2815
  %v2846 = vmul.f32 %v2336, %v2815
  %v2847 = vmul.f32 %v2339, %v2815
  %v2848 = vmul.f32 %v2344, %v2815
  %v2849 = vmul.f32 %v2347, %v2815
  %v2850 = vmul.f32 %v2352, %v2815
  %v2851 = vmul.f32 %v2355, %v2815
  %v2852 = vmul.f32 %v2360, %v2815
  %v2853 = vmul.f32 %v2363, %v2815
  %v2854 = vmul.f32 %v2368, %v2815
  %v2855 = vmul.f32 %v2371, %v2815
  %v2856 = vmul.f32 %v2376, %v2815
  %v2857 = vmul.f32 %v2379, %v2815
  %v2858 = vmul.f32 %v2384, %v2815
  %v2859 = vmul.f32 %v2387, %v2815
  %v2860 = vmul.f32 %v2392, %v2815
  %v2861 = vmul.f32 %v2395, %v2815
  %v2862 = vmul.f32 %v2400, %v2815
  %v2863 = vmul.f32 %v2403, %v2815
  %v2864 = vmul.f32 %v2408, %v2815
  %v2865 = vmul.f32 %v2411, %v2815
  %v2866 = vmul.f32 %v2416, %v2815
  %v2867 = vmul.f32 %v2419, %v2815
  %v2868 = vmul.f32 %v2424, %v2815
  %v2869 = vmul.f32 %v2427, %v2815
  %v2870 = vmul.f32 %v2432, %v2815
  %v2871 = vmul.f32 %v2435, %v2815
  %v2872 = vmul.f32 %v2440, %v2815
  %v2873 = vmul.f32 %v2443, %v2815
  %v2874 = vmul.f32 %v2448, %v2815
  %v2875 = vmul.f32 %v2451, %v2815
  %v2876 = vmul.f32 %v2456, %v2815
  %v2877 = vmul.f32 %v2459, %v2815
  %v2878 = vmul.f32 %v2464, %v2815
  %v2879 = vmul.f32 %v2467, %v2815
  %v2880 = vlaneseq
  %v2881 = vshrl.u32 %v2880, 7
  %v2882 = vsub.s32 0, %v2881
  %v2883 = vrot.slane %v2811, %v2882
  %v2884 = vadd.f32 %v2816, %v2883
  %v2885 = vadd.f32 %v2817, %v2883
  %v2886 = vadd.f32 %v2818, %v2883
  %v2887 = vadd.f32 %v2819, %v2883
  %v2888 = vadd.f32 %v2820, %v2883
  %v2889 = vadd.f32 %v2821, %v2883
  %v2890 = vadd.f32 %v2822, %v2883
  %v2891 = vadd.f32 %v2823, %v2883
  %v2892 = vadd.f32 %v2824, %v2883
  %v2893 = vadd.f32 %v2825, %v2883
  %v2894 = vadd.f32 %v2826, %v2883
  %v2895 = vadd.f32 %v2827, %v2883
  %v2896 = vadd.f32 %v2828, %v2883
  %v2897 = vadd.f32 %v2829, %v2883
  %v2898 = vadd.f32 %v2830, %v2883
  %v2899 = vadd.f32 %v2831, %v2883
  %v2900 = vadd.f32 %v2832, %v2883
  %v2901 = vadd.f32 %v2833, %v2883
  %v2902 = vadd.f32 %v2834, %v2883
  %v2903 = vadd.f32 %v2835, %v2883
  %v2904 = vadd.f32 %v2836, %v2883
  %v2905 = vadd.f32 %v2837, %v2883
  %v2906 = vadd.f32 %v2838, %v2883
  %v2907 = vadd.f32 %v2839, %v2883
  %v2908 = vadd.f32 %v2840, %v2883
  %v2909 = vadd.f32 %v2841, %v2883
  %v2910 = vadd.f32 %v2842, %v2883
  %v2911 = vadd.f32 %v2843, %v2883
  %v2912 = vadd.f32 %v2844, %v2883
  %v2913 = vadd.f32 %v2845, %v2883
  %v2914 = vadd.f32 %v2846, %v2883
  %v2915 = vadd.f32 %v2847, %v2883
  %v2916 = vadd.f32 %v2848, %v2883
  %v2917 = vadd.f32 %v2849, %v2883
  %v2918 = vadd.f32 %v2850, %v2883
  %v2919 = vadd.f32 %v2851, %v2883
  %v2920 = vadd.f32 %v2852, %v2883
  %v2921 = vadd.f32 %v2853, %v2883
  %v2922 = vadd.f32 %v2854, %v2883
  %v2923 = vadd.f32 %v2855, %v2883
  %v2924 = vadd.f32 %v2856, %v2883
  %v2925 = vadd.f32 %v2857, %v2883
  %v2926 = vadd.f32 %v2858, %v2883
  %v2927 = vadd.f32 %v2859, %v2883
  %v2928 = vadd.f32 %v2860, %v2883
  %v2929 = vadd.f32 %v2861, %v2883
  %v2930 = vadd.f32 %v2862, %v2883
  %v2931 = vadd.f32 %v2863, %v2883
  %v2932 = vadd.f32 %v2864, %v2883
  %v2933 = vadd.f32 %v2865, %v2883
  %v2934 = vadd.f32 %v2866, %v2883
  %v2935 = vadd.f32 %v2867, %v2883
  %v2936 = vadd.f32 %v2868, %v2883
  %v2937 = vadd.f32 %v2869, %v2883
  %v2938 = vadd.f32 %v2870, %v2883
  %v2939 = vadd.f32 %v2871, %v2883
  %v2940 = vadd.f32 %v2872, %v2883
  %v2941 = vadd.f32 %v2873, %v2883
  %v2942 = vadd.f32 %v2874, %v2883
  %v2943 = vadd.f32 %v2875, %v2883
  %v2944 = vadd.f32 %v2876, %v2883
  %v2945 = vadd.f32 %v2877, %v2883
  %v2946 = vadd.f32 %v2878, %v2883
  %v2947 = vadd.f32 %v2879, %v2883
  %v2948 = vmax.f32 %v2884, 0.0
  %v2949 = vmax.f32 %v2885, 0.0
  %v2950 = vmax.f32 %v2886, 0.0
  %v2951 = vmax.f32 %v2887, 0.0
  %v2952 = vmax.f32 %v2888, 0.0
  %v2953 = vmax.f32 %v2889, 0.0
  %v2954 = vmax.f32 %v2890, 0.0
  %v2955 = vmax.f32 %v2891, 0.0
  %v2956 = vmax.f32 %v2892, 0.0
  %v2957 = vmax.f32 %v2893, 0.0
  %v2958 = vmax.f32 %v2894, 0.0
  %v2959 = vmax.f32 %v2895, 0.0
  %v2960 = vmax.f32 %v2896, 0.0
  %v2961 = vmax.f32 %v2897, 0.0
  %v2962 = vmax.f32 %v2898, 0.0
  %v2963 = vmax.f32 %v2899, 0.0
  %v2964 = vmax.f32 %v2900, 0.0
  %v2965 = vmax.f32 %v2901, 0.0
  %v2966 = vmax.f32 %v2902, 0.0
  %v2967 = vmax.f32 %v2903, 0.0
  %v2968 = vmax.f32 %v2904, 0.0
  %v2969 = vmax.f32 %v2905, 0.0
  %v2970 = vmax.f32 %v2906, 0.0
  %v2971 = vmax.f32 %v2907, 0.0
  %v2972 = vmax.f32 %v2908, 0.0
  %v2973 = vmax.f32 %v2909, 0.0
  %v2974 = vmax.f32 %v2910, 0.0
  %v2975 = vmax.f32 %v2911, 0.0
  %v2976 = vmax.f32 %v2912, 0.0
  %v2977 = vmax.f32 %v2913, 0.0
  %v2978 = vmax.f32 %v2914, 0.0
  %v2979 = vmax.f32 %v2915, 0.0
  %v2980 = vmax.f32 %v2916, 0.0
  %v2981 = vmax.f32 %v2917, 0.0
  %v2982 = vmax.f32 %v2918, 0.0
  %v2983 = vmax.f32 %v2919, 0.0
  %v2984 = vmax.f32 %v2920, 0.0
  %v2985 = vmax.f32 %v2921, 0.0
  %v2986 = vmax.f32 %v2922, 0.0
  %v2987 = vmax.f32 %v2923, 0.0
  %v2988 = vmax.f32 %v2924, 0.0
  %v2989 = vmax.f32 %v2925, 0.0
  %v2990 = vmax.f32 %v2926, 0.0
  %v2991 = vmax.f32 %v2927, 0.0
  %v2992 = vmax.f32 %v2928, 0.0
  %v2993 = vmax.f32 %v2929, 0.0
  %v2994 = vmax.f32 %v2930, 0.0
  %v2995 = vmax.f32 %v2931, 0.0
  %v2996 = vmax.f32 %v2932, 0.0
  %v2997 = vmax.f32 %v2933, 0.0
  %v2998 = vmax.f32 %v2934, 0.0
  %v2999 = vmax.f32 %v2935, 0.0
  %v3000 = vmax.f32 %v2936, 0.0
  %v3001 = vmax.f32 %v2937, 0.0
  %v3002 = vmax.f32 %v2938, 0.0
  %v3003 = vmax.f32 %v2939, 0.0
  %v3004 = vmax.f32 %v2940, 0.0
  %v3005 = vmax.f32 %v2941, 0.0
  %v3006 = vmax.f32 %v2942, 0.0
  %v3007 = vmax.f32 %v2943, 0.0
  %v3008 = vmax.f32 %v2944, 0.0
  %v3009 = vmax.f32 %v2945, 0.0
  %v3010 = vmax.f32 %v2946, 0.0
  %v3011 = vmax.f32 %v2947, 0.0
  %3012 = vst.msk [vmem:[#allocation3] sm:$0xff] %vm1632, 0.0
  %3013 = vst.msk [vmem:[#allocation3 + $0x8] sm:$0xff] %vm1632, 0.0
  %vm3014 = vcmask 58368
  %3015 = vst.msk [vmem:[#allocation3 + $0x10] sm:$0x3] %vm3014, 0.0
  %3016 = vst.msk [vmem:[#allocation3 + $0x18] sm:$0xff] %vm1632, 0.0
  %3017 = vst.msk [vmem:[#allocation3 + $0x20] sm:$0xff] %vm1632, 0.0
  %3018 = vst.msk [vmem:[#allocation3 + $0x28] sm:$0x3] %vm3014, 0.0
  %3019 = vst.msk [vmem:[#allocation3 + $0x30] sm:$0xff] %vm1632, 0.0
  %3020 = vst.msk [vmem:[#allocation3 + $0x38] sm:$0xff] %vm1632, 0.0
  %3021 = vst.msk [vmem:[#allocation3 + $0x40] sm:$0x3] %vm3014, 0.0
  %3022 = vst.msk [vmem:[#allocation3 + $0x48] sm:$0xff] %vm1632, 0.0
  %3023 = vst.msk [vmem:[#allocation3 + $0x50] sm:$0xff] %vm1632, 0.0
  %3024 = vst.msk [vmem:[#allocation3 + $0x58] sm:$0x3] %vm3014, 0.0
  %3025 = vst.msk [vmem:[#allocation3 + $0x60] sm:$0xff] %vm1632, 0.0
  %3026 = vst.msk [vmem:[#allocation3 + $0x68] sm:$0xff] %vm1632, 0.0
  %3027 = vst.msk [vmem:[#allocation3 + $0x70] sm:$0x3] %vm3014, 0.0
  %3028 = vst.msk [vmem:[#allocation3 + $0x78] sm:$0xff] %vm1632, 0.0
  %3029 = vst.msk [vmem:[#allocation3 + $0x80] sm:$0xff] %vm1632, 0.0
  %3030 = vst.msk [vmem:[#allocation3 + $0x88] sm:$0x3] %vm3014, 0.0
  %3031 = vst.msk [vmem:[#allocation3 + $0x90] sm:$0xff] %vm1632, 0.0
  %3032 = vst.msk [vmem:[#allocation3 + $0x98] sm:$0xff] %vm1632, 0.0
  %3033 = vst.msk [vmem:[#allocation3 + $0xa0] sm:$0x3] %vm3014, 0.0
  %3034 = vst.msk [vmem:[#allocation3 + $0xa8] sm:$0xff] %vm1632, 0.0
  %3035 = vst.msk [vmem:[#allocation3 + $0xb0] sm:$0xff] %vm1632, 0.0
  %3036 = vst.msk [vmem:[#allocation3 + $0xb8] sm:$0x3] %vm3014, 0.0
  %3037 = vst.msk [vmem:[#allocation3 + $0xc0] sm:$0xff] %vm1632, 0.0
  %3038 = vst.msk [vmem:[#allocation3 + $0xc8] sm:$0xff] %vm1632, 0.0
  %3039 = vst.msk [vmem:[#allocation3 + $0xd0] sm:$0x3] %vm3014, 0.0
  %3040 = vst.msk [vmem:[#allocation3 + $0xd8] sm:$0xff] %vm1632, 0.0
  %3041 = vst.msk [vmem:[#allocation3 + $0xe0] sm:$0xff] %vm1632, 0.0
  %3042 = vst.msk [vmem:[#allocation3 + $0xe8] sm:$0x3] %vm3014, 0.0
  %3043 = vst.msk [vmem:[#allocation3 + $0xf0] sm:$0xff] %vm1632, 0.0
  %3044 = vst.msk [vmem:[#allocation3 + $0xf8] sm:$0xff] %vm1632, 0.0
  %3045 = vst.msk [vmem:[#allocation3 + $0x100] sm:$0x3] %vm3014, 0.0
  %3046 = vst.msk [vmem:[#allocation3 + $0x108] sm:$0xff] %vm1632, 0.0
  %3047 = vst.msk [vmem:[#allocation3 + $0x110] sm:$0xff] %vm1632, 0.0
  %3048 = vst.msk [vmem:[#allocation3 + $0x118] sm:$0x3] %vm3014, 0.0
  %3049 = vst.msk [vmem:[#allocation3 + $0x120] sm:$0xff] %vm1632, 0.0
  %3050 = vst.msk [vmem:[#allocation3 + $0x128] sm:$0xff] %vm1632, 0.0
  %3051 = vst.msk [vmem:[#allocation3 + $0x130] sm:$0x3] %vm3014, 0.0
  %3052 = vst.msk [vmem:[#allocation3 + $0x138] sm:$0xff] %vm1632, 0.0
  %3053 = vst.msk [vmem:[#allocation3 + $0x140] sm:$0xff] %vm1632, 0.0
  %3054 = vst.msk [vmem:[#allocation3 + $0x148] sm:$0x3] %vm3014, 0.0
  %3055 = vst.msk [vmem:[#allocation3 + $0x150] sm:$0xff] %vm1632, 0.0
  %3056 = vst.msk [vmem:[#allocation3 + $0x158] sm:$0xff] %vm1632, 0.0
  %3057 = vst.msk [vmem:[#allocation3 + $0x160] sm:$0x3] %vm3014, 0.0
  %3058 = vst.msk [vmem:[#allocation3 + $0x168] sm:$0xff] %vm1632, 0.0
  %3059 = vst.msk [vmem:[#allocation3 + $0x170] sm:$0xff] %vm1632, 0.0
  %3060 = vst.msk [vmem:[#allocation3 + $0x178] sm:$0x3] %vm3014, 0.0
  %3061 = vst.msk [vmem:[#allocation3 + $0x180] sm:$0xff] %vm1632, 0.0
  %3062 = vst.msk [vmem:[#allocation3 + $0x188] sm:$0xff] %vm1632, 0.0
  %3063 = vst.msk [vmem:[#allocation3 + $0x190] sm:$0x3] %vm3014, 0.0
  %3064 = vst.msk [vmem:[#allocation3 + $0x198] sm:$0xff] %vm1632, 0.0
  %3065 = vst.msk [vmem:[#allocation3 + $0x1a0] sm:$0xff] %vm1632, 0.0
  %3066 = vst.msk [vmem:[#allocation3 + $0x1a8] sm:$0x3] %vm3014, 0.0
  %3067 = vst.msk [vmem:[#allocation3 + $0x1b0] sm:$0xff] %vm1632, 0.0
  %3068 = vst.msk [vmem:[#allocation3 + $0x1b8] sm:$0xff] %vm1632, 0.0
  %3069 = vst.msk [vmem:[#allocation3 + $0x1c0] sm:$0x3] %vm3014, 0.0
  %3070 = vst.msk [vmem:[#allocation3 + $0x1c8] sm:$0xff] %vm1632, 0.0
  %3071 = vst.msk [vmem:[#allocation3 + $0x1d0] sm:$0xff] %vm1632, 0.0
  %3072 = vst.msk [vmem:[#allocation3 + $0x1d8] sm:$0x3] %vm3014, 0.0
  %3073 = vst.msk [vmem:[#allocation3 + $0x1e0] sm:$0xff] %vm1632, 0.0
  %3074 = vst.msk [vmem:[#allocation3 + $0x1e8] sm:$0xff] %vm1632, 0.0
  %3075 = vst.msk [vmem:[#allocation3 + $0x1f0] sm:$0x3] %vm3014, 0.0
  %3076 = vst.msk [vmem:[#allocation3 + $0x1f8] sm:$0xff] %vm1632, 0.0
  %3077 = vst.msk [vmem:[#allocation3 + $0x200] sm:$0xff] %vm1632, 0.0
  %3078 = vst.msk [vmem:[#allocation3 + $0x208] sm:$0x3] %vm3014, 0.0
  %3079 = vst.msk [vmem:[#allocation3 + $0x210] sm:$0xff] %vm1632, 0.0
  %3080 = vst.msk [vmem:[#allocation3 + $0x218] sm:$0xff] %vm1632, 0.0
  %3081 = vst.msk [vmem:[#allocation3 + $0x220] sm:$0x3] %vm3014, 0.0
  %3082 = vst.msk [vmem:[#allocation3 + $0x228] sm:$0xff] %vm1632, 0.0
  %3083 = vst.msk [vmem:[#allocation3 + $0x230] sm:$0xff] %vm1632, 0.0
  %3084 = vst.msk [vmem:[#allocation3 + $0x238] sm:$0x3] %vm3014, 0.0
  %3085 = vst.msk [vmem:[#allocation3 + $0x240] sm:$0xff] %vm1632, 0.0
  %3086 = vst.msk [vmem:[#allocation3 + $0x248] sm:$0xff] %vm1632, 0.0
  %3087 = vst.msk [vmem:[#allocation3 + $0x250] sm:$0x3] %vm3014, 0.0
  %3088 = vst.msk [vmem:[#allocation3 + $0x258] sm:$0xff] %vm1632, 0.0
  %3089 = vst.msk [vmem:[#allocation3 + $0x260] sm:$0xff] %vm1632, 0.0
  %3090 = vst.msk [vmem:[#allocation3 + $0x268] sm:$0x3] %vm3014, 0.0
  %3091 = vst.msk [vmem:[#allocation3 + $0x270] sm:$0xff] %vm1632, 0.0
  %3092 = vst.msk [vmem:[#allocation3 + $0x278] sm:$0xff] %vm1632, 0.0
  %3093 = vst.msk [vmem:[#allocation3 + $0x280] sm:$0x3] %vm3014, 0.0
  %3094 = vst.msk [vmem:[#allocation3 + $0x288] sm:$0xff] %vm1632, 0.0
  %3095 = vst.msk [vmem:[#allocation3 + $0x290] sm:$0xff] %vm1632, 0.0
  %3096 = vst.msk [vmem:[#allocation3 + $0x298] sm:$0x3] %vm3014, 0.0
  %3097 = vst.msk [vmem:[#allocation3 + $0x2a0] sm:$0xff] %vm1632, 0.0
  %3098 = vst.msk [vmem:[#allocation3 + $0x2a8] sm:$0xff] %vm1632, 0.0
  %3099 = vst.msk [vmem:[#allocation3 + $0x2b0] sm:$0x3] %vm3014, 0.0
  %3100 = vst.msk [vmem:[#allocation3 + $0x2b8] sm:$0xff] %vm1632, 0.0
  %3101 = vst.msk [vmem:[#allocation3 + $0x2c0] sm:$0xff] %vm1632, 0.0
  %3102 = vst.msk [vmem:[#allocation3 + $0x2c8] sm:$0x3] %vm3014, 0.0
  %3103 = vst.msk [vmem:[#allocation3 + $0x2d0] sm:$0xff] %vm1632, 0.0
  %3104 = vst.msk [vmem:[#allocation3 + $0x2d8] sm:$0xff] %vm1632, 0.0
  %3105 = vst.msk [vmem:[#allocation3 + $0x2e0] sm:$0x3] %vm3014, 0.0
  %3106 = vst.msk [vmem:[#allocation3 + $0x2e8] sm:$0xff] %vm1632, 0.0
  %3107 = vst.msk [vmem:[#allocation3 + $0x2f0] sm:$0xff] %vm1632, 0.0
  %3108 = vst.msk [vmem:[#allocation3 + $0x2f8] sm:$0x3] %vm3014, 0.0
  %3109 = vst.msk [vmem:[#allocation3 + $0x300] sm:$0xff] %vm1632, 0.0
  %3110 = vst.msk [vmem:[#allocation3 + $0x308] sm:$0xff] %vm1632, 0.0
  %3111 = vst.msk [vmem:[#allocation3 + $0x310] sm:$0x3] %vm3014, 0.0
  %3112 = vst.msk [vmem:[#allocation3 + $0x318] sm:$0xff] %vm1632, 0.0
  %3113 = vst.msk [vmem:[#allocation3 + $0x320] sm:$0xff] %vm1632, 0.0
  %3114 = vst.msk [vmem:[#allocation3 + $0x328] sm:$0x3] %vm3014, 0.0
  %3115 = vst.msk [vmem:[#allocation3 + $0x330] sm:$0xff] %vm1632, 0.0
  %3116 = vst.msk [vmem:[#allocation3 + $0x338] sm:$0xff] %vm1632, 0.0
  %3117 = vst.msk [vmem:[#allocation3 + $0x340] sm:$0x3] %vm3014, 0.0
  %3118 = vst.msk [vmem:[#allocation3 + $0x348] sm:$0xff] %vm1632, 0.0
  %3119 = vst.msk [vmem:[#allocation3 + $0x350] sm:$0xff] %vm1632, 0.0
  %3120 = vst.msk [vmem:[#allocation3 + $0x358] sm:$0x3] %vm3014, 0.0
  %s3121 = scalar_lea.vmem [#allocation3], 24
  %3122 = vst.msk [vmem:[%s3121 + $0x1] sm:$0xff] %vm1632, %v2948
  %3123 = vst.msk [vmem:[%s3121 + $0x9] sm:$0xff] %vm1632, %v2949
  %3124 = vst.msk [vmem:[%s3121 + $0x19] sm:$0xff] %vm1632, %v2950
  %3125 = vst.msk [vmem:[%s3121 + $0x21] sm:$0xff] %vm1632, %v2951
  %3126 = vst.msk [vmem:[%s3121 + $0x31] sm:$0xff] %vm1632, %v2952
  %3127 = vst.msk [vmem:[%s3121 + $0x39] sm:$0xff] %vm1632, %v2953
  %3128 = vst.msk [vmem:[%s3121 + $0x49] sm:$0xff] %vm1632, %v2954
  %3129 = vst.msk [vmem:[%s3121 + $0x51] sm:$0xff] %vm1632, %v2955
  %3130 = vst.msk [vmem:[%s3121 + $0x61] sm:$0xff] %vm1632, %v2956
  %3131 = vst.msk [vmem:[%s3121 + $0x69] sm:$0xff] %vm1632, %v2957
  %3132 = vst.msk [vmem:[%s3121 + $0x79] sm:$0xff] %vm1632, %v2958
  %3133 = vst.msk [vmem:[%s3121 + $0x81] sm:$0xff] %vm1632, %v2959
  %3134 = vst.msk [vmem:[%s3121 + $0x91] sm:$0xff] %vm1632, %v2960
  %3135 = vst.msk [vmem:[%s3121 + $0x99] sm:$0xff] %vm1632, %v2961
  %3136 = vst.msk [vmem:[%s3121 + $0xa9] sm:$0xff] %vm1632, %v2962
  %3137 = vst.msk [vmem:[%s3121 + $0xb1] sm:$0xff] %vm1632, %v2963
  %3138 = vst.msk [vmem:[%s3121 + $0xc1] sm:$0xff] %vm1632, %v2964
  %3139 = vst.msk [vmem:[%s3121 + $0xc9] sm:$0xff] %vm1632, %v2965
  %3140 = vst.msk [vmem:[%s3121 + $0xd9] sm:$0xff] %vm1632, %v2966
  %3141 = vst.msk [vmem:[%s3121 + $0xe1] sm:$0xff] %vm1632, %v2967
  %3142 = vst.msk [vmem:[%s3121 + $0xf1] sm:$0xff] %vm1632, %v2968
  %3143 = vst.msk [vmem:[%s3121 + $0xf9] sm:$0xff] %vm1632, %v2969
  %3144 = vst.msk [vmem:[%s3121 + $0x109] sm:$0xff] %vm1632, %v2970
  %3145 = vst.msk [vmem:[%s3121 + $0x111] sm:$0xff] %vm1632, %v2971
  %3146 = vst.msk [vmem:[%s3121 + $0x121] sm:$0xff] %vm1632, %v2972
  %3147 = vst.msk [vmem:[%s3121 + $0x129] sm:$0xff] %vm1632, %v2973
  %3148 = vst.msk [vmem:[%s3121 + $0x139] sm:$0xff] %vm1632, %v2974
  %3149 = vst.msk [vmem:[%s3121 + $0x141] sm:$0xff] %vm1632, %v2975
  %3150 = vst.msk [vmem:[%s3121 + $0x151] sm:$0xff] %vm1632, %v2976
  %3151 = vst.msk [vmem:[%s3121 + $0x159] sm:$0xff] %vm1632, %v2977
  %3152 = vst.msk [vmem:[%s3121 + $0x169] sm:$0xff] %vm1632, %v2978
  %3153 = vst.msk [vmem:[%s3121 + $0x171] sm:$0xff] %vm1632, %v2979
  %3154 = vst.msk [vmem:[%s3121 + $0x1b1] sm:$0xff] %vm1632, %v2980
  %3155 = vst.msk [vmem:[%s3121 + $0x1b9] sm:$0xff] %vm1632, %v2981
  %3156 = vst.msk [vmem:[%s3121 + $0x1c9] sm:$0xff] %vm1632, %v2982
  %3157 = vst.msk [vmem:[%s3121 + $0x1d1] sm:$0xff] %vm1632, %v2983
  %3158 = vst.msk [vmem:[%s3121 + $0x1e1] sm:$0xff] %vm1632, %v2984
  %3159 = vst.msk [vmem:[%s3121 + $0x1e9] sm:$0xff] %vm1632, %v2985
  %3160 = vst.msk [vmem:[%s3121 + $0x1f9] sm:$0xff] %vm1632, %v2986
  %3161 = vst.msk [vmem:[%s3121 + $0x201] sm:$0xff] %vm1632, %v2987
  %3162 = vst.msk [vmem:[%s3121 + $0x211] sm:$0xff] %vm1632, %v2988
  %3163 = vst.msk [vmem:[%s3121 + $0x219] sm:$0xff] %vm1632, %v2989
  %3164 = vst.msk [vmem:[%s3121 + $0x229] sm:$0xff] %vm1632, %v2990
  %3165 = vst.msk [vmem:[%s3121 + $0x231] sm:$0xff] %vm1632, %v2991
  %3166 = vst.msk [vmem:[%s3121 + $0x241] sm:$0xff] %vm1632, %v2992
  %3167 = vst.msk [vmem:[%s3121 + $0x249] sm:$0xff] %vm1632, %v2993
  %3168 = vst.msk [vmem:[%s3121 + $0x259] sm:$0xff] %vm1632, %v2994
  %3169 = vst.msk [vmem:[%s3121 + $0x261] sm:$0xff] %vm1632, %v2995
  %3170 = vst.msk [vmem:[%s3121 + $0x271] sm:$0xff] %vm1632, %v2996
  %3171 = vst.msk [vmem:[%s3121 + $0x279] sm:$0xff] %vm1632, %v2997
  %3172 = vst.msk [vmem:[%s3121 + $0x289] sm:$0xff] %vm1632, %v2998
  %3173 = vst.msk [vmem:[%s3121 + $0x291] sm:$0xff] %vm1632, %v2999
  %3174 = vst.msk [vmem:[%s3121 + $0x2a1] sm:$0xff] %vm1632, %v3000
  %3175 = vst.msk [vmem:[%s3121 + $0x2a9] sm:$0xff] %vm1632, %v3001
  %3176 = vst.msk [vmem:[%s3121 + $0x2b9] sm:$0xff] %vm1632, %v3002
  %3177 = vst.msk [vmem:[%s3121 + $0x2c1] sm:$0xff] %vm1632, %v3003
  %3178 = vst.msk [vmem:[%s3121 + $0x2d1] sm:$0xff] %vm1632, %v3004
  %3179 = vst.msk [vmem:[%s3121 + $0x2d9] sm:$0xff] %vm1632, %v3005
  %3180 = vst.msk [vmem:[%s3121 + $0x2e9] sm:$0xff] %vm1632, %v3006
  %3181 = vst.msk [vmem:[%s3121 + $0x2f1] sm:$0xff] %vm1632, %v3007
  %3182 = vst.msk [vmem:[%s3121 + $0x301] sm:$0xff] %vm1632, %v3008
  %3183 = vst.msk [vmem:[%s3121 + $0x309] sm:$0xff] %vm1632, %v3009
  %3184 = vst.msk [vmem:[%s3121 + $0x319] sm:$0xff] %vm1632, %v3010
  %3185 = vst.msk [vmem:[%s3121 + $0x321] sm:$0xff] %vm1632, %v3011
  %v3186 = vld [vmem:[#allocation3] sm:$0xff]
  %v3187 = vld [vmem:[#allocation3 + $0x8] sm:$0xff]
  %v3188 = vld [vmem:[#allocation3 + $0x10] sm:$0x3]
  %v3189 = vld [vmem:[#allocation3 + $0x18] sm:$0xff]
  %v3190 = vld [vmem:[#allocation3 + $0x20] sm:$0xff]
  %v3191 = vld [vmem:[#allocation3 + $0x28] sm:$0x3]
  %v3192 = vld [vmem:[#allocation3 + $0x30] sm:$0xff]
  %v3193 = vld [vmem:[#allocation3 + $0x38] sm:$0xff]
  %v3194 = vld [vmem:[#allocation3 + $0x40] sm:$0x3]
  %v3195 = vld [vmem:[#allocation3 + $0x48] sm:$0xff]
  %v3196 = vld [vmem:[#allocation3 + $0x50] sm:$0xff]
  %v3197 = vld [vmem:[#allocation3 + $0x58] sm:$0x3]
  %v3198 = vld [vmem:[#allocation3 + $0x60] sm:$0xff]
  %v3199 = vld [vmem:[#allocation3 + $0x68] sm:$0xff]
  %v3200 = vld [vmem:[#allocation3 + $0x70] sm:$0x3]
  %v3201 = vld [vmem:[#allocation3 + $0x78] sm:$0xff]
  %v3202 = vld [vmem:[#allocation3 + $0x80] sm:$0xff]
  %v3203 = vld [vmem:[#allocation3 + $0x88] sm:$0x3]
  %v3204 = vld [vmem:[#allocation3 + $0x90] sm:$0xff]
  %v3205 = vld [vmem:[#allocation3 + $0x98] sm:$0xff]
  %v3206 = vld [vmem:[#allocation3 + $0xa0] sm:$0x3]
  %v3207 = vld [vmem:[#allocation3 + $0xa8] sm:$0xff]
  %v3208 = vld [vmem:[#allocation3 + $0xb0] sm:$0xff]
  %v3209 = vld [vmem:[#allocation3 + $0xb8] sm:$0x3]
  %v3210 = vld [vmem:[#allocation3 + $0xc0] sm:$0xff]
  %v3211 = vld [vmem:[#allocation3 + $0xc8] sm:$0xff]
  %v3212 = vld [vmem:[#allocation3 + $0xd0] sm:$0x3]
  %v3213 = vld [vmem:[#allocation3 + $0xd8] sm:$0xff]
  %v3214 = vld [vmem:[#allocation3 + $0xe0] sm:$0xff]
  %v3215 = vld [vmem:[#allocation3 + $0xe8] sm:$0x3]
  %v3216 = vld [vmem:[#allocation3 + $0xf0] sm:$0xff]
  %v3217 = vld [vmem:[#allocation3 + $0xf8] sm:$0xff]
  %v3218 = vld [vmem:[#allocation3 + $0x100] sm:$0x3]
  %v3219 = vld [vmem:[#allocation3 + $0x108] sm:$0xff]
  %v3220 = vld [vmem:[#allocation3 + $0x110] sm:$0xff]
  %v3221 = vld [vmem:[#allocation3 + $0x118] sm:$0x3]
  %v3222 = vld [vmem:[#allocation3 + $0x120] sm:$0xff]
  %v3223 = vld [vmem:[#allocation3 + $0x128] sm:$0xff]
  %v3224 = vld [vmem:[#allocation3 + $0x130] sm:$0x3]
  %v3225 = vld [vmem:[#allocation3 + $0x138] sm:$0xff]
  %v3226 = vld [vmem:[#allocation3 + $0x140] sm:$0xff]
  %v3227 = vld [vmem:[#allocation3 + $0x148] sm:$0x3]
  %v3228 = vld [vmem:[#allocation3 + $0x150] sm:$0xff]
  %v3229 = vld [vmem:[#allocation3 + $0x158] sm:$0xff]
  %v3230 = vld [vmem:[#allocation3 + $0x160] sm:$0x3]
  %v3231 = vld [vmem:[#allocation3 + $0x168] sm:$0xff]
  %v3232 = vld [vmem:[#allocation3 + $0x170] sm:$0xff]
  %v3233 = vld [vmem:[#allocation3 + $0x178] sm:$0x3]
  %v3234 = vld [vmem:[#allocation3 + $0x180] sm:$0xff]
  %v3235 = vld [vmem:[#allocation3 + $0x188] sm:$0xff]
  %v3236 = vld [vmem:[#allocation3 + $0x190] sm:$0x3]
  %v3237 = vld [vmem:[#allocation3 + $0x198] sm:$0xff]
  %v3238 = vld [vmem:[#allocation3 + $0x1a0] sm:$0xff]
  %v3239 = vld [vmem:[#allocation3 + $0x1a8] sm:$0x3]
  %v3240 = vld [vmem:[#allocation3 + $0x1b0] sm:$0xff]
  %v3241 = vld [vmem:[#allocation3 + $0x1b8] sm:$0xff]
  %v3242 = vld [vmem:[#allocation3 + $0x1c0] sm:$0x3]
  %v3243 = vld [vmem:[#allocation3 + $0x1c8] sm:$0xff]
  %v3244 = vld [vmem:[#allocation3 + $0x1d0] sm:$0xff]
  %v3245 = vld [vmem:[#allocation3 + $0x1d8] sm:$0x3]
  %v3246 = vld [vmem:[#allocation3 + $0x1e0] sm:$0xff]
  %v3247 = vld [vmem:[#allocation3 + $0x1e8] sm:$0xff]
  %v3248 = vld [vmem:[#allocation3 + $0x1f0] sm:$0x3]
  %v3249 = vld [vmem:[#allocation3 + $0x1f8] sm:$0xff]
  %v3250 = vld [vmem:[#allocation3 + $0x200] sm:$0xff]
  %v3251 = vld [vmem:[#allocation3 + $0x208] sm:$0x3]
  %v3252 = vld [vmem:[#allocation3 + $0x210] sm:$0xff]
  %v3253 = vld [vmem:[#allocation3 + $0x218] sm:$0xff]
  %v3254 = vld [vmem:[#allocation3 + $0x220] sm:$0x3]
  %v3255 = vld [vmem:[#allocation3 + $0x228] sm:$0xff]
  %v3256 = vld [vmem:[#allocation3 + $0x230] sm:$0xff]
  %v3257 = vld [vmem:[#allocation3 + $0x238] sm:$0x3]
  %v3258 = vld [vmem:[#allocation3 + $0x240] sm:$0xff]
  %v3259 = vld [vmem:[#allocation3 + $0x248] sm:$0xff]
  %v3260 = vld [vmem:[#allocation3 + $0x250] sm:$0x3]
  %v3261 = vld [vmem:[#allocation3 + $0x258] sm:$0xff]
  %v3262 = vld [vmem:[#allocation3 + $0x260] sm:$0xff]
  %v3263 = vld [vmem:[#allocation3 + $0x268] sm:$0x3]
  %v3264 = vld [vmem:[#allocation3 + $0x270] sm:$0xff]
  %v3265 = vld [vmem:[#allocation3 + $0x278] sm:$0xff]
  %v3266 = vld [vmem:[#allocation3 + $0x280] sm:$0x3]
  %v3267 = vld [vmem:[#allocation3 + $0x288] sm:$0xff]
  %v3268 = vld [vmem:[#allocation3 + $0x290] sm:$0xff]
  %v3269 = vld [vmem:[#allocation3 + $0x298] sm:$0x3]
  %v3270 = vld [vmem:[#allocation3 + $0x2a0] sm:$0xff]
  %v3271 = vld [vmem:[#allocation3 + $0x2a8] sm:$0xff]
  %v3272 = vld [vmem:[#allocation3 + $0x2b0] sm:$0x3]
  %v3273 = vld [vmem:[#allocation3 + $0x2b8] sm:$0xff]
  %v3274 = vld [vmem:[#allocation3 + $0x2c0] sm:$0xff]
  %v3275 = vld [vmem:[#allocation3 + $0x2c8] sm:$0x3]
  %v3276 = vld [vmem:[#allocation3 + $0x2d0] sm:$0xff]
  %v3277 = vld [vmem:[#allocation3 + $0x2d8] sm:$0xff]
  %v3278 = vld [vmem:[#allocation3 + $0x2e0] sm:$0x3]
  %v3279 = vld [vmem:[#allocation3 + $0x2e8] sm:$0xff]
  %v3280 = vld [vmem:[#allocation3 + $0x2f0] sm:$0xff]
  %v3281 = vld [vmem:[#allocation3 + $0x2f8] sm:$0x3]
  %v3282 = vld [vmem:[#allocation3 + $0x300] sm:$0xff]
  %v3283 = vld [vmem:[#allocation3 + $0x308] sm:$0xff]
  %v3284 = vld [vmem:[#allocation3 + $0x310] sm:$0x3]
  %v3285 = vld [vmem:[#allocation3 + $0x318] sm:$0xff]
  %v3286 = vld [vmem:[#allocation3 + $0x320] sm:$0xff]
  %v3287 = vld [vmem:[#allocation3 + $0x328] sm:$0x3]
  %v3288 = vld [vmem:[#allocation3 + $0x330] sm:$0xff]
  %v3289 = vld [vmem:[#allocation3 + $0x338] sm:$0xff]
  %v3290 = vld [vmem:[#allocation3 + $0x340] sm:$0x3]
  %v3291 = vld [vmem:[#allocation3 + $0x348] sm:$0xff]
  %v3292 = vld [vmem:[#allocation3 + $0x350] sm:$0xff]
  %v3293 = vld [vmem:[#allocation3 + $0x358] sm:$0x3]
  %v3294 = vpack.c.bf16 %v3187, %v3186
  %v3295 = vpack.c.bf16 %v3188, %v3188
  %v3296 = vpack.c.bf16 %v3190, %v3189
  %v3297 = vpack.c.bf16 %v3191, %v3191
  %v3298 = vpack.c.bf16 %v3193, %v3192
  %v3299 = vpack.c.bf16 %v3194, %v3194
  %v3300 = vpack.c.bf16 %v3196, %v3195
  %v3301 = vpack.c.bf16 %v3197, %v3197
  %v3302 = vpack.c.bf16 %v3199, %v3198
  %v3303 = vpack.c.bf16 %v3200, %v3200
  %v3304 = vpack.c.bf16 %v3202, %v3201
  %v3305 = vpack.c.bf16 %v3203, %v3203
  %v3306 = vpack.c.bf16 %v3205, %v3204
  %v3307 = vpack.c.bf16 %v3206, %v3206
  %v3308 = vpack.c.bf16 %v3208, %v3207
  %v3309 = vpack.c.bf16 %v3209, %v3209
  %v3310 = vpack.c.bf16 %v3211, %v3210
  %v3311 = vpack.c.bf16 %v3212, %v3212
  %v3312 = vpack.c.bf16 %v3214, %v3213
  %v3313 = vpack.c.bf16 %v3215, %v3215
  %v3314 = vpack.c.bf16 %v3217, %v3216
  %v3315 = vpack.c.bf16 %v3218, %v3218
  %v3316 = vpack.c.bf16 %v3220, %v3219
  %v3317 = vpack.c.bf16 %v3221, %v3221
  %v3318 = vpack.c.bf16 %v3223, %v3222
  %v3319 = vpack.c.bf16 %v3224, %v3224
  %v3320 = vpack.c.bf16 %v3226, %v3225
  %v3321 = vpack.c.bf16 %v3227, %v3227
  %v3322 = vpack.c.bf16 %v3229, %v3228
  %v3323 = vpack.c.bf16 %v3230, %v3230
  %v3324 = vpack.c.bf16 %v3232, %v3231
  %v3325 = vpack.c.bf16 %v3233, %v3233
  %v3326 = vpack.c.bf16 %v3235, %v3234
  %v3327 = vpack.c.bf16 %v3236, %v3236
  %v3328 = vpack.c.bf16 %v3238, %v3237
  %v3329 = vpack.c.bf16 %v3239, %v3239
  %v3330 = vpack.c.bf16 %v3241, %v3240
  %v3331 = vpack.c.bf16 %v3242, %v3242
  %v3332 = vpack.c.bf16 %v3244, %v3243
  %v3333 = vpack.c.bf16 %v3245, %v3245
  %v3334 = vpack.c.bf16 %v3247, %v3246
  %v3335 = vpack.c.bf16 %v3248, %v3248
  %v3336 = vpack.c.bf16 %v3250, %v3249
  %v3337 = vpack.c.bf16 %v3251, %v3251
  %v3338 = vpack.c.bf16 %v3253, %v3252
  %v3339 = vpack.c.bf16 %v3254, %v3254
  %v3340 = vpack.c.bf16 %v3256, %v3255
  %v3341 = vpack.c.bf16 %v3257, %v3257
  %v3342 = vpack.c.bf16 %v3259, %v3258
  %v3343 = vpack.c.bf16 %v3260, %v3260
  %v3344 = vpack.c.bf16 %v3262, %v3261
  %v3345 = vpack.c.bf16 %v3263, %v3263
  %v3346 = vpack.c.bf16 %v3265, %v3264
  %v3347 = vpack.c.bf16 %v3266, %v3266
  %v3348 = vpack.c.bf16 %v3268, %v3267
  %v3349 = vpack.c.bf16 %v3269, %v3269
  %v3350 = vpack.c.bf16 %v3271, %v3270
  %v3351 = vpack.c.bf16 %v3272, %v3272
  %v3352 = vpack.c.bf16 %v3274, %v3273
  %v3353 = vpack.c.bf16 %v3275, %v3275
  %v3354 = vpack.c.bf16 %v3277, %v3276
  %v3355 = vpack.c.bf16 %v3278, %v3278
  %v3356 = vpack.c.bf16 %v3280, %v3279
  %v3357 = vpack.c.bf16 %v3281, %v3281
  %v3358 = vpack.c.bf16 %v3283, %v3282
  %v3359 = vpack.c.bf16 %v3284, %v3284
  %v3360 = vpack.c.bf16 %v3286, %v3285
  %v3361 = vpack.c.bf16 %v3287, %v3287
  %v3362 = vpack.c.bf16 %v3289, %v3288
  %v3363 = vpack.c.bf16 %v3290, %v3290
  %v3364 = vpack.c.bf16 %v3292, %v3291
  %v3365 = vpack.c.bf16 %v3293, %v3293
  %v3367 = vshrl.u32 %v3294, 16
  %v3369 = vshll.u32 %v3294, 16
  %v3371 = vrot.slane %v3369, 1
  %v3372 = vor.u32 %v3367, %v3371
  %v3374 = vshll.u32 %v3295, 16
  %v3376 = vrot.slane %v3374, 1
  %v3377 = vsel %vm442, %v3372, %v3376
  %v3379 = vshrl.u32 %v3296, 16
  %v3381 = vshll.u32 %v3296, 16
  %v3383 = vrot.slane %v3381, 1
  %v3384 = vor.u32 %v3379, %v3383
  %v3386 = vshll.u32 %v3297, 16
  %v3388 = vrot.slane %v3386, 1
  %v3389 = vsel %vm442, %v3384, %v3388
  %v3391 = vshrl.u32 %v3298, 16
  %v3393 = vshll.u32 %v3298, 16
  %v3395 = vrot.slane %v3393, 1
  %v3396 = vor.u32 %v3391, %v3395
  %v3398 = vshll.u32 %v3299, 16
  %v3400 = vrot.slane %v3398, 1
  %v3401 = vsel %vm442, %v3396, %v3400
  %v3403 = vshrl.u32 %v3300, 16
  %v3405 = vshll.u32 %v3300, 16
  %v3407 = vrot.slane %v3405, 1
  %v3408 = vor.u32 %v3403, %v3407
  %v3410 = vshll.u32 %v3301, 16
  %v3412 = vrot.slane %v3410, 1
  %v3413 = vsel %vm442, %v3408, %v3412
  %v3415 = vshrl.u32 %v3302, 16
  %v3417 = vshll.u32 %v3302, 16
  %v3419 = vrot.slane %v3417, 1
  %v3420 = vor.u32 %v3415, %v3419
  %v3422 = vshll.u32 %v3303, 16
  %v3424 = vrot.slane %v3422, 1
  %v3425 = vsel %vm442, %v3420, %v3424
  %v3427 = vshrl.u32 %v3304, 16
  %v3429 = vshll.u32 %v3304, 16
  %v3431 = vrot.slane %v3429, 1
  %v3432 = vor.u32 %v3427, %v3431
  %v3434 = vshll.u32 %v3305, 16
  %v3436 = vrot.slane %v3434, 1
  %v3437 = vsel %vm442, %v3432, %v3436
  %v3439 = vshrl.u32 %v3306, 16
  %v3441 = vshll.u32 %v3306, 16
  %v3443 = vrot.slane %v3441, 1
  %v3444 = vor.u32 %v3439, %v3443
  %v3446 = vshll.u32 %v3307, 16
  %v3448 = vrot.slane %v3446, 1
  %v3449 = vsel %vm442, %v3444, %v3448
  %v3451 = vshrl.u32 %v3308, 16
  %v3453 = vshll.u32 %v3308, 16
  %v3455 = vrot.slane %v3453, 1
  %v3456 = vor.u32 %v3451, %v3455
  %v3458 = vshll.u32 %v3309, 16
  %v3460 = vrot.slane %v3458, 1
  %v3461 = vsel %vm442, %v3456, %v3460
  %v3463 = vshrl.u32 %v3310, 16
  %v3465 = vshll.u32 %v3310, 16
  %v3467 = vrot.slane %v3465, 1
  %v3468 = vor.u32 %v3463, %v3467
  %v3470 = vshll.u32 %v3311, 16
  %v3472 = vrot.slane %v3470, 1
  %v3473 = vsel %vm442, %v3468, %v3472
  %v3475 = vshrl.u32 %v3312, 16
  %v3477 = vshll.u32 %v3312, 16
  %v3479 = vrot.slane %v3477, 1
  %v3480 = vor.u32 %v3475, %v3479
  %v3482 = vshll.u32 %v3313, 16
  %v3484 = vrot.slane %v3482, 1
  %v3485 = vsel %vm442, %v3480, %v3484
  %v3487 = vshrl.u32 %v3314, 16
  %v3489 = vshll.u32 %v3314, 16
  %v3491 = vrot.slane %v3489, 1
  %v3492 = vor.u32 %v3487, %v3491
  %v3494 = vshll.u32 %v3315, 16
  %v3496 = vrot.slane %v3494, 1
  %v3497 = vsel %vm442, %v3492, %v3496
  %v3499 = vshrl.u32 %v3316, 16
  %v3501 = vshll.u32 %v3316, 16
  %v3503 = vrot.slane %v3501, 1
  %v3504 = vor.u32 %v3499, %v3503
  %v3506 = vshll.u32 %v3317, 16
  %v3508 = vrot.slane %v3506, 1
  %v3509 = vsel %vm442, %v3504, %v3508
  %v3511 = vshrl.u32 %v3318, 16
  %v3513 = vshll.u32 %v3318, 16
  %v3515 = vrot.slane %v3513, 1
  %v3516 = vor.u32 %v3511, %v3515
  %v3518 = vshll.u32 %v3319, 16
  %v3520 = vrot.slane %v3518, 1
  %v3521 = vsel %vm442, %v3516, %v3520
  %v3523 = vshrl.u32 %v3320, 16
  %v3525 = vshll.u32 %v3320, 16
  %v3527 = vrot.slane %v3525, 1
  %v3528 = vor.u32 %v3523, %v3527
  %v3530 = vshll.u32 %v3321, 16
  %v3532 = vrot.slane %v3530, 1
  %v3533 = vsel %vm442, %v3528, %v3532
  %v3535 = vshrl.u32 %v3322, 16
  %v3537 = vshll.u32 %v3322, 16
  %v3539 = vrot.slane %v3537, 1
  %v3540 = vor.u32 %v3535, %v3539
  %v3542 = vshll.u32 %v3323, 16
  %v3544 = vrot.slane %v3542, 1
  %v3545 = vsel %vm442, %v3540, %v3544
  %v3547 = vshrl.u32 %v3324, 16
  %v3549 = vshll.u32 %v3324, 16
  %v3551 = vrot.slane %v3549, 1
  %v3552 = vor.u32 %v3547, %v3551
  %v3554 = vshll.u32 %v3325, 16
  %v3556 = vrot.slane %v3554, 1
  %v3557 = vsel %vm442, %v3552, %v3556
  %v3559 = vshrl.u32 %v3330, 16
  %v3561 = vshll.u32 %v3330, 16
  %v3563 = vrot.slane %v3561, 1
  %v3564 = vor.u32 %v3559, %v3563
  %v3566 = vshll.u32 %v3331, 16
  %v3568 = vrot.slane %v3566, 1
  %v3569 = vsel %vm442, %v3564, %v3568
  %v3571 = vshrl.u32 %v3332, 16
  %v3573 = vshll.u32 %v3332, 16
  %v3575 = vrot.slane %v3573, 1
  %v3576 = vor.u32 %v3571, %v3575
  %v3578 = vshll.u32 %v3333, 16
  %v3580 = vrot.slane %v3578, 1
  %v3581 = vsel %vm442, %v3576, %v3580
  %v3583 = vshrl.u32 %v3334, 16
  %v3585 = vshll.u32 %v3334, 16
  %v3587 = vrot.slane %v3585, 1
  %v3588 = vor.u32 %v3583, %v3587
  %v3590 = vshll.u32 %v3335, 16
  %v3592 = vrot.slane %v3590, 1
  %v3593 = vsel %vm442, %v3588, %v3592
  %v3595 = vshrl.u32 %v3336, 16
  %v3597 = vshll.u32 %v3336, 16
  %v3599 = vrot.slane %v3597, 1
  %v3600 = vor.u32 %v3595, %v3599
  %v3602 = vshll.u32 %v3337, 16
  %v3604 = vrot.slane %v3602, 1
  %v3605 = vsel %vm442, %v3600, %v3604
  %v3607 = vshrl.u32 %v3338, 16
  %v3609 = vshll.u32 %v3338, 16
  %v3611 = vrot.slane %v3609, 1
  %v3612 = vor.u32 %v3607, %v3611
  %v3614 = vshll.u32 %v3339, 16
  %v3616 = vrot.slane %v3614, 1
  %v3617 = vsel %vm442, %v3612, %v3616
  %v3619 = vshrl.u32 %v3340, 16
  %v3621 = vshll.u32 %v3340, 16
  %v3623 = vrot.slane %v3621, 1
  %v3624 = vor.u32 %v3619, %v3623
  %v3626 = vshll.u32 %v3341, 16
  %v3628 = vrot.slane %v3626, 1
  %v3629 = vsel %vm442, %v3624, %v3628
  %v3631 = vshrl.u32 %v3342, 16
  %v3633 = vshll.u32 %v3342, 16
  %v3635 = vrot.slane %v3633, 1
  %v3636 = vor.u32 %v3631, %v3635
  %v3638 = vshll.u32 %v3343, 16
  %v3640 = vrot.slane %v3638, 1
  %v3641 = vsel %vm442, %v3636, %v3640
  %v3643 = vshrl.u32 %v3344, 16
  %v3645 = vshll.u32 %v3344, 16
  %v3647 = vrot.slane %v3645, 1
  %v3648 = vor.u32 %v3643, %v3647
  %v3650 = vshll.u32 %v3345, 16
  %v3652 = vrot.slane %v3650, 1
  %v3653 = vsel %vm442, %v3648, %v3652
  %v3655 = vshrl.u32 %v3346, 16
  %v3657 = vshll.u32 %v3346, 16
  %v3659 = vrot.slane %v3657, 1
  %v3660 = vor.u32 %v3655, %v3659
  %v3662 = vshll.u32 %v3347, 16
  %v3664 = vrot.slane %v3662, 1
  %v3665 = vsel %vm442, %v3660, %v3664
  %v3667 = vshrl.u32 %v3348, 16
  %v3669 = vshll.u32 %v3348, 16
  %v3671 = vrot.slane %v3669, 1
  %v3672 = vor.u32 %v3667, %v3671
  %v3674 = vshll.u32 %v3349, 16
  %v3676 = vrot.slane %v3674, 1
  %v3677 = vsel %vm442, %v3672, %v3676
  %v3679 = vshrl.u32 %v3350, 16
  %v3681 = vshll.u32 %v3350, 16
  %v3683 = vrot.slane %v3681, 1
  %v3684 = vor.u32 %v3679, %v3683
  %v3686 = vshll.u32 %v3351, 16
  %v3688 = vrot.slane %v3686, 1
  %v3689 = vsel %vm442, %v3684, %v3688
  %v3691 = vshrl.u32 %v3352, 16
  %v3693 = vshll.u32 %v3352, 16
  %v3695 = vrot.slane %v3693, 1
  %v3696 = vor.u32 %v3691, %v3695
  %v3698 = vshll.u32 %v3353, 16
  %v3700 = vrot.slane %v3698, 1
  %v3701 = vsel %vm442, %v3696, %v3700
  %v3703 = vshrl.u32 %v3354, 16
  %v3705 = vshll.u32 %v3354, 16
  %v3707 = vrot.slane %v3705, 1
  %v3708 = vor.u32 %v3703, %v3707
  %v3710 = vshll.u32 %v3355, 16
  %v3712 = vrot.slane %v3710, 1
  %v3713 = vsel %vm442, %v3708, %v3712
  %v3715 = vshrl.u32 %v3356, 16
  %v3717 = vshll.u32 %v3356, 16
  %v3719 = vrot.slane %v3717, 1
  %v3720 = vor.u32 %v3715, %v3719
  %v3722 = vshll.u32 %v3357, 16
  %v3724 = vrot.slane %v3722, 1
  %v3725 = vsel %vm442, %v3720, %v3724
  %v3727 = vshrl.u32 %v3358, 16
  %v3729 = vshll.u32 %v3358, 16
  %v3731 = vrot.slane %v3729, 1
  %v3732 = vor.u32 %v3727, %v3731
  %v3734 = vshll.u32 %v3359, 16
  %v3736 = vrot.slane %v3734, 1
  %v3737 = vsel %vm442, %v3732, %v3736
  %v3739 = vshrl.u32 %v3360, 16
  %v3741 = vshll.u32 %v3360, 16
  %v3743 = vrot.slane %v3741, 1
  %v3744 = vor.u32 %v3739, %v3743
  %v3746 = vshll.u32 %v3361, 16
  %v3748 = vrot.slane %v3746, 1
  %v3749 = vsel %vm442, %v3744, %v3748
  %3750 = vrot.lane.b32.xlu0 %v3377, 8
  %v3751 = vpop.permute.xlu0 %3750
  %3752 = vrot.lane.b32.xlu0 %v3389, 8
  %v3753 = vpop.permute.xlu0 %3752
  %3754 = vrot.lane.b32.xlu0 %v3401, 8
  %v3755 = vpop.permute.xlu0 %3754
  %3756 = vrot.lane.b32.xlu0 %v3413, 8
  %v3757 = vpop.permute.xlu0 %3756
  %3758 = vrot.lane.b32.xlu0 %v3425, 8
  %v3759 = vpop.permute.xlu0 %3758
  %3760 = vrot.lane.b32.xlu0 %v3437, 8
  %v3761 = vpop.permute.xlu0 %3760
  %3762 = vrot.lane.b32.xlu0 %v3449, 8
  %v3763 = vpop.permute.xlu0 %3762
  %3764 = vrot.lane.b32.xlu0 %v3461, 8
  %v3765 = vpop.permute.xlu0 %3764
  %3766 = vrot.lane.b32.xlu0 %v3473, 8
  %v3767 = vpop.permute.xlu0 %3766
  %3768 = vrot.lane.b32.xlu0 %v3485, 8
  %v3769 = vpop.permute.xlu0 %3768
  %3770 = vrot.lane.b32.xlu0 %v3497, 8
  %v3771 = vpop.permute.xlu0 %3770
  %3772 = vrot.lane.b32.xlu0 %v3509, 8
  %v3773 = vpop.permute.xlu0 %3772
  %3774 = vrot.lane.b32.xlu0 %v3521, 8
  %v3775 = vpop.permute.xlu0 %3774
  %3776 = vrot.lane.b32.xlu0 %v3533, 8
  %v3777 = vpop.permute.xlu0 %3776
  %3778 = vrot.lane.b32.xlu0 %v3545, 8
  %v3779 = vpop.permute.xlu0 %3778
  %3780 = vrot.lane.b32.xlu0 %v3557, 8
  %v3781 = vpop.permute.xlu0 %3780
  %3782 = vrot.lane.b32.xlu0 %v3569, 8
  %v3783 = vpop.permute.xlu0 %3782
  %3784 = vrot.lane.b32.xlu0 %v3581, 8
  %v3785 = vpop.permute.xlu0 %3784
  %3786 = vrot.lane.b32.xlu0 %v3593, 8
  %v3787 = vpop.permute.xlu0 %3786
  %3788 = vrot.lane.b32.xlu0 %v3605, 8
  %v3789 = vpop.permute.xlu0 %3788
  %3790 = vrot.lane.b32.xlu0 %v3617, 8
  %v3791 = vpop.permute.xlu0 %3790
  %3792 = vrot.lane.b32.xlu0 %v3629, 8
  %v3793 = vpop.permute.xlu0 %3792
  %3794 = vrot.lane.b32.xlu0 %v3641, 8
  %v3795 = vpop.permute.xlu0 %3794
  %3796 = vrot.lane.b32.xlu0 %v3653, 8
  %v3797 = vpop.permute.xlu0 %3796
  %3798 = vrot.lane.b32.xlu0 %v3665, 8
  %v3799 = vpop.permute.xlu0 %3798
  %3800 = vrot.lane.b32.xlu0 %v3677, 8
  %v3801 = vpop.permute.xlu0 %3800
  %3802 = vrot.lane.b32.xlu0 %v3689, 8
  %v3803 = vpop.permute.xlu0 %3802
  %3804 = vrot.lane.b32.xlu0 %v3701, 8
  %v3805 = vpop.permute.xlu0 %3804
  %3806 = vrot.lane.b32.xlu0 %v3713, 8
  %v3807 = vpop.permute.xlu0 %3806
  %3808 = vrot.lane.b32.xlu0 %v3725, 8
  %v3809 = vpop.permute.xlu0 %3808
  %3810 = vrot.lane.b32.xlu0 %v3737, 8
  %v3811 = vpop.permute.xlu0 %3810
  %3812 = vrot.lane.b32.xlu0 %v3749, 8
  %v3813 = vpop.permute.xlu0 %3812
  %v3878 = vrot.slane %v3294, 1
  %v3879 = vrot.slane %v3295, 1
  %v3880 = vsel %vm955, %v3878, %v3879
  %v3881 = vrot.slane %v3296, 1
  %v3882 = vrot.slane %v3297, 1
  %v3883 = vsel %vm955, %v3881, %v3882
  %v3884 = vrot.slane %v3298, 1
  %v3885 = vrot.slane %v3299, 1
  %v3886 = vsel %vm955, %v3884, %v3885
  %v3887 = vrot.slane %v3300, 1
  %v3888 = vrot.slane %v3301, 1
  %v3889 = vsel %vm955, %v3887, %v3888
  %v3890 = vrot.slane %v3302, 1
  %v3891 = vrot.slane %v3303, 1
  %v3892 = vsel %vm955, %v3890, %v3891
  %v3893 = vrot.slane %v3304, 1
  %v3894 = vrot.slane %v3305, 1
  %v3895 = vsel %vm955, %v3893, %v3894
  %v3896 = vrot.slane %v3306, 1
  %v3897 = vrot.slane %v3307, 1
  %v3898 = vsel %vm955, %v3896, %v3897
  %v3899 = vrot.slane %v3308, 1
  %v3900 = vrot.slane %v3309, 1
  %v3901 = vsel %vm955, %v3899, %v3900
  %v3902 = vrot.slane %v3310, 1
  %v3903 = vrot.slane %v3311, 1
  %v3904 = vsel %vm955, %v3902, %v3903
  %v3905 = vrot.slane %v3312, 1
  %v3906 = vrot.slane %v3313, 1
  %v3907 = vsel %vm955, %v3905, %v3906
  %v3908 = vrot.slane %v3314, 1
  %v3909 = vrot.slane %v3315, 1
  %v3910 = vsel %vm955, %v3908, %v3909
  %v3911 = vrot.slane %v3316, 1
  %v3912 = vrot.slane %v3317, 1
  %v3913 = vsel %vm955, %v3911, %v3912
  %v3914 = vrot.slane %v3318, 1
  %v3915 = vrot.slane %v3319, 1
  %v3916 = vsel %vm955, %v3914, %v3915
  %v3917 = vrot.slane %v3320, 1
  %v3918 = vrot.slane %v3321, 1
  %v3919 = vsel %vm955, %v3917, %v3918
  %v3920 = vrot.slane %v3322, 1
  %v3921 = vrot.slane %v3323, 1
  %v3922 = vsel %vm955, %v3920, %v3921
  %v3923 = vrot.slane %v3324, 1
  %v3924 = vrot.slane %v3325, 1
  %v3925 = vsel %vm955, %v3923, %v3924
  %v3926 = vrot.slane %v3330, 1
  %v3927 = vrot.slane %v3331, 1
  %v3928 = vsel %vm955, %v3926, %v3927
  %v3929 = vrot.slane %v3332, 1
  %v3930 = vrot.slane %v3333, 1
  %v3931 = vsel %vm955, %v3929, %v3930
  %v3932 = vrot.slane %v3334, 1
  %v3933 = vrot.slane %v3335, 1
  %v3934 = vsel %vm955, %v3932, %v3933
  %v3935 = vrot.slane %v3336, 1
  %v3936 = vrot.slane %v3337, 1
  %v3937 = vsel %vm955, %v3935, %v3936
  %v3938 = vrot.slane %v3338, 1
  %v3939 = vrot.slane %v3339, 1
  %v3940 = vsel %vm955, %v3938, %v3939
  %v3941 = vrot.slane %v3340, 1
  %v3942 = vrot.slane %v3341, 1
  %v3943 = vsel %vm955, %v3941, %v3942
  %v3944 = vrot.slane %v3342, 1
  %v3945 = vrot.slane %v3343, 1
  %v3946 = vsel %vm955, %v3944, %v3945
  %v3947 = vrot.slane %v3344, 1
  %v3948 = vrot.slane %v3345, 1
  %v3949 = vsel %vm955, %v3947, %v3948
  %v3950 = vrot.slane %v3346, 1
  %v3951 = vrot.slane %v3347, 1
  %v3952 = vsel %vm955, %v3950, %v3951
  %v3953 = vrot.slane %v3348, 1
  %v3954 = vrot.slane %v3349, 1
  %v3955 = vsel %vm955, %v3953, %v3954
  %v3956 = vrot.slane %v3350, 1
  %v3957 = vrot.slane %v3351, 1
  %v3958 = vsel %vm955, %v3956, %v3957
  %v3959 = vrot.slane %v3352, 1
  %v3960 = vrot.slane %v3353, 1
  %v3961 = vsel %vm955, %v3959, %v3960
  %v3962 = vrot.slane %v3354, 1
  %v3963 = vrot.slane %v3355, 1
  %v3964 = vsel %vm955, %v3962, %v3963
  %v3965 = vrot.slane %v3356, 1
  %v3966 = vrot.slane %v3357, 1
  %v3967 = vsel %vm955, %v3965, %v3966
  %v3968 = vrot.slane %v3358, 1
  %v3969 = vrot.slane %v3359, 1
  %v3970 = vsel %vm955, %v3968, %v3969
  %v3971 = vrot.slane %v3360, 1
  %v3972 = vrot.slane %v3361, 1
  %v3973 = vsel %vm955, %v3971, %v3972
  %3974 = vrot.lane.b32.xlu0 %v3880, 16
  %v3975 = vpop.permute.xlu0 %3974
  %3976 = vrot.lane.b32.xlu0 %v3883, 16
  %v3977 = vpop.permute.xlu0 %3976
  %3978 = vrot.lane.b32.xlu0 %v3886, 16
  %v3979 = vpop.permute.xlu0 %3978
  %3980 = vrot.lane.b32.xlu0 %v3889, 16
  %v3981 = vpop.permute.xlu0 %3980
  %3982 = vrot.lane.b32.xlu0 %v3892, 16
  %v3983 = vpop.permute.xlu0 %3982
  %3984 = vrot.lane.b32.xlu0 %v3895, 16
  %v3985 = vpop.permute.xlu0 %3984
  %3986 = vrot.lane.b32.xlu0 %v3898, 16
  %v3987 = vpop.permute.xlu0 %3986
  %3988 = vrot.lane.b32.xlu0 %v3901, 16
  %v3989 = vpop.permute.xlu0 %3988
  %3990 = vrot.lane.b32.xlu0 %v3904, 16
  %v3991 = vpop.permute.xlu0 %3990
  %3992 = vrot.lane.b32.xlu0 %v3907, 16
  %v3993 = vpop.permute.xlu0 %3992
  %3994 = vrot.lane.b32.xlu0 %v3910, 16
  %v3995 = vpop.permute.xlu0 %3994
  %3996 = vrot.lane.b32.xlu0 %v3913, 16
  %v3997 = vpop.permute.xlu0 %3996
  %3998 = vrot.lane.b32.xlu0 %v3916, 16
  %v3999 = vpop.permute.xlu0 %3998
  %4000 = vrot.lane.b32.xlu0 %v3919, 16
  %v4001 = vpop.permute.xlu0 %4000
  %4002 = vrot.lane.b32.xlu0 %v3922, 16
  %v4003 = vpop.permute.xlu0 %4002
  %4004 = vrot.lane.b32.xlu0 %v3925, 16
  %v4005 = vpop.permute.xlu0 %4004
  %4006 = vrot.lane.b32.xlu0 %v3928, 16
  %v4007 = vpop.permute.xlu0 %4006
  %4008 = vrot.lane.b32.xlu0 %v3931, 16
  %v4009 = vpop.permute.xlu0 %4008
  %4010 = vrot.lane.b32.xlu0 %v3934, 16
  %v4011 = vpop.permute.xlu0 %4010
  %4012 = vrot.lane.b32.xlu0 %v3937, 16
  %v4013 = vpop.permute.xlu0 %4012
  %4014 = vrot.lane.b32.xlu0 %v3940, 16
  %v4015 = vpop.permute.xlu0 %4014
  %4016 = vrot.lane.b32.xlu0 %v3943, 16
  %v4017 = vpop.permute.xlu0 %4016
  %4018 = vrot.lane.b32.xlu0 %v3946, 16
  %v4019 = vpop.permute.xlu0 %4018
  %4020 = vrot.lane.b32.xlu0 %v3949, 16
  %v4021 = vpop.permute.xlu0 %4020
  %4022 = vrot.lane.b32.xlu0 %v3952, 16
  %v4023 = vpop.permute.xlu0 %4022
  %4024 = vrot.lane.b32.xlu0 %v3955, 16
  %v4025 = vpop.permute.xlu0 %4024
  %4026 = vrot.lane.b32.xlu0 %v3958, 16
  %v4027 = vpop.permute.xlu0 %4026
  %4028 = vrot.lane.b32.xlu0 %v3961, 16
  %v4029 = vpop.permute.xlu0 %4028
  %4030 = vrot.lane.b32.xlu0 %v3964, 16
  %v4031 = vpop.permute.xlu0 %4030
  %4032 = vrot.lane.b32.xlu0 %v3967, 16
  %v4033 = vpop.permute.xlu0 %4032
  %4034 = vrot.lane.b32.xlu0 %v3970, 16
  %v4035 = vpop.permute.xlu0 %4034
  %4036 = vrot.lane.b32.xlu0 %v3973, 16
  %v4037 = vpop.permute.xlu0 %4036
  %4040 = vrot.lane.b32.xlu0 %v3296, 24
  %v4041 = vpop.permute.xlu0 %4040
  %4042 = vrot.lane.b32.xlu0 %v3298, 24
  %v4043 = vpop.permute.xlu0 %4042
  %4044 = vrot.lane.b32.xlu0 %v3300, 24
  %v4045 = vpop.permute.xlu0 %4044
  %4046 = vrot.lane.b32.xlu0 %v3302, 24
  %v4047 = vpop.permute.xlu0 %4046
  %4048 = vrot.lane.b32.xlu0 %v3304, 24
  %v4049 = vpop.permute.xlu0 %4048
  %4050 = vrot.lane.b32.xlu0 %v3306, 24
  %v4051 = vpop.permute.xlu0 %4050
  %4052 = vrot.lane.b32.xlu0 %v3308, 24
  %v4053 = vpop.permute.xlu0 %4052
  %4054 = vrot.lane.b32.xlu0 %v3310, 24
  %v4055 = vpop.permute.xlu0 %4054
  %4056 = vrot.lane.b32.xlu0 %v3312, 24
  %v4057 = vpop.permute.xlu0 %4056
  %4058 = vrot.lane.b32.xlu0 %v3314, 24
  %v4059 = vpop.permute.xlu0 %4058
  %4060 = vrot.lane.b32.xlu0 %v3316, 24
  %v4061 = vpop.permute.xlu0 %4060
  %4062 = vrot.lane.b32.xlu0 %v3318, 24
  %v4063 = vpop.permute.xlu0 %4062
  %4064 = vrot.lane.b32.xlu0 %v3320, 24
  %v4065 = vpop.permute.xlu0 %4064
  %4066 = vrot.lane.b32.xlu0 %v3322, 24
  %v4067 = vpop.permute.xlu0 %4066
  %4068 = vrot.lane.b32.xlu0 %v3324, 24
  %v4069 = vpop.permute.xlu0 %4068
  %4070 = vrot.lane.b32.xlu0 %v3326, 24
  %v4071 = vpop.permute.xlu0 %4070
  %4072 = vrot.lane.b32.xlu0 %v3332, 24
  %v4073 = vpop.permute.xlu0 %4072
  %4074 = vrot.lane.b32.xlu0 %v3334, 24
  %v4075 = vpop.permute.xlu0 %4074
  %4076 = vrot.lane.b32.xlu0 %v3336, 24
  %v4077 = vpop.permute.xlu0 %4076
  %4078 = vrot.lane.b32.xlu0 %v3338, 24
  %v4079 = vpop.permute.xlu0 %4078
  %4080 = vrot.lane.b32.xlu0 %v3340, 24
  %v4081 = vpop.permute.xlu0 %4080
  %4082 = vrot.lane.b32.xlu0 %v3342, 24
  %v4083 = vpop.permute.xlu0 %4082
  %4084 = vrot.lane.b32.xlu0 %v3344, 24
  %v4085 = vpop.permute.xlu0 %4084
  %4086 = vrot.lane.b32.xlu0 %v3346, 24
  %v4087 = vpop.permute.xlu0 %4086
  %4088 = vrot.lane.b32.xlu0 %v3348, 24
  %v4089 = vpop.permute.xlu0 %4088
  %4090 = vrot.lane.b32.xlu0 %v3350, 24
  %v4091 = vpop.permute.xlu0 %4090
  %4092 = vrot.lane.b32.xlu0 %v3352, 24
  %v4093 = vpop.permute.xlu0 %4092
  %4094 = vrot.lane.b32.xlu0 %v3354, 24
  %v4095 = vpop.permute.xlu0 %4094
  %4096 = vrot.lane.b32.xlu0 %v3356, 24
  %v4097 = vpop.permute.xlu0 %4096
  %4098 = vrot.lane.b32.xlu0 %v3358, 24
  %v4099 = vpop.permute.xlu0 %4098
  %4100 = vrot.lane.b32.xlu0 %v3360, 24
  %v4101 = vpop.permute.xlu0 %4100
  %4102 = vrot.lane.b32.xlu0 %v3362, 24
  %v4103 = vpop.permute.xlu0 %4102
  %v4105 = vshrl.u32 %v3326, 16
  %v4107 = vshll.u32 %v3326, 16
  %v4109 = vrot.slane %v4107, 1
  %v4110 = vor.u32 %v4105, %v4109
  %v4112 = vshll.u32 %v3327, 16
  %v4114 = vrot.slane %v4112, 1
  %v4115 = vsel %vm442, %v4110, %v4114
  %v4117 = vshrl.u32 %v3362, 16
  %v4119 = vshll.u32 %v3362, 16
  %v4121 = vrot.slane %v4119, 1
  %v4122 = vor.u32 %v4117, %v4121
  %v4124 = vshll.u32 %v3363, 16
  %v4126 = vrot.slane %v4124, 1
  %v4127 = vsel %vm442, %v4122, %v4126
  %4128 = vrot.lane.b32.xlu0 %v3389, 32
  %v4129 = vpop.permute.xlu0 %4128
  %4130 = vrot.lane.b32.xlu0 %v3401, 32
  %v4131 = vpop.permute.xlu0 %4130
  %4132 = vrot.lane.b32.xlu0 %v3413, 32
  %v4133 = vpop.permute.xlu0 %4132
  %4134 = vrot.lane.b32.xlu0 %v3425, 32
  %v4135 = vpop.permute.xlu0 %4134
  %4136 = vrot.lane.b32.xlu0 %v3437, 32
  %v4137 = vpop.permute.xlu0 %4136
  %4138 = vrot.lane.b32.xlu0 %v3449, 32
  %v4139 = vpop.permute.xlu0 %4138
  %4140 = vrot.lane.b32.xlu0 %v3461, 32
  %v4141 = vpop.permute.xlu0 %4140
  %4142 = vrot.lane.b32.xlu0 %v3473, 32
  %v4143 = vpop.permute.xlu0 %4142
  %4144 = vrot.lane.b32.xlu0 %v3485, 32
  %v4145 = vpop.permute.xlu0 %4144
  %4146 = vrot.lane.b32.xlu0 %v3497, 32
  %v4147 = vpop.permute.xlu0 %4146
  %4148 = vrot.lane.b32.xlu0 %v3509, 32
  %v4149 = vpop.permute.xlu0 %4148
  %4150 = vrot.lane.b32.xlu0 %v3521, 32
  %v4151 = vpop.permute.xlu0 %4150
  %4152 = vrot.lane.b32.xlu0 %v3533, 32
  %v4153 = vpop.permute.xlu0 %4152
  %4154 = vrot.lane.b32.xlu0 %v3545, 32
  %v4155 = vpop.permute.xlu0 %4154
  %4156 = vrot.lane.b32.xlu0 %v3557, 32
  %v4157 = vpop.permute.xlu0 %4156
  %4158 = vrot.lane.b32.xlu0 %v4115, 32
  %v4159 = vpop.permute.xlu0 %4158
  %4160 = vrot.lane.b32.xlu0 %v3581, 32
  %v4161 = vpop.permute.xlu0 %4160
  %4162 = vrot.lane.b32.xlu0 %v3593, 32
  %v4163 = vpop.permute.xlu0 %4162
  %4164 = vrot.lane.b32.xlu0 %v3605, 32
  %v4165 = vpop.permute.xlu0 %4164
  %4166 = vrot.lane.b32.xlu0 %v3617, 32
  %v4167 = vpop.permute.xlu0 %4166
  %4168 = vrot.lane.b32.xlu0 %v3629, 32
  %v4169 = vpop.permute.xlu0 %4168
  %4170 = vrot.lane.b32.xlu0 %v3641, 32
  %v4171 = vpop.permute.xlu0 %4170
  %4172 = vrot.lane.b32.xlu0 %v3653, 32
  %v4173 = vpop.permute.xlu0 %4172
  %4174 = vrot.lane.b32.xlu0 %v3665, 32
  %v4175 = vpop.permute.xlu0 %4174
  %4176 = vrot.lane.b32.xlu0 %v3677, 32
  %v4177 = vpop.permute.xlu0 %4176
  %4178 = vrot.lane.b32.xlu0 %v3689, 32
  %v4179 = vpop.permute.xlu0 %4178
  %4180 = vrot.lane.b32.xlu0 %v3701, 32
  %v4181 = vpop.permute.xlu0 %4180
  %4182 = vrot.lane.b32.xlu0 %v3713, 32
  %v4183 = vpop.permute.xlu0 %4182
  %4184 = vrot.lane.b32.xlu0 %v3725, 32
  %v4185 = vpop.permute.xlu0 %4184
  %4186 = vrot.lane.b32.xlu0 %v3737, 32
  %v4187 = vpop.permute.xlu0 %4186
  %4188 = vrot.lane.b32.xlu0 %v3749, 32
  %v4189 = vpop.permute.xlu0 %4188
  %4190 = vrot.lane.b32.xlu0 %v4127, 32
  %v4191 = vpop.permute.xlu0 %4190
  %v4194 = vrot.slane %v3326, 1
  %v4195 = vrot.slane %v3327, 1
  %v4196 = vsel %vm955, %v4194, %v4195
  %v4197 = vrot.slane %v3362, 1
  %v4198 = vrot.slane %v3363, 1
  %v4199 = vsel %vm955, %v4197, %v4198
  %4200 = vrot.lane.b32.xlu0 %v3883, 40
  %v4201 = vpop.permute.xlu0 %4200
  %4202 = vrot.lane.b32.xlu0 %v3886, 40
  %v4203 = vpop.permute.xlu0 %4202
  %4204 = vrot.lane.b32.xlu0 %v3889, 40
  %v4205 = vpop.permute.xlu0 %4204
  %4206 = vrot.lane.b32.xlu0 %v3892, 40
  %v4207 = vpop.permute.xlu0 %4206
  %4208 = vrot.lane.b32.xlu0 %v3895, 40
  %v4209 = vpop.permute.xlu0 %4208
  %4210 = vrot.lane.b32.xlu0 %v3898, 40
  %v4211 = vpop.permute.xlu0 %4210
  %4212 = vrot.lane.b32.xlu0 %v3901, 40
  %v4213 = vpop.permute.xlu0 %4212
  %4214 = vrot.lane.b32.xlu0 %v3904, 40
  %v4215 = vpop.permute.xlu0 %4214
  %4216 = vrot.lane.b32.xlu0 %v3907, 40
  %v4217 = vpop.permute.xlu0 %4216
  %4218 = vrot.lane.b32.xlu0 %v3910, 40
  %v4219 = vpop.permute.xlu0 %4218
  %4220 = vrot.lane.b32.xlu0 %v3913, 40
  %v4221 = vpop.permute.xlu0 %4220
  %4222 = vrot.lane.b32.xlu0 %v3916, 40
  %v4223 = vpop.permute.xlu0 %4222
  %4224 = vrot.lane.b32.xlu0 %v3919, 40
  %v4225 = vpop.permute.xlu0 %4224
  %4226 = vrot.lane.b32.xlu0 %v3922, 40
  %v4227 = vpop.permute.xlu0 %4226
  %4228 = vrot.lane.b32.xlu0 %v3925, 40
  %v4229 = vpop.permute.xlu0 %4228
  %4230 = vrot.lane.b32.xlu0 %v4196, 40
  %v4231 = vpop.permute.xlu0 %4230
  %4232 = vrot.lane.b32.xlu0 %v3931, 40
  %v4233 = vpop.permute.xlu0 %4232
  %4234 = vrot.lane.b32.xlu0 %v3934, 40
  %v4235 = vpop.permute.xlu0 %4234
  %4236 = vrot.lane.b32.xlu0 %v3937, 40
  %v4237 = vpop.permute.xlu0 %4236
  %4238 = vrot.lane.b32.xlu0 %v3940, 40
  %v4239 = vpop.permute.xlu0 %4238
  %4240 = vrot.lane.b32.xlu0 %v3943, 40
  %v4241 = vpop.permute.xlu0 %4240
  %4242 = vrot.lane.b32.xlu0 %v3946, 40
  %v4243 = vpop.permute.xlu0 %4242
  %4244 = vrot.lane.b32.xlu0 %v3949, 40
  %v4245 = vpop.permute.xlu0 %4244
  %4246 = vrot.lane.b32.xlu0 %v3952, 40
  %v4247 = vpop.permute.xlu0 %4246
  %4248 = vrot.lane.b32.xlu0 %v3955, 40
  %v4249 = vpop.permute.xlu0 %4248
  %4250 = vrot.lane.b32.xlu0 %v3958, 40
  %v4251 = vpop.permute.xlu0 %4250
  %4252 = vrot.lane.b32.xlu0 %v3961, 40
  %v4253 = vpop.permute.xlu0 %4252
  %4254 = vrot.lane.b32.xlu0 %v3964, 40
  %v4255 = vpop.permute.xlu0 %4254
  %4256 = vrot.lane.b32.xlu0 %v3967, 40
  %v4257 = vpop.permute.xlu0 %4256
  %4258 = vrot.lane.b32.xlu0 %v3970, 40
  %v4259 = vpop.permute.xlu0 %4258
  %4260 = vrot.lane.b32.xlu0 %v3973, 40
  %v4261 = vpop.permute.xlu0 %4260
  %4262 = vrot.lane.b32.xlu0 %v4199, 40
  %v4263 = vpop.permute.xlu0 %4262
  %4266 = vrot.lane.b32.xlu0 %v3298, 48
  %v4267 = vpop.permute.xlu0 %4266
  %4268 = vrot.lane.b32.xlu0 %v3300, 48
  %v4269 = vpop.permute.xlu0 %4268
  %4270 = vrot.lane.b32.xlu0 %v3302, 48
  %v4271 = vpop.permute.xlu0 %4270
  %4272 = vrot.lane.b32.xlu0 %v3304, 48
  %v4273 = vpop.permute.xlu0 %4272
  %4274 = vrot.lane.b32.xlu0 %v3306, 48
  %v4275 = vpop.permute.xlu0 %4274
  %4276 = vrot.lane.b32.xlu0 %v3308, 48
  %v4277 = vpop.permute.xlu0 %4276
  %4278 = vrot.lane.b32.xlu0 %v3310, 48
  %v4279 = vpop.permute.xlu0 %4278
  %4280 = vrot.lane.b32.xlu0 %v3312, 48
  %v4281 = vpop.permute.xlu0 %4280
  %4282 = vrot.lane.b32.xlu0 %v3314, 48
  %v4283 = vpop.permute.xlu0 %4282
  %4284 = vrot.lane.b32.xlu0 %v3316, 48
  %v4285 = vpop.permute.xlu0 %4284
  %4286 = vrot.lane.b32.xlu0 %v3318, 48
  %v4287 = vpop.permute.xlu0 %4286
  %4288 = vrot.lane.b32.xlu0 %v3320, 48
  %v4289 = vpop.permute.xlu0 %4288
  %4290 = vrot.lane.b32.xlu0 %v3322, 48
  %v4291 = vpop.permute.xlu0 %4290
  %4292 = vrot.lane.b32.xlu0 %v3324, 48
  %v4293 = vpop.permute.xlu0 %4292
  %4294 = vrot.lane.b32.xlu0 %v3326, 48
  %v4295 = vpop.permute.xlu0 %4294
  %4296 = vrot.lane.b32.xlu0 %v3328, 48
  %v4297 = vpop.permute.xlu0 %4296
  %4298 = vrot.lane.b32.xlu0 %v3334, 48
  %v4299 = vpop.permute.xlu0 %4298
  %4300 = vrot.lane.b32.xlu0 %v3336, 48
  %v4301 = vpop.permute.xlu0 %4300
  %4302 = vrot.lane.b32.xlu0 %v3338, 48
  %v4303 = vpop.permute.xlu0 %4302
  %4304 = vrot.lane.b32.xlu0 %v3340, 48
  %v4305 = vpop.permute.xlu0 %4304
  %4306 = vrot.lane.b32.xlu0 %v3342, 48
  %v4307 = vpop.permute.xlu0 %4306
  %4308 = vrot.lane.b32.xlu0 %v3344, 48
  %v4309 = vpop.permute.xlu0 %4308
  %4310 = vrot.lane.b32.xlu0 %v3346, 48
  %v4311 = vpop.permute.xlu0 %4310
  %4312 = vrot.lane.b32.xlu0 %v3348, 48
  %v4313 = vpop.permute.xlu0 %4312
  %4314 = vrot.lane.b32.xlu0 %v3350, 48
  %v4315 = vpop.permute.xlu0 %4314
  %4316 = vrot.lane.b32.xlu0 %v3352, 48
  %v4317 = vpop.permute.xlu0 %4316
  %4318 = vrot.lane.b32.xlu0 %v3354, 48
  %v4319 = vpop.permute.xlu0 %4318
  %4320 = vrot.lane.b32.xlu0 %v3356, 48
  %v4321 = vpop.permute.xlu0 %4320
  %4322 = vrot.lane.b32.xlu0 %v3358, 48
  %v4323 = vpop.permute.xlu0 %4322
  %4324 = vrot.lane.b32.xlu0 %v3360, 48
  %v4325 = vpop.permute.xlu0 %4324
  %4326 = vrot.lane.b32.xlu0 %v3362, 48
  %v4327 = vpop.permute.xlu0 %4326
  %4328 = vrot.lane.b32.xlu0 %v3364, 48
  %v4329 = vpop.permute.xlu0 %4328
  %v4331 = vshrl.u32 %v3328, 16
  %v4333 = vshll.u32 %v3328, 16
  %v4335 = vrot.slane %v4333, 1
  %v4336 = vor.u32 %v4331, %v4335
  %v4338 = vshll.u32 %v3329, 16
  %v4340 = vrot.slane %v4338, 1
  %v4341 = vsel %vm442, %v4336, %v4340
  %v4343 = vshrl.u32 %v3364, 16
  %v4345 = vshll.u32 %v3364, 16
  %v4347 = vrot.slane %v4345, 1
  %v4348 = vor.u32 %v4343, %v4347
  %v4350 = vshll.u32 %v3365, 16
  %v4352 = vrot.slane %v4350, 1
  %v4353 = vsel %vm442, %v4348, %v4352
  %4354 = vrot.lane.b32.xlu0 %v3401, 56
  %v4355 = vpop.permute.xlu0 %4354
  %4356 = vrot.lane.b32.xlu0 %v3413, 56
  %v4357 = vpop.permute.xlu0 %4356
  %4358 = vrot.lane.b32.xlu0 %v3425, 56
  %v4359 = vpop.permute.xlu0 %4358
  %4360 = vrot.lane.b32.xlu0 %v3437, 56
  %v4361 = vpop.permute.xlu0 %4360
  %4362 = vrot.lane.b32.xlu0 %v3449, 56
  %v4363 = vpop.permute.xlu0 %4362
  %4364 = vrot.lane.b32.xlu0 %v3461, 56
  %v4365 = vpop.permute.xlu0 %4364
  %4366 = vrot.lane.b32.xlu0 %v3473, 56
  %v4367 = vpop.permute.xlu0 %4366
  %4368 = vrot.lane.b32.xlu0 %v3485, 56
  %v4369 = vpop.permute.xlu0 %4368
  %4370 = vrot.lane.b32.xlu0 %v3497, 56
  %v4371 = vpop.permute.xlu0 %4370
  %4372 = vrot.lane.b32.xlu0 %v3509, 56
  %v4373 = vpop.permute.xlu0 %4372
  %4374 = vrot.lane.b32.xlu0 %v3521, 56
  %v4375 = vpop.permute.xlu0 %4374
  %4376 = vrot.lane.b32.xlu0 %v3533, 56
  %v4377 = vpop.permute.xlu0 %4376
  %4378 = vrot.lane.b32.xlu0 %v3545, 56
  %v4379 = vpop.permute.xlu0 %4378
  %4380 = vrot.lane.b32.xlu0 %v3557, 56
  %v4381 = vpop.permute.xlu0 %4380
  %4382 = vrot.lane.b32.xlu0 %v4115, 56
  %v4383 = vpop.permute.xlu0 %4382
  %4384 = vrot.lane.b32.xlu0 %v4341, 56
  %v4385 = vpop.permute.xlu0 %4384
  %4386 = vrot.lane.b32.xlu0 %v3593, 56
  %v4387 = vpop.permute.xlu0 %4386
  %4388 = vrot.lane.b32.xlu0 %v3605, 56
  %v4389 = vpop.permute.xlu0 %4388
  %4390 = vrot.lane.b32.xlu0 %v3617, 56
  %v4391 = vpop.permute.xlu0 %4390
  %4392 = vrot.lane.b32.xlu0 %v3629, 56
  %v4393 = vpop.permute.xlu0 %4392
  %4394 = vrot.lane.b32.xlu0 %v3641, 56
  %v4395 = vpop.permute.xlu0 %4394
  %4396 = vrot.lane.b32.xlu0 %v3653, 56
  %v4397 = vpop.permute.xlu0 %4396
  %4398 = vrot.lane.b32.xlu0 %v3665, 56
  %v4399 = vpop.permute.xlu0 %4398
  %4400 = vrot.lane.b32.xlu0 %v3677, 56
  %v4401 = vpop.permute.xlu0 %4400
  %4402 = vrot.lane.b32.xlu0 %v3689, 56
  %v4403 = vpop.permute.xlu0 %4402
  %4404 = vrot.lane.b32.xlu0 %v3701, 56
  %v4405 = vpop.permute.xlu0 %4404
  %4406 = vrot.lane.b32.xlu0 %v3713, 56
  %v4407 = vpop.permute.xlu0 %4406
  %4408 = vrot.lane.b32.xlu0 %v3725, 56
  %v4409 = vpop.permute.xlu0 %4408
  %4410 = vrot.lane.b32.xlu0 %v3737, 56
  %v4411 = vpop.permute.xlu0 %4410
  %4412 = vrot.lane.b32.xlu0 %v3749, 56
  %v4413 = vpop.permute.xlu0 %4412
  %4414 = vrot.lane.b32.xlu0 %v4127, 56
  %v4415 = vpop.permute.xlu0 %4414
  %4416 = vrot.lane.b32.xlu0 %v4353, 56
  %v4417 = vpop.permute.xlu0 %4416
  %v4420 = vrot.slane %v3328, 1
  %v4421 = vrot.slane %v3329, 1
  %v4422 = vsel %vm955, %v4420, %v4421
  %v4423 = vrot.slane %v3364, 1
  %v4424 = vrot.slane %v3365, 1
  %v4425 = vsel %vm955, %v4423, %v4424
  %4426 = vrot.lane.b32.xlu0 %v3886, 64
  %v4427 = vpop.permute.xlu0 %4426
  %4428 = vrot.lane.b32.xlu0 %v3889, 64
  %v4429 = vpop.permute.xlu0 %4428
  %4430 = vrot.lane.b32.xlu0 %v3892, 64
  %v4431 = vpop.permute.xlu0 %4430
  %4432 = vrot.lane.b32.xlu0 %v3895, 64
  %v4433 = vpop.permute.xlu0 %4432
  %4434 = vrot.lane.b32.xlu0 %v3898, 64
  %v4435 = vpop.permute.xlu0 %4434
  %4436 = vrot.lane.b32.xlu0 %v3901, 64
  %v4437 = vpop.permute.xlu0 %4436
  %4438 = vrot.lane.b32.xlu0 %v3904, 64
  %v4439 = vpop.permute.xlu0 %4438
  %4440 = vrot.lane.b32.xlu0 %v3907, 64
  %v4441 = vpop.permute.xlu0 %4440
  %4442 = vrot.lane.b32.xlu0 %v3910, 64
  %v4443 = vpop.permute.xlu0 %4442
  %4444 = vrot.lane.b32.xlu0 %v3913, 64
  %v4445 = vpop.permute.xlu0 %4444
  %4446 = vrot.lane.b32.xlu0 %v3916, 64
  %v4447 = vpop.permute.xlu0 %4446
  %4448 = vrot.lane.b32.xlu0 %v3919, 64
  %v4449 = vpop.permute.xlu0 %4448
  %4450 = vrot.lane.b32.xlu0 %v3922, 64
  %v4451 = vpop.permute.xlu0 %4450
  %4452 = vrot.lane.b32.xlu0 %v3925, 64
  %v4453 = vpop.permute.xlu0 %4452
  %4454 = vrot.lane.b32.xlu0 %v4196, 64
  %v4455 = vpop.permute.xlu0 %4454
  %4456 = vrot.lane.b32.xlu0 %v4422, 64
  %v4457 = vpop.permute.xlu0 %4456
  %4458 = vrot.lane.b32.xlu0 %v3934, 64
  %v4459 = vpop.permute.xlu0 %4458
  %4460 = vrot.lane.b32.xlu0 %v3937, 64
  %v4461 = vpop.permute.xlu0 %4460
  %4462 = vrot.lane.b32.xlu0 %v3940, 64
  %v4463 = vpop.permute.xlu0 %4462
  %4464 = vrot.lane.b32.xlu0 %v3943, 64
  %v4465 = vpop.permute.xlu0 %4464
  %4466 = vrot.lane.b32.xlu0 %v3946, 64
  %v4467 = vpop.permute.xlu0 %4466
  %4468 = vrot.lane.b32.xlu0 %v3949, 64
  %v4469 = vpop.permute.xlu0 %4468
  %4470 = vrot.lane.b32.xlu0 %v3952, 64
  %v4471 = vpop.permute.xlu0 %4470
  %4472 = vrot.lane.b32.xlu0 %v3955, 64
  %v4473 = vpop.permute.xlu0 %4472
  %4474 = vrot.lane.b32.xlu0 %v3958, 64
  %v4475 = vpop.permute.xlu0 %4474
  %4476 = vrot.lane.b32.xlu0 %v3961, 64
  %v4477 = vpop.permute.xlu0 %4476
  %4478 = vrot.lane.b32.xlu0 %v3964, 64
  %v4479 = vpop.permute.xlu0 %4478
  %4480 = vrot.lane.b32.xlu0 %v3967, 64
  %v4481 = vpop.permute.xlu0 %4480
  %4482 = vrot.lane.b32.xlu0 %v3970, 64
  %v4483 = vpop.permute.xlu0 %4482
  %4484 = vrot.lane.b32.xlu0 %v3973, 64
  %v4485 = vpop.permute.xlu0 %4484
  %4486 = vrot.lane.b32.xlu0 %v4199, 64
  %v4487 = vpop.permute.xlu0 %4486
  %4488 = vrot.lane.b32.xlu0 %v4425, 64
  %v4489 = vpop.permute.xlu0 %4488
  %v4491 = vsel %vm1632, %v3294, %v3751
  %v4493 = vsel %vm1632, %v3296, %v3753
  %v4495 = vsel %vm1632, %v3298, %v3755
  %v4497 = vsel %vm1632, %v3300, %v3757
  %v4499 = vsel %vm1632, %v3302, %v3759
  %v4501 = vsel %vm1632, %v3304, %v3761
  %v4503 = vsel %vm1632, %v3306, %v3763
  %v4505 = vsel %vm1632, %v3308, %v3765
  %v4507 = vsel %vm1632, %v3310, %v3767
  %v4509 = vsel %vm1632, %v3312, %v3769
  %v4511 = vsel %vm1632, %v3314, %v3771
  %v4513 = vsel %vm1632, %v3316, %v3773
  %v4515 = vsel %vm1632, %v3318, %v3775
  %v4517 = vsel %vm1632, %v3320, %v3777
  %v4519 = vsel %vm1632, %v3322, %v3779
  %v4521 = vsel %vm1632, %v3324, %v3781
  %v4523 = vsel %vm1632, %v3330, %v3783
  %v4525 = vsel %vm1632, %v3332, %v3785
  %v4527 = vsel %vm1632, %v3334, %v3787
  %v4529 = vsel %vm1632, %v3336, %v3789
  %v4531 = vsel %vm1632, %v3338, %v3791
  %v4533 = vsel %vm1632, %v3340, %v3793
  %v4535 = vsel %vm1632, %v3342, %v3795
  %v4537 = vsel %vm1632, %v3344, %v3797
  %v4539 = vsel %vm1632, %v3346, %v3799
  %v4541 = vsel %vm1632, %v3348, %v3801
  %v4543 = vsel %vm1632, %v3350, %v3803
  %v4545 = vsel %vm1632, %v3352, %v3805
  %v4547 = vsel %vm1632, %v3354, %v3807
  %v4549 = vsel %vm1632, %v3356, %v3809
  %v4551 = vsel %vm1632, %v3358, %v3811
  %v4553 = vsel %vm1632, %v3360, %v3813
  %v4555 = vsel %vm1762, %v4491, %v3975
  %v4557 = vsel %vm1762, %v4493, %v3977
  %v4559 = vsel %vm1762, %v4495, %v3979
  %v4561 = vsel %vm1762, %v4497, %v3981
  %v4563 = vsel %vm1762, %v4499, %v3983
  %v4565 = vsel %vm1762, %v4501, %v3985
  %v4567 = vsel %vm1762, %v4503, %v3987
  %v4569 = vsel %vm1762, %v4505, %v3989
  %v4571 = vsel %vm1762, %v4507, %v3991
  %v4573 = vsel %vm1762, %v4509, %v3993
  %v4575 = vsel %vm1762, %v4511, %v3995
  %v4577 = vsel %vm1762, %v4513, %v3997
  %v4579 = vsel %vm1762, %v4515, %v3999
  %v4581 = vsel %vm1762, %v4517, %v4001
  %v4583 = vsel %vm1762, %v4519, %v4003
  %v4585 = vsel %vm1762, %v4521, %v4005
  %v4587 = vsel %vm1762, %v4523, %v4007
  %v4589 = vsel %vm1762, %v4525, %v4009
  %v4591 = vsel %vm1762, %v4527, %v4011
  %v4593 = vsel %vm1762, %v4529, %v4013
  %v4595 = vsel %vm1762, %v4531, %v4015
  %v4597 = vsel %vm1762, %v4533, %v4017
  %v4599 = vsel %vm1762, %v4535, %v4019
  %v4601 = vsel %vm1762, %v4537, %v4021
  %v4603 = vsel %vm1762, %v4539, %v4023
  %v4605 = vsel %vm1762, %v4541, %v4025
  %v4607 = vsel %vm1762, %v4543, %v4027
  %v4609 = vsel %vm1762, %v4545, %v4029
  %v4611 = vsel %vm1762, %v4547, %v4031
  %v4613 = vsel %vm1762, %v4549, %v4033
  %v4615 = vsel %vm1762, %v4551, %v4035
  %v4617 = vsel %vm1762, %v4553, %v4037
  %v4619 = vsel %vm1892, %v4555, %v4041
  %v4621 = vsel %vm1892, %v4557, %v4043
  %v4623 = vsel %vm1892, %v4559, %v4045
  %v4625 = vsel %vm1892, %v4561, %v4047
  %v4627 = vsel %vm1892, %v4563, %v4049
  %v4629 = vsel %vm1892, %v4565, %v4051
  %v4631 = vsel %vm1892, %v4567, %v4053
  %v4633 = vsel %vm1892, %v4569, %v4055
  %v4635 = vsel %vm1892, %v4571, %v4057
  %v4637 = vsel %vm1892, %v4573, %v4059
  %v4639 = vsel %vm1892, %v4575, %v4061
  %v4641 = vsel %vm1892, %v4577, %v4063
  %v4643 = vsel %vm1892, %v4579, %v4065
  %v4645 = vsel %vm1892, %v4581, %v4067
  %v4647 = vsel %vm1892, %v4583, %v4069
  %v4649 = vsel %vm1892, %v4585, %v4071
  %v4651 = vsel %vm1892, %v4587, %v4073
  %v4653 = vsel %vm1892, %v4589, %v4075
  %v4655 = vsel %vm1892, %v4591, %v4077
  %v4657 = vsel %vm1892, %v4593, %v4079
  %v4659 = vsel %vm1892, %v4595, %v4081
  %v4661 = vsel %vm1892, %v4597, %v4083
  %v4663 = vsel %vm1892, %v4599, %v4085
  %v4665 = vsel %vm1892, %v4601, %v4087
  %v4667 = vsel %vm1892, %v4603, %v4089
  %v4669 = vsel %vm1892, %v4605, %v4091
  %v4671 = vsel %vm1892, %v4607, %v4093
  %v4673 = vsel %vm1892, %v4609, %v4095
  %v4675 = vsel %vm1892, %v4611, %v4097
  %v4677 = vsel %vm1892, %v4613, %v4099
  %v4679 = vsel %vm1892, %v4615, %v4101
  %v4681 = vsel %vm1892, %v4617, %v4103
  %v4683 = vsel %vm2022, %v4619, %v4129
  %v4685 = vsel %vm2022, %v4621, %v4131
  %v4687 = vsel %vm2022, %v4623, %v4133
  %v4689 = vsel %vm2022, %v4625, %v4135
  %v4691 = vsel %vm2022, %v4627, %v4137
  %v4693 = vsel %vm2022, %v4629, %v4139
  %v4695 = vsel %vm2022, %v4631, %v4141
  %v4697 = vsel %vm2022, %v4633, %v4143
  %v4699 = vsel %vm2022, %v4635, %v4145
  %v4701 = vsel %vm2022, %v4637, %v4147
  %v4703 = vsel %vm2022, %v4639, %v4149
  %v4705 = vsel %vm2022, %v4641, %v4151
  %v4707 = vsel %vm2022, %v4643, %v4153
  %v4709 = vsel %vm2022, %v4645, %v4155
  %v4711 = vsel %vm2022, %v4647, %v4157
  %v4713 = vsel %vm2022, %v4649, %v4159
  %v4715 = vsel %vm2022, %v4651, %v4161
  %v4717 = vsel %vm2022, %v4653, %v4163
  %v4719 = vsel %vm2022, %v4655, %v4165
  %v4721 = vsel %vm2022, %v4657, %v4167
  %v4723 = vsel %vm2022, %v4659, %v4169
  %v4725 = vsel %vm2022, %v4661, %v4171
  %v4727 = vsel %vm2022, %v4663, %v4173
  %v4729 = vsel %vm2022, %v4665, %v4175
  %v4731 = vsel %vm2022, %v4667, %v4177
  %v4733 = vsel %vm2022, %v4669, %v4179
  %v4735 = vsel %vm2022, %v4671, %v4181
  %v4737 = vsel %vm2022, %v4673, %v4183
  %v4739 = vsel %vm2022, %v4675, %v4185
  %v4741 = vsel %vm2022, %v4677, %v4187
  %v4743 = vsel %vm2022, %v4679, %v4189
  %v4745 = vsel %vm2022, %v4681, %v4191
  %vm4746 = vcmask 326656
  %v4748 = vsel %vm4746, %v4683, %v4201
  %v4750 = vsel %vm4746, %v4685, %v4203
  %v4752 = vsel %vm4746, %v4687, %v4205
  %v4754 = vsel %vm4746, %v4689, %v4207
  %v4756 = vsel %vm4746, %v4691, %v4209
  %v4758 = vsel %vm4746, %v4693, %v4211
  %v4760 = vsel %vm4746, %v4695, %v4213
  %v4762 = vsel %vm4746, %v4697, %v4215
  %v4764 = vsel %vm4746, %v4699, %v4217
  %v4766 = vsel %vm4746, %v4701, %v4219
  %v4768 = vsel %vm4746, %v4703, %v4221
  %v4770 = vsel %vm4746, %v4705, %v4223
  %v4772 = vsel %vm4746, %v4707, %v4225
  %v4774 = vsel %vm4746, %v4709, %v4227
  %v4776 = vsel %vm4746, %v4711, %v4229
  %v4778 = vsel %vm4746, %v4713, %v4231
  %v4780 = vsel %vm4746, %v4715, %v4233
  %v4782 = vsel %vm4746, %v4717, %v4235
  %v4784 = vsel %vm4746, %v4719, %v4237
  %v4786 = vsel %vm4746, %v4721, %v4239
  %v4788 = vsel %vm4746, %v4723, %v4241
  %v4790 = vsel %vm4746, %v4725, %v4243
  %v4792 = vsel %vm4746, %v4727, %v4245
  %v4794 = vsel %vm4746, %v4729, %v4247
  %v4796 = vsel %vm4746, %v4731, %v4249
  %v4798 = vsel %vm4746, %v4733, %v4251
  %v4800 = vsel %vm4746, %v4735, %v4253
  %v4802 = vsel %vm4746, %v4737, %v4255
  %v4804 = vsel %vm4746, %v4739, %v4257
  %v4806 = vsel %vm4746, %v4741, %v4259
  %v4808 = vsel %vm4746, %v4743, %v4261
  %v4810 = vsel %vm4746, %v4745, %v4263
  %vm4811 = vcmask 392192
  %v4813 = vsel %vm4811, %v4748, %v4267
  %v4815 = vsel %vm4811, %v4750, %v4269
  %v4817 = vsel %vm4811, %v4752, %v4271
  %v4819 = vsel %vm4811, %v4754, %v4273
  %v4821 = vsel %vm4811, %v4756, %v4275
  %v4823 = vsel %vm4811, %v4758, %v4277
  %v4825 = vsel %vm4811, %v4760, %v4279
  %v4827 = vsel %vm4811, %v4762, %v4281
  %v4829 = vsel %vm4811, %v4764, %v4283
  %v4831 = vsel %vm4811, %v4766, %v4285
  %v4833 = vsel %vm4811, %v4768, %v4287
  %v4835 = vsel %vm4811, %v4770, %v4289
  %v4837 = vsel %vm4811, %v4772, %v4291
  %v4839 = vsel %vm4811, %v4774, %v4293
  %v4841 = vsel %vm4811, %v4776, %v4295
  %v4843 = vsel %vm4811, %v4778, %v4297
  %v4845 = vsel %vm4811, %v4780, %v4299
  %v4847 = vsel %vm4811, %v4782, %v4301
  %v4849 = vsel %vm4811, %v4784, %v4303
  %v4851 = vsel %vm4811, %v4786, %v4305
  %v4853 = vsel %vm4811, %v4788, %v4307
  %v4855 = vsel %vm4811, %v4790, %v4309
  %v4857 = vsel %vm4811, %v4792, %v4311
  %v4859 = vsel %vm4811, %v4794, %v4313
  %v4861 = vsel %vm4811, %v4796, %v4315
  %v4863 = vsel %vm4811, %v4798, %v4317
  %v4865 = vsel %vm4811, %v4800, %v4319
  %v4867 = vsel %vm4811, %v4802, %v4321
  %v4869 = vsel %vm4811, %v4804, %v4323
  %v4871 = vsel %vm4811, %v4806, %v4325
  %v4873 = vsel %vm4811, %v4808, %v4327
  %v4875 = vsel %vm4811, %v4810, %v4329
  %vm4876 = vcmask 457728
  %v4878 = vsel %vm4876, %v4813, %v4355
  %v4880 = vsel %vm4876, %v4815, %v4357
  %v4882 = vsel %vm4876, %v4817, %v4359
  %v4884 = vsel %vm4876, %v4819, %v4361
  %v4886 = vsel %vm4876, %v4821, %v4363
  %v4888 = vsel %vm4876, %v4823, %v4365
  %v4890 = vsel %vm4876, %v4825, %v4367
  %v4892 = vsel %vm4876, %v4827, %v4369
  %v4894 = vsel %vm4876, %v4829, %v4371
  %v4896 = vsel %vm4876, %v4831, %v4373
  %v4898 = vsel %vm4876, %v4833, %v4375
  %v4900 = vsel %vm4876, %v4835, %v4377
  %v4902 = vsel %vm4876, %v4837, %v4379
  %v4904 = vsel %vm4876, %v4839, %v4381
  %v4906 = vsel %vm4876, %v4841, %v4383
  %v4908 = vsel %vm4876, %v4843, %v4385
  %v4910 = vsel %vm4876, %v4845, %v4387
  %v4912 = vsel %vm4876, %v4847, %v4389
  %v4914 = vsel %vm4876, %v4849, %v4391
  %v4916 = vsel %vm4876, %v4851, %v4393
  %v4918 = vsel %vm4876, %v4853, %v4395
  %v4920 = vsel %vm4876, %v4855, %v4397
  %v4922 = vsel %vm4876, %v4857, %v4399
  %v4924 = vsel %vm4876, %v4859, %v4401
  %v4926 = vsel %vm4876, %v4861, %v4403
  %v4928 = vsel %vm4876, %v4863, %v4405
  %v4930 = vsel %vm4876, %v4865, %v4407
  %v4932 = vsel %vm4876, %v4867, %v4409
  %v4934 = vsel %vm4876, %v4869, %v4411
  %v4936 = vsel %vm4876, %v4871, %v4413
  %v4938 = vsel %vm4876, %v4873, %v4415
  %v4940 = vsel %vm4876, %v4875, %v4417
  %vm4941 = vcmask 523264
  %v4943 = vsel %vm4941, %v4878, %v4427
  %v4945 = vsel %vm4941, %v4880, %v4429
  %v4947 = vsel %vm4941, %v4882, %v4431
  %v4949 = vsel %vm4941, %v4884, %v4433
  %v4951 = vsel %vm4941, %v4886, %v4435
  %v4953 = vsel %vm4941, %v4888, %v4437
  %v4955 = vsel %vm4941, %v4890, %v4439
  %v4957 = vsel %vm4941, %v4892, %v4441
  %v4959 = vsel %vm4941, %v4894, %v4443
  %v4961 = vsel %vm4941, %v4896, %v4445
  %v4963 = vsel %vm4941, %v4898, %v4447
  %v4965 = vsel %vm4941, %v4900, %v4449
  %v4967 = vsel %vm4941, %v4902, %v4451
  %v4969 = vsel %vm4941, %v4904, %v4453
  %v4971 = vsel %vm4941, %v4906, %v4455
  %v4973 = vsel %vm4941, %v4908, %v4457
  %v4975 = vsel %vm4941, %v4910, %v4459
  %v4977 = vsel %vm4941, %v4912, %v4461
  %v4979 = vsel %vm4941, %v4914, %v4463
  %v4981 = vsel %vm4941, %v4916, %v4465
  %v4983 = vsel %vm4941, %v4918, %v4467
  %v4985 = vsel %vm4941, %v4920, %v4469
  %v4987 = vsel %vm4941, %v4922, %v4471
  %v4989 = vsel %vm4941, %v4924, %v4473
  %v4991 = vsel %vm4941, %v4926, %v4475
  %v4993 = vsel %vm4941, %v4928, %v4477
  %v4995 = vsel %vm4941, %v4930, %v4479
  %v4997 = vsel %vm4941, %v4932, %v4481
  %v4999 = vsel %vm4941, %v4934, %v4483
  %v5001 = vsel %vm4941, %v4936, %v4485
  %v5003 = vsel %vm4941, %v4938, %v4487
  %v5005 = vsel %vm4941, %v4940, %v4489
  %v5006 = vld [vmem:[%s3] sm:$0xf]
  %v5007 = vld [vmem:[%s3 + $0x4] sm:$0xf]
  %v5008 = vld [vmem:[%s3 + $0x8] sm:$0xf]
  %v5009 = vld [vmem:[%s3 + $0xc] sm:$0xf]
  %v5010 = vld [vmem:[%s3 + $0x10] sm:$0xf]
  %v5011 = vld [vmem:[%s3 + $0x14] sm:$0xf]
  %v5012 = vld [vmem:[%s3 + $0x18] sm:$0xf]
  %v5013 = vld [vmem:[%s3 + $0x1c] sm:$0xf]
  %v5014 = vld [vmem:[%s3 + $0x20] sm:$0xf]
  %v5015 = vld [vmem:[%s4] sm:$0x1]
  %v5016 = vlaneseq
  %v5017 = vshrl.u32 %v5016, 7
  %v5018 = vsub.s32 0, %v5017
  %v5019 = vrot.slane %v5015, %v5018
  %v5029 = vunpack.c.l.b16 %v5006
  %v5030 = vunpack.c.l.b16 %v5007
  %v5031 = vunpack.c.l.b16 %v5008
  %v5032 = vunpack.c.l.b16 %v5009
  %v5033 = vunpack.c.l.b16 %v5010
  %v5034 = vunpack.c.l.b16 %v5011
  %v5035 = vunpack.c.l.b16 %v5012
  %v5036 = vunpack.c.l.b16 %v5013
  %v5037 = vunpack.c.l.b16 %v5014
  %v5038 = vpack.c.b16 %v5030, %v5029
  %v5039 = vpack.c.b16 %v5032, %v5031
  %v5040 = vpack.c.b16 %v5034, %v5033
  %v5041 = vpack.c.b16 %v5036, %v5035
  %v5042 = vpack.c.b16 %v5037, %v5037
  %vm5047 = vcmask 588800
  %v5048 = vsel %vm5047, %v4943, 0
  %v5050 = vsel %vm5047, %v4945, 0
  %v5052 = vsel %vm5047, %v4947, 0
  %v5054 = vsel %vm5047, %v4949, 0
  %v5056 = vsel %vm5047, %v4951, 0
  %v5058 = vsel %vm5047, %v4953, 0
  %v5060 = vsel %vm5047, %v4955, 0
  %v5062 = vsel %vm5047, %v4957, 0
  %v5064 = vsel %vm5047, %v4959, 0
  %v5066 = vsel %vm5047, %v4961, 0
  %v5068 = vsel %vm5047, %v4963, 0
  %v5070 = vsel %vm5047, %v4965, 0
  %v5072 = vsel %vm5047, %v4967, 0
  %v5074 = vsel %vm5047, %v4969, 0
  %v5076 = vsel %vm5047, %v4971, 0
  %v5078 = vsel %vm5047, %v4973, 0
  %v5080 = vsel %vm5047, %v4975, 0
  %v5082 = vsel %vm5047, %v4977, 0
  %v5084 = vsel %vm5047, %v4979, 0
  %v5086 = vsel %vm5047, %v4981, 0
  %v5088 = vsel %vm5047, %v4983, 0
  %v5090 = vsel %vm5047, %v4985, 0
  %v5092 = vsel %vm5047, %v4987, 0
  %v5094 = vsel %vm5047, %v4989, 0
  %v5096 = vsel %vm5047, %v4991, 0
  %v5098 = vsel %vm5047, %v4993, 0
  %v5100 = vsel %vm5047, %v4995, 0
  %v5102 = vsel %vm5047, %v4997, 0
  %v5104 = vsel %vm5047, %v4999, 0
  %v5106 = vsel %vm5047, %v5001, 0
  %v5108 = vsel %vm5047, %v5003, 0
  %v5110 = vsel %vm5047, %v5005, 0
  %vm5112 = vcmask 1043456
  %v5114 = vsel %vm5112, %v5042, 0
  %5116 = vmatprep.subr.bf16.mxu0 0
  %5117 = vmatpush1.bf16.msra.mxu0 0
  %5118 = vmatprep.subr.bf16.mxu0 0
  %5119 = vmatpush1.bf16.msra.mxu0 0
  %5120 = vmatprep.subr.bf16.mxu0 0
  %5121 = vmatpush1.bf16.msra.mxu0 0
  %5122 = vmatprep.subr.bf16.mxu0 0
  %5123 = vmatpush1.bf16.msra.mxu0 %v5114
  %5124 = vmatprep.subr.bf16.mxu0 0
  %5125 = vmatpush1.bf16.msra.mxu0 %v5041
  %5126 = vmatprep.subr.bf16.mxu0 0
  %5127 = vmatpush1.bf16.msra.mxu0 %v5040
  %5128 = vmatprep.subr.bf16.mxu0 0
  %5129 = vmatpush1.bf16.msra.mxu0 %v5039
  %5130 = vmatprep.subr.bf16.mxu0 0
  %5131 = vmatpush1.bf16.msra.mxu0 %v5038
  %5132 = vmatprep.subr.bf16.mxu0 0
  %5133 = vmatpush2.bf16.msra.mxu0 0
  %5134 = vmatprep.subr.bf16.mxu0 0
  %5135 = vmatpush2.bf16.msra.mxu0 0
  %5136 = vmatprep.subr.bf16.mxu0 0
  %5137 = vmatpush2.bf16.msra.mxu0 0
  %5138 = vmatprep.subr.bf16.mxu0 0
  %5139 = vmatpush2.bf16.msra.mxu0 0
  %5140 = vmatprep.subr.bf16.mxu0 0
  %5141 = vmatpush2.bf16.msra.mxu0 0
  %5142 = vmatprep.subr.bf16.mxu0 0
  %5143 = vmatpush2.bf16.msra.mxu0 0
  %5144 = vmatprep.subr.bf16.mxu0 0
  %5145 = vmatpush2.bf16.msra.mxu0 0
  %5146 = vmatprep.subr.bf16.mxu0 0
  %5147 = vmatpush2.bf16.msra.mxu0 0
  %5148 = vmatprep.mubr.bf16.mxu0 0
  %5149 = vmatmul.mubr.bf16.gmra.mxu0 %v5048
  %v5150 = vpop.f32.mrf.mxu0
  %v5151 = vadd.f32 %v5019, %v5150
  %v5152 = vpop.f32.mrf.mxu0
  %v5153 = vpop.f32.mrf.mxu0
  %v5154 = vadd.f32 %v5019, %v5153
  %v5155 = vpop.f32.mrf.mxu0
  %5156 = vmatprep.mubr.bf16.mxu0 0
  %5157 = vmatmul.mubr.bf16.gmra.mxu0 %v5050
  %v5158 = vpop.f32.mrf.mxu0
  %v5159 = vadd.f32 %v5019, %v5158
  %v5160 = vpop.f32.mrf.mxu0
  %v5161 = vpop.f32.mrf.mxu0
  %v5162 = vadd.f32 %v5019, %v5161
  %v5163 = vpop.f32.mrf.mxu0
  %5164 = vmatprep.mubr.bf16.mxu0 0
  %5165 = vmatmul.mubr.bf16.gmra.mxu0 %v5052
  %v5166 = vpop.f32.mrf.mxu0
  %v5167 = vadd.f32 %v5019, %v5166
  %v5168 = vpop.f32.mrf.mxu0
  %v5169 = vpop.f32.mrf.mxu0
  %v5170 = vadd.f32 %v5019, %v5169
  %v5171 = vpop.f32.mrf.mxu0
  %5172 = vmatprep.mubr.bf16.mxu0 0
  %5173 = vmatmul.mubr.bf16.gmra.mxu0 %v5054
  %v5174 = vpop.f32.mrf.mxu0
  %v5175 = vadd.f32 %v5019, %v5174
  %v5176 = vpop.f32.mrf.mxu0
  %v5177 = vpop.f32.mrf.mxu0
  %v5178 = vadd.f32 %v5019, %v5177
  %v5179 = vpop.f32.mrf.mxu0
  %5180 = vmatprep.mubr.bf16.mxu0 0
  %5181 = vmatmul.mubr.bf16.gmra.mxu0 %v5056
  %v5182 = vpop.f32.mrf.mxu0
  %v5183 = vadd.f32 %v5019, %v5182
  %v5184 = vpop.f32.mrf.mxu0
  %v5185 = vpop.f32.mrf.mxu0
  %v5186 = vadd.f32 %v5019, %v5185
  %v5187 = vpop.f32.mrf.mxu0
  %5188 = vmatprep.mubr.bf16.mxu0 0
  %5189 = vmatmul.mubr.bf16.gmra.mxu0 %v5058
  %v5190 = vpop.f32.mrf.mxu0
  %v5191 = vadd.f32 %v5019, %v5190
  %v5192 = vpop.f32.mrf.mxu0
  %v5193 = vpop.f32.mrf.mxu0
  %v5194 = vadd.f32 %v5019, %v5193
  %v5195 = vpop.f32.mrf.mxu0
  %5196 = vmatprep.mubr.bf16.mxu0 0
  %5197 = vmatmul.mubr.bf16.gmra.mxu0 %v5060
  %v5198 = vpop.f32.mrf.mxu0
  %v5199 = vadd.f32 %v5019, %v5198
  %v5200 = vpop.f32.mrf.mxu0
  %v5201 = vpop.f32.mrf.mxu0
  %v5202 = vadd.f32 %v5019, %v5201
  %v5203 = vpop.f32.mrf.mxu0
  %5204 = vmatprep.mubr.bf16.mxu0 0
  %5205 = vmatmul.mubr.bf16.gmra.mxu0 %v5062
  %v5206 = vpop.f32.mrf.mxu0
  %v5207 = vadd.f32 %v5019, %v5206
  %v5208 = vpop.f32.mrf.mxu0
  %v5209 = vpop.f32.mrf.mxu0
  %v5210 = vadd.f32 %v5019, %v5209
  %v5211 = vpop.f32.mrf.mxu0
  %5212 = vmatprep.mubr.bf16.mxu0 0
  %5213 = vmatmul.mubr.bf16.gmra.mxu0 %v5064
  %v5214 = vpop.f32.mrf.mxu0
  %v5215 = vadd.f32 %v5019, %v5214
  %v5216 = vpop.f32.mrf.mxu0
  %v5217 = vpop.f32.mrf.mxu0
  %v5218 = vadd.f32 %v5019, %v5217
  %v5219 = vpop.f32.mrf.mxu0
  %5220 = vmatprep.mubr.bf16.mxu0 0
  %5221 = vmatmul.mubr.bf16.gmra.mxu0 %v5066
  %v5222 = vpop.f32.mrf.mxu0
  %v5223 = vadd.f32 %v5019, %v5222
  %v5224 = vpop.f32.mrf.mxu0
  %v5225 = vpop.f32.mrf.mxu0
  %v5226 = vadd.f32 %v5019, %v5225
  %v5227 = vpop.f32.mrf.mxu0
  %5228 = vmatprep.mubr.bf16.mxu0 0
  %5229 = vmatmul.mubr.bf16.gmra.mxu0 %v5068
  %v5230 = vpop.f32.mrf.mxu0
  %v5231 = vadd.f32 %v5019, %v5230
  %v5232 = vpop.f32.mrf.mxu0
  %v5233 = vpop.f32.mrf.mxu0
  %v5234 = vadd.f32 %v5019, %v5233
  %v5235 = vpop.f32.mrf.mxu0
  %5236 = vmatprep.mubr.bf16.mxu0 0
  %5237 = vmatmul.mubr.bf16.gmra.mxu0 %v5070
  %v5238 = vpop.f32.mrf.mxu0
  %v5239 = vadd.f32 %v5019, %v5238
  %v5240 = vpop.f32.mrf.mxu0
  %v5241 = vpop.f32.mrf.mxu0
  %v5242 = vadd.f32 %v5019, %v5241
  %v5243 = vpop.f32.mrf.mxu0
  %5244 = vmatprep.mubr.bf16.mxu0 0
  %5245 = vmatmul.mubr.bf16.gmra.mxu0 %v5072
  %v5246 = vpop.f32.mrf.mxu0
  %v5247 = vadd.f32 %v5019, %v5246
  %v5248 = vpop.f32.mrf.mxu0
  %v5249 = vpop.f32.mrf.mxu0
  %v5250 = vadd.f32 %v5019, %v5249
  %v5251 = vpop.f32.mrf.mxu0
  %5252 = vmatprep.mubr.bf16.mxu0 0
  %5253 = vmatmul.mubr.bf16.gmra.mxu0 %v5074
  %v5254 = vpop.f32.mrf.mxu0
  %v5255 = vadd.f32 %v5019, %v5254
  %v5256 = vpop.f32.mrf.mxu0
  %v5257 = vpop.f32.mrf.mxu0
  %v5258 = vadd.f32 %v5019, %v5257
  %v5259 = vpop.f32.mrf.mxu0
  %5260 = vmatprep.mubr.bf16.mxu0 0
  %5261 = vmatmul.mubr.bf16.gmra.mxu0 %v5076
  %v5262 = vpop.f32.mrf.mxu0
  %v5263 = vadd.f32 %v5019, %v5262
  %v5264 = vpop.f32.mrf.mxu0
  %v5265 = vpop.f32.mrf.mxu0
  %v5266 = vadd.f32 %v5019, %v5265
  %v5267 = vpop.f32.mrf.mxu0
  %5268 = vmatprep.mubr.bf16.mxu0 0
  %5269 = vmatmul.mubr.bf16.gmra.mxu0 %v5078
  %v5270 = vpop.f32.mrf.mxu0
  %v5271 = vadd.f32 %v5019, %v5270
  %v5272 = vpop.f32.mrf.mxu0
  %v5273 = vpop.f32.mrf.mxu0
  %v5274 = vadd.f32 %v5019, %v5273
  %v5275 = vpop.f32.mrf.mxu0
  %5276 = vmatprep.mubr.bf16.mxu0 0
  %5277 = vmatmul.mubr.bf16.gmra.mxu0 %v5080
  %v5278 = vpop.f32.mrf.mxu0
  %v5279 = vadd.f32 %v5019, %v5278
  %v5280 = vpop.f32.mrf.mxu0
  %v5281 = vpop.f32.mrf.mxu0
  %v5282 = vadd.f32 %v5019, %v5281
  %v5283 = vpop.f32.mrf.mxu0
  %5284 = vmatprep.mubr.bf16.mxu0 0
  %5285 = vmatmul.mubr.bf16.gmra.mxu0 %v5082
  %v5286 = vpop.f32.mrf.mxu0
  %v5287 = vadd.f32 %v5019, %v5286
  %v5288 = vpop.f32.mrf.mxu0
  %v5289 = vpop.f32.mrf.mxu0
  %v5290 = vadd.f32 %v5019, %v5289
  %v5291 = vpop.f32.mrf.mxu0
  %5292 = vmatprep.mubr.bf16.mxu0 0
  %5293 = vmatmul.mubr.bf16.gmra.mxu0 %v5084
  %v5294 = vpop.f32.mrf.mxu0
  %v5295 = vadd.f32 %v5019, %v5294
  %v5296 = vpop.f32.mrf.mxu0
  %v5297 = vpop.f32.mrf.mxu0
  %v5298 = vadd.f32 %v5019, %v5297
  %v5299 = vpop.f32.mrf.mxu0
  %5300 = vmatprep.mubr.bf16.mxu0 0
  %5301 = vmatmul.mubr.bf16.gmra.mxu0 %v5086
  %v5302 = vpop.f32.mrf.mxu0
  %v5303 = vadd.f32 %v5019, %v5302
  %v5304 = vpop.f32.mrf.mxu0
  %v5305 = vpop.f32.mrf.mxu0
  %v5306 = vadd.f32 %v5019, %v5305
  %v5307 = vpop.f32.mrf.mxu0
  %5308 = vmatprep.mubr.bf16.mxu0 0
  %5309 = vmatmul.mubr.bf16.gmra.mxu0 %v5088
  %v5310 = vpop.f32.mrf.mxu0
  %v5311 = vadd.f32 %v5019, %v5310
  %v5312 = vpop.f32.mrf.mxu0
  %v5313 = vpop.f32.mrf.mxu0
  %v5314 = vadd.f32 %v5019, %v5313
  %v5315 = vpop.f32.mrf.mxu0
  %5316 = vmatprep.mubr.bf16.mxu0 0
  %5317 = vmatmul.mubr.bf16.gmra.mxu0 %v5090
  %v5318 = vpop.f32.mrf.mxu0
  %v5319 = vadd.f32 %v5019, %v5318
  %v5320 = vpop.f32.mrf.mxu0
  %v5321 = vpop.f32.mrf.mxu0
  %v5322 = vadd.f32 %v5019, %v5321
  %v5323 = vpop.f32.mrf.mxu0
  %5324 = vmatprep.mubr.bf16.mxu0 0
  %5325 = vmatmul.mubr.bf16.gmra.mxu0 %v5092
  %v5326 = vpop.f32.mrf.mxu0
  %v5327 = vadd.f32 %v5019, %v5326
  %v5328 = vpop.f32.mrf.mxu0
  %v5329 = vpop.f32.mrf.mxu0
  %v5330 = vadd.f32 %v5019, %v5329
  %v5331 = vpop.f32.mrf.mxu0
  %5332 = vmatprep.mubr.bf16.mxu0 0
  %5333 = vmatmul.mubr.bf16.gmra.mxu0 %v5094
  %v5334 = vpop.f32.mrf.mxu0
  %v5335 = vadd.f32 %v5019, %v5334
  %v5336 = vpop.f32.mrf.mxu0
  %v5337 = vpop.f32.mrf.mxu0
  %v5338 = vadd.f32 %v5019, %v5337
  %v5339 = vpop.f32.mrf.mxu0
  %5340 = vmatprep.mubr.bf16.mxu0 0
  %5341 = vmatmul.mubr.bf16.gmra.mxu0 %v5096
  %v5342 = vpop.f32.mrf.mxu0
  %v5343 = vadd.f32 %v5019, %v5342
  %v5344 = vpop.f32.mrf.mxu0
  %v5345 = vpop.f32.mrf.mxu0
  %v5346 = vadd.f32 %v5019, %v5345
  %v5347 = vpop.f32.mrf.mxu0
  %5348 = vmatprep.mubr.bf16.mxu0 0
  %5349 = vmatmul.mubr.bf16.gmra.mxu0 %v5098
  %v5350 = vpop.f32.mrf.mxu0
  %v5351 = vadd.f32 %v5019, %v5350
  %v5352 = vpop.f32.mrf.mxu0
  %v5353 = vpop.f32.mrf.mxu0
  %v5354 = vadd.f32 %v5019, %v5353
  %v5355 = vpop.f32.mrf.mxu0
  %5356 = vmatprep.mubr.bf16.mxu0 0
  %5357 = vmatmul.mubr.bf16.gmra.mxu0 %v5100
  %v5358 = vpop.f32.mrf.mxu0
  %v5359 = vadd.f32 %v5019, %v5358
  %v5360 = vpop.f32.mrf.mxu0
  %v5361 = vpop.f32.mrf.mxu0
  %v5362 = vadd.f32 %v5019, %v5361
  %v5363 = vpop.f32.mrf.mxu0
  %5364 = vmatprep.mubr.bf16.mxu0 0
  %5365 = vmatmul.mubr.bf16.gmra.mxu0 %v5102
  %v5366 = vpop.f32.mrf.mxu0
  %v5367 = vadd.f32 %v5019, %v5366
  %v5368 = vpop.f32.mrf.mxu0
  %v5369 = vpop.f32.mrf.mxu0
  %v5370 = vadd.f32 %v5019, %v5369
  %v5371 = vpop.f32.mrf.mxu0
  %5372 = vmatprep.mubr.bf16.mxu0 0
  %5373 = vmatmul.mubr.bf16.gmra.mxu0 %v5104
  %v5374 = vpop.f32.mrf.mxu0
  %v5375 = vadd.f32 %v5019, %v5374
  %v5376 = vpop.f32.mrf.mxu0
  %v5377 = vpop.f32.mrf.mxu0
  %v5378 = vadd.f32 %v5019, %v5377
  %v5379 = vpop.f32.mrf.mxu0
  %5380 = vmatprep.mubr.bf16.mxu0 0
  %5381 = vmatmul.mubr.bf16.gmra.mxu0 %v5106
  %v5382 = vpop.f32.mrf.mxu0
  %v5383 = vadd.f32 %v5019, %v5382
  %v5384 = vpop.f32.mrf.mxu0
  %v5385 = vpop.f32.mrf.mxu0
  %v5386 = vadd.f32 %v5019, %v5385
  %v5387 = vpop.f32.mrf.mxu0
  %5388 = vmatprep.mubr.bf16.mxu0 0
  %5389 = vmatmul.mubr.bf16.gmra.mxu0 %v5108
  %v5390 = vpop.f32.mrf.mxu0
  %v5391 = vadd.f32 %v5019, %v5390
  %v5392 = vpop.f32.mrf.mxu0
  %v5393 = vpop.f32.mrf.mxu0
  %v5394 = vadd.f32 %v5019, %v5393
  %v5395 = vpop.f32.mrf.mxu0
  %5396 = vmatprep.mubr.bf16.mxu0 0
  %5397 = vmatmul.mubr.bf16.gmra.mxu0 %v5110
  %v5398 = vpop.f32.mrf.mxu0
  %v5399 = vadd.f32 %v5019, %v5398
  %v5400 = vpop.f32.mrf.mxu0
  %v5401 = vpop.f32.mrf.mxu0
  %v5402 = vadd.f32 %v5019, %v5401
  %v5403 = vpop.f32.mrf.mxu0
  %5404 = vdwg.mxu0
  %v5405 = vsel %vm1632, %v5151, 0.0
  %v5406 = vsel %vm1632, %v5154, 0.0
  %v5407 = vadd.f32 %v5405, %v5406
  %v5408 = vsel %vm1632, %v5159, 0.0
  %v5409 = vadd.f32 %v5407, %v5408
  %v5410 = vsel %vm1632, %v5162, 0.0
  %v5411 = vadd.f32 %v5409, %v5410
  %v5412 = vsel %vm1632, %v5167, 0.0
  %v5413 = vadd.f32 %v5411, %v5412
  %v5414 = vsel %vm1632, %v5170, 0.0
  %v5415 = vadd.f32 %v5413, %v5414
  %v5416 = vsel %vm1632, %v5175, 0.0
  %v5417 = vadd.f32 %v5415, %v5416
  %v5418 = vsel %vm1632, %v5178, 0.0
  %v5419 = vadd.f32 %v5417, %v5418
  %v5420 = vsel %vm1632, %v5183, 0.0
  %v5421 = vadd.f32 %v5419, %v5420
  %v5422 = vsel %vm1632, %v5186, 0.0
  %v5423 = vadd.f32 %v5421, %v5422
  %v5424 = vsel %vm1632, %v5191, 0.0
  %v5425 = vadd.f32 %v5423, %v5424
  %v5426 = vsel %vm1632, %v5194, 0.0
  %v5427 = vadd.f32 %v5425, %v5426
  %v5428 = vsel %vm1632, %v5199, 0.0
  %v5429 = vadd.f32 %v5427, %v5428
  %v5430 = vsel %vm1632, %v5202, 0.0
  %v5431 = vadd.f32 %v5429, %v5430
  %v5432 = vsel %vm1632, %v5207, 0.0
  %v5433 = vadd.f32 %v5431, %v5432
  %v5434 = vsel %vm1632, %v5210, 0.0
  %v5435 = vadd.f32 %v5433, %v5434
  %v5436 = vsel %vm1632, %v5215, 0.0
  %v5437 = vadd.f32 %v5435, %v5436
  %v5438 = vsel %vm1632, %v5218, 0.0
  %v5439 = vadd.f32 %v5437, %v5438
  %v5440 = vsel %vm1632, %v5223, 0.0
  %v5441 = vadd.f32 %v5439, %v5440
  %v5442 = vsel %vm1632, %v5226, 0.0
  %v5443 = vadd.f32 %v5441, %v5442
  %v5444 = vsel %vm1632, %v5231, 0.0
  %v5445 = vadd.f32 %v5443, %v5444
  %v5446 = vsel %vm1632, %v5234, 0.0
  %v5447 = vadd.f32 %v5445, %v5446
  %v5448 = vsel %vm1632, %v5239, 0.0
  %v5449 = vadd.f32 %v5447, %v5448
  %v5450 = vsel %vm1632, %v5242, 0.0
  %v5451 = vadd.f32 %v5449, %v5450
  %v5452 = vsel %vm1632, %v5247, 0.0
  %v5453 = vadd.f32 %v5451, %v5452
  %v5454 = vsel %vm1632, %v5250, 0.0
  %v5455 = vadd.f32 %v5453, %v5454
  %v5456 = vsel %vm1632, %v5255, 0.0
  %v5457 = vadd.f32 %v5455, %v5456
  %v5458 = vsel %vm1632, %v5258, 0.0
  %v5459 = vadd.f32 %v5457, %v5458
  %v5460 = vsel %vm1632, %v5263, 0.0
  %v5461 = vadd.f32 %v5459, %v5460
  %v5462 = vsel %vm1632, %v5266, 0.0
  %v5463 = vadd.f32 %v5461, %v5462
  %v5464 = vsel %vm1632, %v5271, 0.0
  %v5465 = vadd.f32 %v5463, %v5464
  %v5466 = vsel %vm1632, %v5274, 0.0
  %v5467 = vadd.f32 %v5465, %v5466
  %v5468 = vsel %vm1632, %v5279, 0.0
  %v5469 = vadd.f32 %v5467, %v5468
  %v5470 = vsel %vm1632, %v5282, 0.0
  %v5471 = vadd.f32 %v5469, %v5470
  %v5472 = vsel %vm1632, %v5287, 0.0
  %v5473 = vadd.f32 %v5471, %v5472
  %v5474 = vsel %vm1632, %v5290, 0.0
  %v5475 = vadd.f32 %v5473, %v5474
  %v5476 = vsel %vm1632, %v5295, 0.0
  %v5477 = vadd.f32 %v5475, %v5476
  %v5478 = vsel %vm1632, %v5298, 0.0
  %v5479 = vadd.f32 %v5477, %v5478
  %v5480 = vsel %vm1632, %v5303, 0.0
  %v5481 = vadd.f32 %v5479, %v5480
  %v5482 = vsel %vm1632, %v5306, 0.0
  %v5483 = vadd.f32 %v5481, %v5482
  %v5484 = vsel %vm1632, %v5311, 0.0
  %v5485 = vadd.f32 %v5483, %v5484
  %v5486 = vsel %vm1632, %v5314, 0.0
  %v5487 = vadd.f32 %v5485, %v5486
  %v5488 = vsel %vm1632, %v5319, 0.0
  %v5489 = vadd.f32 %v5487, %v5488
  %v5490 = vsel %vm1632, %v5322, 0.0
  %v5491 = vadd.f32 %v5489, %v5490
  %v5492 = vsel %vm1632, %v5327, 0.0
  %v5493 = vadd.f32 %v5491, %v5492
  %v5494 = vsel %vm1632, %v5330, 0.0
  %v5495 = vadd.f32 %v5493, %v5494
  %v5496 = vsel %vm1632, %v5335, 0.0
  %v5497 = vadd.f32 %v5495, %v5496
  %v5498 = vsel %vm1632, %v5338, 0.0
  %v5499 = vadd.f32 %v5497, %v5498
  %v5500 = vsel %vm1632, %v5343, 0.0
  %v5501 = vadd.f32 %v5499, %v5500
  %v5502 = vsel %vm1632, %v5346, 0.0
  %v5503 = vadd.f32 %v5501, %v5502
  %v5504 = vsel %vm1632, %v5351, 0.0
  %v5505 = vadd.f32 %v5503, %v5504
  %v5506 = vsel %vm1632, %v5354, 0.0
  %v5507 = vadd.f32 %v5505, %v5506
  %v5508 = vsel %vm1632, %v5359, 0.0
  %v5509 = vadd.f32 %v5507, %v5508
  %v5510 = vsel %vm1632, %v5362, 0.0
  %v5511 = vadd.f32 %v5509, %v5510
  %v5512 = vsel %vm1632, %v5367, 0.0
  %v5513 = vadd.f32 %v5511, %v5512
  %v5514 = vsel %vm1632, %v5370, 0.0
  %v5515 = vadd.f32 %v5513, %v5514
  %v5516 = vsel %vm1632, %v5375, 0.0
  %v5517 = vadd.f32 %v5515, %v5516
  %v5518 = vsel %vm1632, %v5378, 0.0
  %v5519 = vadd.f32 %v5517, %v5518
  %v5520 = vsel %vm1632, %v5383, 0.0
  %v5521 = vadd.f32 %v5519, %v5520
  %v5522 = vsel %vm1632, %v5386, 0.0
  %v5523 = vadd.f32 %v5521, %v5522
  %v5524 = vsel %vm1632, %v5391, 0.0
  %v5525 = vadd.f32 %v5523, %v5524
  %v5526 = vsel %vm1632, %v5394, 0.0
  %v5527 = vadd.f32 %v5525, %v5526
  %v5528 = vsel %vm1632, %v5399, 0.0
  %v5529 = vadd.f32 %v5527, %v5528
  %v5530 = vsel %vm1632, %v5402, 0.0
  %v5531 = vadd.f32 %v5529, %v5530
  %v5532 = vrot.slane %v5531, 4
  %v5533 = vadd.f32 %v5531, %v5532
  %v5534 = vrot.slane %v5533, 2
  %v5535 = vadd.f32 %v5533, %v5534
  %v5536 = vrot.slane %v5535, 1
  %v5537 = vadd.f32 %v5535, %v5536
  %v5538 = vmul.f32 %v5151, %v5151
  %v5539 = vmul.f32 %v5154, %v5154
  %v5540 = vmul.f32 %v5159, %v5159
  %v5541 = vmul.f32 %v5162, %v5162
  %v5542 = vmul.f32 %v5167, %v5167
  %v5543 = vmul.f32 %v5170, %v5170
  %v5544 = vmul.f32 %v5175, %v5175
  %v5545 = vmul.f32 %v5178, %v5178
  %v5546 = vmul.f32 %v5183, %v5183
  %v5547 = vmul.f32 %v5186, %v5186
  %v5548 = vmul.f32 %v5191, %v5191
  %v5549 = vmul.f32 %v5194, %v5194
  %v5550 = vmul.f32 %v5199, %v5199
  %v5551 = vmul.f32 %v5202, %v5202
  %v5552 = vmul.f32 %v5207, %v5207
  %v5553 = vmul.f32 %v5210, %v5210
  %v5554 = vmul.f32 %v5215, %v5215
  %v5555 = vmul.f32 %v5218, %v5218
  %v5556 = vmul.f32 %v5223, %v5223
  %v5557 = vmul.f32 %v5226, %v5226
  %v5558 = vmul.f32 %v5231, %v5231
  %v5559 = vmul.f32 %v5234, %v5234
  %v5560 = vmul.f32 %v5239, %v5239
  %v5561 = vmul.f32 %v5242, %v5242
  %v5562 = vmul.f32 %v5247, %v5247
  %v5563 = vmul.f32 %v5250, %v5250
  %v5564 = vmul.f32 %v5255, %v5255
  %v5565 = vmul.f32 %v5258, %v5258
  %v5566 = vmul.f32 %v5263, %v5263
  %v5567 = vmul.f32 %v5266, %v5266
  %v5568 = vmul.f32 %v5271, %v5271
  %v5569 = vmul.f32 %v5274, %v5274
  %v5570 = vmul.f32 %v5279, %v5279
  %v5571 = vmul.f32 %v5282, %v5282
  %v5572 = vmul.f32 %v5287, %v5287
  %v5573 = vmul.f32 %v5290, %v5290
  %v5574 = vmul.f32 %v5295, %v5295
  %v5575 = vmul.f32 %v5298, %v5298
  %v5576 = vmul.f32 %v5303, %v5303
  %v5577 = vmul.f32 %v5306, %v5306
  %v5578 = vmul.f32 %v5311, %v5311
  %v5579 = vmul.f32 %v5314, %v5314
  %v5580 = vmul.f32 %v5319, %v5319
  %v5581 = vmul.f32 %v5322, %v5322
  %v5582 = vmul.f32 %v5327, %v5327
  %v5583 = vmul.f32 %v5330, %v5330
  %v5584 = vmul.f32 %v5335, %v5335
  %v5585 = vmul.f32 %v5338, %v5338
  %v5586 = vmul.f32 %v5343, %v5343
  %v5587 = vmul.f32 %v5346, %v5346
  %v5588 = vmul.f32 %v5351, %v5351
  %v5589 = vmul.f32 %v5354, %v5354
  %v5590 = vmul.f32 %v5359, %v5359
  %v5591 = vmul.f32 %v5362, %v5362
  %v5592 = vmul.f32 %v5367, %v5367
  %v5593 = vmul.f32 %v5370, %v5370
  %v5594 = vmul.f32 %v5375, %v5375
  %v5595 = vmul.f32 %v5378, %v5378
  %v5596 = vmul.f32 %v5383, %v5383
  %v5597 = vmul.f32 %v5386, %v5386
  %v5598 = vmul.f32 %v5391, %v5391
  %v5599 = vmul.f32 %v5394, %v5394
  %v5600 = vmul.f32 %v5399, %v5399
  %v5601 = vmul.f32 %v5402, %v5402
  %v5602 = vsel %vm1632, %v5538, 0.0
  %v5603 = vsel %vm1632, %v5539, 0.0
  %v5604 = vadd.f32 %v5602, %v5603
  %v5605 = vsel %vm1632, %v5540, 0.0
  %v5606 = vadd.f32 %v5604, %v5605
  %v5607 = vsel %vm1632, %v5541, 0.0
  %v5608 = vadd.f32 %v5606, %v5607
  %v5609 = vsel %vm1632, %v5542, 0.0
  %v5610 = vadd.f32 %v5608, %v5609
  %v5611 = vsel %vm1632, %v5543, 0.0
  %v5612 = vadd.f32 %v5610, %v5611
  %v5613 = vsel %vm1632, %v5544, 0.0
  %v5614 = vadd.f32 %v5612, %v5613
  %v5615 = vsel %vm1632, %v5545, 0.0
  %v5616 = vadd.f32 %v5614, %v5615
  %v5617 = vsel %vm1632, %v5546, 0.0
  %v5618 = vadd.f32 %v5616, %v5617
  %v5619 = vsel %vm1632, %v5547, 0.0
  %v5620 = vadd.f32 %v5618, %v5619
  %v5621 = vsel %vm1632, %v5548, 0.0
  %v5622 = vadd.f32 %v5620, %v5621
  %v5623 = vsel %vm1632, %v5549, 0.0
  %v5624 = vadd.f32 %v5622, %v5623
  %v5625 = vsel %vm1632, %v5550, 0.0
  %v5626 = vadd.f32 %v5624, %v5625
  %v5627 = vsel %vm1632, %v5551, 0.0
  %v5628 = vadd.f32 %v5626, %v5627
  %v5629 = vsel %vm1632, %v5552, 0.0
  %v5630 = vadd.f32 %v5628, %v5629
  %v5631 = vsel %vm1632, %v5553, 0.0
  %v5632 = vadd.f32 %v5630, %v5631
  %v5633 = vsel %vm1632, %v5554, 0.0
  %v5634 = vadd.f32 %v5632, %v5633
  %v5635 = vsel %vm1632, %v5555, 0.0
  %v5636 = vadd.f32 %v5634, %v5635
  %v5637 = vsel %vm1632, %v5556, 0.0
  %v5638 = vadd.f32 %v5636, %v5637
  %v5639 = vsel %vm1632, %v5557, 0.0
  %v5640 = vadd.f32 %v5638, %v5639
  %v5641 = vsel %vm1632, %v5558, 0.0
  %v5642 = vadd.f32 %v5640, %v5641
  %v5643 = vsel %vm1632, %v5559, 0.0
  %v5644 = vadd.f32 %v5642, %v5643
  %v5645 = vsel %vm1632, %v5560, 0.0
  %v5646 = vadd.f32 %v5644, %v5645
  %v5647 = vsel %vm1632, %v5561, 0.0
  %v5648 = vadd.f32 %v5646, %v5647
  %v5649 = vsel %vm1632, %v5562, 0.0
  %v5650 = vadd.f32 %v5648, %v5649
  %v5651 = vsel %vm1632, %v5563, 0.0
  %v5652 = vadd.f32 %v5650, %v5651
  %v5653 = vsel %vm1632, %v5564, 0.0
  %v5654 = vadd.f32 %v5652, %v5653
  %v5655 = vsel %vm1632, %v5565, 0.0
  %v5656 = vadd.f32 %v5654, %v5655
  %v5657 = vsel %vm1632, %v5566, 0.0
  %v5658 = vadd.f32 %v5656, %v5657
  %v5659 = vsel %vm1632, %v5567, 0.0
  %v5660 = vadd.f32 %v5658, %v5659
  %v5661 = vsel %vm1632, %v5568, 0.0
  %v5662 = vadd.f32 %v5660, %v5661
  %v5663 = vsel %vm1632, %v5569, 0.0
  %v5664 = vadd.f32 %v5662, %v5663
  %v5665 = vsel %vm1632, %v5570, 0.0
  %v5666 = vadd.f32 %v5664, %v5665
  %v5667 = vsel %vm1632, %v5571, 0.0
  %v5668 = vadd.f32 %v5666, %v5667
  %v5669 = vsel %vm1632, %v5572, 0.0
  %v5670 = vadd.f32 %v5668, %v5669
  %v5671 = vsel %vm1632, %v5573, 0.0
  %v5672 = vadd.f32 %v5670, %v5671
  %v5673 = vsel %vm1632, %v5574, 0.0
  %v5674 = vadd.f32 %v5672, %v5673
  %v5675 = vsel %vm1632, %v5575, 0.0
  %v5676 = vadd.f32 %v5674, %v5675
  %v5677 = vsel %vm1632, %v5576, 0.0
  %v5678 = vadd.f32 %v5676, %v5677
  %v5679 = vsel %vm1632, %v5577, 0.0
  %v5680 = vadd.f32 %v5678, %v5679
  %v5681 = vsel %vm1632, %v5578, 0.0
  %v5682 = vadd.f32 %v5680, %v5681
  %v5683 = vsel %vm1632, %v5579, 0.0
  %v5684 = vadd.f32 %v5682, %v5683
  %v5685 = vsel %vm1632, %v5580, 0.0
  %v5686 = vadd.f32 %v5684, %v5685
  %v5687 = vsel %vm1632, %v5581, 0.0
  %v5688 = vadd.f32 %v5686, %v5687
  %v5689 = vsel %vm1632, %v5582, 0.0
  %v5690 = vadd.f32 %v5688, %v5689
  %v5691 = vsel %vm1632, %v5583, 0.0
  %v5692 = vadd.f32 %v5690, %v5691
  %v5693 = vsel %vm1632, %v5584, 0.0
  %v5694 = vadd.f32 %v5692, %v5693
  %v5695 = vsel %vm1632, %v5585, 0.0
  %v5696 = vadd.f32 %v5694, %v5695
  %v5697 = vsel %vm1632, %v5586, 0.0
  %v5698 = vadd.f32 %v5696, %v5697
  %v5699 = vsel %vm1632, %v5587, 0.0
  %v5700 = vadd.f32 %v5698, %v5699
  %v5701 = vsel %vm1632, %v5588, 0.0
  %v5702 = vadd.f32 %v5700, %v5701
  %v5703 = vsel %vm1632, %v5589, 0.0
  %v5704 = vadd.f32 %v5702, %v5703
  %v5705 = vsel %vm1632, %v5590, 0.0
  %v5706 = vadd.f32 %v5704, %v5705
  %v5707 = vsel %vm1632, %v5591, 0.0
  %v5708 = vadd.f32 %v5706, %v5707
  %v5709 = vsel %vm1632, %v5592, 0.0
  %v5710 = vadd.f32 %v5708, %v5709
  %v5711 = vsel %vm1632, %v5593, 0.0
  %v5712 = vadd.f32 %v5710, %v5711
  %v5713 = vsel %vm1632, %v5594, 0.0
  %v5714 = vadd.f32 %v5712, %v5713
  %v5715 = vsel %vm1632, %v5595, 0.0
  %v5716 = vadd.f32 %v5714, %v5715
  %v5717 = vsel %vm1632, %v5596, 0.0
  %v5718 = vadd.f32 %v5716, %v5717
  %v5719 = vsel %vm1632, %v5597, 0.0
  %v5720 = vadd.f32 %v5718, %v5719
  %v5721 = vsel %vm1632, %v5598, 0.0
  %v5722 = vadd.f32 %v5720, %v5721
  %v5723 = vsel %vm1632, %v5599, 0.0
  %v5724 = vadd.f32 %v5722, %v5723
  %v5725 = vsel %vm1632, %v5600, 0.0
  %v5726 = vadd.f32 %v5724, %v5725
  %v5727 = vsel %vm1632, %v5601, 0.0
  %v5728 = vadd.f32 %v5726, %v5727
  %v5729 = vrot.slane %v5728, 4
  %v5730 = vadd.f32 %v5728, %v5729
  %v5731 = vrot.slane %v5730, 2
  %v5732 = vadd.f32 %v5730, %v5731
  %v5733 = vrot.slane %v5732, 1
  %v5734 = vadd.f32 %v5732, %v5733
  %v5735 = vmul.f32 %v5537, 0.001953125
  %v5736 = vmul.f32 %v5734, 0.001953125
  %v5737 = vmul.f32 %v5735, %v5735
  %v5738 = vsub.f32 %v5736, %v5737
  %v5739 = vmax.f32 %v5738, 0.0
  %v5740 = vld [vmem:[%s4 + $0x1] sm:$0x1]
  %v5741 = vadd.f32 %v5739, 1e-05
  %v5742 = vrsqrt.pop %v5741
  %v5743 = vmul.f32 %v5740, %v5742
  %v5744 = vld [vmem:[%s4 + $0x2] sm:$0x1]
  %v5745 = vmul.f32 %v5735, %v5743
  %v5746 = vsub.f32 %v5744, %v5745
  %v5747 = vlaneseq
  %v5748 = vshrl.u32 %v5747, 7
  %v5749 = vsub.s32 0, %v5748
  %v5750 = vrot.slane %v5743, %v5749
  %v5751 = vmul.f32 %v5151, %v5750
  %v5752 = vmul.f32 %v5154, %v5750
  %v5753 = vmul.f32 %v5159, %v5750
  %v5754 = vmul.f32 %v5162, %v5750
  %v5755 = vmul.f32 %v5167, %v5750
  %v5756 = vmul.f32 %v5170, %v5750
  %v5757 = vmul.f32 %v5175, %v5750
  %v5758 = vmul.f32 %v5178, %v5750
  %v5759 = vmul.f32 %v5183, %v5750
  %v5760 = vmul.f32 %v5186, %v5750
  %v5761 = vmul.f32 %v5191, %v5750
  %v5762 = vmul.f32 %v5194, %v5750
  %v5763 = vmul.f32 %v5199, %v5750
  %v5764 = vmul.f32 %v5202, %v5750
  %v5765 = vmul.f32 %v5207, %v5750
  %v5766 = vmul.f32 %v5210, %v5750
  %v5767 = vmul.f32 %v5215, %v5750
  %v5768 = vmul.f32 %v5218, %v5750
  %v5769 = vmul.f32 %v5223, %v5750
  %v5770 = vmul.f32 %v5226, %v5750
  %v5771 = vmul.f32 %v5231, %v5750
  %v5772 = vmul.f32 %v5234, %v5750
  %v5773 = vmul.f32 %v5239, %v5750
  %v5774 = vmul.f32 %v5242, %v5750
  %v5775 = vmul.f32 %v5247, %v5750
  %v5776 = vmul.f32 %v5250, %v5750
  %v5777 = vmul.f32 %v5255, %v5750
  %v5778 = vmul.f32 %v5258, %v5750
  %v5779 = vmul.f32 %v5263, %v5750
  %v5780 = vmul.f32 %v5266, %v5750
  %v5781 = vmul.f32 %v5271, %v5750
  %v5782 = vmul.f32 %v5274, %v5750
  %v5783 = vmul.f32 %v5279, %v5750
  %v5784 = vmul.f32 %v5282, %v5750
  %v5785 = vmul.f32 %v5287, %v5750
  %v5786 = vmul.f32 %v5290, %v5750
  %v5787 = vmul.f32 %v5295, %v5750
  %v5788 = vmul.f32 %v5298, %v5750
  %v5789 = vmul.f32 %v5303, %v5750
  %v5790 = vmul.f32 %v5306, %v5750
  %v5791 = vmul.f32 %v5311, %v5750
  %v5792 = vmul.f32 %v5314, %v5750
  %v5793 = vmul.f32 %v5319, %v5750
  %v5794 = vmul.f32 %v5322, %v5750
  %v5795 = vmul.f32 %v5327, %v5750
  %v5796 = vmul.f32 %v5330, %v5750
  %v5797 = vmul.f32 %v5335, %v5750
  %v5798 = vmul.f32 %v5338, %v5750
  %v5799 = vmul.f32 %v5343, %v5750
  %v5800 = vmul.f32 %v5346, %v5750
  %v5801 = vmul.f32 %v5351, %v5750
  %v5802 = vmul.f32 %v5354, %v5750
  %v5803 = vmul.f32 %v5359, %v5750
  %v5804 = vmul.f32 %v5362, %v5750
  %v5805 = vmul.f32 %v5367, %v5750
  %v5806 = vmul.f32 %v5370, %v5750
  %v5807 = vmul.f32 %v5375, %v5750
  %v5808 = vmul.f32 %v5378, %v5750
  %v5809 = vmul.f32 %v5383, %v5750
  %v5810 = vmul.f32 %v5386, %v5750
  %v5811 = vmul.f32 %v5391, %v5750
  %v5812 = vmul.f32 %v5394, %v5750
  %v5813 = vmul.f32 %v5399, %v5750
  %v5814 = vmul.f32 %v5402, %v5750
  %v5815 = vlaneseq
  %v5816 = vshrl.u32 %v5815, 7
  %v5817 = vsub.s32 0, %v5816
  %v5818 = vrot.slane %v5746, %v5817
  %v5819 = vadd.f32 %v5751, %v5818
  %v5820 = vadd.f32 %v5752, %v5818
  %v5821 = vadd.f32 %v5753, %v5818
  %v5822 = vadd.f32 %v5754, %v5818
  %v5823 = vadd.f32 %v5755, %v5818
  %v5824 = vadd.f32 %v5756, %v5818
  %v5825 = vadd.f32 %v5757, %v5818
  %v5826 = vadd.f32 %v5758, %v5818
  %v5827 = vadd.f32 %v5759, %v5818
  %v5828 = vadd.f32 %v5760, %v5818
  %v5829 = vadd.f32 %v5761, %v5818
  %v5830 = vadd.f32 %v5762, %v5818
  %v5831 = vadd.f32 %v5763, %v5818
  %v5832 = vadd.f32 %v5764, %v5818
  %v5833 = vadd.f32 %v5765, %v5818
  %v5834 = vadd.f32 %v5766, %v5818
  %v5835 = vadd.f32 %v5767, %v5818
  %v5836 = vadd.f32 %v5768, %v5818
  %v5837 = vadd.f32 %v5769, %v5818
  %v5838 = vadd.f32 %v5770, %v5818
  %v5839 = vadd.f32 %v5771, %v5818
  %v5840 = vadd.f32 %v5772, %v5818
  %v5841 = vadd.f32 %v5773, %v5818
  %v5842 = vadd.f32 %v5774, %v5818
  %v5843 = vadd.f32 %v5775, %v5818
  %v5844 = vadd.f32 %v5776, %v5818
  %v5845 = vadd.f32 %v5777, %v5818
  %v5846 = vadd.f32 %v5778, %v5818
  %v5847 = vadd.f32 %v5779, %v5818
  %v5848 = vadd.f32 %v5780, %v5818
  %v5849 = vadd.f32 %v5781, %v5818
  %v5850 = vadd.f32 %v5782, %v5818
  %v5851 = vadd.f32 %v5783, %v5818
  %v5852 = vadd.f32 %v5784, %v5818
  %v5853 = vadd.f32 %v5785, %v5818
  %v5854 = vadd.f32 %v5786, %v5818
  %v5855 = vadd.f32 %v5787, %v5818
  %v5856 = vadd.f32 %v5788, %v5818
  %v5857 = vadd.f32 %v5789, %v5818
  %v5858 = vadd.f32 %v5790, %v5818
  %v5859 = vadd.f32 %v5791, %v5818
  %v5860 = vadd.f32 %v5792, %v5818
  %v5861 = vadd.f32 %v5793, %v5818
  %v5862 = vadd.f32 %v5794, %v5818
  %v5863 = vadd.f32 %v5795, %v5818
  %v5864 = vadd.f32 %v5796, %v5818
  %v5865 = vadd.f32 %v5797, %v5818
  %v5866 = vadd.f32 %v5798, %v5818
  %v5867 = vadd.f32 %v5799, %v5818
  %v5868 = vadd.f32 %v5800, %v5818
  %v5869 = vadd.f32 %v5801, %v5818
  %v5870 = vadd.f32 %v5802, %v5818
  %v5871 = vadd.f32 %v5803, %v5818
  %v5872 = vadd.f32 %v5804, %v5818
  %v5873 = vadd.f32 %v5805, %v5818
  %v5874 = vadd.f32 %v5806, %v5818
  %v5875 = vadd.f32 %v5807, %v5818
  %v5876 = vadd.f32 %v5808, %v5818
  %v5877 = vadd.f32 %v5809, %v5818
  %v5878 = vadd.f32 %v5810, %v5818
  %v5879 = vadd.f32 %v5811, %v5818
  %v5880 = vadd.f32 %v5812, %v5818
  %v5881 = vadd.f32 %v5813, %v5818
  %v5882 = vadd.f32 %v5814, %v5818
  %v5883 = vmax.f32 %v5819, 0.0
  %v5884 = vmax.f32 %v5820, 0.0
  %v5885 = vmax.f32 %v5821, 0.0
  %v5886 = vmax.f32 %v5822, 0.0
  %v5887 = vmax.f32 %v5823, 0.0
  %v5888 = vmax.f32 %v5824, 0.0
  %v5889 = vmax.f32 %v5825, 0.0
  %v5890 = vmax.f32 %v5826, 0.0
  %v5891 = vmax.f32 %v5827, 0.0
  %v5892 = vmax.f32 %v5828, 0.0
  %v5893 = vmax.f32 %v5829, 0.0
  %v5894 = vmax.f32 %v5830, 0.0
  %v5895 = vmax.f32 %v5831, 0.0
  %v5896 = vmax.f32 %v5832, 0.0
  %v5897 = vmax.f32 %v5833, 0.0
  %v5898 = vmax.f32 %v5834, 0.0
  %v5899 = vmax.f32 %v5835, 0.0
  %v5900 = vmax.f32 %v5836, 0.0
  %v5901 = vmax.f32 %v5837, 0.0
  %v5902 = vmax.f32 %v5838, 0.0
  %v5903 = vmax.f32 %v5839, 0.0
  %v5904 = vmax.f32 %v5840, 0.0
  %v5905 = vmax.f32 %v5841, 0.0
  %v5906 = vmax.f32 %v5842, 0.0
  %v5907 = vmax.f32 %v5843, 0.0
  %v5908 = vmax.f32 %v5844, 0.0
  %v5909 = vmax.f32 %v5845, 0.0
  %v5910 = vmax.f32 %v5846, 0.0
  %v5911 = vmax.f32 %v5847, 0.0
  %v5912 = vmax.f32 %v5848, 0.0
  %v5913 = vmax.f32 %v5849, 0.0
  %v5914 = vmax.f32 %v5850, 0.0
  %v5915 = vmax.f32 %v5851, 0.0
  %v5916 = vmax.f32 %v5852, 0.0
  %v5917 = vmax.f32 %v5853, 0.0
  %v5918 = vmax.f32 %v5854, 0.0
  %v5919 = vmax.f32 %v5855, 0.0
  %v5920 = vmax.f32 %v5856, 0.0
  %v5921 = vmax.f32 %v5857, 0.0
  %v5922 = vmax.f32 %v5858, 0.0
  %v5923 = vmax.f32 %v5859, 0.0
  %v5924 = vmax.f32 %v5860, 0.0
  %v5925 = vmax.f32 %v5861, 0.0
  %v5926 = vmax.f32 %v5862, 0.0
  %v5927 = vmax.f32 %v5863, 0.0
  %v5928 = vmax.f32 %v5864, 0.0
  %v5929 = vmax.f32 %v5865, 0.0
  %v5930 = vmax.f32 %v5866, 0.0
  %v5931 = vmax.f32 %v5867, 0.0
  %v5932 = vmax.f32 %v5868, 0.0
  %v5933 = vmax.f32 %v5869, 0.0
  %v5934 = vmax.f32 %v5870, 0.0
  %v5935 = vmax.f32 %v5871, 0.0
  %v5936 = vmax.f32 %v5872, 0.0
  %v5937 = vmax.f32 %v5873, 0.0
  %v5938 = vmax.f32 %v5874, 0.0
  %v5939 = vmax.f32 %v5875, 0.0
  %v5940 = vmax.f32 %v5876, 0.0
  %v5941 = vmax.f32 %v5877, 0.0
  %v5942 = vmax.f32 %v5878, 0.0
  %v5943 = vmax.f32 %v5879, 0.0
  %v5944 = vmax.f32 %v5880, 0.0
  %v5945 = vmax.f32 %v5881, 0.0
  %v5946 = vmax.f32 %v5882, 0.0
  %5947 = vst.msk [vmem:[%s5] sm:$0xff] %vm1632, %v5883
  %5948 = vst.msk [vmem:[%s5 + $0x8] sm:$0xff] %vm1632, %v5884
  %5949 = vst.msk [vmem:[%s5 + $0x10] sm:$0xff] %vm1632, %v5885
  %5950 = vst.msk [vmem:[%s5 + $0x18] sm:$0xff] %vm1632, %v5886
  %5951 = vst.msk [vmem:[%s5 + $0x20] sm:$0xff] %vm1632, %v5887
  %5952 = vst.msk [vmem:[%s5 + $0x28] sm:$0xff] %vm1632, %v5888
  %5953 = vst.msk [vmem:[%s5 + $0x30] sm:$0xff] %vm1632, %v5889
  %5954 = vst.msk [vmem:[%s5 + $0x38] sm:$0xff] %vm1632, %v5890
  %5955 = vst.msk [vmem:[%s5 + $0x40] sm:$0xff] %vm1632, %v5891
  %5956 = vst.msk [vmem:[%s5 + $0x48] sm:$0xff] %vm1632, %v5892
  %5957 = vst.msk [vmem:[%s5 + $0x50] sm:$0xff] %vm1632, %v5893
  %5958 = vst.msk [vmem:[%s5 + $0x58] sm:$0xff] %vm1632, %v5894
  %5959 = vst.msk [vmem:[%s5 + $0x60] sm:$0xff] %vm1632, %v5895
  %5960 = vst.msk [vmem:[%s5 + $0x68] sm:$0xff] %vm1632, %v5896
  %5961 = vst.msk [vmem:[%s5 + $0x70] sm:$0xff] %vm1632, %v5897
  %5962 = vst.msk [vmem:[%s5 + $0x78] sm:$0xff] %vm1632, %v5898
  %5963 = vst.msk [vmem:[%s5 + $0x80] sm:$0xff] %vm1632, %v5899
  %5964 = vst.msk [vmem:[%s5 + $0x88] sm:$0xff] %vm1632, %v5900
  %5965 = vst.msk [vmem:[%s5 + $0x90] sm:$0xff] %vm1632, %v5901
  %5966 = vst.msk [vmem:[%s5 + $0x98] sm:$0xff] %vm1632, %v5902
  %5967 = vst.msk [vmem:[%s5 + $0xa0] sm:$0xff] %vm1632, %v5903
  %5968 = vst.msk [vmem:[%s5 + $0xa8] sm:$0xff] %vm1632, %v5904
  %5969 = vst.msk [vmem:[%s5 + $0xb0] sm:$0xff] %vm1632, %v5905
  %5970 = vst.msk [vmem:[%s5 + $0xb8] sm:$0xff] %vm1632, %v5906
  %5971 = vst.msk [vmem:[%s5 + $0xc0] sm:$0xff] %vm1632, %v5907
  %5972 = vst.msk [vmem:[%s5 + $0xc8] sm:$0xff] %vm1632, %v5908
  %5973 = vst.msk [vmem:[%s5 + $0xd0] sm:$0xff] %vm1632, %v5909
  %5974 = vst.msk [vmem:[%s5 + $0xd8] sm:$0xff] %vm1632, %v5910
  %5975 = vst.msk [vmem:[%s5 + $0xe0] sm:$0xff] %vm1632, %v5911
  %5976 = vst.msk [vmem:[%s5 + $0xe8] sm:$0xff] %vm1632, %v5912
  %5977 = vst.msk [vmem:[%s5 + $0xf0] sm:$0xff] %vm1632, %v5913
  %5978 = vst.msk [vmem:[%s5 + $0xf8] sm:$0xff] %vm1632, %v5914
  %5979 = vst.msk [vmem:[%s5 + $0x100] sm:$0xff] %vm1632, %v5915
  %5980 = vst.msk [vmem:[%s5 + $0x108] sm:$0xff] %vm1632, %v5916
  %5981 = vst.msk [vmem:[%s5 + $0x110] sm:$0xff] %vm1632, %v5917
  %5982 = vst.msk [vmem:[%s5 + $0x118] sm:$0xff] %vm1632, %v5918
  %5983 = vst.msk [vmem:[%s5 + $0x120] sm:$0xff] %vm1632, %v5919
  %5984 = vst.msk [vmem:[%s5 + $0x128] sm:$0xff] %vm1632, %v5920
  %5985 = vst.msk [vmem:[%s5 + $0x130] sm:$0xff] %vm1632, %v5921
  %5986 = vst.msk [vmem:[%s5 + $0x138] sm:$0xff] %vm1632, %v5922
  %5987 = vst.msk [vmem:[%s5 + $0x140] sm:$0xff] %vm1632, %v5923
  %5988 = vst.msk [vmem:[%s5 + $0x148] sm:$0xff] %vm1632, %v5924
  %5989 = vst.msk [vmem:[%s5 + $0x150] sm:$0xff] %vm1632, %v5925
  %5990 = vst.msk [vmem:[%s5 + $0x158] sm:$0xff] %vm1632, %v5926
  %5991 = vst.msk [vmem:[%s5 + $0x160] sm:$0xff] %vm1632, %v5927
  %5992 = vst.msk [vmem:[%s5 + $0x168] sm:$0xff] %vm1632, %v5928
  %5993 = vst.msk [vmem:[%s5 + $0x170] sm:$0xff] %vm1632, %v5929
  %5994 = vst.msk [vmem:[%s5 + $0x178] sm:$0xff] %vm1632, %v5930
  %5995 = vst.msk [vmem:[%s5 + $0x180] sm:$0xff] %vm1632, %v5931
  %5996 = vst.msk [vmem:[%s5 + $0x188] sm:$0xff] %vm1632, %v5932
  %5997 = vst.msk [vmem:[%s5 + $0x190] sm:$0xff] %vm1632, %v5933
  %5998 = vst.msk [vmem:[%s5 + $0x198] sm:$0xff] %vm1632, %v5934
  %5999 = vst.msk [vmem:[%s5 + $0x1a0] sm:$0xff] %vm1632, %v5935
  %6000 = vst.msk [vmem:[%s5 + $0x1a8] sm:$0xff] %vm1632, %v5936
  %6001 = vst.msk [vmem:[%s5 + $0x1b0] sm:$0xff] %vm1632, %v5937
  %6002 = vst.msk [vmem:[%s5 + $0x1b8] sm:$0xff] %vm1632, %v5938
  %6003 = vst.msk [vmem:[%s5 + $0x1c0] sm:$0xff] %vm1632, %v5939
  %6004 = vst.msk [vmem:[%s5 + $0x1c8] sm:$0xff] %vm1632, %v5940
  %6005 = vst.msk [vmem:[%s5 + $0x1d0] sm:$0xff] %vm1632, %v5941
  %6006 = vst.msk [vmem:[%s5 + $0x1d8] sm:$0xff] %vm1632, %v5942
  %6007 = vst.msk [vmem:[%s5 + $0x1e0] sm:$0xff] %vm1632, %v5943
  %6008 = vst.msk [vmem:[%s5 + $0x1e8] sm:$0xff] %vm1632, %v5944
  %6009 = vst.msk [vmem:[%s5 + $0x1f0] sm:$0xff] %vm1632, %v5945
  %6010 = vst.msk [vmem:[%s5 + $0x1f8] sm:$0xff] %vm1632, %v5946
  %v6011 = vld [vmem:[%s5] ss:$2 sm:$0xff]
  %s6012 = scalar_lea.vmem %s5, 32
  %v6013 = vld [vmem:[%s6012] ss:$2 sm:$0xff]
  %s6014 = scalar_lea.vmem %s5, 64
  %v6015 = vld [vmem:[%s6014] ss:$2 sm:$0xff]
  %s6016 = scalar_lea.vmem %s5, 96
  %v6017 = vld [vmem:[%s6016] ss:$2 sm:$0xff]
  %s6018 = scalar_lea.vmem %s5, 128
  %v6019 = vld [vmem:[%s6018] ss:$2 sm:$0xff]
  %s6020 = scalar_lea.vmem %s5, 160
  %v6021 = vld [vmem:[%s6020] ss:$2 sm:$0xff]
  %s6022 = scalar_lea.vmem %s5, 192
  %v6023 = vld [vmem:[%s6022] ss:$2 sm:$0xff]
  %s6024 = scalar_lea.vmem %s5, 224
  %v6025 = vld [vmem:[%s6024] ss:$2 sm:$0xff]
  %s6026 = scalar_lea.vmem %s5, 256
  %v6027 = vld [vmem:[%s6026] ss:$2 sm:$0xff]
  %s6028 = scalar_lea.vmem %s5, 288
  %v6029 = vld [vmem:[%s6028] ss:$2 sm:$0xff]
  %s6030 = scalar_lea.vmem %s5, 320
  %v6031 = vld [vmem:[%s6030] ss:$2 sm:$0xff]
  %s6032 = scalar_lea.vmem %s5, 352
  %v6033 = vld [vmem:[%s6032] ss:$2 sm:$0xff]
  %s6034 = scalar_lea.vmem %s5, 384
  %v6035 = vld [vmem:[%s6034] ss:$2 sm:$0xff]
  %s6036 = scalar_lea.vmem %s5, 416
  %v6037 = vld [vmem:[%s6036] ss:$2 sm:$0xff]
  %s6038 = scalar_lea.vmem %s5, 448
  %v6039 = vld [vmem:[%s6038] ss:$2 sm:$0xff]
  %s6040 = scalar_lea.vmem %s5, 480
  %v6041 = vld [vmem:[%s6040] ss:$2 sm:$0xff]
  %s6042 = scalar_lea.vmem %s5, 1
  %v6043 = vld [vmem:[%s6042] ss:$2 sm:$0xff]
  %s6044 = scalar_lea.vmem %s5, 33
  %v6045 = vld [vmem:[%s6044] ss:$2 sm:$0xff]
  %s6046 = scalar_lea.vmem %s5, 65
  %v6047 = vld [vmem:[%s6046] ss:$2 sm:$0xff]
  %s6048 = scalar_lea.vmem %s5, 97
  %v6049 = vld [vmem:[%s6048] ss:$2 sm:$0xff]
  %s6050 = scalar_lea.vmem %s5, 129
  %v6051 = vld [vmem:[%s6050] ss:$2 sm:$0xff]
  %s6052 = scalar_lea.vmem %s5, 161
  %v6053 = vld [vmem:[%s6052] ss:$2 sm:$0xff]
  %s6054 = scalar_lea.vmem %s5, 193
  %v6055 = vld [vmem:[%s6054] ss:$2 sm:$0xff]
  %s6056 = scalar_lea.vmem %s5, 225
  %v6057 = vld [vmem:[%s6056] ss:$2 sm:$0xff]
  %s6058 = scalar_lea.vmem %s5, 257
  %v6059 = vld [vmem:[%s6058] ss:$2 sm:$0xff]
  %s6060 = scalar_lea.vmem %s5, 289
  %v6061 = vld [vmem:[%s6060] ss:$2 sm:$0xff]
  %s6062 = scalar_lea.vmem %s5, 321
  %v6063 = vld [vmem:[%s6062] ss:$2 sm:$0xff]
  %s6064 = scalar_lea.vmem %s5, 353
  %v6065 = vld [vmem:[%s6064] ss:$2 sm:$0xff]
  %s6066 = scalar_lea.vmem %s5, 385
  %v6067 = vld [vmem:[%s6066] ss:$2 sm:$0xff]
  %s6068 = scalar_lea.vmem %s5, 417
  %v6069 = vld [vmem:[%s6068] ss:$2 sm:$0xff]
  %s6070 = scalar_lea.vmem %s5, 449
  %v6071 = vld [vmem:[%s6070] ss:$2 sm:$0xff]
  %s6072 = scalar_lea.vmem %s5, 481
  %v6073 = vld [vmem:[%s6072] ss:$2 sm:$0xff]
  %s6074 = scalar_lea.vmem %s5, 16
  %v6075 = vld [vmem:[%s6074] ss:$2 sm:$0xff]
  %s6076 = scalar_lea.vmem %s6074, 32
  %v6077 = vld [vmem:[%s6076] ss:$2 sm:$0xff]
  %s6078 = scalar_lea.vmem %s6074, 64
  %v6079 = vld [vmem:[%s6078] ss:$2 sm:$0xff]
  %s6080 = scalar_lea.vmem %s6074, 96
  %v6081 = vld [vmem:[%s6080] ss:$2 sm:$0xff]
  %s6082 = scalar_lea.vmem %s6074, 128
  %v6083 = vld [vmem:[%s6082] ss:$2 sm:$0xff]
  %s6084 = scalar_lea.vmem %s6074, 160
  %v6085 = vld [vmem:[%s6084] ss:$2 sm:$0xff]
  %s6086 = scalar_lea.vmem %s6074, 192
  %v6087 = vld [vmem:[%s6086] ss:$2 sm:$0xff]
  %s6088 = scalar_lea.vmem %s6074, 224
  %v6089 = vld [vmem:[%s6088] ss:$2 sm:$0xff]
  %s6090 = scalar_lea.vmem %s6074, 256
  %v6091 = vld [vmem:[%s6090] ss:$2 sm:$0xff]
  %s6092 = scalar_lea.vmem %s6074, 288
  %v6093 = vld [vmem:[%s6092] ss:$2 sm:$0xff]
  %s6094 = scalar_lea.vmem %s6074, 320
  %v6095 = vld [vmem:[%s6094] ss:$2 sm:$0xff]
  %s6096 = scalar_lea.vmem %s6074, 352
  %v6097 = vld [vmem:[%s6096] ss:$2 sm:$0xff]
  %s6098 = scalar_lea.vmem %s6074, 384
  %v6099 = vld [vmem:[%s6098] ss:$2 sm:$0xff]
  %s6100 = scalar_lea.vmem %s6074, 416
  %v6101 = vld [vmem:[%s6100] ss:$2 sm:$0xff]
  %s6102 = scalar_lea.vmem %s6074, 448
  %v6103 = vld [vmem:[%s6102] ss:$2 sm:$0xff]
  %s6104 = scalar_lea.vmem %s6074, 480
  %v6105 = vld [vmem:[%s6104] ss:$2 sm:$0xff]
  %s6106 = scalar_lea.vmem %s6074, 1
  %v6107 = vld [vmem:[%s6106] ss:$2 sm:$0xff]
  %s6108 = scalar_lea.vmem %s6074, 33
  %v6109 = vld [vmem:[%s6108] ss:$2 sm:$0xff]
  %s6110 = scalar_lea.vmem %s6074, 65
  %v6111 = vld [vmem:[%s6110] ss:$2 sm:$0xff]
  %s6112 = scalar_lea.vmem %s6074, 97
  %v6113 = vld [vmem:[%s6112] ss:$2 sm:$0xff]
  %s6114 = scalar_lea.vmem %s6074, 129
  %v6115 = vld [vmem:[%s6114] ss:$2 sm:$0xff]
  %s6116 = scalar_lea.vmem %s6074, 161
  %v6117 = vld [vmem:[%s6116] ss:$2 sm:$0xff]
  %s6118 = scalar_lea.vmem %s6074, 193
  %v6119 = vld [vmem:[%s6118] ss:$2 sm:$0xff]
  %s6120 = scalar_lea.vmem %s6074, 225
  %v6121 = vld [vmem:[%s6120] ss:$2 sm:$0xff]
  %s6122 = scalar_lea.vmem %s6074, 257
  %v6123 = vld [vmem:[%s6122] ss:$2 sm:$0xff]
  %s6124 = scalar_lea.vmem %s6074, 289
  %v6125 = vld [vmem:[%s6124] ss:$2 sm:$0xff]
  %s6126 = scalar_lea.vmem %s6074, 321
  %v6127 = vld [vmem:[%s6126] ss:$2 sm:$0xff]
  %s6128 = scalar_lea.vmem %s6074, 353
  %v6129 = vld [vmem:[%s6128] ss:$2 sm:$0xff]
  %s6130 = scalar_lea.vmem %s6074, 385
  %v6131 = vld [vmem:[%s6130] ss:$2 sm:$0xff]
  %s6132 = scalar_lea.vmem %s6074, 417
  %v6133 = vld [vmem:[%s6132] ss:$2 sm:$0xff]
  %s6134 = scalar_lea.vmem %s6074, 449
  %v6135 = vld [vmem:[%s6134] ss:$2 sm:$0xff]
  %s6136 = scalar_lea.vmem %s6074, 481
  %v6137 = vld [vmem:[%s6136] ss:$2 sm:$0xff]
  %v6138 = vmax.f32 %v6011, %v6043
  %v6139 = vmax.f32 %v6013, %v6045
  %v6140 = vmax.f32 %v6015, %v6047
  %v6141 = vmax.f32 %v6017, %v6049
  %v6142 = vmax.f32 %v6019, %v6051
  %v6143 = vmax.f32 %v6021, %v6053
  %v6144 = vmax.f32 %v6023, %v6055
  %v6145 = vmax.f32 %v6025, %v6057
  %v6146 = vmax.f32 %v6027, %v6059
  %v6147 = vmax.f32 %v6029, %v6061
  %v6148 = vmax.f32 %v6031, %v6063
  %v6149 = vmax.f32 %v6033, %v6065
  %v6150 = vmax.f32 %v6035, %v6067
  %v6151 = vmax.f32 %v6037, %v6069
  %v6152 = vmax.f32 %v6039, %v6071
  %v6153 = vmax.f32 %v6041, %v6073
  %v6154 = vmax.f32 %v6075, %v6107
  %v6155 = vmax.f32 %v6077, %v6109
  %v6156 = vmax.f32 %v6079, %v6111
  %v6157 = vmax.f32 %v6081, %v6113
  %v6158 = vmax.f32 %v6083, %v6115
  %v6159 = vmax.f32 %v6085, %v6117
  %v6160 = vmax.f32 %v6087, %v6119
  %v6161 = vmax.f32 %v6089, %v6121
  %v6162 = vmax.f32 %v6091, %v6123
  %v6163 = vmax.f32 %v6093, %v6125
  %v6164 = vmax.f32 %v6095, %v6127
  %v6165 = vmax.f32 %v6097, %v6129
  %v6166 = vmax.f32 %v6099, %v6131
  %v6167 = vmax.f32 %v6101, %v6133
  %v6168 = vmax.f32 %v6103, %v6135
  %v6169 = vmax.f32 %v6105, %v6137
  %v6170 = vmax.f32 %v6138, %v6154
  %v6171 = vmax.f32 %v6139, %v6155
  %v6172 = vmax.f32 %v6140, %v6156
  %v6173 = vmax.f32 %v6141, %v6157
  %v6174 = vmax.f32 %v6142, %v6158
  %v6175 = vmax.f32 %v6143, %v6159
  %v6176 = vmax.f32 %v6144, %v6160
  %v6177 = vmax.f32 %v6145, %v6161
  %v6178 = vmax.f32 %v6146, %v6162
  %v6179 = vmax.f32 %v6147, %v6163
  %v6180 = vmax.f32 %v6148, %v6164
  %v6181 = vmax.f32 %v6149, %v6165
  %v6182 = vmax.f32 %v6150, %v6166
  %v6183 = vmax.f32 %v6151, %v6167
  %v6184 = vmax.f32 %v6152, %v6168
  %v6185 = vmax.f32 %v6153, %v6169
  %v6186 = vpack.c.bf16 %v6170, %v6170
  %v6187 = vpack.c.bf16 %v6171, %v6171
  %v6188 = vpack.c.bf16 %v6172, %v6172
  %v6189 = vpack.c.bf16 %v6173, %v6173
  %v6190 = vpack.c.bf16 %v6174, %v6174
  %v6191 = vpack.c.bf16 %v6175, %v6175
  %v6192 = vpack.c.bf16 %v6176, %v6176
  %v6193 = vpack.c.bf16 %v6177, %v6177
  %v6194 = vpack.c.bf16 %v6178, %v6178
  %v6195 = vpack.c.bf16 %v6179, %v6179
  %v6196 = vpack.c.bf16 %v6180, %v6180
  %v6197 = vpack.c.bf16 %v6181, %v6181
  %v6198 = vpack.c.bf16 %v6182, %v6182
  %v6199 = vpack.c.bf16 %v6183, %v6183
  %v6200 = vpack.c.bf16 %v6184, %v6184
  %v6201 = vpack.c.bf16 %v6185, %v6185
  %vm6202 = vcmask 60416
  %6203 = vst.msk [vmem:[%s6] sm:$0xf] %vm6202, %v6186
  %6204 = vst.msk [vmem:[%s6 + $0x4] sm:$0xf] %vm6202, %v6187
  %6205 = vst.msk [vmem:[%s6 + $0x8] sm:$0xf] %vm6202, %v6188
  %6206 = vst.msk [vmem:[%s6 + $0xc] sm:$0xf] %vm6202, %v6189
  %6207 = vst.msk [vmem:[%s6 + $0x10] sm:$0xf] %vm6202, %v6190
  %6208 = vst.msk [vmem:[%s6 + $0x14] sm:$0xf] %vm6202, %v6191
  %6209 = vst.msk [vmem:[%s6 + $0x18] sm:$0xf] %vm6202, %v6192
  %6210 = vst.msk [vmem:[%s6 + $0x1c] sm:$0xf] %vm6202, %v6193
  %6211 = vst.msk [vmem:[%s6 + $0x20] sm:$0xf] %vm6202, %v6194
  %6212 = vst.msk [vmem:[%s6 + $0x24] sm:$0xf] %vm6202, %v6195
  %6213 = vst.msk [vmem:[%s6 + $0x28] sm:$0xf] %vm6202, %v6196
  %6214 = vst.msk [vmem:[%s6 + $0x2c] sm:$0xf] %vm6202, %v6197
  %6215 = vst.msk [vmem:[%s6 + $0x30] sm:$0xf] %vm6202, %v6198
  %6216 = vst.msk [vmem:[%s6 + $0x34] sm:$0xf] %vm6202, %v6199
  %6217 = vst.msk [vmem:[%s6 + $0x38] sm:$0xf] %vm6202, %v6200
  %6218 = vst.msk [vmem:[%s6 + $0x3c] sm:$0xf] %vm6202, %v6201
  // Predicated region
  $region22: #{downward_layers_forward.2} parent=0 // pred_check
    _
  $region23: #{downward_layers_forward.2} parent=0 // pred_check_branch
    %6220 = sbr.rel (0) target = $region25
  $region24: #{downward_layers_forward.2} parent=0 // pred_region
    _
  $region25: #{downward_layers_forward.2} parent=0 // pred_fallthru
    _
  // Predicated region
  $region26: #{downward_layers_forward.2} parent=0 // pred_check
    _
  $region27: #{downward_layers_forward.2} parent=0 // pred_check_branch
    %6222 = sbr.rel (0) target = $region29
  $region28: #{downward_layers_forward.2} parent=0 // pred_region
    _
  $region29: #{downward_layers_forward.2} parent=0 // pred_fallthru
    _
  // Predicated region
  $region30: #{downward_layers_forward.2} parent=0 // pred_check
    _
  $region31: #{downward_layers_forward.2} parent=0 // pred_check_branch
    %6224 = sbr.rel (0) target = $region33
  $region32: #{downward_layers_forward.2} parent=0 // pred_region
    _
  $region33: #{downward_layers_forward.2} parent=0 // pred_fallthru
    _
  // Predicated region
  $region34: #{downward_layers_forward.2} parent=0 // pred_check
    _
  $region35: #{downward_layers_forward.2} parent=0 // pred_check_branch
    %6226 = sbr.rel (0) target = $region37
  $region36: #{downward_layers_forward.2} parent=0 // pred_region
    _
  $region37: #{downward_layers_forward.2} parent=0 // pred_fallthru
    _

</llo_original>
